<compile_context>
chip_gen: v5e
topology: v5e:2x2
jax: 0.10.0
libtpu: 0.0.40
codegen_flags: <defaults>
</compile_context>

<pallas_src>
import math

import jax
import jax.numpy as jnp
import numpy as np
from jax.experimental import pallas as pl
from jax.experimental.pallas import tpu as pltpu

C1P = 32            # conv1 out channels padded (10 -> 32)
C2P = 32            # conv2 out channels padded (20 -> 32)
F1P = 64            # fc1 out padded (50 -> 64)
NCLS = 10
NOUT = 128          # logits padded to a full lane tile
TB = 32             # batch tile (multiple of 8); sweep 32/64 per generation
NEG = -1e30         # bias pinning padded logit lanes
K1 = 64             # conv1 patch K: 8x8 stride-4 image window
N1 = 512            # conv1 GEMM N: 4 pool phases x 4 position parities x C1P
K2 = 9 * 4 * C1P    # conv2 patch K: 3x3 window x (parity x C1P) = 1152


# ----------------------------- Pallas kernel ---------------------------------

def smallnet_kernel(p1_ref, w1_ref, b1_ref, w2_ref, b2_ref,
                    wf1_ref, bf1_ref, wf2_ref, bf2_ref, o_ref, y1_ref):
    tb = o_ref.shape[0]

    # ---- conv1 (5x5, 1->10) + 2x2 maxpool + relu ------------------------------
    # p1_ref: (36*tb, 64) bf16, rows = (u0, v0, b).  N is grouped as
    # phase(4) x parity(4) x C1P, so the pool max is three unmasked maxes of
    # 128-aligned quarters and the result is already in the lane-dense y1 layout
    # (lanes = parity*C1P + channel).
    acc1 = jnp.dot(p1_ref[...], w1_ref[...],
                   preferred_element_type=jnp.float32)            # (36*tb, 512)
    pooled1 = jnp.maximum(jnp.maximum(acc1[:, 0:128], acc1[:, 128:256]),
                          jnp.maximum(acc1[:, 256:384], acc1[:, 384:512]))
    y1_ref[...] = jnp.maximum(pooled1 + b1_ref[...], 0.0).reshape(6, 6, tb, 4 * C1P)

    # ---- conv2 (5x5, 10->20) + 2x2 maxpool + relu ------------------------------
    # On-chip im2col: 9 full-width (128-lane), full-sublane slices of the
    # (6, 6, tb, 128) scratch, concatenated at 128-aligned lane offsets.
    m2 = 16 * tb
    cols = []
    for su in range(3):
        for sv in range(3):
            t = y1_ref[su:su + 4, sv:sv + 4, :, :]                # (4, 4, tb, 128)
            cols.append(t.reshape(m2, 4 * C1P).astype(jnp.bfloat16))
    patches2 = jnp.concatenate(cols, axis=-1)                     # (16*tb, 1152)
    acc2 = jnp.dot(patches2, w2_ref[...],
                   preferred_element_type=jnp.float32)            # (16*tb, 128)
    # 4-phase pool max via XLU rolls; lanes [0:32] hold the max of all four
    # 32-lane phase groups regardless of roll direction convention.
    m = jnp.maximum(acc2, pltpu.roll(acc2, shift=64, axis=1))
    m = jnp.maximum(m, pltpu.roll(m, shift=32, axis=1))
    y2 = jnp.maximum(m[:, :C2P] + b2_ref[...], 0.0)               # (16*tb, C2P)

    # ---- fc1 + relu (NCHW flatten permutation folded into wf1) ----------------
    flat = jnp.concatenate([y2[s * tb:(s + 1) * tb, :] for s in range(16)],
                           axis=-1).astype(jnp.bfloat16)          # (tb, 16*C2P)
    h = jnp.maximum(jnp.dot(flat, wf1_ref[...],
                            preferred_element_type=jnp.float32) + bf1_ref[...],
                    0.0)                                          # (tb, F1P)

    # ---- fc2 + log_softmax (padded classes pinned via -1e30 bias) -------------
    logits = jnp.dot(h.astype(jnp.bfloat16), wf2_ref[...],
                     preferred_element_type=jnp.float32) + bf2_ref[...]
    mx = jnp.max(logits, axis=1, keepdims=True)
    s = logits - mx
    lse = jnp.log(jnp.sum(jnp.exp(s), axis=1, keepdims=True))
    o_ref[...] = s - lse


# ------------------------------- Wrapper --------------------------------------

def _conv1_patches(x28, nt):
    """(bp, 28, 28) f32 -> (nt*36*TB, 64) bf16, rows ordered (tile, u0, v0, b)."""
    taps = []
    for du in range(8):
        for dv in range(8):
            taps.append(x28[:, du:du + 21:4, dv:dv + 21:4])       # (bp, 6, 6)
    p = jnp.stack(taps, axis=-1)                                  # (bp, 6, 6, 64)
    p = p.reshape(nt, TB, 6, 6, 64).transpose(0, 2, 3, 1, 4)      # (nt, 6, 6, TB, 64)
    return p.reshape(nt * 36 * TB, K1).astype(jnp.bfloat16)


def _full_spec(arr):
    n = arr.ndim
    return pl.BlockSpec(arr.shape, lambda i: (0,) * n)


@jax.jit
def smallnet_forward(x_nchw, packed):
    """x_nchw: (B, 1, 28, 28) float32 -> (B, 10) log-probs."""
    B = x_nchw.shape[0]
    nt = (B + TB - 1) // TB
    bp = nt * TB
    x28 = jnp.pad(x_nchw[:, 0, :, :], ((0, bp - B), (0, 0), (0, 0)))
    p1 = _conv1_patches(x28, nt)     # contiguous (36*TB, 64) slab per batch tile

    out = pl.pallas_call(
        smallnet_kernel,
        out_shape=jax.ShapeDtypeStruct((bp, NOUT), jnp.float32),
        grid=(nt,),
        in_specs=[
            pl.BlockSpec((36 * TB, K1), lambda i: (i, 0)),        # conv1 patches
            _full_spec(packed["w1"]), _full_spec(packed["b1"]),
            _full_spec(packed["w2"]), _full_spec(packed["b2"]),
            _full_spec(packed["wf1"]), _full_spec(packed["bf1"]),
            _full_spec(packed["wf2"]), _full_spec(packed["bf2"]),
        ],
        out_specs=pl.BlockSpec((TB, NOUT), lambda i: (i, 0)),
        scratch_shapes=[pltpu.VMEM((6, 6, TB, 4 * C1P), jnp.float32)],
        compiler_params=pltpu.CompilerParams(
            dimension_semantics=("parallel",),
            vmem_limit_bytes=32 * 1024 * 1024),
    )(p1, packed["w1"], packed["b1"], packed["w2"], packed["b2"],
      packed["wf1"], packed["bf1"], packed["wf2"], packed["bf2"])

    return out[:B, :NCLS]


# ------------------------- one-time parameter packing -------------------------

def pack_params(params):
    """Repack PyTorch-layout params into lane-dense, pool-phase-stacked GEMM operands."""
    w1 = np.asarray(params["conv1_w"], np.float32)   # (10, 1, 5, 5)
    b1 = np.asarray(params["conv1_b"], np.float32)
    w2 = np.asarray(params["conv2_w"], np.float32)   # (20, 10, 5, 5)
    b2 = np.asarray(params["conv2_b"], np.float32)
    f1w = np.asarray(params["fc1_w"], np.float32)    # (50, 320)
    f1b = np.asarray(params["fc1_b"], np.float32)
    f2w = np.asarray(params["fc2_w"], np.float32)    # (10, 50)
    f2b = np.asarray(params["fc2_b"], np.float32)

    # conv1: K = 8x8 stride-4 image window (k = 8*du + dv);
    #        N lane = pool-phase(a,c)*128 + position-parity(up,vp)*C1P + channel.
    w1g = np.zeros((K1, N1), np.float32)
    for a in range(2):
        for c in range(2):
            for up in range(2):
                for vp in range(2):
                    lane0 = (2 * a + c) * 128 + (2 * up + vp) * C1P
                    for di in range(5):
                        for dj in range(5):
                            du, dv = 2 * up + a + di, 2 * vp + c + dj
                            w1g[8 * du + dv, lane0:lane0 + 10] = w1[:, 0, di, dj]
    b1p = np.zeros((1, 4 * C1P), np.float32)
    for par in range(4):
        b1p[0, par * C1P:par * C1P + 10] = b1

    # conv2: K = 9 blocks of 128 lanes (3x3 window of the lane-dense y1 scratch,
    #        each block = parity(4) x C1P); N lane = pool-phase(a2,c2)*C2P + channel.
    w2g = np.zeros((K2, 4 * C2P), np.float32)
    for a2 in range(2):
        for c2 in range(2):
            ph = 2 * a2 + c2
            for di in range(5):
                for dj in range(5):
                    su, up = divmod(a2 + di, 2)
                    sv, vp = divmod(c2 + dj, 2)
                    k0 = (3 * su + sv) * (4 * C1P) + (2 * up + vp) * C1P
                    w2g[k0:k0 + 10, ph * C2P:ph * C2P + 20] = w2[:, :, di, dj].T
    b2p = np.zeros((1, C2P), np.float32)
    b2p[0, :20] = b2

    # fc1: PyTorch flat index k = c2*16 + (p2*4 + q2); kernel lane index = s*C2P + c2.
    f1r = f1w.reshape(50, 20, 16)
    wf1 = np.zeros((16 * C2P, F1P), np.float32)
    for s in range(16):
        wf1[s * C2P:s * C2P + 20, :50] = f1r[:, :, s].T
    bf1 = np.zeros((1, F1P), np.float32)
    bf1[0, :50] = f1b

    # fc2: classes lane-padded to 128; padded classes pinned to -1e30 via the bias.
    wf2 = np.zeros((F1P, NOUT), np.float32)
    wf2[:50, :10] = f2w.T
    bf2 = np.full((1, NOUT), NEG, np.float32)
    bf2[0, :10] = f2b

    return {
        "w1": jnp.asarray(w1g, jnp.bfloat16), "b1": jnp.asarray(b1p),
        "w2": jnp.asarray(w2g, jnp.bfloat16), "b2": jnp.asarray(b2p),
        "wf1": jnp.asarray(wf1, jnp.bfloat16), "bf1": jnp.asarray(bf1),
        "wf2": jnp.asarray(wf2, jnp.bfloat16), "bf2": jnp.asarray(bf2),
    }


# ------------------------- params / reference / main ---------------------------

def init_params(key):
    ks = jax.random.split(key, 8)

    def u(k, shape, fan_in):
        bound = 1.0 / math.sqrt(fan_in)
        return jax.random.uniform(k, shape, jnp.float32, -bound, bound)

    return {
        "conv1_w": u(ks[0], (10, 1, 5, 5), 25),
        "conv1_b": u(ks[1], (10,), 25),
        "conv2_w": u(ks[2], (20, 10, 5, 5), 250),
        "conv2_b": u(ks[3], (20,), 250),
        "fc1_w":   u(ks[4], (50, 320), 320),
        "fc1_b":   u(ks[5], (50,), 320),
        "fc2_w":   u(ks[6], (10, 50), 50),
        "fc2_b":   u(ks[7], (10,), 50),
    }


@jax.jit
def reference_forward(x, params):
    """Pure-JAX f32 reference matching the PyTorch module."""
    dn = ("NCHW", "OIHW", "NCHW")
    y = jax.lax.conv_general_dilated(x, params["conv1_w"], (1, 1), "VALID",
                                     dimension_numbers=dn)
    y = y + params["conv1_b"][None, :, None, None]
    y = jax.lax.reduce_window(y, -jnp.inf, jax.lax.max, (1, 1, 2, 2), (1, 1, 2, 2), "VALID")
    y = jax.nn.relu(y)
    y = jax.lax.conv_general_dilated(y, params["conv2_w"], (1, 1), "VALID",
                                     dimension_numbers=dn)
    y = y + params["conv2_b"][None, :, None, None]
    y = jax.lax.reduce_window(y, -jnp.inf, jax.lax.max, (1, 1, 2, 2), (1, 1, 2, 2), "VALID")
    y = jax.nn.relu(y)
    y = y.reshape(y.shape[0], -1)
    y = jax.nn.relu(y @ params["fc1_w"].T + params["fc1_b"])
    y = y @ params["fc2_w"].T + params["fc2_b"]
    return jax.nn.log_softmax(y, axis=1)


if __name__ == "__main__":
    key = jax.random.PRNGKey(0)
    k_x, k_p = jax.random.split(key)
    x = jax.random.normal(k_x, (2, 1, 28, 28), jnp.float32)   # batch=2, MNIST-sized
    params = init_params(k_p)
    packed = pack_params(params)                              # one-time repack

    out = smallnet_forward(x, packed)
    out = jax.block_until_ready(out)

    assert out.shape == (2, 10)
    assert bool(jnp.all(jnp.isfinite(out)))
    row_sums = jnp.sum(jnp.exp(out), axis=1)
    assert bool(jnp.all(jnp.abs(row_sums - 1.0) < 1e-3))

    ref = reference_forward(x, params)
    err = float(jnp.max(jnp.abs(out - ref)))
    assert err < 0.2, f"max |pallas - reference| = {err}"     # bf16 MXU operands, f32 acc

    print("KERNEL_OK")
</pallas_src>

<mosaic_0001>
module attributes {stable_mosaic.version = 11 : i64} {
  func.func @smallnet_kernel(%arg0: i32, %arg1: memref<1152x64xbf16, #tpu.memory_space<vmem>>, %arg2: memref<64x512xbf16, #tpu.memory_space<vmem>>, %arg3: memref<1x128xf32, #tpu.memory_space<vmem>>, %arg4: memref<1152x128xbf16, #tpu.memory_space<vmem>>, %arg5: memref<1x32xf32, #tpu.memory_space<vmem>>, %arg6: memref<512x64xbf16, #tpu.memory_space<vmem>>, %arg7: memref<1x64xf32, #tpu.memory_space<vmem>>, %arg8: memref<64x128xbf16, #tpu.memory_space<vmem>>, %arg9: memref<1x128xf32, #tpu.memory_space<vmem>>, %arg10: memref<32x128xf32, #tpu.memory_space<vmem>>, %arg11: memref<6x6x32x128xf32, #tpu.memory_space<vmem>>) attributes {dimension_semantics = [#tpu.dimension_semantics<parallel>], iteration_bounds = array<i64: 1>, scalar_prefetch = 0 : i64, scratch_operands = 1 : i64, tpu.core_type = #tpu.core_type<tc>, window_params = [{transform_indices = @transform_0, window_bounds = array<i64: 1152, 64>}, {pipeline_mode = #tpu.pipeline_mode<synchronous>, transform_indices = @transform_1, window_bounds = array<i64: 64, 512>}, {pipeline_mode = #tpu.pipeline_mode<synchronous>, transform_indices = @transform_2, window_bounds = array<i64: 1, 128>}, {pipeline_mode = #tpu.pipeline_mode<synchronous>, transform_indices = @transform_3, window_bounds = array<i64: 1152, 128>}, {pipeline_mode = #tpu.pipeline_mode<synchronous>, transform_indices = @transform_4, window_bounds = array<i64: 1, 32>}, {pipeline_mode = #tpu.pipeline_mode<synchronous>, transform_indices = @transform_5, window_bounds = array<i64: 512, 64>}, {pipeline_mode = #tpu.pipeline_mode<synchronous>, transform_indices = @transform_6, window_bounds = array<i64: 1, 64>}, {pipeline_mode = #tpu.pipeline_mode<synchronous>, transform_indices = @transform_7, window_bounds = array<i64: 64, 128>}, {pipeline_mode = #tpu.pipeline_mode<synchronous>, transform_indices = @transform_8, window_bounds = array<i64: 1, 128>}, {transform_indices = @transform_9, window_bounds = array<i64: 32, 128>}]} {
    %c0 = arith.constant 0 : index
    %c0_0 = arith.constant 0 : index
    %0 = vector.load %arg1[%c0, %c0_0] : memref<1152x64xbf16, #tpu.memory_space<vmem>>, vector<1152x64xbf16>
    %c0_1 = arith.constant 0 : index
    %c0_2 = arith.constant 0 : index
    %1 = vector.load %arg2[%c0_1, %c0_2] : memref<64x512xbf16, #tpu.memory_space<vmem>>, vector<64x512xbf16>
    %cst = arith.constant dense<0.000000e+00> : vector<1152x512xf32>
    %2 = tpu.matmul %0, %1, %cst {dimension_numbers = #tpu.dot_dimension_numbers<[1], [0], [0], [1], [0, 0, 1, 1], [], []>} : vector<1152x64xbf16>, vector<64x512xbf16>, vector<1152x512xf32> -> vector<1152x512xf32>
    %3 = vector.extract_strided_slice %2 {offsets = [0, 0], sizes = [1152, 128], strides = [1, 1]} : vector<1152x512xf32> to vector<1152x128xf32>
    %4 = vector.extract_strided_slice %2 {offsets = [0, 128], sizes = [1152, 128], strides = [1, 1]} : vector<1152x512xf32> to vector<1152x128xf32>
    %5 = arith.maximumf %3, %4 : vector<1152x128xf32>
    %6 = vector.extract_strided_slice %2 {offsets = [0, 256], sizes = [1152, 128], strides = [1, 1]} : vector<1152x512xf32> to vector<1152x128xf32>
    %7 = vector.extract_strided_slice %2 {offsets = [0, 384], sizes = [1152, 128], strides = [1, 1]} : vector<1152x512xf32> to vector<1152x128xf32>
    %8 = arith.maximumf %6, %7 : vector<1152x128xf32>
    %9 = arith.maximumf %5, %8 : vector<1152x128xf32>
    %c0_3 = arith.constant 0 : index
    %c0_4 = arith.constant 0 : index
    %10 = vector.load %arg3[%c0_3, %c0_4] : memref<1x128xf32, #tpu.memory_space<vmem>>, vector<1x128xf32>
    %11 = vector.broadcast %10 : vector<1x128xf32> to vector<1152x128xf32>
    %12 = arith.addf %9, %11 : vector<1152x128xf32>
    %cst_5 = arith.constant 0.000000e+00 : f32
    %13 = vector.broadcast %cst_5 : f32 to vector<1152x128xf32>
    %14 = arith.maximumf %12, %13 : vector<1152x128xf32>
    %15 = vector.shape_cast %14 : vector<1152x128xf32> to vector<6x6x32x128xf32>
    %c0_6 = arith.constant 0 : index
    %c0_7 = arith.constant 0 : index
    %c0_8 = arith.constant 0 : index
    %c0_9 = arith.constant 0 : index
    %16 = vector.load %arg11[%c0_6, %c0_7, %c0_8, %c0_9] : memref<6x6x32x128xf32, #tpu.memory_space<vmem>>, vector<6x6x32x128xf32>
    tpu.vector_store %arg11[%c0_6, %c0_7, %c0_8, %c0_9], %15 {strides = array<i32>} : memref<6x6x32x128xf32, #tpu.memory_space<vmem>>, vector<6x6x32x128xf32>,
    %c0_10 = arith.constant 0 : index
    %c0_11 = arith.constant 0 : index
    %c0_12 = arith.constant 0 : index
    %c0_13 = arith.constant 0 : index
    %17 = vector.load %arg11[%c0_10, %c0_11, %c0_12, %c0_13] : memref<6x6x32x128xf32, #tpu.memory_space<vmem>>, vector<4x4x32x128xf32>
    %18 = vector.shape_cast %17 : vector<4x4x32x128xf32> to vector<512x128xf32>
    %19 = arith.truncf %18 : vector<512x128xf32> to vector<512x128xbf16>
    %c0_14 = arith.constant 0 : index
    %c1 = arith.constant 1 : index
    %c0_15 = arith.constant 0 : index
    %c0_16 = arith.constant 0 : index
    %20 = vector.load %arg11[%c0_14, %c1, %c0_15, %c0_16] : memref<6x6x32x128xf32, #tpu.memory_space<vmem>>, vector<4x4x32x128xf32>
    %21 = vector.shape_cast %20 : vector<4x4x32x128xf32> to vector<512x128xf32>
    %22 = arith.truncf %21 : vector<512x128xf32> to vector<512x128xbf16>
    %c0_17 = arith.constant 0 : index
    %c2 = arith.constant 2 : index
    %c0_18 = arith.constant 0 : index
    %c0_19 = arith.constant 0 : index
    %23 = vector.load %arg11[%c0_17, %c2, %c0_18, %c0_19] : memref<6x6x32x128xf32, #tpu.memory_space<vmem>>, vector<4x4x32x128xf32>
    %24 = vector.shape_cast %23 : vector<4x4x32x128xf32> to vector<512x128xf32>
    %25 = arith.truncf %24 : vector<512x128xf32> to vector<512x128xbf16>
    %c1_20 = arith.constant 1 : index
    %c0_21 = arith.constant 0 : index
    %c0_22 = arith.constant 0 : index
    %c0_23 = arith.constant 0 : index
    %26 = vector.load %arg11[%c1_20, %c0_21, %c0_22, %c0_23] : memref<6x6x32x128xf32, #tpu.memory_space<vmem>>, vector<4x4x32x128xf32>
    %27 = vector.shape_cast %26 : vector<4x4x32x128xf32> to vector<512x128xf32>
    %28 = arith.truncf %27 : vector<512x128xf32> to vector<512x128xbf16>
    %c1_24 = arith.constant 1 : index
    %c1_25 = arith.constant 1 : index
    %c0_26 = arith.constant 0 : index
    %c0_27 = arith.constant 0 : index
    %29 = vector.load %arg11[%c1_24, %c1_25, %c0_26, %c0_27] : memref<6x6x32x128xf32, #tpu.memory_space<vmem>>, vector<4x4x32x128xf32>
    %30 = vector.shape_cast %29 : vector<4x4x32x128xf32> to vector<512x128xf32>
    %31 = arith.truncf %30 : vector<512x128xf32> to vector<512x128xbf16>
    %c1_28 = arith.constant 1 : index
    %c2_29 = arith.constant 2 : index
    %c0_30 = arith.constant 0 : index
    %c0_31 = arith.constant 0 : index
    %32 = vector.load %arg11[%c1_28, %c2_29, %c0_30, %c0_31] : memref<6x6x32x128xf32, #tpu.memory_space<vmem>>, vector<4x4x32x128xf32>
    %33 = vector.shape_cast %32 : vector<4x4x32x128xf32> to vector<512x128xf32>
    %34 = arith.truncf %33 : vector<512x128xf32> to vector<512x128xbf16>
    %c2_32 = arith.constant 2 : index
    %c0_33 = arith.constant 0 : index
    %c0_34 = arith.constant 0 : index
    %c0_35 = arith.constant 0 : index
    %35 = vector.load %arg11[%c2_32, %c0_33, %c0_34, %c0_35] : memref<6x6x32x128xf32, #tpu.memory_space<vmem>>, vector<4x4x32x128xf32>
    %36 = vector.shape_cast %35 : vector<4x4x32x128xf32> to vector<512x128xf32>
    %37 = arith.truncf %36 : vector<512x128xf32> to vector<512x128xbf16>
    %c2_36 = arith.constant 2 : index
    %c1_37 = arith.constant 1 : index
    %c0_38 = arith.constant 0 : index
    %c0_39 = arith.constant 0 : index
    %38 = vector.load %arg11[%c2_36, %c1_37, %c0_38, %c0_39] : memref<6x6x32x128xf32, #tpu.memory_space<vmem>>, vector<4x4x32x128xf32>
    %39 = vector.shape_cast %38 : vector<4x4x32x128xf32> to vector<512x128xf32>
    %40 = arith.truncf %39 : vector<512x128xf32> to vector<512x128xbf16>
    %c2_40 = arith.constant 2 : index
    %c2_41 = arith.constant 2 : index
    %c0_42 = arith.constant 0 : index
    %c0_43 = arith.constant 0 : index
    %41 = vector.load %arg11[%c2_40, %c2_41, %c0_42, %c0_43] : memref<6x6x32x128xf32, #tpu.memory_space<vmem>>, vector<4x4x32x128xf32>
    %42 = vector.shape_cast %41 : vector<4x4x32x128xf32> to vector<512x128xf32>
    %43 = arith.truncf %42 : vector<512x128xf32> to vector<512x128xbf16>
    %44 = tpu.concatenate %19, %22, %25, %28, %31, %34, %37, %40, %43 in 1 : vector<512x128xbf16>, vector<512x128xbf16>, vector<512x128xbf16>, vector<512x128xbf16>, vector<512x128xbf16>, vector<512x128xbf16>, vector<512x128xbf16>, vector<512x128xbf16>, vector<512x128xbf16> -> vector<512x1152xbf16>
    %c0_44 = arith.constant 0 : index
    %c0_45 = arith.constant 0 : index
    %45 = vector.load %arg4[%c0_44, %c0_45] : memref<1152x128xbf16, #tpu.memory_space<vmem>>, vector<1152x128xbf16>
    %cst_46 = arith.constant dense<0.000000e+00> : vector<512x128xf32>
    %46 = tpu.matmul %44, %45, %cst_46 {dimension_numbers = #tpu.dot_dimension_numbers<[1], [0], [0], [1], [0, 0, 1, 1], [], []>} : vector<512x1152xbf16>, vector<1152x128xbf16>, vector<512x128xf32> -> vector<512x128xf32>
    %c64_i32 = arith.constant 64 : i32
    %47 = tpu.dynamic_rotate %46 by %c64_i32 dim 1 : vector<512x128xf32>, i32 -> vector<512x128xf32>
    %48 = arith.maximumf %46, %47 : vector<512x128xf32>
    %c32_i32 = arith.constant 32 : i32
    %49 = tpu.dynamic_rotate %48 by %c32_i32 dim 1 : vector<512x128xf32>, i32 -> vector<512x128xf32>
    %50 = arith.maximumf %48, %49 : vector<512x128xf32>
    %51 = vector.extract_strided_slice %50 {offsets = [0, 0], sizes = [512, 32], strides = [1, 1]} : vector<512x128xf32> to vector<512x32xf32>
    %c0_47 = arith.constant 0 : index
    %c0_48 = arith.constant 0 : index
    %52 = vector.load %arg5[%c0_47, %c0_48] : memref<1x32xf32, #tpu.memory_space<vmem>>, vector<1x32xf32>
    %53 = vector.broadcast %52 : vector<1x32xf32> to vector<512x32xf32>
    %54 = arith.addf %51, %53 : vector<512x32xf32>
    %cst_49 = arith.constant 0.000000e+00 : f32
    %55 = vector.broadcast %cst_49 : f32 to vector<512x32xf32>
    %56 = arith.maximumf %54, %55 : vector<512x32xf32>
    %57 = vector.extract_strided_slice %56 {offsets = [0, 0], sizes = [32, 32], strides = [1, 1]} : vector<512x32xf32> to vector<32x32xf32>
    %58 = vector.extract_strided_slice %56 {offsets = [32, 0], sizes = [32, 32], strides = [1, 1]} : vector<512x32xf32> to vector<32x32xf32>
    %59 = vector.extract_strided_slice %56 {offsets = [64, 0], sizes = [32, 32], strides = [1, 1]} : vector<512x32xf32> to vector<32x32xf32>
    %60 = vector.extract_strided_slice %56 {offsets = [96, 0], sizes = [32, 32], strides = [1, 1]} : vector<512x32xf32> to vector<32x32xf32>
    %61 = vector.extract_strided_slice %56 {offsets = [128, 0], sizes = [32, 32], strides = [1, 1]} : vector<512x32xf32> to vector<32x32xf32>
    %62 = vector.extract_strided_slice %56 {offsets = [160, 0], sizes = [32, 32], strides = [1, 1]} : vector<512x32xf32> to vector<32x32xf32>
    %63 = vector.extract_strided_slice %56 {offsets = [192, 0], sizes = [32, 32], strides = [1, 1]} : vector<512x32xf32> to vector<32x32xf32>
    %64 = vector.extract_strided_slice %56 {offsets = [224, 0], sizes = [32, 32], strides = [1, 1]} : vector<512x32xf32> to vector<32x32xf32>
    %65 = vector.extract_strided_slice %56 {offsets = [256, 0], sizes = [32, 32], strides = [1, 1]} : vector<512x32xf32> to vector<32x32xf32>
    %66 = vector.extract_strided_slice %56 {offsets = [288, 0], sizes = [32, 32], strides = [1, 1]} : vector<512x32xf32> to vector<32x32xf32>
    %67 = vector.extract_strided_slice %56 {offsets = [320, 0], sizes = [32, 32], strides = [1, 1]} : vector<512x32xf32> to vector<32x32xf32>
    %68 = vector.extract_strided_slice %56 {offsets = [352, 0], sizes = [32, 32], strides = [1, 1]} : vector<512x32xf32> to vector<32x32xf32>
    %69 = vector.extract_strided_slice %56 {offsets = [384, 0], sizes = [32, 32], strides = [1, 1]} : vector<512x32xf32> to vector<32x32xf32>
    %70 = vector.extract_strided_slice %56 {offsets = [416, 0], sizes = [32, 32], strides = [1, 1]} : vector<512x32xf32> to vector<32x32xf32>
    %71 = vector.extract_strided_slice %56 {offsets = [448, 0], sizes = [32, 32], strides = [1, 1]} : vector<512x32xf32> to vector<32x32xf32>
    %72 = vector.extract_strided_slice %56 {offsets = [480, 0], sizes = [32, 32], strides = [1, 1]} : vector<512x32xf32> to vector<32x32xf32>
    %73 = tpu.concatenate %57, %58, %59, %60, %61, %62, %63, %64, %65, %66, %67, %68, %69, %70, %71, %72 in 1 : vector<32x32xf32>, vector<32x32xf32>, vector<32x32xf32>, vector<32x32xf32>, vector<32x32xf32>, vector<32x32xf32>, vector<32x32xf32>, vector<32x32xf32>, vector<32x32xf32>, vector<32x32xf32>, vector<32x32xf32>, vector<32x32xf32>, vector<32x32xf32>, vector<32x32xf32>, vector<32x32xf32>, vector<32x32xf32> -> vector<32x512xf32>
    %74 = arith.truncf %73 : vector<32x512xf32> to vector<32x512xbf16>
    %c0_50 = arith.constant 0 : index
    %c0_51 = arith.constant 0 : index
    %75 = vector.load %arg6[%c0_50, %c0_51] : memref<512x64xbf16, #tpu.memory_space<vmem>>, vector<512x64xbf16>
    %cst_52 = arith.constant dense<0.000000e+00> : vector<32x64xf32>
    %76 = tpu.matmul %74, %75, %cst_52 {dimension_numbers = #tpu.dot_dimension_numbers<[1], [0], [0], [1], [0, 0, 1, 1], [], []>} : vector<32x512xbf16>, vector<512x64xbf16>, vector<32x64xf32> -> vector<32x64xf32>
    %c0_53 = arith.constant 0 : index
    %c0_54 = arith.constant 0 : index
    %77 = vector.load %arg7[%c0_53, %c0_54] : memref<1x64xf32, #tpu.memory_space<vmem>>, vector<1x64xf32>
    %78 = vector.broadcast %77 : vector<1x64xf32> to vector<32x64xf32>
    %79 = arith.addf %76, %78 : vector<32x64xf32>
    %cst_55 = arith.constant 0.000000e+00 : f32
    %80 = vector.broadcast %cst_55 : f32 to vector<32x64xf32>
    %81 = arith.maximumf %79, %80 : vector<32x64xf32>
    %82 = arith.truncf %81 : vector<32x64xf32> to vector<32x64xbf16>
    %c0_56 = arith.constant 0 : index
    %c0_57 = arith.constant 0 : index
    %83 = vector.load %arg8[%c0_56, %c0_57] : memref<64x128xbf16, #tpu.memory_space<vmem>>, vector<64x128xbf16>
    %cst_58 = arith.constant dense<0.000000e+00> : vector<32x128xf32>
    %84 = tpu.matmul %82, %83, %cst_58 {dimension_numbers = #tpu.dot_dimension_numbers<[1], [0], [0], [1], [0, 0, 1, 1], [], []>} : vector<32x64xbf16>, vector<64x128xbf16>, vector<32x128xf32> -> vector<32x128xf32>
    %c0_59 = arith.constant 0 : index
    %c0_60 = arith.constant 0 : index
    %85 = vector.load %arg9[%c0_59, %c0_60] : memref<1x128xf32, #tpu.memory_space<vmem>>, vector<1x128xf32>
    %86 = vector.broadcast %85 : vector<1x128xf32> to vector<32x128xf32>
    %87 = arith.addf %84, %86 : vector<32x128xf32>
    %cst_61 = arith.constant dense<0xFF800000> : vector<32xf32>
    %88 = vector.multi_reduction <maximumf>, %87, %cst_61 [1] : vector<32x128xf32> to vector<32xf32>
    %89 = vector.shape_cast %88 : vector<32xf32> to vector<32x1xf32>
    %90 = vector.broadcast %89 : vector<32x1xf32> to vector<32x128xf32>
    %91 = arith.subf %87, %90 : vector<32x128xf32>
    %92 = math.exp %91 : vector<32x128xf32>
    %cst_62 = arith.constant dense<0.000000e+00> : vector<32xf32>
    %93 = vector.multi_reduction <add>, %92, %cst_62 [1] : vector<32x128xf32> to vector<32xf32>
    %94 = vector.shape_cast %93 : vector<32xf32> to vector<32x1xf32>
    %95 = math.log %94 : vector<32x1xf32>
    %96 = vector.broadcast %95 : vector<32x1xf32> to vector<32x128xf32>
    %97 = arith.subf %91, %96 : vector<32x128xf32>
    %c0_63 = arith.constant 0 : index
    %c0_64 = arith.constant 0 : index
    %98 = vector.load %arg10[%c0_63, %c0_64] : memref<32x128xf32, #tpu.memory_space<vmem>>, vector<32x128xf32>
    tpu.vector_store %arg10[%c0_63, %c0_64], %97 {strides = array<i32>} : memref<32x128xf32, #tpu.memory_space<vmem>>, vector<32x128xf32>,
    return
  }
  func.func @transform_0(%arg0: i32) -> (i32, i32) {
    %c0_i32 = arith.constant 0 : i32
    %c0_i32_0 = arith.constant 0 : i32
    return %arg0, %c0_i32 : i32, i32
  }
  func.func @transform_1(%arg0: i32) -> (i32, i32) {
    %c0_i32 = arith.constant 0 : i32
    %c0_i32_0 = arith.constant 0 : i32
    %c0_i32_1 = arith.constant 0 : i32
    return %c0_i32, %c0_i32_0 : i32, i32
  }
  func.func @transform_2(%arg0: i32) -> (i32, i32) {
    %c0_i32 = arith.constant 0 : i32
    %c0_i32_0 = arith.constant 0 : i32
    %c0_i32_1 = arith.constant 0 : i32
    return %c0_i32, %c0_i32_0 : i32, i32
  }
  func.func @transform_3(%arg0: i32) -> (i32, i32) {
    %c0_i32 = arith.constant 0 : i32
    %c0_i32_0 = arith.constant 0 : i32
    %c0_i32_1 = arith.constant 0 : i32
    return %c0_i32, %c0_i32_0 : i32, i32
  }
  func.func @transform_4(%arg0: i32) -> (i32, i32) {
    %c0_i32 = arith.constant 0 : i32
    %c0_i32_0 = arith.constant 0 : i32
    %c0_i32_1 = arith.constant 0 : i32
    return %c0_i32, %c0_i32_0 : i32, i32
  }
  func.func @transform_5(%arg0: i32) -> (i32, i32) {
    %c0_i32 = arith.constant 0 : i32
    %c0_i32_0 = arith.constant 0 : i32
    %c0_i32_1 = arith.constant 0 : i32
    return %c0_i32, %c0_i32_0 : i32, i32
  }
  func.func @transform_6(%arg0: i32) -> (i32, i32) {
    %c0_i32 = arith.constant 0 : i32
    %c0_i32_0 = arith.constant 0 : i32
    %c0_i32_1 = arith.constant 0 : i32
    return %c0_i32, %c0_i32_0 : i32, i32
  }
  func.func @transform_7(%arg0: i32) -> (i32, i32) {
    %c0_i32 = arith.constant 0 : i32
    %c0_i32_0 = arith.constant 0 : i32
    %c0_i32_1 = arith.constant 0 : i32
    return %c0_i32, %c0_i32_0 : i32, i32
  }
  func.func @transform_8(%arg0: i32) -> (i32, i32) {
    %c0_i32 = arith.constant 0 : i32
    %c0_i32_0 = arith.constant 0 : i32
    %c0_i32_1 = arith.constant 0 : i32
    return %c0_i32, %c0_i32_0 : i32, i32
  }
  func.func @transform_9(%arg0: i32) -> (i32, i32) {
    %c0_i32 = arith.constant 0 : i32
    %c0_i32_0 = arith.constant 0 : i32
    return %arg0, %c0_i32 : i32, i32
  }
}

</mosaic_0001>

<llo_original>
// kernel: smallnet_forward.1
$region0: #{smallnet_forward.1}
  #allocation0 [shape = 'u32[]', space=smem, size = 0x4, offset = 0x4, fixed_abs, tag = 'smem constant byte address 0x4 - core index']
  #allocation1 [shape = 'u32[72,128]{1,0:T(1,128)}', space=vmem, size = 0x9000, scoped, tag = 'internal scratch']
  #allocation2 [shape = 'f32[6,6,32,128]{3,2,1,0:T(8,128)}', space=vmem, size = 0x90000, scoped, tag = 'scratch operand']
  %s0 = inlined_call_operand.vmem [shape: bf16[1152,64], index: 0, kind: input, shape index: {}]
  %s1 = inlined_call_operand.vmem [shape: bf16[64,512], index: 1, kind: input, shape index: {}]
  %s2 = inlined_call_operand.vmem [shape: f32[1,128], index: 2, kind: input, shape index: {}]
  %s3 = inlined_call_operand.vmem [shape: bf16[1152,128], index: 3, kind: input, shape index: {}]
  %s4 = inlined_call_operand.vmem [shape: f32[1,32], index: 4, kind: input, shape index: {}]
  %s5 = inlined_call_operand.vmem [shape: bf16[512,64], index: 5, kind: input, shape index: {}]
  %s6 = inlined_call_operand.vmem [shape: f32[1,64], index: 6, kind: input, shape index: {}]
  %s7 = inlined_call_operand.vmem [shape: bf16[64,128], index: 7, kind: input, shape index: {}]
  %s8 = inlined_call_operand.vmem [shape: f32[1,128], index: 8, kind: input, shape index: {}]
  %s9 = inlined_call_operand.vmem [shape: f32[32,128], index: 9, kind: output, shape index: {}]
  %s10 = sld [smem:[#allocation0]]
  $region46: #{smallnet_forward.1} parent=0
    _
  %s12 = ssub.s32 1, %s10
  %s13 = scalar_select 0, %s12, %s10
  // Predicated region
  $region2: #{smallnet_forward.1} parent=0 // pred_check
    _
  $region3: #{smallnet_forward.1} parent=0 // pred_check_branch
    %15 = sbr.rel (0) target = $region5
  $region4: #{smallnet_forward.1} parent=0 // pred_region
    _
  $region5: #{smallnet_forward.1} parent=0 // pred_fallthru
    _
  // Predicated region
  $region6: #{smallnet_forward.1} parent=0 // pred_check
    _
  $region7: #{smallnet_forward.1} parent=0 // pred_check_branch
    %17 = sbr.rel (0) target = $region9
  $region8: #{smallnet_forward.1} parent=0 // pred_region
    _
  $region9: #{smallnet_forward.1} parent=0 // pred_fallthru
    _
  // Predicated region
  $region10: #{smallnet_forward.1} parent=0 // pred_check
    _
  $region11: #{smallnet_forward.1} parent=0 // pred_check_branch
    %19 = sbr.rel (0) target = $region13
  $region12: #{smallnet_forward.1} parent=0 // pred_region
    _
  $region13: #{smallnet_forward.1} parent=0 // pred_fallthru
    _
  // Predicated region
  $region14: #{smallnet_forward.1} parent=0 // pred_check
    _
  $region15: #{smallnet_forward.1} parent=0 // pred_check_branch
    %21 = sbr.rel (0) target = $region17
  $region16: #{smallnet_forward.1} parent=0 // pred_region
    _
  $region17: #{smallnet_forward.1} parent=0 // pred_fallthru
    _
  // Predicated region
  $region18: #{smallnet_forward.1} parent=0 // pred_check
    _
  $region19: #{smallnet_forward.1} parent=0 // pred_check_branch
    %23 = sbr.rel (0) target = $region21
  $region20: #{smallnet_forward.1} parent=0 // pred_region
    _
  $region21: #{smallnet_forward.1} parent=0 // pred_fallthru
    _
  // Predicated region
  $region22: #{smallnet_forward.1} parent=0 // pred_check
    _
  $region23: #{smallnet_forward.1} parent=0 // pred_check_branch
    %25 = sbr.rel (0) target = $region25
  $region24: #{smallnet_forward.1} parent=0 // pred_region
    _
  $region25: #{smallnet_forward.1} parent=0 // pred_fallthru
    _
  // Predicated region
  $region26: #{smallnet_forward.1} parent=0 // pred_check
    _
  $region27: #{smallnet_forward.1} parent=0 // pred_check_branch
    %27 = sbr.rel (0) target = $region29
  $region28: #{smallnet_forward.1} parent=0 // pred_region
    _
  $region29: #{smallnet_forward.1} parent=0 // pred_fallthru
    _
  // Predicated region
  $region30: #{smallnet_forward.1} parent=0 // pred_check
    _
  $region31: #{smallnet_forward.1} parent=0 // pred_check_branch
    %29 = sbr.rel (0) target = $region33
  $region32: #{smallnet_forward.1} parent=0 // pred_region
    _
  $region33: #{smallnet_forward.1} parent=0 // pred_fallthru
    _
  // Predicated region
  $region34: #{smallnet_forward.1} parent=0 // pred_check
    _
  $region35: #{smallnet_forward.1} parent=0 // pred_check_branch
    %31 = sbr.rel (0) target = $region37
  $region36: #{smallnet_forward.1} parent=0 // pred_region
    _
  $region37: #{smallnet_forward.1} parent=0 // pred_fallthru
    _
  %v33 = vld [vmem:[%s0] sm:$0xf]
  %v34 = vld [vmem:[%s0 + $0x4] sm:$0xf]
  %v35 = vld [vmem:[%s0 + $0x8] sm:$0xf]
  %v36 = vld [vmem:[%s0 + $0xc] sm:$0xf]
  %v37 = vld [vmem:[%s0 + $0x10] sm:$0xf]
  %v38 = vld [vmem:[%s0 + $0x14] sm:$0xf]
  %v39 = vld [vmem:[%s0 + $0x18] sm:$0xf]
  %v40 = vld [vmem:[%s0 + $0x1c] sm:$0xf]
  %v41 = vld [vmem:[%s0 + $0x20] sm:$0xf]
  %v42 = vld [vmem:[%s0 + $0x24] sm:$0xf]
  %v43 = vld [vmem:[%s0 + $0x28] sm:$0xf]
  %v44 = vld [vmem:[%s0 + $0x2c] sm:$0xf]
  %v45 = vld [vmem:[%s0 + $0x30] sm:$0xf]
  %v46 = vld [vmem:[%s0 + $0x34] sm:$0xf]
  %v47 = vld [vmem:[%s0 + $0x38] sm:$0xf]
  %v48 = vld [vmem:[%s0 + $0x3c] sm:$0xf]
  %v49 = vld [vmem:[%s0 + $0x40] sm:$0xf]
  %v50 = vld [vmem:[%s0 + $0x44] sm:$0xf]
  %v51 = vld [vmem:[%s0 + $0x48] sm:$0xf]
  %v52 = vld [vmem:[%s0 + $0x4c] sm:$0xf]
  %v53 = vld [vmem:[%s0 + $0x50] sm:$0xf]
  %v54 = vld [vmem:[%s0 + $0x54] sm:$0xf]
  %v55 = vld [vmem:[%s0 + $0x58] sm:$0xf]
  %v56 = vld [vmem:[%s0 + $0x5c] sm:$0xf]
  %v57 = vld [vmem:[%s0 + $0x60] sm:$0xf]
  %v58 = vld [vmem:[%s0 + $0x64] sm:$0xf]
  %v59 = vld [vmem:[%s0 + $0x68] sm:$0xf]
  %v60 = vld [vmem:[%s0 + $0x6c] sm:$0xf]
  %v61 = vld [vmem:[%s0 + $0x70] sm:$0xf]
  %v62 = vld [vmem:[%s0 + $0x74] sm:$0xf]
  %v63 = vld [vmem:[%s0 + $0x78] sm:$0xf]
  %v64 = vld [vmem:[%s0 + $0x7c] sm:$0xf]
  %v65 = vld [vmem:[%s0 + $0x80] sm:$0xf]
  %v66 = vld [vmem:[%s0 + $0x84] sm:$0xf]
  %v67 = vld [vmem:[%s0 + $0x88] sm:$0xf]
  %v68 = vld [vmem:[%s0 + $0x8c] sm:$0xf]
  %v69 = vld [vmem:[%s0 + $0x90] sm:$0xf]
  %v70 = vld [vmem:[%s0 + $0x94] sm:$0xf]
  %v71 = vld [vmem:[%s0 + $0x98] sm:$0xf]
  %v72 = vld [vmem:[%s0 + $0x9c] sm:$0xf]
  %v73 = vld [vmem:[%s0 + $0xa0] sm:$0xf]
  %v74 = vld [vmem:[%s0 + $0xa4] sm:$0xf]
  %v75 = vld [vmem:[%s0 + $0xa8] sm:$0xf]
  %v76 = vld [vmem:[%s0 + $0xac] sm:$0xf]
  %v77 = vld [vmem:[%s0 + $0xb0] sm:$0xf]
  %v78 = vld [vmem:[%s0 + $0xb4] sm:$0xf]
  %v79 = vld [vmem:[%s0 + $0xb8] sm:$0xf]
  %v80 = vld [vmem:[%s0 + $0xbc] sm:$0xf]
  %v81 = vld [vmem:[%s0 + $0xc0] sm:$0xf]
  %v82 = vld [vmem:[%s0 + $0xc4] sm:$0xf]
  %v83 = vld [vmem:[%s0 + $0xc8] sm:$0xf]
  %v84 = vld [vmem:[%s0 + $0xcc] sm:$0xf]
  %v85 = vld [vmem:[%s0 + $0xd0] sm:$0xf]
  %v86 = vld [vmem:[%s0 + $0xd4] sm:$0xf]
  %v87 = vld [vmem:[%s0 + $0xd8] sm:$0xf]
  %v88 = vld [vmem:[%s0 + $0xdc] sm:$0xf]
  %v89 = vld [vmem:[%s0 + $0xe0] sm:$0xf]
  %v90 = vld [vmem:[%s0 + $0xe4] sm:$0xf]
  %v91 = vld [vmem:[%s0 + $0xe8] sm:$0xf]
  %v92 = vld [vmem:[%s0 + $0xec] sm:$0xf]
  %v93 = vld [vmem:[%s0 + $0xf0] sm:$0xf]
  %v94 = vld [vmem:[%s0 + $0xf4] sm:$0xf]
  %v95 = vld [vmem:[%s0 + $0xf8] sm:$0xf]
  %v96 = vld [vmem:[%s0 + $0xfc] sm:$0xf]
  %v97 = vld [vmem:[%s0 + $0x100] sm:$0xf]
  %v98 = vld [vmem:[%s0 + $0x104] sm:$0xf]
  %v99 = vld [vmem:[%s0 + $0x108] sm:$0xf]
  %v100 = vld [vmem:[%s0 + $0x10c] sm:$0xf]
  %v101 = vld [vmem:[%s0 + $0x110] sm:$0xf]
  %v102 = vld [vmem:[%s0 + $0x114] sm:$0xf]
  %v103 = vld [vmem:[%s0 + $0x118] sm:$0xf]
  %v104 = vld [vmem:[%s0 + $0x11c] sm:$0xf]
  %v105 = vld [vmem:[%s0 + $0x120] sm:$0xf]
  %v106 = vld [vmem:[%s0 + $0x124] sm:$0xf]
  %v107 = vld [vmem:[%s0 + $0x128] sm:$0xf]
  %v108 = vld [vmem:[%s0 + $0x12c] sm:$0xf]
  %v109 = vld [vmem:[%s0 + $0x130] sm:$0xf]
  %v110 = vld [vmem:[%s0 + $0x134] sm:$0xf]
  %v111 = vld [vmem:[%s0 + $0x138] sm:$0xf]
  %v112 = vld [vmem:[%s0 + $0x13c] sm:$0xf]
  %v113 = vld [vmem:[%s0 + $0x140] sm:$0xf]
  %v114 = vld [vmem:[%s0 + $0x144] sm:$0xf]
  %v115 = vld [vmem:[%s0 + $0x148] sm:$0xf]
  %v116 = vld [vmem:[%s0 + $0x14c] sm:$0xf]
  %v117 = vld [vmem:[%s0 + $0x150] sm:$0xf]
  %v118 = vld [vmem:[%s0 + $0x154] sm:$0xf]
  %v119 = vld [vmem:[%s0 + $0x158] sm:$0xf]
  %v120 = vld [vmem:[%s0 + $0x15c] sm:$0xf]
  %v121 = vld [vmem:[%s0 + $0x160] sm:$0xf]
  %v122 = vld [vmem:[%s0 + $0x164] sm:$0xf]
  %v123 = vld [vmem:[%s0 + $0x168] sm:$0xf]
  %v124 = vld [vmem:[%s0 + $0x16c] sm:$0xf]
  %v125 = vld [vmem:[%s0 + $0x170] sm:$0xf]
  %v126 = vld [vmem:[%s0 + $0x174] sm:$0xf]
  %v127 = vld [vmem:[%s0 + $0x178] sm:$0xf]
  %v128 = vld [vmem:[%s0 + $0x17c] sm:$0xf]
  %v129 = vld [vmem:[%s0 + $0x180] sm:$0xf]
  %v130 = vld [vmem:[%s0 + $0x184] sm:$0xf]
  %v131 = vld [vmem:[%s0 + $0x188] sm:$0xf]
  %v132 = vld [vmem:[%s0 + $0x18c] sm:$0xf]
  %v133 = vld [vmem:[%s0 + $0x190] sm:$0xf]
  %v134 = vld [vmem:[%s0 + $0x194] sm:$0xf]
  %v135 = vld [vmem:[%s0 + $0x198] sm:$0xf]
  %v136 = vld [vmem:[%s0 + $0x19c] sm:$0xf]
  %v137 = vld [vmem:[%s0 + $0x1a0] sm:$0xf]
  %v138 = vld [vmem:[%s0 + $0x1a4] sm:$0xf]
  %v139 = vld [vmem:[%s0 + $0x1a8] sm:$0xf]
  %v140 = vld [vmem:[%s0 + $0x1ac] sm:$0xf]
  %v141 = vld [vmem:[%s0 + $0x1b0] sm:$0xf]
  %v142 = vld [vmem:[%s0 + $0x1b4] sm:$0xf]
  %v143 = vld [vmem:[%s0 + $0x1b8] sm:$0xf]
  %v144 = vld [vmem:[%s0 + $0x1bc] sm:$0xf]
  %v145 = vld [vmem:[%s0 + $0x1c0] sm:$0xf]
  %v146 = vld [vmem:[%s0 + $0x1c4] sm:$0xf]
  %v147 = vld [vmem:[%s0 + $0x1c8] sm:$0xf]
  %v148 = vld [vmem:[%s0 + $0x1cc] sm:$0xf]
  %v149 = vld [vmem:[%s0 + $0x1d0] sm:$0xf]
  %v150 = vld [vmem:[%s0 + $0x1d4] sm:$0xf]
  %v151 = vld [vmem:[%s0 + $0x1d8] sm:$0xf]
  %v152 = vld [vmem:[%s0 + $0x1dc] sm:$0xf]
  %v153 = vld [vmem:[%s0 + $0x1e0] sm:$0xf]
  %v154 = vld [vmem:[%s0 + $0x1e4] sm:$0xf]
  %v155 = vld [vmem:[%s0 + $0x1e8] sm:$0xf]
  %v156 = vld [vmem:[%s0 + $0x1ec] sm:$0xf]
  %v157 = vld [vmem:[%s0 + $0x1f0] sm:$0xf]
  %v158 = vld [vmem:[%s0 + $0x1f4] sm:$0xf]
  %v159 = vld [vmem:[%s0 + $0x1f8] sm:$0xf]
  %v160 = vld [vmem:[%s0 + $0x1fc] sm:$0xf]
  %v161 = vld [vmem:[%s0 + $0x200] sm:$0xf]
  %v162 = vld [vmem:[%s0 + $0x204] sm:$0xf]
  %v163 = vld [vmem:[%s0 + $0x208] sm:$0xf]
  %v164 = vld [vmem:[%s0 + $0x20c] sm:$0xf]
  %v165 = vld [vmem:[%s0 + $0x210] sm:$0xf]
  %v166 = vld [vmem:[%s0 + $0x214] sm:$0xf]
  %v167 = vld [vmem:[%s0 + $0x218] sm:$0xf]
  %v168 = vld [vmem:[%s0 + $0x21c] sm:$0xf]
  %v169 = vld [vmem:[%s0 + $0x220] sm:$0xf]
  %v170 = vld [vmem:[%s0 + $0x224] sm:$0xf]
  %v171 = vld [vmem:[%s0 + $0x228] sm:$0xf]
  %v172 = vld [vmem:[%s0 + $0x22c] sm:$0xf]
  %v173 = vld [vmem:[%s0 + $0x230] sm:$0xf]
  %v174 = vld [vmem:[%s0 + $0x234] sm:$0xf]
  %v175 = vld [vmem:[%s0 + $0x238] sm:$0xf]
  %v176 = vld [vmem:[%s0 + $0x23c] sm:$0xf]
  %v177 = vld [vmem:[%s1] sm:$0xff]
  %v178 = vld [vmem:[%s1 + $0x8] sm:$0xff]
  %v179 = vld [vmem:[%s1 + $0x10] sm:$0xff]
  %v180 = vld [vmem:[%s1 + $0x18] sm:$0xff]
  %v181 = vld [vmem:[%s1 + $0x20] sm:$0xff]
  %v182 = vld [vmem:[%s1 + $0x28] sm:$0xff]
  %v183 = vld [vmem:[%s1 + $0x30] sm:$0xff]
  %v184 = vld [vmem:[%s1 + $0x38] sm:$0xff]
  %v185 = vld [vmem:[%s1 + $0x40] sm:$0xff]
  %v186 = vld [vmem:[%s1 + $0x48] sm:$0xff]
  %v187 = vld [vmem:[%s1 + $0x50] sm:$0xff]
  %v188 = vld [vmem:[%s1 + $0x58] sm:$0xff]
  %v189 = vld [vmem:[%s1 + $0x60] sm:$0xff]
  %v190 = vld [vmem:[%s1 + $0x68] sm:$0xff]
  %v191 = vld [vmem:[%s1 + $0x70] sm:$0xff]
  %v192 = vld [vmem:[%s1 + $0x78] sm:$0xff]
  %v337 = vunpack.c.l.b16 %v33
  %v338 = vunpack.c.l.b16 %v34
  %v339 = vunpack.c.l.b16 %v35
  %v340 = vunpack.c.l.b16 %v36
  %v341 = vunpack.c.l.b16 %v37
  %v342 = vunpack.c.l.b16 %v38
  %v343 = vunpack.c.l.b16 %v39
  %v344 = vunpack.c.l.b16 %v40
  %v345 = vunpack.c.l.b16 %v41
  %v346 = vunpack.c.l.b16 %v42
  %v347 = vunpack.c.l.b16 %v43
  %v348 = vunpack.c.l.b16 %v44
  %v349 = vunpack.c.l.b16 %v45
  %v350 = vunpack.c.l.b16 %v46
  %v351 = vunpack.c.l.b16 %v47
  %v352 = vunpack.c.l.b16 %v48
  %v353 = vunpack.c.l.b16 %v49
  %v354 = vunpack.c.l.b16 %v50
  %v355 = vunpack.c.l.b16 %v51
  %v356 = vunpack.c.l.b16 %v52
  %v357 = vunpack.c.l.b16 %v53
  %v358 = vunpack.c.l.b16 %v54
  %v359 = vunpack.c.l.b16 %v55
  %v360 = vunpack.c.l.b16 %v56
  %v361 = vunpack.c.l.b16 %v57
  %v362 = vunpack.c.l.b16 %v58
  %v363 = vunpack.c.l.b16 %v59
  %v364 = vunpack.c.l.b16 %v60
  %v365 = vunpack.c.l.b16 %v61
  %v366 = vunpack.c.l.b16 %v62
  %v367 = vunpack.c.l.b16 %v63
  %v368 = vunpack.c.l.b16 %v64
  %v369 = vunpack.c.l.b16 %v65
  %v370 = vunpack.c.l.b16 %v66
  %v371 = vunpack.c.l.b16 %v67
  %v372 = vunpack.c.l.b16 %v68
  %v373 = vunpack.c.l.b16 %v69
  %v374 = vunpack.c.l.b16 %v70
  %v375 = vunpack.c.l.b16 %v71
  %v376 = vunpack.c.l.b16 %v72
  %v377 = vunpack.c.l.b16 %v73
  %v378 = vunpack.c.l.b16 %v74
  %v379 = vunpack.c.l.b16 %v75
  %v380 = vunpack.c.l.b16 %v76
  %v381 = vunpack.c.l.b16 %v77
  %v382 = vunpack.c.l.b16 %v78
  %v383 = vunpack.c.l.b16 %v79
  %v384 = vunpack.c.l.b16 %v80
  %v385 = vunpack.c.l.b16 %v81
  %v386 = vunpack.c.l.b16 %v82
  %v387 = vunpack.c.l.b16 %v83
  %v388 = vunpack.c.l.b16 %v84
  %v389 = vunpack.c.l.b16 %v85
  %v390 = vunpack.c.l.b16 %v86
  %v391 = vunpack.c.l.b16 %v87
  %v392 = vunpack.c.l.b16 %v88
  %v393 = vunpack.c.l.b16 %v89
  %v394 = vunpack.c.l.b16 %v90
  %v395 = vunpack.c.l.b16 %v91
  %v396 = vunpack.c.l.b16 %v92
  %v397 = vunpack.c.l.b16 %v93
  %v398 = vunpack.c.l.b16 %v94
  %v399 = vunpack.c.l.b16 %v95
  %v400 = vunpack.c.l.b16 %v96
  %v401 = vunpack.c.l.b16 %v97
  %v402 = vunpack.c.l.b16 %v98
  %v403 = vunpack.c.l.b16 %v99
  %v404 = vunpack.c.l.b16 %v100
  %v405 = vunpack.c.l.b16 %v101
  %v406 = vunpack.c.l.b16 %v102
  %v407 = vunpack.c.l.b16 %v103
  %v408 = vunpack.c.l.b16 %v104
  %v409 = vunpack.c.l.b16 %v105
  %v410 = vunpack.c.l.b16 %v106
  %v411 = vunpack.c.l.b16 %v107
  %v412 = vunpack.c.l.b16 %v108
  %v413 = vunpack.c.l.b16 %v109
  %v414 = vunpack.c.l.b16 %v110
  %v415 = vunpack.c.l.b16 %v111
  %v416 = vunpack.c.l.b16 %v112
  %v417 = vunpack.c.l.b16 %v113
  %v418 = vunpack.c.l.b16 %v114
  %v419 = vunpack.c.l.b16 %v115
  %v420 = vunpack.c.l.b16 %v116
  %v421 = vunpack.c.l.b16 %v117
  %v422 = vunpack.c.l.b16 %v118
  %v423 = vunpack.c.l.b16 %v119
  %v424 = vunpack.c.l.b16 %v120
  %v425 = vunpack.c.l.b16 %v121
  %v426 = vunpack.c.l.b16 %v122
  %v427 = vunpack.c.l.b16 %v123
  %v428 = vunpack.c.l.b16 %v124
  %v429 = vunpack.c.l.b16 %v125
  %v430 = vunpack.c.l.b16 %v126
  %v431 = vunpack.c.l.b16 %v127
  %v432 = vunpack.c.l.b16 %v128
  %v433 = vunpack.c.l.b16 %v129
  %v434 = vunpack.c.l.b16 %v130
  %v435 = vunpack.c.l.b16 %v131
  %v436 = vunpack.c.l.b16 %v132
  %v437 = vunpack.c.l.b16 %v133
  %v438 = vunpack.c.l.b16 %v134
  %v439 = vunpack.c.l.b16 %v135
  %v440 = vunpack.c.l.b16 %v136
  %v441 = vunpack.c.l.b16 %v137
  %v442 = vunpack.c.l.b16 %v138
  %v443 = vunpack.c.l.b16 %v139
  %v444 = vunpack.c.l.b16 %v140
  %v445 = vunpack.c.l.b16 %v141
  %v446 = vunpack.c.l.b16 %v142
  %v447 = vunpack.c.l.b16 %v143
  %v448 = vunpack.c.l.b16 %v144
  %v449 = vunpack.c.l.b16 %v145
  %v450 = vunpack.c.l.b16 %v146
  %v451 = vunpack.c.l.b16 %v147
  %v452 = vunpack.c.l.b16 %v148
  %v453 = vunpack.c.l.b16 %v149
  %v454 = vunpack.c.l.b16 %v150
  %v455 = vunpack.c.l.b16 %v151
  %v456 = vunpack.c.l.b16 %v152
  %v457 = vunpack.c.l.b16 %v153
  %v458 = vunpack.c.l.b16 %v154
  %v459 = vunpack.c.l.b16 %v155
  %v460 = vunpack.c.l.b16 %v156
  %v461 = vunpack.c.l.b16 %v157
  %v462 = vunpack.c.l.b16 %v158
  %v463 = vunpack.c.l.b16 %v159
  %v464 = vunpack.c.l.b16 %v160
  %v465 = vunpack.c.l.b16 %v161
  %v466 = vunpack.c.l.b16 %v162
  %v467 = vunpack.c.l.b16 %v163
  %v468 = vunpack.c.l.b16 %v164
  %v469 = vunpack.c.l.b16 %v165
  %v470 = vunpack.c.l.b16 %v166
  %v471 = vunpack.c.l.b16 %v167
  %v472 = vunpack.c.l.b16 %v168
  %v473 = vunpack.c.l.b16 %v169
  %v474 = vunpack.c.l.b16 %v170
  %v475 = vunpack.c.l.b16 %v171
  %v476 = vunpack.c.l.b16 %v172
  %v477 = vunpack.c.l.b16 %v173
  %v478 = vunpack.c.l.b16 %v174
  %v479 = vunpack.c.l.b16 %v175
  %v480 = vunpack.c.l.b16 %v176
  %v481 = vpack.c.b16 %v338, %v337
  %v482 = vpack.c.b16 %v340, %v339
  %v483 = vpack.c.b16 %v342, %v341
  %v484 = vpack.c.b16 %v344, %v343
  %v485 = vpack.c.b16 %v346, %v345
  %v486 = vpack.c.b16 %v348, %v347
  %v487 = vpack.c.b16 %v350, %v349
  %v488 = vpack.c.b16 %v352, %v351
  %v489 = vpack.c.b16 %v354, %v353
  %v490 = vpack.c.b16 %v356, %v355
  %v491 = vpack.c.b16 %v358, %v357
  %v492 = vpack.c.b16 %v360, %v359
  %v493 = vpack.c.b16 %v362, %v361
  %v494 = vpack.c.b16 %v364, %v363
  %v495 = vpack.c.b16 %v366, %v365
  %v496 = vpack.c.b16 %v368, %v367
  %v497 = vpack.c.b16 %v370, %v369
  %v498 = vpack.c.b16 %v372, %v371
  %v499 = vpack.c.b16 %v374, %v373
  %v500 = vpack.c.b16 %v376, %v375
  %v501 = vpack.c.b16 %v378, %v377
  %v502 = vpack.c.b16 %v380, %v379
  %v503 = vpack.c.b16 %v382, %v381
  %v504 = vpack.c.b16 %v384, %v383
  %v505 = vpack.c.b16 %v386, %v385
  %v506 = vpack.c.b16 %v388, %v387
  %v507 = vpack.c.b16 %v390, %v389
  %v508 = vpack.c.b16 %v392, %v391
  %v509 = vpack.c.b16 %v394, %v393
  %v510 = vpack.c.b16 %v396, %v395
  %v511 = vpack.c.b16 %v398, %v397
  %v512 = vpack.c.b16 %v400, %v399
  %v513 = vpack.c.b16 %v402, %v401
  %v514 = vpack.c.b16 %v404, %v403
  %v515 = vpack.c.b16 %v406, %v405
  %v516 = vpack.c.b16 %v408, %v407
  %v517 = vpack.c.b16 %v410, %v409
  %v518 = vpack.c.b16 %v412, %v411
  %v519 = vpack.c.b16 %v414, %v413
  %v520 = vpack.c.b16 %v416, %v415
  %v521 = vpack.c.b16 %v418, %v417
  %v522 = vpack.c.b16 %v420, %v419
  %v523 = vpack.c.b16 %v422, %v421
  %v524 = vpack.c.b16 %v424, %v423
  %v525 = vpack.c.b16 %v426, %v425
  %v526 = vpack.c.b16 %v428, %v427
  %v527 = vpack.c.b16 %v430, %v429
  %v528 = vpack.c.b16 %v432, %v431
  %v529 = vpack.c.b16 %v434, %v433
  %v530 = vpack.c.b16 %v436, %v435
  %v531 = vpack.c.b16 %v438, %v437
  %v532 = vpack.c.b16 %v440, %v439
  %v533 = vpack.c.b16 %v442, %v441
  %v534 = vpack.c.b16 %v444, %v443
  %v535 = vpack.c.b16 %v446, %v445
  %v536 = vpack.c.b16 %v448, %v447
  %v537 = vpack.c.b16 %v450, %v449
  %v538 = vpack.c.b16 %v452, %v451
  %v539 = vpack.c.b16 %v454, %v453
  %v540 = vpack.c.b16 %v456, %v455
  %v541 = vpack.c.b16 %v458, %v457
  %v542 = vpack.c.b16 %v460, %v459
  %v543 = vpack.c.b16 %v462, %v461
  %v544 = vpack.c.b16 %v464, %v463
  %v545 = vpack.c.b16 %v466, %v465
  %v546 = vpack.c.b16 %v468, %v467
  %v547 = vpack.c.b16 %v470, %v469
  %v548 = vpack.c.b16 %v472, %v471
  %v549 = vpack.c.b16 %v474, %v473
  %v550 = vpack.c.b16 %v476, %v475
  %v551 = vpack.c.b16 %v478, %v477
  %v552 = vpack.c.b16 %v480, %v479
  %v569 = vunpack.c.l.b16 %v177
  %v570 = vunpack.c.h.b16 %v177
  %v571 = vunpack.c.l.b16 %v178
  %v572 = vunpack.c.h.b16 %v178
  %v573 = vunpack.c.l.b16 %v179
  %v574 = vunpack.c.h.b16 %v179
  %v575 = vunpack.c.l.b16 %v180
  %v576 = vunpack.c.h.b16 %v180
  %v577 = vunpack.c.l.b16 %v181
  %v578 = vunpack.c.h.b16 %v181
  %v579 = vunpack.c.l.b16 %v182
  %v580 = vunpack.c.h.b16 %v182
  %v581 = vunpack.c.l.b16 %v183
  %v582 = vunpack.c.h.b16 %v183
  %v583 = vunpack.c.l.b16 %v184
  %v584 = vunpack.c.h.b16 %v184
  %v585 = vunpack.c.l.b16 %v185
  %v586 = vunpack.c.h.b16 %v185
  %v587 = vunpack.c.l.b16 %v186
  %v588 = vunpack.c.h.b16 %v186
  %v589 = vunpack.c.l.b16 %v187
  %v590 = vunpack.c.h.b16 %v187
  %v591 = vunpack.c.l.b16 %v188
  %v592 = vunpack.c.h.b16 %v188
  %v593 = vunpack.c.l.b16 %v189
  %v594 = vunpack.c.h.b16 %v189
  %v595 = vunpack.c.l.b16 %v190
  %v596 = vunpack.c.h.b16 %v190
  %v597 = vunpack.c.l.b16 %v191
  %v598 = vunpack.c.h.b16 %v191
  %v599 = vunpack.c.l.b16 %v192
  %v600 = vunpack.c.h.b16 %v192
  %v601 = vpack.c.b16 %v573, %v569
  %v602 = vpack.c.b16 %v574, %v570
  %v603 = vpack.c.b16 %v575, %v571
  %v604 = vpack.c.b16 %v576, %v572
  %v605 = vpack.c.b16 %v581, %v577
  %v606 = vpack.c.b16 %v582, %v578
  %v607 = vpack.c.b16 %v583, %v579
  %v608 = vpack.c.b16 %v584, %v580
  %v609 = vpack.c.b16 %v589, %v585
  %v610 = vpack.c.b16 %v590, %v586
  %v611 = vpack.c.b16 %v591, %v587
  %v612 = vpack.c.b16 %v592, %v588
  %v613 = vpack.c.b16 %v597, %v593
  %v614 = vpack.c.b16 %v598, %v594
  %v615 = vpack.c.b16 %v599, %v595
  %v616 = vpack.c.b16 %v600, %v596
  %vm633 = vcmask 523264
  %v635 = vsel %vm633, %v481, 0
  %v638 = vsel %vm633, %v482, 0
  %v641 = vsel %vm633, %v483, 0
  %v644 = vsel %vm633, %v484, 0
  %v647 = vsel %vm633, %v485, 0
  %v650 = vsel %vm633, %v486, 0
  %v653 = vsel %vm633, %v487, 0
  %v656 = vsel %vm633, %v488, 0
  %v659 = vsel %vm633, %v489, 0
  %v662 = vsel %vm633, %v490, 0
  %v665 = vsel %vm633, %v491, 0
  %v668 = vsel %vm633, %v492, 0
  %v671 = vsel %vm633, %v493, 0
  %v674 = vsel %vm633, %v494, 0
  %v677 = vsel %vm633, %v495, 0
  %v680 = vsel %vm633, %v496, 0
  %v683 = vsel %vm633, %v497, 0
  %v686 = vsel %vm633, %v498, 0
  %v689 = vsel %vm633, %v499, 0
  %v692 = vsel %vm633, %v500, 0
  %v695 = vsel %vm633, %v501, 0
  %v698 = vsel %vm633, %v502, 0
  %v701 = vsel %vm633, %v503, 0
  %v704 = vsel %vm633, %v504, 0
  %v707 = vsel %vm633, %v505, 0
  %v710 = vsel %vm633, %v506, 0
  %v713 = vsel %vm633, %v507, 0
  %v716 = vsel %vm633, %v508, 0
  %v719 = vsel %vm633, %v509, 0
  %v722 = vsel %vm633, %v510, 0
  %v725 = vsel %vm633, %v511, 0
  %v728 = vsel %vm633, %v512, 0
  %v731 = vsel %vm633, %v513, 0
  %v734 = vsel %vm633, %v514, 0
  %v737 = vsel %vm633, %v515, 0
  %v740 = vsel %vm633, %v516, 0
  %v743 = vsel %vm633, %v517, 0
  %v746 = vsel %vm633, %v518, 0
  %v749 = vsel %vm633, %v519, 0
  %v752 = vsel %vm633, %v520, 0
  %v755 = vsel %vm633, %v521, 0
  %v758 = vsel %vm633, %v522, 0
  %v761 = vsel %vm633, %v523, 0
  %v764 = vsel %vm633, %v524, 0
  %v767 = vsel %vm633, %v525, 0
  %v770 = vsel %vm633, %v526, 0
  %v773 = vsel %vm633, %v527, 0
  %v776 = vsel %vm633, %v528, 0
  %v779 = vsel %vm633, %v529, 0
  %v782 = vsel %vm633, %v530, 0
  %v785 = vsel %vm633, %v531, 0
  %v788 = vsel %vm633, %v532, 0
  %v791 = vsel %vm633, %v533, 0
  %v794 = vsel %vm633, %v534, 0
  %v797 = vsel %vm633, %v535, 0
  %v800 = vsel %vm633, %v536, 0
  %v803 = vsel %vm633, %v537, 0
  %v806 = vsel %vm633, %v538, 0
  %v809 = vsel %vm633, %v539, 0
  %v812 = vsel %vm633, %v540, 0
  %v815 = vsel %vm633, %v541, 0
  %v818 = vsel %vm633, %v542, 0
  %v821 = vsel %vm633, %v543, 0
  %v824 = vsel %vm633, %v544, 0
  %v827 = vsel %vm633, %v545, 0
  %v830 = vsel %vm633, %v546, 0
  %v833 = vsel %vm633, %v547, 0
  %v836 = vsel %vm633, %v548, 0
  %v839 = vsel %vm633, %v549, 0
  %v842 = vsel %vm633, %v550, 0
  %v845 = vsel %vm633, %v551, 0
  %v848 = vsel %vm633, %v552, 0
  %850 = vmatpush.bf16.msra.mxu0 0
  %851 = vmatpush.bf16.msra.mxu0 0
  %852 = vmatpush.bf16.msra.mxu0 0
  %853 = vmatpush.bf16.msra.mxu0 0
  %854 = vmatpush.bf16.msra.mxu0 %v613
  %855 = vmatpush.bf16.msra.mxu0 %v609
  %856 = vmatpush.bf16.msra.mxu0 %v605
  %857 = vmatpush.bf16.msra.mxu0 %v601
  %858 = vmatmul.bf16.gmra.mxu0 %v635
  %v859 = vpop.f32.mrf.mxu0
  %v860 = vadd.f32 0.0, %v859
  %v861 = vpop.f32.mrf.mxu0
  %v862 = vadd.f32 0.0, %v861
  %863 = vmatmul.bf16.gmra.mxu0 %v638
  %v864 = vpop.f32.mrf.mxu0
  %v865 = vadd.f32 0.0, %v864
  %v866 = vpop.f32.mrf.mxu0
  %v867 = vadd.f32 0.0, %v866
  %868 = vmatmul.bf16.gmra.mxu0 %v641
  %v869 = vpop.f32.mrf.mxu0
  %v870 = vadd.f32 0.0, %v869
  %v871 = vpop.f32.mrf.mxu0
  %v872 = vadd.f32 0.0, %v871
  %873 = vmatmul.bf16.gmra.mxu0 %v644
  %v874 = vpop.f32.mrf.mxu0
  %v875 = vadd.f32 0.0, %v874
  %v876 = vpop.f32.mrf.mxu0
  %v877 = vadd.f32 0.0, %v876
  %878 = vmatmul.bf16.gmra.mxu0 %v647
  %v879 = vpop.f32.mrf.mxu0
  %v880 = vadd.f32 0.0, %v879
  %v881 = vpop.f32.mrf.mxu0
  %v882 = vadd.f32 0.0, %v881
  %883 = vmatmul.bf16.gmra.mxu0 %v650
  %v884 = vpop.f32.mrf.mxu0
  %v885 = vadd.f32 0.0, %v884
  %v886 = vpop.f32.mrf.mxu0
  %v887 = vadd.f32 0.0, %v886
  %888 = vmatmul.bf16.gmra.mxu0 %v653
  %v889 = vpop.f32.mrf.mxu0
  %v890 = vadd.f32 0.0, %v889
  %v891 = vpop.f32.mrf.mxu0
  %v892 = vadd.f32 0.0, %v891
  %893 = vmatmul.bf16.gmra.mxu0 %v656
  %v894 = vpop.f32.mrf.mxu0
  %v895 = vadd.f32 0.0, %v894
  %v896 = vpop.f32.mrf.mxu0
  %v897 = vadd.f32 0.0, %v896
  %898 = vmatmul.bf16.gmra.mxu0 %v659
  %v899 = vpop.f32.mrf.mxu0
  %v900 = vadd.f32 0.0, %v899
  %v901 = vpop.f32.mrf.mxu0
  %v902 = vadd.f32 0.0, %v901
  %903 = vmatmul.bf16.gmra.mxu0 %v662
  %v904 = vpop.f32.mrf.mxu0
  %v905 = vadd.f32 0.0, %v904
  %v906 = vpop.f32.mrf.mxu0
  %v907 = vadd.f32 0.0, %v906
  %908 = vmatmul.bf16.gmra.mxu0 %v665
  %v909 = vpop.f32.mrf.mxu0
  %v910 = vadd.f32 0.0, %v909
  %v911 = vpop.f32.mrf.mxu0
  %v912 = vadd.f32 0.0, %v911
  %913 = vmatmul.bf16.gmra.mxu0 %v668
  %v914 = vpop.f32.mrf.mxu0
  %v915 = vadd.f32 0.0, %v914
  %v916 = vpop.f32.mrf.mxu0
  %v917 = vadd.f32 0.0, %v916
  %918 = vmatmul.bf16.gmra.mxu0 %v671
  %v919 = vpop.f32.mrf.mxu0
  %v920 = vadd.f32 0.0, %v919
  %v921 = vpop.f32.mrf.mxu0
  %v922 = vadd.f32 0.0, %v921
  %923 = vmatmul.bf16.gmra.mxu0 %v674
  %v924 = vpop.f32.mrf.mxu0
  %v925 = vadd.f32 0.0, %v924
  %v926 = vpop.f32.mrf.mxu0
  %v927 = vadd.f32 0.0, %v926
  %928 = vmatmul.bf16.gmra.mxu0 %v677
  %v929 = vpop.f32.mrf.mxu0
  %v930 = vadd.f32 0.0, %v929
  %v931 = vpop.f32.mrf.mxu0
  %v932 = vadd.f32 0.0, %v931
  %933 = vmatmul.bf16.gmra.mxu0 %v680
  %v934 = vpop.f32.mrf.mxu0
  %v935 = vadd.f32 0.0, %v934
  %v936 = vpop.f32.mrf.mxu0
  %v937 = vadd.f32 0.0, %v936
  %938 = vmatmul.bf16.gmra.mxu0 %v683
  %v939 = vpop.f32.mrf.mxu0
  %v940 = vadd.f32 0.0, %v939
  %v941 = vpop.f32.mrf.mxu0
  %v942 = vadd.f32 0.0, %v941
  %943 = vmatmul.bf16.gmra.mxu0 %v686
  %v944 = vpop.f32.mrf.mxu0
  %v945 = vadd.f32 0.0, %v944
  %v946 = vpop.f32.mrf.mxu0
  %v947 = vadd.f32 0.0, %v946
  %948 = vmatmul.bf16.gmra.mxu0 %v689
  %v949 = vpop.f32.mrf.mxu0
  %v950 = vadd.f32 0.0, %v949
  %v951 = vpop.f32.mrf.mxu0
  %v952 = vadd.f32 0.0, %v951
  %953 = vmatmul.bf16.gmra.mxu0 %v692
  %v954 = vpop.f32.mrf.mxu0
  %v955 = vadd.f32 0.0, %v954
  %v956 = vpop.f32.mrf.mxu0
  %v957 = vadd.f32 0.0, %v956
  %958 = vmatmul.bf16.gmra.mxu0 %v695
  %v959 = vpop.f32.mrf.mxu0
  %v960 = vadd.f32 0.0, %v959
  %v961 = vpop.f32.mrf.mxu0
  %v962 = vadd.f32 0.0, %v961
  %963 = vmatmul.bf16.gmra.mxu0 %v698
  %v964 = vpop.f32.mrf.mxu0
  %v965 = vadd.f32 0.0, %v964
  %v966 = vpop.f32.mrf.mxu0
  %v967 = vadd.f32 0.0, %v966
  %968 = vmatmul.bf16.gmra.mxu0 %v701
  %v969 = vpop.f32.mrf.mxu0
  %v970 = vadd.f32 0.0, %v969
  %v971 = vpop.f32.mrf.mxu0
  %v972 = vadd.f32 0.0, %v971
  %973 = vmatmul.bf16.gmra.mxu0 %v704
  %v974 = vpop.f32.mrf.mxu0
  %v975 = vadd.f32 0.0, %v974
  %v976 = vpop.f32.mrf.mxu0
  %v977 = vadd.f32 0.0, %v976
  %978 = vmatmul.bf16.gmra.mxu0 %v707
  %v979 = vpop.f32.mrf.mxu0
  %v980 = vadd.f32 0.0, %v979
  %v981 = vpop.f32.mrf.mxu0
  %v982 = vadd.f32 0.0, %v981
  %983 = vmatmul.bf16.gmra.mxu0 %v710
  %v984 = vpop.f32.mrf.mxu0
  %v985 = vadd.f32 0.0, %v984
  %v986 = vpop.f32.mrf.mxu0
  %v987 = vadd.f32 0.0, %v986
  %988 = vmatmul.bf16.gmra.mxu0 %v713
  %v989 = vpop.f32.mrf.mxu0
  %v990 = vadd.f32 0.0, %v989
  %v991 = vpop.f32.mrf.mxu0
  %v992 = vadd.f32 0.0, %v991
  %993 = vmatmul.bf16.gmra.mxu0 %v716
  %v994 = vpop.f32.mrf.mxu0
  %v995 = vadd.f32 0.0, %v994
  %v996 = vpop.f32.mrf.mxu0
  %v997 = vadd.f32 0.0, %v996
  %998 = vmatmul.bf16.gmra.mxu0 %v719
  %v999 = vpop.f32.mrf.mxu0
  %v1000 = vadd.f32 0.0, %v999
  %v1001 = vpop.f32.mrf.mxu0
  %v1002 = vadd.f32 0.0, %v1001
  %1003 = vmatmul.bf16.gmra.mxu0 %v722
  %v1004 = vpop.f32.mrf.mxu0
  %v1005 = vadd.f32 0.0, %v1004
  %v1006 = vpop.f32.mrf.mxu0
  %v1007 = vadd.f32 0.0, %v1006
  %1008 = vmatmul.bf16.gmra.mxu0 %v725
  %v1009 = vpop.f32.mrf.mxu0
  %v1010 = vadd.f32 0.0, %v1009
  %v1011 = vpop.f32.mrf.mxu0
  %v1012 = vadd.f32 0.0, %v1011
  %1013 = vmatmul.bf16.gmra.mxu0 %v728
  %v1014 = vpop.f32.mrf.mxu0
  %v1015 = vadd.f32 0.0, %v1014
  %v1016 = vpop.f32.mrf.mxu0
  %v1017 = vadd.f32 0.0, %v1016
  %1018 = vmatmul.bf16.gmra.mxu0 %v731
  %v1019 = vpop.f32.mrf.mxu0
  %v1020 = vadd.f32 0.0, %v1019
  %v1021 = vpop.f32.mrf.mxu0
  %v1022 = vadd.f32 0.0, %v1021
  %1023 = vmatmul.bf16.gmra.mxu0 %v734
  %v1024 = vpop.f32.mrf.mxu0
  %v1025 = vadd.f32 0.0, %v1024
  %v1026 = vpop.f32.mrf.mxu0
  %v1027 = vadd.f32 0.0, %v1026
  %1028 = vmatmul.bf16.gmra.mxu0 %v737
  %v1029 = vpop.f32.mrf.mxu0
  %v1030 = vadd.f32 0.0, %v1029
  %v1031 = vpop.f32.mrf.mxu0
  %v1032 = vadd.f32 0.0, %v1031
  %1033 = vmatmul.bf16.gmra.mxu0 %v740
  %v1034 = vpop.f32.mrf.mxu0
  %v1035 = vadd.f32 0.0, %v1034
  %v1036 = vpop.f32.mrf.mxu0
  %v1037 = vadd.f32 0.0, %v1036
  %1038 = vmatmul.bf16.gmra.mxu0 %v743
  %v1039 = vpop.f32.mrf.mxu0
  %v1040 = vadd.f32 0.0, %v1039
  %v1041 = vpop.f32.mrf.mxu0
  %v1042 = vadd.f32 0.0, %v1041
  %1043 = vmatmul.bf16.gmra.mxu0 %v746
  %v1044 = vpop.f32.mrf.mxu0
  %v1045 = vadd.f32 0.0, %v1044
  %v1046 = vpop.f32.mrf.mxu0
  %v1047 = vadd.f32 0.0, %v1046
  %1048 = vmatmul.bf16.gmra.mxu0 %v749
  %v1049 = vpop.f32.mrf.mxu0
  %v1050 = vadd.f32 0.0, %v1049
  %v1051 = vpop.f32.mrf.mxu0
  %v1052 = vadd.f32 0.0, %v1051
  %1053 = vmatmul.bf16.gmra.mxu0 %v752
  %v1054 = vpop.f32.mrf.mxu0
  %v1055 = vadd.f32 0.0, %v1054
  %v1056 = vpop.f32.mrf.mxu0
  %v1057 = vadd.f32 0.0, %v1056
  %1058 = vmatmul.bf16.gmra.mxu0 %v755
  %v1059 = vpop.f32.mrf.mxu0
  %v1060 = vadd.f32 0.0, %v1059
  %v1061 = vpop.f32.mrf.mxu0
  %v1062 = vadd.f32 0.0, %v1061
  %1063 = vmatmul.bf16.gmra.mxu0 %v758
  %v1064 = vpop.f32.mrf.mxu0
  %v1065 = vadd.f32 0.0, %v1064
  %v1066 = vpop.f32.mrf.mxu0
  %v1067 = vadd.f32 0.0, %v1066
  %1068 = vmatmul.bf16.gmra.mxu0 %v761
  %v1069 = vpop.f32.mrf.mxu0
  %v1070 = vadd.f32 0.0, %v1069
  %v1071 = vpop.f32.mrf.mxu0
  %v1072 = vadd.f32 0.0, %v1071
  %1073 = vmatmul.bf16.gmra.mxu0 %v764
  %v1074 = vpop.f32.mrf.mxu0
  %v1075 = vadd.f32 0.0, %v1074
  %v1076 = vpop.f32.mrf.mxu0
  %v1077 = vadd.f32 0.0, %v1076
  %1078 = vmatmul.bf16.gmra.mxu0 %v767
  %v1079 = vpop.f32.mrf.mxu0
  %v1080 = vadd.f32 0.0, %v1079
  %v1081 = vpop.f32.mrf.mxu0
  %v1082 = vadd.f32 0.0, %v1081
  %1083 = vmatmul.bf16.gmra.mxu0 %v770
  %v1084 = vpop.f32.mrf.mxu0
  %v1085 = vadd.f32 0.0, %v1084
  %v1086 = vpop.f32.mrf.mxu0
  %v1087 = vadd.f32 0.0, %v1086
  %1088 = vmatmul.bf16.gmra.mxu0 %v773
  %v1089 = vpop.f32.mrf.mxu0
  %v1090 = vadd.f32 0.0, %v1089
  %v1091 = vpop.f32.mrf.mxu0
  %v1092 = vadd.f32 0.0, %v1091
  %1093 = vmatmul.bf16.gmra.mxu0 %v776
  %v1094 = vpop.f32.mrf.mxu0
  %v1095 = vadd.f32 0.0, %v1094
  %v1096 = vpop.f32.mrf.mxu0
  %v1097 = vadd.f32 0.0, %v1096
  %1098 = vmatmul.bf16.gmra.mxu0 %v779
  %v1099 = vpop.f32.mrf.mxu0
  %v1100 = vadd.f32 0.0, %v1099
  %v1101 = vpop.f32.mrf.mxu0
  %v1102 = vadd.f32 0.0, %v1101
  %1103 = vmatmul.bf16.gmra.mxu0 %v782
  %v1104 = vpop.f32.mrf.mxu0
  %v1105 = vadd.f32 0.0, %v1104
  %v1106 = vpop.f32.mrf.mxu0
  %v1107 = vadd.f32 0.0, %v1106
  %1108 = vmatmul.bf16.gmra.mxu0 %v785
  %v1109 = vpop.f32.mrf.mxu0
  %v1110 = vadd.f32 0.0, %v1109
  %v1111 = vpop.f32.mrf.mxu0
  %v1112 = vadd.f32 0.0, %v1111
  %1113 = vmatmul.bf16.gmra.mxu0 %v788
  %v1114 = vpop.f32.mrf.mxu0
  %v1115 = vadd.f32 0.0, %v1114
  %v1116 = vpop.f32.mrf.mxu0
  %v1117 = vadd.f32 0.0, %v1116
  %1118 = vmatmul.bf16.gmra.mxu0 %v791
  %v1119 = vpop.f32.mrf.mxu0
  %v1120 = vadd.f32 0.0, %v1119
  %v1121 = vpop.f32.mrf.mxu0
  %v1122 = vadd.f32 0.0, %v1121
  %1123 = vmatmul.bf16.gmra.mxu0 %v794
  %v1124 = vpop.f32.mrf.mxu0
  %v1125 = vadd.f32 0.0, %v1124
  %v1126 = vpop.f32.mrf.mxu0
  %v1127 = vadd.f32 0.0, %v1126
  %1128 = vmatmul.bf16.gmra.mxu0 %v797
  %v1129 = vpop.f32.mrf.mxu0
  %v1130 = vadd.f32 0.0, %v1129
  %v1131 = vpop.f32.mrf.mxu0
  %v1132 = vadd.f32 0.0, %v1131
  %1133 = vmatmul.bf16.gmra.mxu0 %v800
  %v1134 = vpop.f32.mrf.mxu0
  %v1135 = vadd.f32 0.0, %v1134
  %v1136 = vpop.f32.mrf.mxu0
  %v1137 = vadd.f32 0.0, %v1136
  %1138 = vmatmul.bf16.gmra.mxu0 %v803
  %v1139 = vpop.f32.mrf.mxu0
  %v1140 = vadd.f32 0.0, %v1139
  %v1141 = vpop.f32.mrf.mxu0
  %v1142 = vadd.f32 0.0, %v1141
  %1143 = vmatmul.bf16.gmra.mxu0 %v806
  %v1144 = vpop.f32.mrf.mxu0
  %v1145 = vadd.f32 0.0, %v1144
  %v1146 = vpop.f32.mrf.mxu0
  %v1147 = vadd.f32 0.0, %v1146
  %1148 = vmatmul.bf16.gmra.mxu0 %v809
  %v1149 = vpop.f32.mrf.mxu0
  %v1150 = vadd.f32 0.0, %v1149
  %v1151 = vpop.f32.mrf.mxu0
  %v1152 = vadd.f32 0.0, %v1151
  %1153 = vmatmul.bf16.gmra.mxu0 %v812
  %v1154 = vpop.f32.mrf.mxu0
  %v1155 = vadd.f32 0.0, %v1154
  %v1156 = vpop.f32.mrf.mxu0
  %v1157 = vadd.f32 0.0, %v1156
  %1158 = vmatmul.bf16.gmra.mxu0 %v815
  %v1159 = vpop.f32.mrf.mxu0
  %v1160 = vadd.f32 0.0, %v1159
  %v1161 = vpop.f32.mrf.mxu0
  %v1162 = vadd.f32 0.0, %v1161
  %1163 = vmatmul.bf16.gmra.mxu0 %v818
  %v1164 = vpop.f32.mrf.mxu0
  %v1165 = vadd.f32 0.0, %v1164
  %v1166 = vpop.f32.mrf.mxu0
  %v1167 = vadd.f32 0.0, %v1166
  %1168 = vmatmul.bf16.gmra.mxu0 %v821
  %v1169 = vpop.f32.mrf.mxu0
  %v1170 = vadd.f32 0.0, %v1169
  %v1171 = vpop.f32.mrf.mxu0
  %v1172 = vadd.f32 0.0, %v1171
  %1173 = vmatmul.bf16.gmra.mxu0 %v824
  %v1174 = vpop.f32.mrf.mxu0
  %v1175 = vadd.f32 0.0, %v1174
  %v1176 = vpop.f32.mrf.mxu0
  %v1177 = vadd.f32 0.0, %v1176
  %1178 = vmatmul.bf16.gmra.mxu0 %v827
  %v1179 = vpop.f32.mrf.mxu0
  %v1180 = vadd.f32 0.0, %v1179
  %v1181 = vpop.f32.mrf.mxu0
  %v1182 = vadd.f32 0.0, %v1181
  %1183 = vmatmul.bf16.gmra.mxu0 %v830
  %v1184 = vpop.f32.mrf.mxu0
  %v1185 = vadd.f32 0.0, %v1184
  %v1186 = vpop.f32.mrf.mxu0
  %v1187 = vadd.f32 0.0, %v1186
  %1188 = vmatmul.bf16.gmra.mxu0 %v833
  %v1189 = vpop.f32.mrf.mxu0
  %v1190 = vadd.f32 0.0, %v1189
  %v1191 = vpop.f32.mrf.mxu0
  %v1192 = vadd.f32 0.0, %v1191
  %1193 = vmatmul.bf16.gmra.mxu0 %v836
  %v1194 = vpop.f32.mrf.mxu0
  %v1195 = vadd.f32 0.0, %v1194
  %v1196 = vpop.f32.mrf.mxu0
  %v1197 = vadd.f32 0.0, %v1196
  %1198 = vmatmul.bf16.gmra.mxu0 %v839
  %v1199 = vpop.f32.mrf.mxu0
  %v1200 = vadd.f32 0.0, %v1199
  %v1201 = vpop.f32.mrf.mxu0
  %v1202 = vadd.f32 0.0, %v1201
  %1203 = vmatmul.bf16.gmra.mxu0 %v842
  %v1204 = vpop.f32.mrf.mxu0
  %v1205 = vadd.f32 0.0, %v1204
  %v1206 = vpop.f32.mrf.mxu0
  %v1207 = vadd.f32 0.0, %v1206
  %1208 = vmatmul.bf16.gmra.mxu0 %v845
  %v1209 = vpop.f32.mrf.mxu0
  %v1210 = vadd.f32 0.0, %v1209
  %v1211 = vpop.f32.mrf.mxu0
  %v1212 = vadd.f32 0.0, %v1211
  %1213 = vmatmul.bf16.gmra.mxu0 %v848
  %v1214 = vpop.f32.mrf.mxu0
  %v1215 = vadd.f32 0.0, %v1214
  %v1216 = vpop.f32.mrf.mxu0
  %v1217 = vadd.f32 0.0, %v1216
  %1218 = vdwg.mxu0
  %1219 = vmatpush.bf16.msra.mxu0 0
  %1220 = vmatpush.bf16.msra.mxu0 0
  %1221 = vmatpush.bf16.msra.mxu0 0
  %1222 = vmatpush.bf16.msra.mxu0 0
  %1223 = vmatpush.bf16.msra.mxu0 %v614
  %1224 = vmatpush.bf16.msra.mxu0 %v610
  %1225 = vmatpush.bf16.msra.mxu0 %v606
  %1226 = vmatpush.bf16.msra.mxu0 %v602
  %1227 = vmatmul.bf16.gmra.mxu0 %v635
  %v1228 = vpop.f32.mrf.mxu0
  %v1229 = vadd.f32 0.0, %v1228
  %v1230 = vpop.f32.mrf.mxu0
  %v1231 = vadd.f32 0.0, %v1230
  %1232 = vmatmul.bf16.gmra.mxu0 %v638
  %v1233 = vpop.f32.mrf.mxu0
  %v1234 = vadd.f32 0.0, %v1233
  %v1235 = vpop.f32.mrf.mxu0
  %v1236 = vadd.f32 0.0, %v1235
  %1237 = vmatmul.bf16.gmra.mxu0 %v641
  %v1238 = vpop.f32.mrf.mxu0
  %v1239 = vadd.f32 0.0, %v1238
  %v1240 = vpop.f32.mrf.mxu0
  %v1241 = vadd.f32 0.0, %v1240
  %1242 = vmatmul.bf16.gmra.mxu0 %v644
  %v1243 = vpop.f32.mrf.mxu0
  %v1244 = vadd.f32 0.0, %v1243
  %v1245 = vpop.f32.mrf.mxu0
  %v1246 = vadd.f32 0.0, %v1245
  %1247 = vmatmul.bf16.gmra.mxu0 %v647
  %v1248 = vpop.f32.mrf.mxu0
  %v1249 = vadd.f32 0.0, %v1248
  %v1250 = vpop.f32.mrf.mxu0
  %v1251 = vadd.f32 0.0, %v1250
  %1252 = vmatmul.bf16.gmra.mxu0 %v650
  %v1253 = vpop.f32.mrf.mxu0
  %v1254 = vadd.f32 0.0, %v1253
  %v1255 = vpop.f32.mrf.mxu0
  %v1256 = vadd.f32 0.0, %v1255
  %1257 = vmatmul.bf16.gmra.mxu0 %v653
  %v1258 = vpop.f32.mrf.mxu0
  %v1259 = vadd.f32 0.0, %v1258
  %v1260 = vpop.f32.mrf.mxu0
  %v1261 = vadd.f32 0.0, %v1260
  %1262 = vmatmul.bf16.gmra.mxu0 %v656
  %v1263 = vpop.f32.mrf.mxu0
  %v1264 = vadd.f32 0.0, %v1263
  %v1265 = vpop.f32.mrf.mxu0
  %v1266 = vadd.f32 0.0, %v1265
  %1267 = vmatmul.bf16.gmra.mxu0 %v659
  %v1268 = vpop.f32.mrf.mxu0
  %v1269 = vadd.f32 0.0, %v1268
  %v1270 = vpop.f32.mrf.mxu0
  %v1271 = vadd.f32 0.0, %v1270
  %1272 = vmatmul.bf16.gmra.mxu0 %v662
  %v1273 = vpop.f32.mrf.mxu0
  %v1274 = vadd.f32 0.0, %v1273
  %v1275 = vpop.f32.mrf.mxu0
  %v1276 = vadd.f32 0.0, %v1275
  %1277 = vmatmul.bf16.gmra.mxu0 %v665
  %v1278 = vpop.f32.mrf.mxu0
  %v1279 = vadd.f32 0.0, %v1278
  %v1280 = vpop.f32.mrf.mxu0
  %v1281 = vadd.f32 0.0, %v1280
  %1282 = vmatmul.bf16.gmra.mxu0 %v668
  %v1283 = vpop.f32.mrf.mxu0
  %v1284 = vadd.f32 0.0, %v1283
  %v1285 = vpop.f32.mrf.mxu0
  %v1286 = vadd.f32 0.0, %v1285
  %1287 = vmatmul.bf16.gmra.mxu0 %v671
  %v1288 = vpop.f32.mrf.mxu0
  %v1289 = vadd.f32 0.0, %v1288
  %v1290 = vpop.f32.mrf.mxu0
  %v1291 = vadd.f32 0.0, %v1290
  %1292 = vmatmul.bf16.gmra.mxu0 %v674
  %v1293 = vpop.f32.mrf.mxu0
  %v1294 = vadd.f32 0.0, %v1293
  %v1295 = vpop.f32.mrf.mxu0
  %v1296 = vadd.f32 0.0, %v1295
  %1297 = vmatmul.bf16.gmra.mxu0 %v677
  %v1298 = vpop.f32.mrf.mxu0
  %v1299 = vadd.f32 0.0, %v1298
  %v1300 = vpop.f32.mrf.mxu0
  %v1301 = vadd.f32 0.0, %v1300
  %1302 = vmatmul.bf16.gmra.mxu0 %v680
  %v1303 = vpop.f32.mrf.mxu0
  %v1304 = vadd.f32 0.0, %v1303
  %v1305 = vpop.f32.mrf.mxu0
  %v1306 = vadd.f32 0.0, %v1305
  %1307 = vmatmul.bf16.gmra.mxu0 %v683
  %v1308 = vpop.f32.mrf.mxu0
  %v1309 = vadd.f32 0.0, %v1308
  %v1310 = vpop.f32.mrf.mxu0
  %v1311 = vadd.f32 0.0, %v1310
  %1312 = vmatmul.bf16.gmra.mxu0 %v686
  %v1313 = vpop.f32.mrf.mxu0
  %v1314 = vadd.f32 0.0, %v1313
  %v1315 = vpop.f32.mrf.mxu0
  %v1316 = vadd.f32 0.0, %v1315
  %1317 = vmatmul.bf16.gmra.mxu0 %v689
  %v1318 = vpop.f32.mrf.mxu0
  %v1319 = vadd.f32 0.0, %v1318
  %v1320 = vpop.f32.mrf.mxu0
  %v1321 = vadd.f32 0.0, %v1320
  %1322 = vmatmul.bf16.gmra.mxu0 %v692
  %v1323 = vpop.f32.mrf.mxu0
  %v1324 = vadd.f32 0.0, %v1323
  %v1325 = vpop.f32.mrf.mxu0
  %v1326 = vadd.f32 0.0, %v1325
  %1327 = vmatmul.bf16.gmra.mxu0 %v695
  %v1328 = vpop.f32.mrf.mxu0
  %v1329 = vadd.f32 0.0, %v1328
  %v1330 = vpop.f32.mrf.mxu0
  %v1331 = vadd.f32 0.0, %v1330
  %1332 = vmatmul.bf16.gmra.mxu0 %v698
  %v1333 = vpop.f32.mrf.mxu0
  %v1334 = vadd.f32 0.0, %v1333
  %v1335 = vpop.f32.mrf.mxu0
  %v1336 = vadd.f32 0.0, %v1335
  %1337 = vmatmul.bf16.gmra.mxu0 %v701
  %v1338 = vpop.f32.mrf.mxu0
  %v1339 = vadd.f32 0.0, %v1338
  %v1340 = vpop.f32.mrf.mxu0
  %v1341 = vadd.f32 0.0, %v1340
  %1342 = vmatmul.bf16.gmra.mxu0 %v704
  %v1343 = vpop.f32.mrf.mxu0
  %v1344 = vadd.f32 0.0, %v1343
  %v1345 = vpop.f32.mrf.mxu0
  %v1346 = vadd.f32 0.0, %v1345
  %1347 = vmatmul.bf16.gmra.mxu0 %v707
  %v1348 = vpop.f32.mrf.mxu0
  %v1349 = vadd.f32 0.0, %v1348
  %v1350 = vpop.f32.mrf.mxu0
  %v1351 = vadd.f32 0.0, %v1350
  %1352 = vmatmul.bf16.gmra.mxu0 %v710
  %v1353 = vpop.f32.mrf.mxu0
  %v1354 = vadd.f32 0.0, %v1353
  %v1355 = vpop.f32.mrf.mxu0
  %v1356 = vadd.f32 0.0, %v1355
  %1357 = vmatmul.bf16.gmra.mxu0 %v713
  %v1358 = vpop.f32.mrf.mxu0
  %v1359 = vadd.f32 0.0, %v1358
  %v1360 = vpop.f32.mrf.mxu0
  %v1361 = vadd.f32 0.0, %v1360
  %1362 = vmatmul.bf16.gmra.mxu0 %v716
  %v1363 = vpop.f32.mrf.mxu0
  %v1364 = vadd.f32 0.0, %v1363
  %v1365 = vpop.f32.mrf.mxu0
  %v1366 = vadd.f32 0.0, %v1365
  %1367 = vmatmul.bf16.gmra.mxu0 %v719
  %v1368 = vpop.f32.mrf.mxu0
  %v1369 = vadd.f32 0.0, %v1368
  %v1370 = vpop.f32.mrf.mxu0
  %v1371 = vadd.f32 0.0, %v1370
  %1372 = vmatmul.bf16.gmra.mxu0 %v722
  %v1373 = vpop.f32.mrf.mxu0
  %v1374 = vadd.f32 0.0, %v1373
  %v1375 = vpop.f32.mrf.mxu0
  %v1376 = vadd.f32 0.0, %v1375
  %1377 = vmatmul.bf16.gmra.mxu0 %v725
  %v1378 = vpop.f32.mrf.mxu0
  %v1379 = vadd.f32 0.0, %v1378
  %v1380 = vpop.f32.mrf.mxu0
  %v1381 = vadd.f32 0.0, %v1380
  %1382 = vmatmul.bf16.gmra.mxu0 %v728
  %v1383 = vpop.f32.mrf.mxu0
  %v1384 = vadd.f32 0.0, %v1383
  %v1385 = vpop.f32.mrf.mxu0
  %v1386 = vadd.f32 0.0, %v1385
  %1387 = vmatmul.bf16.gmra.mxu0 %v731
  %v1388 = vpop.f32.mrf.mxu0
  %v1389 = vadd.f32 0.0, %v1388
  %v1390 = vpop.f32.mrf.mxu0
  %v1391 = vadd.f32 0.0, %v1390
  %1392 = vmatmul.bf16.gmra.mxu0 %v734
  %v1393 = vpop.f32.mrf.mxu0
  %v1394 = vadd.f32 0.0, %v1393
  %v1395 = vpop.f32.mrf.mxu0
  %v1396 = vadd.f32 0.0, %v1395
  %1397 = vmatmul.bf16.gmra.mxu0 %v737
  %v1398 = vpop.f32.mrf.mxu0
  %v1399 = vadd.f32 0.0, %v1398
  %v1400 = vpop.f32.mrf.mxu0
  %v1401 = vadd.f32 0.0, %v1400
  %1402 = vmatmul.bf16.gmra.mxu0 %v740
  %v1403 = vpop.f32.mrf.mxu0
  %v1404 = vadd.f32 0.0, %v1403
  %v1405 = vpop.f32.mrf.mxu0
  %v1406 = vadd.f32 0.0, %v1405
  %1407 = vmatmul.bf16.gmra.mxu0 %v743
  %v1408 = vpop.f32.mrf.mxu0
  %v1409 = vadd.f32 0.0, %v1408
  %v1410 = vpop.f32.mrf.mxu0
  %v1411 = vadd.f32 0.0, %v1410
  %1412 = vmatmul.bf16.gmra.mxu0 %v746
  %v1413 = vpop.f32.mrf.mxu0
  %v1414 = vadd.f32 0.0, %v1413
  %v1415 = vpop.f32.mrf.mxu0
  %v1416 = vadd.f32 0.0, %v1415
  %1417 = vmatmul.bf16.gmra.mxu0 %v749
  %v1418 = vpop.f32.mrf.mxu0
  %v1419 = vadd.f32 0.0, %v1418
  %v1420 = vpop.f32.mrf.mxu0
  %v1421 = vadd.f32 0.0, %v1420
  %1422 = vmatmul.bf16.gmra.mxu0 %v752
  %v1423 = vpop.f32.mrf.mxu0
  %v1424 = vadd.f32 0.0, %v1423
  %v1425 = vpop.f32.mrf.mxu0
  %v1426 = vadd.f32 0.0, %v1425
  %1427 = vmatmul.bf16.gmra.mxu0 %v755
  %v1428 = vpop.f32.mrf.mxu0
  %v1429 = vadd.f32 0.0, %v1428
  %v1430 = vpop.f32.mrf.mxu0
  %v1431 = vadd.f32 0.0, %v1430
  %1432 = vmatmul.bf16.gmra.mxu0 %v758
  %v1433 = vpop.f32.mrf.mxu0
  %v1434 = vadd.f32 0.0, %v1433
  %v1435 = vpop.f32.mrf.mxu0
  %v1436 = vadd.f32 0.0, %v1435
  %1437 = vmatmul.bf16.gmra.mxu0 %v761
  %v1438 = vpop.f32.mrf.mxu0
  %v1439 = vadd.f32 0.0, %v1438
  %v1440 = vpop.f32.mrf.mxu0
  %v1441 = vadd.f32 0.0, %v1440
  %1442 = vmatmul.bf16.gmra.mxu0 %v764
  %v1443 = vpop.f32.mrf.mxu0
  %v1444 = vadd.f32 0.0, %v1443
  %v1445 = vpop.f32.mrf.mxu0
  %v1446 = vadd.f32 0.0, %v1445
  %1447 = vmatmul.bf16.gmra.mxu0 %v767
  %v1448 = vpop.f32.mrf.mxu0
  %v1449 = vadd.f32 0.0, %v1448
  %v1450 = vpop.f32.mrf.mxu0
  %v1451 = vadd.f32 0.0, %v1450
  %1452 = vmatmul.bf16.gmra.mxu0 %v770
  %v1453 = vpop.f32.mrf.mxu0
  %v1454 = vadd.f32 0.0, %v1453
  %v1455 = vpop.f32.mrf.mxu0
  %v1456 = vadd.f32 0.0, %v1455
  %1457 = vmatmul.bf16.gmra.mxu0 %v773
  %v1458 = vpop.f32.mrf.mxu0
  %v1459 = vadd.f32 0.0, %v1458
  %v1460 = vpop.f32.mrf.mxu0
  %v1461 = vadd.f32 0.0, %v1460
  %1462 = vmatmul.bf16.gmra.mxu0 %v776
  %v1463 = vpop.f32.mrf.mxu0
  %v1464 = vadd.f32 0.0, %v1463
  %v1465 = vpop.f32.mrf.mxu0
  %v1466 = vadd.f32 0.0, %v1465
  %1467 = vmatmul.bf16.gmra.mxu0 %v779
  %v1468 = vpop.f32.mrf.mxu0
  %v1469 = vadd.f32 0.0, %v1468
  %v1470 = vpop.f32.mrf.mxu0
  %v1471 = vadd.f32 0.0, %v1470
  %1472 = vmatmul.bf16.gmra.mxu0 %v782
  %v1473 = vpop.f32.mrf.mxu0
  %v1474 = vadd.f32 0.0, %v1473
  %v1475 = vpop.f32.mrf.mxu0
  %v1476 = vadd.f32 0.0, %v1475
  %1477 = vmatmul.bf16.gmra.mxu0 %v785
  %v1478 = vpop.f32.mrf.mxu0
  %v1479 = vadd.f32 0.0, %v1478
  %v1480 = vpop.f32.mrf.mxu0
  %v1481 = vadd.f32 0.0, %v1480
  %1482 = vmatmul.bf16.gmra.mxu0 %v788
  %v1483 = vpop.f32.mrf.mxu0
  %v1484 = vadd.f32 0.0, %v1483
  %v1485 = vpop.f32.mrf.mxu0
  %v1486 = vadd.f32 0.0, %v1485
  %1487 = vmatmul.bf16.gmra.mxu0 %v791
  %v1488 = vpop.f32.mrf.mxu0
  %v1489 = vadd.f32 0.0, %v1488
  %v1490 = vpop.f32.mrf.mxu0
  %v1491 = vadd.f32 0.0, %v1490
  %1492 = vmatmul.bf16.gmra.mxu0 %v794
  %v1493 = vpop.f32.mrf.mxu0
  %v1494 = vadd.f32 0.0, %v1493
  %v1495 = vpop.f32.mrf.mxu0
  %v1496 = vadd.f32 0.0, %v1495
  %1497 = vmatmul.bf16.gmra.mxu0 %v797
  %v1498 = vpop.f32.mrf.mxu0
  %v1499 = vadd.f32 0.0, %v1498
  %v1500 = vpop.f32.mrf.mxu0
  %v1501 = vadd.f32 0.0, %v1500
  %1502 = vmatmul.bf16.gmra.mxu0 %v800
  %v1503 = vpop.f32.mrf.mxu0
  %v1504 = vadd.f32 0.0, %v1503
  %v1505 = vpop.f32.mrf.mxu0
  %v1506 = vadd.f32 0.0, %v1505
  %1507 = vmatmul.bf16.gmra.mxu0 %v803
  %v1508 = vpop.f32.mrf.mxu0
  %v1509 = vadd.f32 0.0, %v1508
  %v1510 = vpop.f32.mrf.mxu0
  %v1511 = vadd.f32 0.0, %v1510
  %1512 = vmatmul.bf16.gmra.mxu0 %v806
  %v1513 = vpop.f32.mrf.mxu0
  %v1514 = vadd.f32 0.0, %v1513
  %v1515 = vpop.f32.mrf.mxu0
  %v1516 = vadd.f32 0.0, %v1515
  %1517 = vmatmul.bf16.gmra.mxu0 %v809
  %v1518 = vpop.f32.mrf.mxu0
  %v1519 = vadd.f32 0.0, %v1518
  %v1520 = vpop.f32.mrf.mxu0
  %v1521 = vadd.f32 0.0, %v1520
  %1522 = vmatmul.bf16.gmra.mxu0 %v812
  %v1523 = vpop.f32.mrf.mxu0
  %v1524 = vadd.f32 0.0, %v1523
  %v1525 = vpop.f32.mrf.mxu0
  %v1526 = vadd.f32 0.0, %v1525
  %1527 = vmatmul.bf16.gmra.mxu0 %v815
  %v1528 = vpop.f32.mrf.mxu0
  %v1529 = vadd.f32 0.0, %v1528
  %v1530 = vpop.f32.mrf.mxu0
  %v1531 = vadd.f32 0.0, %v1530
  %1532 = vmatmul.bf16.gmra.mxu0 %v818
  %v1533 = vpop.f32.mrf.mxu0
  %v1534 = vadd.f32 0.0, %v1533
  %v1535 = vpop.f32.mrf.mxu0
  %v1536 = vadd.f32 0.0, %v1535
  %1537 = vmatmul.bf16.gmra.mxu0 %v821
  %v1538 = vpop.f32.mrf.mxu0
  %v1539 = vadd.f32 0.0, %v1538
  %v1540 = vpop.f32.mrf.mxu0
  %v1541 = vadd.f32 0.0, %v1540
  %1542 = vmatmul.bf16.gmra.mxu0 %v824
  %v1543 = vpop.f32.mrf.mxu0
  %v1544 = vadd.f32 0.0, %v1543
  %v1545 = vpop.f32.mrf.mxu0
  %v1546 = vadd.f32 0.0, %v1545
  %1547 = vmatmul.bf16.gmra.mxu0 %v827
  %v1548 = vpop.f32.mrf.mxu0
  %v1549 = vadd.f32 0.0, %v1548
  %v1550 = vpop.f32.mrf.mxu0
  %v1551 = vadd.f32 0.0, %v1550
  %1552 = vmatmul.bf16.gmra.mxu0 %v830
  %v1553 = vpop.f32.mrf.mxu0
  %v1554 = vadd.f32 0.0, %v1553
  %v1555 = vpop.f32.mrf.mxu0
  %v1556 = vadd.f32 0.0, %v1555
  %1557 = vmatmul.bf16.gmra.mxu0 %v833
  %v1558 = vpop.f32.mrf.mxu0
  %v1559 = vadd.f32 0.0, %v1558
  %v1560 = vpop.f32.mrf.mxu0
  %v1561 = vadd.f32 0.0, %v1560
  %1562 = vmatmul.bf16.gmra.mxu0 %v836
  %v1563 = vpop.f32.mrf.mxu0
  %v1564 = vadd.f32 0.0, %v1563
  %v1565 = vpop.f32.mrf.mxu0
  %v1566 = vadd.f32 0.0, %v1565
  %1567 = vmatmul.bf16.gmra.mxu0 %v839
  %v1568 = vpop.f32.mrf.mxu0
  %v1569 = vadd.f32 0.0, %v1568
  %v1570 = vpop.f32.mrf.mxu0
  %v1571 = vadd.f32 0.0, %v1570
  %1572 = vmatmul.bf16.gmra.mxu0 %v842
  %v1573 = vpop.f32.mrf.mxu0
  %v1574 = vadd.f32 0.0, %v1573
  %v1575 = vpop.f32.mrf.mxu0
  %v1576 = vadd.f32 0.0, %v1575
  %1577 = vmatmul.bf16.gmra.mxu0 %v845
  %v1578 = vpop.f32.mrf.mxu0
  %v1579 = vadd.f32 0.0, %v1578
  %v1580 = vpop.f32.mrf.mxu0
  %v1581 = vadd.f32 0.0, %v1580
  %1582 = vmatmul.bf16.gmra.mxu0 %v848
  %v1583 = vpop.f32.mrf.mxu0
  %v1584 = vadd.f32 0.0, %v1583
  %v1585 = vpop.f32.mrf.mxu0
  %v1586 = vadd.f32 0.0, %v1585
  %1587 = vdwg.mxu0
  %1588 = vmatpush.bf16.msra.mxu0 0
  %1589 = vmatpush.bf16.msra.mxu0 0
  %1590 = vmatpush.bf16.msra.mxu0 0
  %1591 = vmatpush.bf16.msra.mxu0 0
  %1592 = vmatpush.bf16.msra.mxu0 %v615
  %1593 = vmatpush.bf16.msra.mxu0 %v611
  %1594 = vmatpush.bf16.msra.mxu0 %v607
  %1595 = vmatpush.bf16.msra.mxu0 %v603
  %1596 = vmatmul.bf16.gmra.mxu0 %v635
  %v1597 = vpop.f32.mrf.mxu0
  %v1598 = vadd.f32 0.0, %v1597
  %v1599 = vpop.f32.mrf.mxu0
  %v1600 = vadd.f32 0.0, %v1599
  %1601 = vmatmul.bf16.gmra.mxu0 %v638
  %v1602 = vpop.f32.mrf.mxu0
  %v1603 = vadd.f32 0.0, %v1602
  %v1604 = vpop.f32.mrf.mxu0
  %v1605 = vadd.f32 0.0, %v1604
  %1606 = vmatmul.bf16.gmra.mxu0 %v641
  %v1607 = vpop.f32.mrf.mxu0
  %v1608 = vadd.f32 0.0, %v1607
  %v1609 = vpop.f32.mrf.mxu0
  %v1610 = vadd.f32 0.0, %v1609
  %1611 = vmatmul.bf16.gmra.mxu0 %v644
  %v1612 = vpop.f32.mrf.mxu0
  %v1613 = vadd.f32 0.0, %v1612
  %v1614 = vpop.f32.mrf.mxu0
  %v1615 = vadd.f32 0.0, %v1614
  %1616 = vmatmul.bf16.gmra.mxu0 %v647
  %v1617 = vpop.f32.mrf.mxu0
  %v1618 = vadd.f32 0.0, %v1617
  %v1619 = vpop.f32.mrf.mxu0
  %v1620 = vadd.f32 0.0, %v1619
  %1621 = vmatmul.bf16.gmra.mxu0 %v650
  %v1622 = vpop.f32.mrf.mxu0
  %v1623 = vadd.f32 0.0, %v1622
  %v1624 = vpop.f32.mrf.mxu0
  %v1625 = vadd.f32 0.0, %v1624
  %1626 = vmatmul.bf16.gmra.mxu0 %v653
  %v1627 = vpop.f32.mrf.mxu0
  %v1628 = vadd.f32 0.0, %v1627
  %v1629 = vpop.f32.mrf.mxu0
  %v1630 = vadd.f32 0.0, %v1629
  %1631 = vmatmul.bf16.gmra.mxu0 %v656
  %v1632 = vpop.f32.mrf.mxu0
  %v1633 = vadd.f32 0.0, %v1632
  %v1634 = vpop.f32.mrf.mxu0
  %v1635 = vadd.f32 0.0, %v1634
  %1636 = vmatmul.bf16.gmra.mxu0 %v659
  %v1637 = vpop.f32.mrf.mxu0
  %v1638 = vadd.f32 0.0, %v1637
  %v1639 = vpop.f32.mrf.mxu0
  %v1640 = vadd.f32 0.0, %v1639
  %1641 = vmatmul.bf16.gmra.mxu0 %v662
  %v1642 = vpop.f32.mrf.mxu0
  %v1643 = vadd.f32 0.0, %v1642
  %v1644 = vpop.f32.mrf.mxu0
  %v1645 = vadd.f32 0.0, %v1644
  %1646 = vmatmul.bf16.gmra.mxu0 %v665
  %v1647 = vpop.f32.mrf.mxu0
  %v1648 = vadd.f32 0.0, %v1647
  %v1649 = vpop.f32.mrf.mxu0
  %v1650 = vadd.f32 0.0, %v1649
  %1651 = vmatmul.bf16.gmra.mxu0 %v668
  %v1652 = vpop.f32.mrf.mxu0
  %v1653 = vadd.f32 0.0, %v1652
  %v1654 = vpop.f32.mrf.mxu0
  %v1655 = vadd.f32 0.0, %v1654
  %1656 = vmatmul.bf16.gmra.mxu0 %v671
  %v1657 = vpop.f32.mrf.mxu0
  %v1658 = vadd.f32 0.0, %v1657
  %v1659 = vpop.f32.mrf.mxu0
  %v1660 = vadd.f32 0.0, %v1659
  %1661 = vmatmul.bf16.gmra.mxu0 %v674
  %v1662 = vpop.f32.mrf.mxu0
  %v1663 = vadd.f32 0.0, %v1662
  %v1664 = vpop.f32.mrf.mxu0
  %v1665 = vadd.f32 0.0, %v1664
  %1666 = vmatmul.bf16.gmra.mxu0 %v677
  %v1667 = vpop.f32.mrf.mxu0
  %v1668 = vadd.f32 0.0, %v1667
  %v1669 = vpop.f32.mrf.mxu0
  %v1670 = vadd.f32 0.0, %v1669
  %1671 = vmatmul.bf16.gmra.mxu0 %v680
  %v1672 = vpop.f32.mrf.mxu0
  %v1673 = vadd.f32 0.0, %v1672
  %v1674 = vpop.f32.mrf.mxu0
  %v1675 = vadd.f32 0.0, %v1674
  %1676 = vmatmul.bf16.gmra.mxu0 %v683
  %v1677 = vpop.f32.mrf.mxu0
  %v1678 = vadd.f32 0.0, %v1677
  %v1679 = vpop.f32.mrf.mxu0
  %v1680 = vadd.f32 0.0, %v1679
  %1681 = vmatmul.bf16.gmra.mxu0 %v686
  %v1682 = vpop.f32.mrf.mxu0
  %v1683 = vadd.f32 0.0, %v1682
  %v1684 = vpop.f32.mrf.mxu0
  %v1685 = vadd.f32 0.0, %v1684
  %1686 = vmatmul.bf16.gmra.mxu0 %v689
  %v1687 = vpop.f32.mrf.mxu0
  %v1688 = vadd.f32 0.0, %v1687
  %v1689 = vpop.f32.mrf.mxu0
  %v1690 = vadd.f32 0.0, %v1689
  %1691 = vmatmul.bf16.gmra.mxu0 %v692
  %v1692 = vpop.f32.mrf.mxu0
  %v1693 = vadd.f32 0.0, %v1692
  %v1694 = vpop.f32.mrf.mxu0
  %v1695 = vadd.f32 0.0, %v1694
  %1696 = vmatmul.bf16.gmra.mxu0 %v695
  %v1697 = vpop.f32.mrf.mxu0
  %v1698 = vadd.f32 0.0, %v1697
  %v1699 = vpop.f32.mrf.mxu0
  %v1700 = vadd.f32 0.0, %v1699
  %1701 = vmatmul.bf16.gmra.mxu0 %v698
  %v1702 = vpop.f32.mrf.mxu0
  %v1703 = vadd.f32 0.0, %v1702
  %v1704 = vpop.f32.mrf.mxu0
  %v1705 = vadd.f32 0.0, %v1704
  %1706 = vmatmul.bf16.gmra.mxu0 %v701
  %v1707 = vpop.f32.mrf.mxu0
  %v1708 = vadd.f32 0.0, %v1707
  %v1709 = vpop.f32.mrf.mxu0
  %v1710 = vadd.f32 0.0, %v1709
  %1711 = vmatmul.bf16.gmra.mxu0 %v704
  %v1712 = vpop.f32.mrf.mxu0
  %v1713 = vadd.f32 0.0, %v1712
  %v1714 = vpop.f32.mrf.mxu0
  %v1715 = vadd.f32 0.0, %v1714
  %1716 = vmatmul.bf16.gmra.mxu0 %v707
  %v1717 = vpop.f32.mrf.mxu0
  %v1718 = vadd.f32 0.0, %v1717
  %v1719 = vpop.f32.mrf.mxu0
  %v1720 = vadd.f32 0.0, %v1719
  %1721 = vmatmul.bf16.gmra.mxu0 %v710
  %v1722 = vpop.f32.mrf.mxu0
  %v1723 = vadd.f32 0.0, %v1722
  %v1724 = vpop.f32.mrf.mxu0
  %v1725 = vadd.f32 0.0, %v1724
  %1726 = vmatmul.bf16.gmra.mxu0 %v713
  %v1727 = vpop.f32.mrf.mxu0
  %v1728 = vadd.f32 0.0, %v1727
  %v1729 = vpop.f32.mrf.mxu0
  %v1730 = vadd.f32 0.0, %v1729
  %1731 = vmatmul.bf16.gmra.mxu0 %v716
  %v1732 = vpop.f32.mrf.mxu0
  %v1733 = vadd.f32 0.0, %v1732
  %v1734 = vpop.f32.mrf.mxu0
  %v1735 = vadd.f32 0.0, %v1734
  %1736 = vmatmul.bf16.gmra.mxu0 %v719
  %v1737 = vpop.f32.mrf.mxu0
  %v1738 = vadd.f32 0.0, %v1737
  %v1739 = vpop.f32.mrf.mxu0
  %v1740 = vadd.f32 0.0, %v1739
  %1741 = vmatmul.bf16.gmra.mxu0 %v722
  %v1742 = vpop.f32.mrf.mxu0
  %v1743 = vadd.f32 0.0, %v1742
  %v1744 = vpop.f32.mrf.mxu0
  %v1745 = vadd.f32 0.0, %v1744
  %1746 = vmatmul.bf16.gmra.mxu0 %v725
  %v1747 = vpop.f32.mrf.mxu0
  %v1748 = vadd.f32 0.0, %v1747
  %v1749 = vpop.f32.mrf.mxu0
  %v1750 = vadd.f32 0.0, %v1749
  %1751 = vmatmul.bf16.gmra.mxu0 %v728
  %v1752 = vpop.f32.mrf.mxu0
  %v1753 = vadd.f32 0.0, %v1752
  %v1754 = vpop.f32.mrf.mxu0
  %v1755 = vadd.f32 0.0, %v1754
  %1756 = vmatmul.bf16.gmra.mxu0 %v731
  %v1757 = vpop.f32.mrf.mxu0
  %v1758 = vadd.f32 0.0, %v1757
  %v1759 = vpop.f32.mrf.mxu0
  %v1760 = vadd.f32 0.0, %v1759
  %1761 = vmatmul.bf16.gmra.mxu0 %v734
  %v1762 = vpop.f32.mrf.mxu0
  %v1763 = vadd.f32 0.0, %v1762
  %v1764 = vpop.f32.mrf.mxu0
  %v1765 = vadd.f32 0.0, %v1764
  %1766 = vmatmul.bf16.gmra.mxu0 %v737
  %v1767 = vpop.f32.mrf.mxu0
  %v1768 = vadd.f32 0.0, %v1767
  %v1769 = vpop.f32.mrf.mxu0
  %v1770 = vadd.f32 0.0, %v1769
  %1771 = vmatmul.bf16.gmra.mxu0 %v740
  %v1772 = vpop.f32.mrf.mxu0
  %v1773 = vadd.f32 0.0, %v1772
  %v1774 = vpop.f32.mrf.mxu0
  %v1775 = vadd.f32 0.0, %v1774
  %1776 = vmatmul.bf16.gmra.mxu0 %v743
  %v1777 = vpop.f32.mrf.mxu0
  %v1778 = vadd.f32 0.0, %v1777
  %v1779 = vpop.f32.mrf.mxu0
  %v1780 = vadd.f32 0.0, %v1779
  %1781 = vmatmul.bf16.gmra.mxu0 %v746
  %v1782 = vpop.f32.mrf.mxu0
  %v1783 = vadd.f32 0.0, %v1782
  %v1784 = vpop.f32.mrf.mxu0
  %v1785 = vadd.f32 0.0, %v1784
  %1786 = vmatmul.bf16.gmra.mxu0 %v749
  %v1787 = vpop.f32.mrf.mxu0
  %v1788 = vadd.f32 0.0, %v1787
  %v1789 = vpop.f32.mrf.mxu0
  %v1790 = vadd.f32 0.0, %v1789
  %1791 = vmatmul.bf16.gmra.mxu0 %v752
  %v1792 = vpop.f32.mrf.mxu0
  %v1793 = vadd.f32 0.0, %v1792
  %v1794 = vpop.f32.mrf.mxu0
  %v1795 = vadd.f32 0.0, %v1794
  %1796 = vmatmul.bf16.gmra.mxu0 %v755
  %v1797 = vpop.f32.mrf.mxu0
  %v1798 = vadd.f32 0.0, %v1797
  %v1799 = vpop.f32.mrf.mxu0
  %v1800 = vadd.f32 0.0, %v1799
  %1801 = vmatmul.bf16.gmra.mxu0 %v758
  %v1802 = vpop.f32.mrf.mxu0
  %v1803 = vadd.f32 0.0, %v1802
  %v1804 = vpop.f32.mrf.mxu0
  %v1805 = vadd.f32 0.0, %v1804
  %1806 = vmatmul.bf16.gmra.mxu0 %v761
  %v1807 = vpop.f32.mrf.mxu0
  %v1808 = vadd.f32 0.0, %v1807
  %v1809 = vpop.f32.mrf.mxu0
  %v1810 = vadd.f32 0.0, %v1809
  %1811 = vmatmul.bf16.gmra.mxu0 %v764
  %v1812 = vpop.f32.mrf.mxu0
  %v1813 = vadd.f32 0.0, %v1812
  %v1814 = vpop.f32.mrf.mxu0
  %v1815 = vadd.f32 0.0, %v1814
  %1816 = vmatmul.bf16.gmra.mxu0 %v767
  %v1817 = vpop.f32.mrf.mxu0
  %v1818 = vadd.f32 0.0, %v1817
  %v1819 = vpop.f32.mrf.mxu0
  %v1820 = vadd.f32 0.0, %v1819
  %1821 = vmatmul.bf16.gmra.mxu0 %v770
  %v1822 = vpop.f32.mrf.mxu0
  %v1823 = vadd.f32 0.0, %v1822
  %v1824 = vpop.f32.mrf.mxu0
  %v1825 = vadd.f32 0.0, %v1824
  %1826 = vmatmul.bf16.gmra.mxu0 %v773
  %v1827 = vpop.f32.mrf.mxu0
  %v1828 = vadd.f32 0.0, %v1827
  %v1829 = vpop.f32.mrf.mxu0
  %v1830 = vadd.f32 0.0, %v1829
  %1831 = vmatmul.bf16.gmra.mxu0 %v776
  %v1832 = vpop.f32.mrf.mxu0
  %v1833 = vadd.f32 0.0, %v1832
  %v1834 = vpop.f32.mrf.mxu0
  %v1835 = vadd.f32 0.0, %v1834
  %1836 = vmatmul.bf16.gmra.mxu0 %v779
  %v1837 = vpop.f32.mrf.mxu0
  %v1838 = vadd.f32 0.0, %v1837
  %v1839 = vpop.f32.mrf.mxu0
  %v1840 = vadd.f32 0.0, %v1839
  %1841 = vmatmul.bf16.gmra.mxu0 %v782
  %v1842 = vpop.f32.mrf.mxu0
  %v1843 = vadd.f32 0.0, %v1842
  %v1844 = vpop.f32.mrf.mxu0
  %v1845 = vadd.f32 0.0, %v1844
  %1846 = vmatmul.bf16.gmra.mxu0 %v785
  %v1847 = vpop.f32.mrf.mxu0
  %v1848 = vadd.f32 0.0, %v1847
  %v1849 = vpop.f32.mrf.mxu0
  %v1850 = vadd.f32 0.0, %v1849
  %1851 = vmatmul.bf16.gmra.mxu0 %v788
  %v1852 = vpop.f32.mrf.mxu0
  %v1853 = vadd.f32 0.0, %v1852
  %v1854 = vpop.f32.mrf.mxu0
  %v1855 = vadd.f32 0.0, %v1854
  %1856 = vmatmul.bf16.gmra.mxu0 %v791
  %v1857 = vpop.f32.mrf.mxu0
  %v1858 = vadd.f32 0.0, %v1857
  %v1859 = vpop.f32.mrf.mxu0
  %v1860 = vadd.f32 0.0, %v1859
  %1861 = vmatmul.bf16.gmra.mxu0 %v794
  %v1862 = vpop.f32.mrf.mxu0
  %v1863 = vadd.f32 0.0, %v1862
  %v1864 = vpop.f32.mrf.mxu0
  %v1865 = vadd.f32 0.0, %v1864
  %1866 = vmatmul.bf16.gmra.mxu0 %v797
  %v1867 = vpop.f32.mrf.mxu0
  %v1868 = vadd.f32 0.0, %v1867
  %v1869 = vpop.f32.mrf.mxu0
  %v1870 = vadd.f32 0.0, %v1869
  %1871 = vmatmul.bf16.gmra.mxu0 %v800
  %v1872 = vpop.f32.mrf.mxu0
  %v1873 = vadd.f32 0.0, %v1872
  %v1874 = vpop.f32.mrf.mxu0
  %v1875 = vadd.f32 0.0, %v1874
  %1876 = vmatmul.bf16.gmra.mxu0 %v803
  %v1877 = vpop.f32.mrf.mxu0
  %v1878 = vadd.f32 0.0, %v1877
  %v1879 = vpop.f32.mrf.mxu0
  %v1880 = vadd.f32 0.0, %v1879
  %1881 = vmatmul.bf16.gmra.mxu0 %v806
  %v1882 = vpop.f32.mrf.mxu0
  %v1883 = vadd.f32 0.0, %v1882
  %v1884 = vpop.f32.mrf.mxu0
  %v1885 = vadd.f32 0.0, %v1884
  %1886 = vmatmul.bf16.gmra.mxu0 %v809
  %v1887 = vpop.f32.mrf.mxu0
  %v1888 = vadd.f32 0.0, %v1887
  %v1889 = vpop.f32.mrf.mxu0
  %v1890 = vadd.f32 0.0, %v1889
  %1891 = vmatmul.bf16.gmra.mxu0 %v812
  %v1892 = vpop.f32.mrf.mxu0
  %v1893 = vadd.f32 0.0, %v1892
  %v1894 = vpop.f32.mrf.mxu0
  %v1895 = vadd.f32 0.0, %v1894
  %1896 = vmatmul.bf16.gmra.mxu0 %v815
  %v1897 = vpop.f32.mrf.mxu0
  %v1898 = vadd.f32 0.0, %v1897
  %v1899 = vpop.f32.mrf.mxu0
  %v1900 = vadd.f32 0.0, %v1899
  %1901 = vmatmul.bf16.gmra.mxu0 %v818
  %v1902 = vpop.f32.mrf.mxu0
  %v1903 = vadd.f32 0.0, %v1902
  %v1904 = vpop.f32.mrf.mxu0
  %v1905 = vadd.f32 0.0, %v1904
  %1906 = vmatmul.bf16.gmra.mxu0 %v821
  %v1907 = vpop.f32.mrf.mxu0
  %v1908 = vadd.f32 0.0, %v1907
  %v1909 = vpop.f32.mrf.mxu0
  %v1910 = vadd.f32 0.0, %v1909
  %1911 = vmatmul.bf16.gmra.mxu0 %v824
  %v1912 = vpop.f32.mrf.mxu0
  %v1913 = vadd.f32 0.0, %v1912
  %v1914 = vpop.f32.mrf.mxu0
  %v1915 = vadd.f32 0.0, %v1914
  %1916 = vmatmul.bf16.gmra.mxu0 %v827
  %v1917 = vpop.f32.mrf.mxu0
  %v1918 = vadd.f32 0.0, %v1917
  %v1919 = vpop.f32.mrf.mxu0
  %v1920 = vadd.f32 0.0, %v1919
  %1921 = vmatmul.bf16.gmra.mxu0 %v830
  %v1922 = vpop.f32.mrf.mxu0
  %v1923 = vadd.f32 0.0, %v1922
  %v1924 = vpop.f32.mrf.mxu0
  %v1925 = vadd.f32 0.0, %v1924
  %1926 = vmatmul.bf16.gmra.mxu0 %v833
  %v1927 = vpop.f32.mrf.mxu0
  %v1928 = vadd.f32 0.0, %v1927
  %v1929 = vpop.f32.mrf.mxu0
  %v1930 = vadd.f32 0.0, %v1929
  %1931 = vmatmul.bf16.gmra.mxu0 %v836
  %v1932 = vpop.f32.mrf.mxu0
  %v1933 = vadd.f32 0.0, %v1932
  %v1934 = vpop.f32.mrf.mxu0
  %v1935 = vadd.f32 0.0, %v1934
  %1936 = vmatmul.bf16.gmra.mxu0 %v839
  %v1937 = vpop.f32.mrf.mxu0
  %v1938 = vadd.f32 0.0, %v1937
  %v1939 = vpop.f32.mrf.mxu0
  %v1940 = vadd.f32 0.0, %v1939
  %1941 = vmatmul.bf16.gmra.mxu0 %v842
  %v1942 = vpop.f32.mrf.mxu0
  %v1943 = vadd.f32 0.0, %v1942
  %v1944 = vpop.f32.mrf.mxu0
  %v1945 = vadd.f32 0.0, %v1944
  %1946 = vmatmul.bf16.gmra.mxu0 %v845
  %v1947 = vpop.f32.mrf.mxu0
  %v1948 = vadd.f32 0.0, %v1947
  %v1949 = vpop.f32.mrf.mxu0
  %v1950 = vadd.f32 0.0, %v1949
  %1951 = vmatmul.bf16.gmra.mxu0 %v848
  %v1952 = vpop.f32.mrf.mxu0
  %v1953 = vadd.f32 0.0, %v1952
  %v1954 = vpop.f32.mrf.mxu0
  %v1955 = vadd.f32 0.0, %v1954
  %1956 = vdwg.mxu0
  %1957 = vmatpush.bf16.msra.mxu0 0
  %1958 = vmatpush.bf16.msra.mxu0 0
  %1959 = vmatpush.bf16.msra.mxu0 0
  %1960 = vmatpush.bf16.msra.mxu0 0
  %1961 = vmatpush.bf16.msra.mxu0 %v616
  %1962 = vmatpush.bf16.msra.mxu0 %v612
  %1963 = vmatpush.bf16.msra.mxu0 %v608
  %1964 = vmatpush.bf16.msra.mxu0 %v604
  %1965 = vmatmul.bf16.gmra.mxu0 %v635
  %v1966 = vpop.f32.mrf.mxu0
  %v1967 = vadd.f32 0.0, %v1966
  %v1968 = vpop.f32.mrf.mxu0
  %v1969 = vadd.f32 0.0, %v1968
  %1970 = vmatmul.bf16.gmra.mxu0 %v638
  %v1971 = vpop.f32.mrf.mxu0
  %v1972 = vadd.f32 0.0, %v1971
  %v1973 = vpop.f32.mrf.mxu0
  %v1974 = vadd.f32 0.0, %v1973
  %1975 = vmatmul.bf16.gmra.mxu0 %v641
  %v1976 = vpop.f32.mrf.mxu0
  %v1977 = vadd.f32 0.0, %v1976
  %v1978 = vpop.f32.mrf.mxu0
  %v1979 = vadd.f32 0.0, %v1978
  %1980 = vmatmul.bf16.gmra.mxu0 %v644
  %v1981 = vpop.f32.mrf.mxu0
  %v1982 = vadd.f32 0.0, %v1981
  %v1983 = vpop.f32.mrf.mxu0
  %v1984 = vadd.f32 0.0, %v1983
  %1985 = vmatmul.bf16.gmra.mxu0 %v647
  %v1986 = vpop.f32.mrf.mxu0
  %v1987 = vadd.f32 0.0, %v1986
  %v1988 = vpop.f32.mrf.mxu0
  %v1989 = vadd.f32 0.0, %v1988
  %1990 = vmatmul.bf16.gmra.mxu0 %v650
  %v1991 = vpop.f32.mrf.mxu0
  %v1992 = vadd.f32 0.0, %v1991
  %v1993 = vpop.f32.mrf.mxu0
  %v1994 = vadd.f32 0.0, %v1993
  %1995 = vmatmul.bf16.gmra.mxu0 %v653
  %v1996 = vpop.f32.mrf.mxu0
  %v1997 = vadd.f32 0.0, %v1996
  %v1998 = vpop.f32.mrf.mxu0
  %v1999 = vadd.f32 0.0, %v1998
  %2000 = vmatmul.bf16.gmra.mxu0 %v656
  %v2001 = vpop.f32.mrf.mxu0
  %v2002 = vadd.f32 0.0, %v2001
  %v2003 = vpop.f32.mrf.mxu0
  %v2004 = vadd.f32 0.0, %v2003
  %2005 = vmatmul.bf16.gmra.mxu0 %v659
  %v2006 = vpop.f32.mrf.mxu0
  %v2007 = vadd.f32 0.0, %v2006
  %v2008 = vpop.f32.mrf.mxu0
  %v2009 = vadd.f32 0.0, %v2008
  %2010 = vmatmul.bf16.gmra.mxu0 %v662
  %v2011 = vpop.f32.mrf.mxu0
  %v2012 = vadd.f32 0.0, %v2011
  %v2013 = vpop.f32.mrf.mxu0
  %v2014 = vadd.f32 0.0, %v2013
  %2015 = vmatmul.bf16.gmra.mxu0 %v665
  %v2016 = vpop.f32.mrf.mxu0
  %v2017 = vadd.f32 0.0, %v2016
  %v2018 = vpop.f32.mrf.mxu0
  %v2019 = vadd.f32 0.0, %v2018
  %2020 = vmatmul.bf16.gmra.mxu0 %v668
  %v2021 = vpop.f32.mrf.mxu0
  %v2022 = vadd.f32 0.0, %v2021
  %v2023 = vpop.f32.mrf.mxu0
  %v2024 = vadd.f32 0.0, %v2023
  %2025 = vmatmul.bf16.gmra.mxu0 %v671
  %v2026 = vpop.f32.mrf.mxu0
  %v2027 = vadd.f32 0.0, %v2026
  %v2028 = vpop.f32.mrf.mxu0
  %v2029 = vadd.f32 0.0, %v2028
  %2030 = vmatmul.bf16.gmra.mxu0 %v674
  %v2031 = vpop.f32.mrf.mxu0
  %v2032 = vadd.f32 0.0, %v2031
  %v2033 = vpop.f32.mrf.mxu0
  %v2034 = vadd.f32 0.0, %v2033
  %2035 = vmatmul.bf16.gmra.mxu0 %v677
  %v2036 = vpop.f32.mrf.mxu0
  %v2037 = vadd.f32 0.0, %v2036
  %v2038 = vpop.f32.mrf.mxu0
  %v2039 = vadd.f32 0.0, %v2038
  %2040 = vmatmul.bf16.gmra.mxu0 %v680
  %v2041 = vpop.f32.mrf.mxu0
  %v2042 = vadd.f32 0.0, %v2041
  %v2043 = vpop.f32.mrf.mxu0
  %v2044 = vadd.f32 0.0, %v2043
  %2045 = vmatmul.bf16.gmra.mxu0 %v683
  %v2046 = vpop.f32.mrf.mxu0
  %v2047 = vadd.f32 0.0, %v2046
  %v2048 = vpop.f32.mrf.mxu0
  %v2049 = vadd.f32 0.0, %v2048
  %2050 = vmatmul.bf16.gmra.mxu0 %v686
  %v2051 = vpop.f32.mrf.mxu0
  %v2052 = vadd.f32 0.0, %v2051
  %v2053 = vpop.f32.mrf.mxu0
  %v2054 = vadd.f32 0.0, %v2053
  %2055 = vmatmul.bf16.gmra.mxu0 %v689
  %v2056 = vpop.f32.mrf.mxu0
  %v2057 = vadd.f32 0.0, %v2056
  %v2058 = vpop.f32.mrf.mxu0
  %v2059 = vadd.f32 0.0, %v2058
  %2060 = vmatmul.bf16.gmra.mxu0 %v692
  %v2061 = vpop.f32.mrf.mxu0
  %v2062 = vadd.f32 0.0, %v2061
  %v2063 = vpop.f32.mrf.mxu0
  %v2064 = vadd.f32 0.0, %v2063
  %2065 = vmatmul.bf16.gmra.mxu0 %v695
  %v2066 = vpop.f32.mrf.mxu0
  %v2067 = vadd.f32 0.0, %v2066
  %v2068 = vpop.f32.mrf.mxu0
  %v2069 = vadd.f32 0.0, %v2068
  %2070 = vmatmul.bf16.gmra.mxu0 %v698
  %v2071 = vpop.f32.mrf.mxu0
  %v2072 = vadd.f32 0.0, %v2071
  %v2073 = vpop.f32.mrf.mxu0
  %v2074 = vadd.f32 0.0, %v2073
  %2075 = vmatmul.bf16.gmra.mxu0 %v701
  %v2076 = vpop.f32.mrf.mxu0
  %v2077 = vadd.f32 0.0, %v2076
  %v2078 = vpop.f32.mrf.mxu0
  %v2079 = vadd.f32 0.0, %v2078
  %2080 = vmatmul.bf16.gmra.mxu0 %v704
  %v2081 = vpop.f32.mrf.mxu0
  %v2082 = vadd.f32 0.0, %v2081
  %v2083 = vpop.f32.mrf.mxu0
  %v2084 = vadd.f32 0.0, %v2083
  %2085 = vmatmul.bf16.gmra.mxu0 %v707
  %v2086 = vpop.f32.mrf.mxu0
  %v2087 = vadd.f32 0.0, %v2086
  %v2088 = vpop.f32.mrf.mxu0
  %v2089 = vadd.f32 0.0, %v2088
  %2090 = vmatmul.bf16.gmra.mxu0 %v710
  %v2091 = vpop.f32.mrf.mxu0
  %v2092 = vadd.f32 0.0, %v2091
  %v2093 = vpop.f32.mrf.mxu0
  %v2094 = vadd.f32 0.0, %v2093
  %2095 = vmatmul.bf16.gmra.mxu0 %v713
  %v2096 = vpop.f32.mrf.mxu0
  %v2097 = vadd.f32 0.0, %v2096
  %v2098 = vpop.f32.mrf.mxu0
  %v2099 = vadd.f32 0.0, %v2098
  %2100 = vmatmul.bf16.gmra.mxu0 %v716
  %v2101 = vpop.f32.mrf.mxu0
  %v2102 = vadd.f32 0.0, %v2101
  %v2103 = vpop.f32.mrf.mxu0
  %v2104 = vadd.f32 0.0, %v2103
  %2105 = vmatmul.bf16.gmra.mxu0 %v719
  %v2106 = vpop.f32.mrf.mxu0
  %v2107 = vadd.f32 0.0, %v2106
  %v2108 = vpop.f32.mrf.mxu0
  %v2109 = vadd.f32 0.0, %v2108
  %2110 = vmatmul.bf16.gmra.mxu0 %v722
  %v2111 = vpop.f32.mrf.mxu0
  %v2112 = vadd.f32 0.0, %v2111
  %v2113 = vpop.f32.mrf.mxu0
  %v2114 = vadd.f32 0.0, %v2113
  %2115 = vmatmul.bf16.gmra.mxu0 %v725
  %v2116 = vpop.f32.mrf.mxu0
  %v2117 = vadd.f32 0.0, %v2116
  %v2118 = vpop.f32.mrf.mxu0
  %v2119 = vadd.f32 0.0, %v2118
  %2120 = vmatmul.bf16.gmra.mxu0 %v728
  %v2121 = vpop.f32.mrf.mxu0
  %v2122 = vadd.f32 0.0, %v2121
  %v2123 = vpop.f32.mrf.mxu0
  %v2124 = vadd.f32 0.0, %v2123
  %2125 = vmatmul.bf16.gmra.mxu0 %v731
  %v2126 = vpop.f32.mrf.mxu0
  %v2127 = vadd.f32 0.0, %v2126
  %v2128 = vpop.f32.mrf.mxu0
  %v2129 = vadd.f32 0.0, %v2128
  %2130 = vmatmul.bf16.gmra.mxu0 %v734
  %v2131 = vpop.f32.mrf.mxu0
  %v2132 = vadd.f32 0.0, %v2131
  %v2133 = vpop.f32.mrf.mxu0
  %v2134 = vadd.f32 0.0, %v2133
  %2135 = vmatmul.bf16.gmra.mxu0 %v737
  %v2136 = vpop.f32.mrf.mxu0
  %v2137 = vadd.f32 0.0, %v2136
  %v2138 = vpop.f32.mrf.mxu0
  %v2139 = vadd.f32 0.0, %v2138
  %2140 = vmatmul.bf16.gmra.mxu0 %v740
  %v2141 = vpop.f32.mrf.mxu0
  %v2142 = vadd.f32 0.0, %v2141
  %v2143 = vpop.f32.mrf.mxu0
  %v2144 = vadd.f32 0.0, %v2143
  %2145 = vmatmul.bf16.gmra.mxu0 %v743
  %v2146 = vpop.f32.mrf.mxu0
  %v2147 = vadd.f32 0.0, %v2146
  %v2148 = vpop.f32.mrf.mxu0
  %v2149 = vadd.f32 0.0, %v2148
  %2150 = vmatmul.bf16.gmra.mxu0 %v746
  %v2151 = vpop.f32.mrf.mxu0
  %v2152 = vadd.f32 0.0, %v2151
  %v2153 = vpop.f32.mrf.mxu0
  %v2154 = vadd.f32 0.0, %v2153
  %2155 = vmatmul.bf16.gmra.mxu0 %v749
  %v2156 = vpop.f32.mrf.mxu0
  %v2157 = vadd.f32 0.0, %v2156
  %v2158 = vpop.f32.mrf.mxu0
  %v2159 = vadd.f32 0.0, %v2158
  %2160 = vmatmul.bf16.gmra.mxu0 %v752
  %v2161 = vpop.f32.mrf.mxu0
  %v2162 = vadd.f32 0.0, %v2161
  %v2163 = vpop.f32.mrf.mxu0
  %v2164 = vadd.f32 0.0, %v2163
  %2165 = vmatmul.bf16.gmra.mxu0 %v755
  %v2166 = vpop.f32.mrf.mxu0
  %v2167 = vadd.f32 0.0, %v2166
  %v2168 = vpop.f32.mrf.mxu0
  %v2169 = vadd.f32 0.0, %v2168
  %2170 = vmatmul.bf16.gmra.mxu0 %v758
  %v2171 = vpop.f32.mrf.mxu0
  %v2172 = vadd.f32 0.0, %v2171
  %v2173 = vpop.f32.mrf.mxu0
  %v2174 = vadd.f32 0.0, %v2173
  %2175 = vmatmul.bf16.gmra.mxu0 %v761
  %v2176 = vpop.f32.mrf.mxu0
  %v2177 = vadd.f32 0.0, %v2176
  %v2178 = vpop.f32.mrf.mxu0
  %v2179 = vadd.f32 0.0, %v2178
  %2180 = vmatmul.bf16.gmra.mxu0 %v764
  %v2181 = vpop.f32.mrf.mxu0
  %v2182 = vadd.f32 0.0, %v2181
  %v2183 = vpop.f32.mrf.mxu0
  %v2184 = vadd.f32 0.0, %v2183
  %2185 = vmatmul.bf16.gmra.mxu0 %v767
  %v2186 = vpop.f32.mrf.mxu0
  %v2187 = vadd.f32 0.0, %v2186
  %v2188 = vpop.f32.mrf.mxu0
  %v2189 = vadd.f32 0.0, %v2188
  %2190 = vmatmul.bf16.gmra.mxu0 %v770
  %v2191 = vpop.f32.mrf.mxu0
  %v2192 = vadd.f32 0.0, %v2191
  %v2193 = vpop.f32.mrf.mxu0
  %v2194 = vadd.f32 0.0, %v2193
  %2195 = vmatmul.bf16.gmra.mxu0 %v773
  %v2196 = vpop.f32.mrf.mxu0
  %v2197 = vadd.f32 0.0, %v2196
  %v2198 = vpop.f32.mrf.mxu0
  %v2199 = vadd.f32 0.0, %v2198
  %2200 = vmatmul.bf16.gmra.mxu0 %v776
  %v2201 = vpop.f32.mrf.mxu0
  %v2202 = vadd.f32 0.0, %v2201
  %v2203 = vpop.f32.mrf.mxu0
  %v2204 = vadd.f32 0.0, %v2203
  %2205 = vmatmul.bf16.gmra.mxu0 %v779
  %v2206 = vpop.f32.mrf.mxu0
  %v2207 = vadd.f32 0.0, %v2206
  %v2208 = vpop.f32.mrf.mxu0
  %v2209 = vadd.f32 0.0, %v2208
  %2210 = vmatmul.bf16.gmra.mxu0 %v782
  %v2211 = vpop.f32.mrf.mxu0
  %v2212 = vadd.f32 0.0, %v2211
  %v2213 = vpop.f32.mrf.mxu0
  %v2214 = vadd.f32 0.0, %v2213
  %2215 = vmatmul.bf16.gmra.mxu0 %v785
  %v2216 = vpop.f32.mrf.mxu0
  %v2217 = vadd.f32 0.0, %v2216
  %v2218 = vpop.f32.mrf.mxu0
  %v2219 = vadd.f32 0.0, %v2218
  %2220 = vmatmul.bf16.gmra.mxu0 %v788
  %v2221 = vpop.f32.mrf.mxu0
  %v2222 = vadd.f32 0.0, %v2221
  %v2223 = vpop.f32.mrf.mxu0
  %v2224 = vadd.f32 0.0, %v2223
  %2225 = vmatmul.bf16.gmra.mxu0 %v791
  %v2226 = vpop.f32.mrf.mxu0
  %v2227 = vadd.f32 0.0, %v2226
  %v2228 = vpop.f32.mrf.mxu0
  %v2229 = vadd.f32 0.0, %v2228
  %2230 = vmatmul.bf16.gmra.mxu0 %v794
  %v2231 = vpop.f32.mrf.mxu0
  %v2232 = vadd.f32 0.0, %v2231
  %v2233 = vpop.f32.mrf.mxu0
  %v2234 = vadd.f32 0.0, %v2233
  %2235 = vmatmul.bf16.gmra.mxu0 %v797
  %v2236 = vpop.f32.mrf.mxu0
  %v2237 = vadd.f32 0.0, %v2236
  %v2238 = vpop.f32.mrf.mxu0
  %v2239 = vadd.f32 0.0, %v2238
  %2240 = vmatmul.bf16.gmra.mxu0 %v800
  %v2241 = vpop.f32.mrf.mxu0
  %v2242 = vadd.f32 0.0, %v2241
  %v2243 = vpop.f32.mrf.mxu0
  %v2244 = vadd.f32 0.0, %v2243
  %2245 = vmatmul.bf16.gmra.mxu0 %v803
  %v2246 = vpop.f32.mrf.mxu0
  %v2247 = vadd.f32 0.0, %v2246
  %v2248 = vpop.f32.mrf.mxu0
  %v2249 = vadd.f32 0.0, %v2248
  %2250 = vmatmul.bf16.gmra.mxu0 %v806
  %v2251 = vpop.f32.mrf.mxu0
  %v2252 = vadd.f32 0.0, %v2251
  %v2253 = vpop.f32.mrf.mxu0
  %v2254 = vadd.f32 0.0, %v2253
  %2255 = vmatmul.bf16.gmra.mxu0 %v809
  %v2256 = vpop.f32.mrf.mxu0
  %v2257 = vadd.f32 0.0, %v2256
  %v2258 = vpop.f32.mrf.mxu0
  %v2259 = vadd.f32 0.0, %v2258
  %2260 = vmatmul.bf16.gmra.mxu0 %v812
  %v2261 = vpop.f32.mrf.mxu0
  %v2262 = vadd.f32 0.0, %v2261
  %v2263 = vpop.f32.mrf.mxu0
  %v2264 = vadd.f32 0.0, %v2263
  %2265 = vmatmul.bf16.gmra.mxu0 %v815
  %v2266 = vpop.f32.mrf.mxu0
  %v2267 = vadd.f32 0.0, %v2266
  %v2268 = vpop.f32.mrf.mxu0
  %v2269 = vadd.f32 0.0, %v2268
  %2270 = vmatmul.bf16.gmra.mxu0 %v818
  %v2271 = vpop.f32.mrf.mxu0
  %v2272 = vadd.f32 0.0, %v2271
  %v2273 = vpop.f32.mrf.mxu0
  %v2274 = vadd.f32 0.0, %v2273
  %2275 = vmatmul.bf16.gmra.mxu0 %v821
  %v2276 = vpop.f32.mrf.mxu0
  %v2277 = vadd.f32 0.0, %v2276
  %v2278 = vpop.f32.mrf.mxu0
  %v2279 = vadd.f32 0.0, %v2278
  %2280 = vmatmul.bf16.gmra.mxu0 %v824
  %v2281 = vpop.f32.mrf.mxu0
  %v2282 = vadd.f32 0.0, %v2281
  %v2283 = vpop.f32.mrf.mxu0
  %v2284 = vadd.f32 0.0, %v2283
  %2285 = vmatmul.bf16.gmra.mxu0 %v827
  %v2286 = vpop.f32.mrf.mxu0
  %v2287 = vadd.f32 0.0, %v2286
  %v2288 = vpop.f32.mrf.mxu0
  %v2289 = vadd.f32 0.0, %v2288
  %2290 = vmatmul.bf16.gmra.mxu0 %v830
  %v2291 = vpop.f32.mrf.mxu0
  %v2292 = vadd.f32 0.0, %v2291
  %v2293 = vpop.f32.mrf.mxu0
  %v2294 = vadd.f32 0.0, %v2293
  %2295 = vmatmul.bf16.gmra.mxu0 %v833
  %v2296 = vpop.f32.mrf.mxu0
  %v2297 = vadd.f32 0.0, %v2296
  %v2298 = vpop.f32.mrf.mxu0
  %v2299 = vadd.f32 0.0, %v2298
  %2300 = vmatmul.bf16.gmra.mxu0 %v836
  %v2301 = vpop.f32.mrf.mxu0
  %v2302 = vadd.f32 0.0, %v2301
  %v2303 = vpop.f32.mrf.mxu0
  %v2304 = vadd.f32 0.0, %v2303
  %2305 = vmatmul.bf16.gmra.mxu0 %v839
  %v2306 = vpop.f32.mrf.mxu0
  %v2307 = vadd.f32 0.0, %v2306
  %v2308 = vpop.f32.mrf.mxu0
  %v2309 = vadd.f32 0.0, %v2308
  %2310 = vmatmul.bf16.gmra.mxu0 %v842
  %v2311 = vpop.f32.mrf.mxu0
  %v2312 = vadd.f32 0.0, %v2311
  %v2313 = vpop.f32.mrf.mxu0
  %v2314 = vadd.f32 0.0, %v2313
  %2315 = vmatmul.bf16.gmra.mxu0 %v845
  %v2316 = vpop.f32.mrf.mxu0
  %v2317 = vadd.f32 0.0, %v2316
  %v2318 = vpop.f32.mrf.mxu0
  %v2319 = vadd.f32 0.0, %v2318
  %2320 = vmatmul.bf16.gmra.mxu0 %v848
  %v2321 = vpop.f32.mrf.mxu0
  %v2322 = vadd.f32 0.0, %v2321
  %v2323 = vpop.f32.mrf.mxu0
  %v2324 = vadd.f32 0.0, %v2323
  %2325 = vdwg.mxu0
  %v2326 = vmax.f32 %v860, %v1229
  %v2327 = vmax.f32 %v862, %v1231
  %v2328 = vmax.f32 %v865, %v1234
  %v2329 = vmax.f32 %v867, %v1236
  %v2330 = vmax.f32 %v870, %v1239
  %v2331 = vmax.f32 %v872, %v1241
  %v2332 = vmax.f32 %v875, %v1244
  %v2333 = vmax.f32 %v877, %v1246
  %v2334 = vmax.f32 %v880, %v1249
  %v2335 = vmax.f32 %v882, %v1251
  %v2336 = vmax.f32 %v885, %v1254
  %v2337 = vmax.f32 %v887, %v1256
  %v2338 = vmax.f32 %v890, %v1259
  %v2339 = vmax.f32 %v892, %v1261
  %v2340 = vmax.f32 %v895, %v1264
  %v2341 = vmax.f32 %v897, %v1266
  %v2342 = vmax.f32 %v900, %v1269
  %v2343 = vmax.f32 %v902, %v1271
  %v2344 = vmax.f32 %v905, %v1274
  %v2345 = vmax.f32 %v907, %v1276
  %v2346 = vmax.f32 %v910, %v1279
  %v2347 = vmax.f32 %v912, %v1281
  %v2348 = vmax.f32 %v915, %v1284
  %v2349 = vmax.f32 %v917, %v1286
  %v2350 = vmax.f32 %v920, %v1289
  %v2351 = vmax.f32 %v922, %v1291
  %v2352 = vmax.f32 %v925, %v1294
  %v2353 = vmax.f32 %v927, %v1296
  %v2354 = vmax.f32 %v930, %v1299
  %v2355 = vmax.f32 %v932, %v1301
  %v2356 = vmax.f32 %v935, %v1304
  %v2357 = vmax.f32 %v937, %v1306
  %v2358 = vmax.f32 %v940, %v1309
  %v2359 = vmax.f32 %v942, %v1311
  %v2360 = vmax.f32 %v945, %v1314
  %v2361 = vmax.f32 %v947, %v1316
  %v2362 = vmax.f32 %v950, %v1319
  %v2363 = vmax.f32 %v952, %v1321
  %v2364 = vmax.f32 %v955, %v1324
  %v2365 = vmax.f32 %v957, %v1326
  %v2366 = vmax.f32 %v960, %v1329
  %v2367 = vmax.f32 %v962, %v1331
  %v2368 = vmax.f32 %v965, %v1334
  %v2369 = vmax.f32 %v967, %v1336
  %v2370 = vmax.f32 %v970, %v1339
  %v2371 = vmax.f32 %v972, %v1341
  %v2372 = vmax.f32 %v975, %v1344
  %v2373 = vmax.f32 %v977, %v1346
  %v2374 = vmax.f32 %v980, %v1349
  %v2375 = vmax.f32 %v982, %v1351
  %v2376 = vmax.f32 %v985, %v1354
  %v2377 = vmax.f32 %v987, %v1356
  %v2378 = vmax.f32 %v990, %v1359
  %v2379 = vmax.f32 %v992, %v1361
  %v2380 = vmax.f32 %v995, %v1364
  %v2381 = vmax.f32 %v997, %v1366
  %v2382 = vmax.f32 %v1000, %v1369
  %v2383 = vmax.f32 %v1002, %v1371
  %v2384 = vmax.f32 %v1005, %v1374
  %v2385 = vmax.f32 %v1007, %v1376
  %v2386 = vmax.f32 %v1010, %v1379
  %v2387 = vmax.f32 %v1012, %v1381
  %v2388 = vmax.f32 %v1015, %v1384
  %v2389 = vmax.f32 %v1017, %v1386
  %v2390 = vmax.f32 %v1020, %v1389
  %v2391 = vmax.f32 %v1022, %v1391
  %v2392 = vmax.f32 %v1025, %v1394
  %v2393 = vmax.f32 %v1027, %v1396
  %v2394 = vmax.f32 %v1030, %v1399
  %v2395 = vmax.f32 %v1032, %v1401
  %v2396 = vmax.f32 %v1035, %v1404
  %v2397 = vmax.f32 %v1037, %v1406
  %v2398 = vmax.f32 %v1040, %v1409
  %v2399 = vmax.f32 %v1042, %v1411
  %v2400 = vmax.f32 %v1045, %v1414
  %v2401 = vmax.f32 %v1047, %v1416
  %v2402 = vmax.f32 %v1050, %v1419
  %v2403 = vmax.f32 %v1052, %v1421
  %v2404 = vmax.f32 %v1055, %v1424
  %v2405 = vmax.f32 %v1057, %v1426
  %v2406 = vmax.f32 %v1060, %v1429
  %v2407 = vmax.f32 %v1062, %v1431
  %v2408 = vmax.f32 %v1065, %v1434
  %v2409 = vmax.f32 %v1067, %v1436
  %v2410 = vmax.f32 %v1070, %v1439
  %v2411 = vmax.f32 %v1072, %v1441
  %v2412 = vmax.f32 %v1075, %v1444
  %v2413 = vmax.f32 %v1077, %v1446
  %v2414 = vmax.f32 %v1080, %v1449
  %v2415 = vmax.f32 %v1082, %v1451
  %v2416 = vmax.f32 %v1085, %v1454
  %v2417 = vmax.f32 %v1087, %v1456
  %v2418 = vmax.f32 %v1090, %v1459
  %v2419 = vmax.f32 %v1092, %v1461
  %v2420 = vmax.f32 %v1095, %v1464
  %v2421 = vmax.f32 %v1097, %v1466
  %v2422 = vmax.f32 %v1100, %v1469
  %v2423 = vmax.f32 %v1102, %v1471
  %v2424 = vmax.f32 %v1105, %v1474
  %v2425 = vmax.f32 %v1107, %v1476
  %v2426 = vmax.f32 %v1110, %v1479
  %v2427 = vmax.f32 %v1112, %v1481
  %v2428 = vmax.f32 %v1115, %v1484
  %v2429 = vmax.f32 %v1117, %v1486
  %v2430 = vmax.f32 %v1120, %v1489
  %v2431 = vmax.f32 %v1122, %v1491
  %v2432 = vmax.f32 %v1125, %v1494
  %v2433 = vmax.f32 %v1127, %v1496
  %v2434 = vmax.f32 %v1130, %v1499
  %v2435 = vmax.f32 %v1132, %v1501
  %v2436 = vmax.f32 %v1135, %v1504
  %v2437 = vmax.f32 %v1137, %v1506
  %v2438 = vmax.f32 %v1140, %v1509
  %v2439 = vmax.f32 %v1142, %v1511
  %v2440 = vmax.f32 %v1145, %v1514
  %v2441 = vmax.f32 %v1147, %v1516
  %v2442 = vmax.f32 %v1150, %v1519
  %v2443 = vmax.f32 %v1152, %v1521
  %v2444 = vmax.f32 %v1155, %v1524
  %v2445 = vmax.f32 %v1157, %v1526
  %v2446 = vmax.f32 %v1160, %v1529
  %v2447 = vmax.f32 %v1162, %v1531
  %v2448 = vmax.f32 %v1165, %v1534
  %v2449 = vmax.f32 %v1167, %v1536
  %v2450 = vmax.f32 %v1170, %v1539
  %v2451 = vmax.f32 %v1172, %v1541
  %v2452 = vmax.f32 %v1175, %v1544
  %v2453 = vmax.f32 %v1177, %v1546
  %v2454 = vmax.f32 %v1180, %v1549
  %v2455 = vmax.f32 %v1182, %v1551
  %v2456 = vmax.f32 %v1185, %v1554
  %v2457 = vmax.f32 %v1187, %v1556
  %v2458 = vmax.f32 %v1190, %v1559
  %v2459 = vmax.f32 %v1192, %v1561
  %v2460 = vmax.f32 %v1195, %v1564
  %v2461 = vmax.f32 %v1197, %v1566
  %v2462 = vmax.f32 %v1200, %v1569
  %v2463 = vmax.f32 %v1202, %v1571
  %v2464 = vmax.f32 %v1205, %v1574
  %v2465 = vmax.f32 %v1207, %v1576
  %v2466 = vmax.f32 %v1210, %v1579
  %v2467 = vmax.f32 %v1212, %v1581
  %v2468 = vmax.f32 %v1215, %v1584
  %v2469 = vmax.f32 %v1217, %v1586
  %v2470 = vmax.f32 %v1598, %v1967
  %v2471 = vmax.f32 %v1600, %v1969
  %v2472 = vmax.f32 %v1603, %v1972
  %v2473 = vmax.f32 %v1605, %v1974
  %v2474 = vmax.f32 %v1608, %v1977
  %v2475 = vmax.f32 %v1610, %v1979
  %v2476 = vmax.f32 %v1613, %v1982
  %v2477 = vmax.f32 %v1615, %v1984
  %v2478 = vmax.f32 %v1618, %v1987
  %v2479 = vmax.f32 %v1620, %v1989
  %v2480 = vmax.f32 %v1623, %v1992
  %v2481 = vmax.f32 %v1625, %v1994
  %v2482 = vmax.f32 %v1628, %v1997
  %v2483 = vmax.f32 %v1630, %v1999
  %v2484 = vmax.f32 %v1633, %v2002
  %v2485 = vmax.f32 %v1635, %v2004
  %v2486 = vmax.f32 %v1638, %v2007
  %v2487 = vmax.f32 %v1640, %v2009
  %v2488 = vmax.f32 %v1643, %v2012
  %v2489 = vmax.f32 %v1645, %v2014
  %v2490 = vmax.f32 %v1648, %v2017
  %v2491 = vmax.f32 %v1650, %v2019
  %v2492 = vmax.f32 %v1653, %v2022
  %v2493 = vmax.f32 %v1655, %v2024
  %v2494 = vmax.f32 %v1658, %v2027
  %v2495 = vmax.f32 %v1660, %v2029
  %v2496 = vmax.f32 %v1663, %v2032
  %v2497 = vmax.f32 %v1665, %v2034
  %v2498 = vmax.f32 %v1668, %v2037
  %v2499 = vmax.f32 %v1670, %v2039
  %v2500 = vmax.f32 %v1673, %v2042
  %v2501 = vmax.f32 %v1675, %v2044
  %v2502 = vmax.f32 %v1678, %v2047
  %v2503 = vmax.f32 %v1680, %v2049
  %v2504 = vmax.f32 %v1683, %v2052
  %v2505 = vmax.f32 %v1685, %v2054
  %v2506 = vmax.f32 %v1688, %v2057
  %v2507 = vmax.f32 %v1690, %v2059
  %v2508 = vmax.f32 %v1693, %v2062
  %v2509 = vmax.f32 %v1695, %v2064
  %v2510 = vmax.f32 %v1698, %v2067
  %v2511 = vmax.f32 %v1700, %v2069
  %v2512 = vmax.f32 %v1703, %v2072
  %v2513 = vmax.f32 %v1705, %v2074
  %v2514 = vmax.f32 %v1708, %v2077
  %v2515 = vmax.f32 %v1710, %v2079
  %v2516 = vmax.f32 %v1713, %v2082
  %v2517 = vmax.f32 %v1715, %v2084
  %v2518 = vmax.f32 %v1718, %v2087
  %v2519 = vmax.f32 %v1720, %v2089
  %v2520 = vmax.f32 %v1723, %v2092
  %v2521 = vmax.f32 %v1725, %v2094
  %v2522 = vmax.f32 %v1728, %v2097
  %v2523 = vmax.f32 %v1730, %v2099
  %v2524 = vmax.f32 %v1733, %v2102
  %v2525 = vmax.f32 %v1735, %v2104
  %v2526 = vmax.f32 %v1738, %v2107
  %v2527 = vmax.f32 %v1740, %v2109
  %v2528 = vmax.f32 %v1743, %v2112
  %v2529 = vmax.f32 %v1745, %v2114
  %v2530 = vmax.f32 %v1748, %v2117
  %v2531 = vmax.f32 %v1750, %v2119
  %v2532 = vmax.f32 %v1753, %v2122
  %v2533 = vmax.f32 %v1755, %v2124
  %v2534 = vmax.f32 %v1758, %v2127
  %v2535 = vmax.f32 %v1760, %v2129
  %v2536 = vmax.f32 %v1763, %v2132
  %v2537 = vmax.f32 %v1765, %v2134
  %v2538 = vmax.f32 %v1768, %v2137
  %v2539 = vmax.f32 %v1770, %v2139
  %v2540 = vmax.f32 %v1773, %v2142
  %v2541 = vmax.f32 %v1775, %v2144
  %v2542 = vmax.f32 %v1778, %v2147
  %v2543 = vmax.f32 %v1780, %v2149
  %v2544 = vmax.f32 %v1783, %v2152
  %v2545 = vmax.f32 %v1785, %v2154
  %v2546 = vmax.f32 %v1788, %v2157
  %v2547 = vmax.f32 %v1790, %v2159
  %v2548 = vmax.f32 %v1793, %v2162
  %v2549 = vmax.f32 %v1795, %v2164
  %v2550 = vmax.f32 %v1798, %v2167
  %v2551 = vmax.f32 %v1800, %v2169
  %v2552 = vmax.f32 %v1803, %v2172
  %v2553 = vmax.f32 %v1805, %v2174
  %v2554 = vmax.f32 %v1808, %v2177
  %v2555 = vmax.f32 %v1810, %v2179
  %v2556 = vmax.f32 %v1813, %v2182
  %v2557 = vmax.f32 %v1815, %v2184
  %v2558 = vmax.f32 %v1818, %v2187
  %v2559 = vmax.f32 %v1820, %v2189
  %v2560 = vmax.f32 %v1823, %v2192
  %v2561 = vmax.f32 %v1825, %v2194
  %v2562 = vmax.f32 %v1828, %v2197
  %v2563 = vmax.f32 %v1830, %v2199
  %v2564 = vmax.f32 %v1833, %v2202
  %v2565 = vmax.f32 %v1835, %v2204
  %v2566 = vmax.f32 %v1838, %v2207
  %v2567 = vmax.f32 %v1840, %v2209
  %v2568 = vmax.f32 %v1843, %v2212
  %v2569 = vmax.f32 %v1845, %v2214
  %v2570 = vmax.f32 %v1848, %v2217
  %v2571 = vmax.f32 %v1850, %v2219
  %v2572 = vmax.f32 %v1853, %v2222
  %v2573 = vmax.f32 %v1855, %v2224
  %v2574 = vmax.f32 %v1858, %v2227
  %v2575 = vmax.f32 %v1860, %v2229
  %v2576 = vmax.f32 %v1863, %v2232
  %v2577 = vmax.f32 %v1865, %v2234
  %v2578 = vmax.f32 %v1868, %v2237
  %v2579 = vmax.f32 %v1870, %v2239
  %v2580 = vmax.f32 %v1873, %v2242
  %v2581 = vmax.f32 %v1875, %v2244
  %v2582 = vmax.f32 %v1878, %v2247
  %v2583 = vmax.f32 %v1880, %v2249
  %v2584 = vmax.f32 %v1883, %v2252
  %v2585 = vmax.f32 %v1885, %v2254
  %v2586 = vmax.f32 %v1888, %v2257
  %v2587 = vmax.f32 %v1890, %v2259
  %v2588 = vmax.f32 %v1893, %v2262
  %v2589 = vmax.f32 %v1895, %v2264
  %v2590 = vmax.f32 %v1898, %v2267
  %v2591 = vmax.f32 %v1900, %v2269
  %v2592 = vmax.f32 %v1903, %v2272
  %v2593 = vmax.f32 %v1905, %v2274
  %v2594 = vmax.f32 %v1908, %v2277
  %v2595 = vmax.f32 %v1910, %v2279
  %v2596 = vmax.f32 %v1913, %v2282
  %v2597 = vmax.f32 %v1915, %v2284
  %v2598 = vmax.f32 %v1918, %v2287
  %v2599 = vmax.f32 %v1920, %v2289
  %v2600 = vmax.f32 %v1923, %v2292
  %v2601 = vmax.f32 %v1925, %v2294
  %v2602 = vmax.f32 %v1928, %v2297
  %v2603 = vmax.f32 %v1930, %v2299
  %v2604 = vmax.f32 %v1933, %v2302
  %v2605 = vmax.f32 %v1935, %v2304
  %v2606 = vmax.f32 %v1938, %v2307
  %v2607 = vmax.f32 %v1940, %v2309
  %v2608 = vmax.f32 %v1943, %v2312
  %v2609 = vmax.f32 %v1945, %v2314
  %v2610 = vmax.f32 %v1948, %v2317
  %v2611 = vmax.f32 %v1950, %v2319
  %v2612 = vmax.f32 %v1953, %v2322
  %v2613 = vmax.f32 %v1955, %v2324
  %v2614 = vmax.f32 %v2326, %v2470
  %v2615 = vmax.f32 %v2327, %v2471
  %v2616 = vmax.f32 %v2328, %v2472
  %v2617 = vmax.f32 %v2329, %v2473
  %v2618 = vmax.f32 %v2330, %v2474
  %v2619 = vmax.f32 %v2331, %v2475
  %v2620 = vmax.f32 %v2332, %v2476
  %v2621 = vmax.f32 %v2333, %v2477
  %v2622 = vmax.f32 %v2334, %v2478
  %v2623 = vmax.f32 %v2335, %v2479
  %v2624 = vmax.f32 %v2336, %v2480
  %v2625 = vmax.f32 %v2337, %v2481
  %v2626 = vmax.f32 %v2338, %v2482
  %v2627 = vmax.f32 %v2339, %v2483
  %v2628 = vmax.f32 %v2340, %v2484
  %v2629 = vmax.f32 %v2341, %v2485
  %v2630 = vmax.f32 %v2342, %v2486
  %v2631 = vmax.f32 %v2343, %v2487
  %v2632 = vmax.f32 %v2344, %v2488
  %v2633 = vmax.f32 %v2345, %v2489
  %v2634 = vmax.f32 %v2346, %v2490
  %v2635 = vmax.f32 %v2347, %v2491
  %v2636 = vmax.f32 %v2348, %v2492
  %v2637 = vmax.f32 %v2349, %v2493
  %v2638 = vmax.f32 %v2350, %v2494
  %v2639 = vmax.f32 %v2351, %v2495
  %v2640 = vmax.f32 %v2352, %v2496
  %v2641 = vmax.f32 %v2353, %v2497
  %v2642 = vmax.f32 %v2354, %v2498
  %v2643 = vmax.f32 %v2355, %v2499
  %v2644 = vmax.f32 %v2356, %v2500
  %v2645 = vmax.f32 %v2357, %v2501
  %v2646 = vmax.f32 %v2358, %v2502
  %v2647 = vmax.f32 %v2359, %v2503
  %v2648 = vmax.f32 %v2360, %v2504
  %v2649 = vmax.f32 %v2361, %v2505
  %v2650 = vmax.f32 %v2362, %v2506
  %v2651 = vmax.f32 %v2363, %v2507
  %v2652 = vmax.f32 %v2364, %v2508
  %v2653 = vmax.f32 %v2365, %v2509
  %v2654 = vmax.f32 %v2366, %v2510
  %v2655 = vmax.f32 %v2367, %v2511
  %v2656 = vmax.f32 %v2368, %v2512
  %v2657 = vmax.f32 %v2369, %v2513
  %v2658 = vmax.f32 %v2370, %v2514
  %v2659 = vmax.f32 %v2371, %v2515
  %v2660 = vmax.f32 %v2372, %v2516
  %v2661 = vmax.f32 %v2373, %v2517
  %v2662 = vmax.f32 %v2374, %v2518
  %v2663 = vmax.f32 %v2375, %v2519
  %v2664 = vmax.f32 %v2376, %v2520
  %v2665 = vmax.f32 %v2377, %v2521
  %v2666 = vmax.f32 %v2378, %v2522
  %v2667 = vmax.f32 %v2379, %v2523
  %v2668 = vmax.f32 %v2380, %v2524
  %v2669 = vmax.f32 %v2381, %v2525
  %v2670 = vmax.f32 %v2382, %v2526
  %v2671 = vmax.f32 %v2383, %v2527
  %v2672 = vmax.f32 %v2384, %v2528
  %v2673 = vmax.f32 %v2385, %v2529
  %v2674 = vmax.f32 %v2386, %v2530
  %v2675 = vmax.f32 %v2387, %v2531
  %v2676 = vmax.f32 %v2388, %v2532
  %v2677 = vmax.f32 %v2389, %v2533
  %v2678 = vmax.f32 %v2390, %v2534
  %v2679 = vmax.f32 %v2391, %v2535
  %v2680 = vmax.f32 %v2392, %v2536
  %v2681 = vmax.f32 %v2393, %v2537
  %v2682 = vmax.f32 %v2394, %v2538
  %v2683 = vmax.f32 %v2395, %v2539
  %v2684 = vmax.f32 %v2396, %v2540
  %v2685 = vmax.f32 %v2397, %v2541
  %v2686 = vmax.f32 %v2398, %v2542
  %v2687 = vmax.f32 %v2399, %v2543
  %v2688 = vmax.f32 %v2400, %v2544
  %v2689 = vmax.f32 %v2401, %v2545
  %v2690 = vmax.f32 %v2402, %v2546
  %v2691 = vmax.f32 %v2403, %v2547
  %v2692 = vmax.f32 %v2404, %v2548
  %v2693 = vmax.f32 %v2405, %v2549
  %v2694 = vmax.f32 %v2406, %v2550
  %v2695 = vmax.f32 %v2407, %v2551
  %v2696 = vmax.f32 %v2408, %v2552
  %v2697 = vmax.f32 %v2409, %v2553
  %v2698 = vmax.f32 %v2410, %v2554
  %v2699 = vmax.f32 %v2411, %v2555
  %v2700 = vmax.f32 %v2412, %v2556
  %v2701 = vmax.f32 %v2413, %v2557
  %v2702 = vmax.f32 %v2414, %v2558
  %v2703 = vmax.f32 %v2415, %v2559
  %v2704 = vmax.f32 %v2416, %v2560
  %v2705 = vmax.f32 %v2417, %v2561
  %v2706 = vmax.f32 %v2418, %v2562
  %v2707 = vmax.f32 %v2419, %v2563
  %v2708 = vmax.f32 %v2420, %v2564
  %v2709 = vmax.f32 %v2421, %v2565
  %v2710 = vmax.f32 %v2422, %v2566
  %v2711 = vmax.f32 %v2423, %v2567
  %v2712 = vmax.f32 %v2424, %v2568
  %v2713 = vmax.f32 %v2425, %v2569
  %v2714 = vmax.f32 %v2426, %v2570
  %v2715 = vmax.f32 %v2427, %v2571
  %v2716 = vmax.f32 %v2428, %v2572
  %v2717 = vmax.f32 %v2429, %v2573
  %v2718 = vmax.f32 %v2430, %v2574
  %v2719 = vmax.f32 %v2431, %v2575
  %v2720 = vmax.f32 %v2432, %v2576
  %v2721 = vmax.f32 %v2433, %v2577
  %v2722 = vmax.f32 %v2434, %v2578
  %v2723 = vmax.f32 %v2435, %v2579
  %v2724 = vmax.f32 %v2436, %v2580
  %v2725 = vmax.f32 %v2437, %v2581
  %v2726 = vmax.f32 %v2438, %v2582
  %v2727 = vmax.f32 %v2439, %v2583
  %v2728 = vmax.f32 %v2440, %v2584
  %v2729 = vmax.f32 %v2441, %v2585
  %v2730 = vmax.f32 %v2442, %v2586
  %v2731 = vmax.f32 %v2443, %v2587
  %v2732 = vmax.f32 %v2444, %v2588
  %v2733 = vmax.f32 %v2445, %v2589
  %v2734 = vmax.f32 %v2446, %v2590
  %v2735 = vmax.f32 %v2447, %v2591
  %v2736 = vmax.f32 %v2448, %v2592
  %v2737 = vmax.f32 %v2449, %v2593
  %v2738 = vmax.f32 %v2450, %v2594
  %v2739 = vmax.f32 %v2451, %v2595
  %v2740 = vmax.f32 %v2452, %v2596
  %v2741 = vmax.f32 %v2453, %v2597
  %v2742 = vmax.f32 %v2454, %v2598
  %v2743 = vmax.f32 %v2455, %v2599
  %v2744 = vmax.f32 %v2456, %v2600
  %v2745 = vmax.f32 %v2457, %v2601
  %v2746 = vmax.f32 %v2458, %v2602
  %v2747 = vmax.f32 %v2459, %v2603
  %v2748 = vmax.f32 %v2460, %v2604
  %v2749 = vmax.f32 %v2461, %v2605
  %v2750 = vmax.f32 %v2462, %v2606
  %v2751 = vmax.f32 %v2463, %v2607
  %v2752 = vmax.f32 %v2464, %v2608
  %v2753 = vmax.f32 %v2465, %v2609
  %v2754 = vmax.f32 %v2466, %v2610
  %v2755 = vmax.f32 %v2467, %v2611
  %v2756 = vmax.f32 %v2468, %v2612
  %v2757 = vmax.f32 %v2469, %v2613
  %v2758 = vld [vmem:[%s2] sm:$0x1]
  %v2760 = vperm.slane %v2758, 0
  %v2762 = vadd.f32 %v2614, %v2760
  %v2763 = vadd.f32 %v2615, %v2760
  %v2764 = vadd.f32 %v2616, %v2760
  %v2765 = vadd.f32 %v2617, %v2760
  %v2766 = vadd.f32 %v2618, %v2760
  %v2767 = vadd.f32 %v2619, %v2760
  %v2768 = vadd.f32 %v2620, %v2760
  %v2769 = vadd.f32 %v2621, %v2760
  %v2770 = vadd.f32 %v2622, %v2760
  %v2771 = vadd.f32 %v2623, %v2760
  %v2772 = vadd.f32 %v2624, %v2760
  %v2773 = vadd.f32 %v2625, %v2760
  %v2774 = vadd.f32 %v2626, %v2760
  %v2775 = vadd.f32 %v2627, %v2760
  %v2776 = vadd.f32 %v2628, %v2760
  %v2777 = vadd.f32 %v2629, %v2760
  %v2778 = vadd.f32 %v2630, %v2760
  %v2779 = vadd.f32 %v2631, %v2760
  %v2780 = vadd.f32 %v2632, %v2760
  %v2781 = vadd.f32 %v2633, %v2760
  %v2782 = vadd.f32 %v2634, %v2760
  %v2783 = vadd.f32 %v2635, %v2760
  %v2784 = vadd.f32 %v2636, %v2760
  %v2785 = vadd.f32 %v2637, %v2760
  %v2786 = vadd.f32 %v2638, %v2760
  %v2787 = vadd.f32 %v2639, %v2760
  %v2788 = vadd.f32 %v2640, %v2760
  %v2789 = vadd.f32 %v2641, %v2760
  %v2790 = vadd.f32 %v2642, %v2760
  %v2791 = vadd.f32 %v2643, %v2760
  %v2792 = vadd.f32 %v2644, %v2760
  %v2793 = vadd.f32 %v2645, %v2760
  %v2794 = vadd.f32 %v2646, %v2760
  %v2795 = vadd.f32 %v2647, %v2760
  %v2796 = vadd.f32 %v2648, %v2760
  %v2797 = vadd.f32 %v2649, %v2760
  %v2798 = vadd.f32 %v2650, %v2760
  %v2799 = vadd.f32 %v2651, %v2760
  %v2800 = vadd.f32 %v2652, %v2760
  %v2801 = vadd.f32 %v2653, %v2760
  %v2802 = vadd.f32 %v2654, %v2760
  %v2803 = vadd.f32 %v2655, %v2760
  %v2804 = vadd.f32 %v2656, %v2760
  %v2805 = vadd.f32 %v2657, %v2760
  %v2806 = vadd.f32 %v2658, %v2760
  %v2807 = vadd.f32 %v2659, %v2760
  %v2808 = vadd.f32 %v2660, %v2760
  %v2809 = vadd.f32 %v2661, %v2760
  %v2810 = vadd.f32 %v2662, %v2760
  %v2811 = vadd.f32 %v2663, %v2760
  %v2812 = vadd.f32 %v2664, %v2760
  %v2813 = vadd.f32 %v2665, %v2760
  %v2814 = vadd.f32 %v2666, %v2760
  %v2815 = vadd.f32 %v2667, %v2760
  %v2816 = vadd.f32 %v2668, %v2760
  %v2817 = vadd.f32 %v2669, %v2760
  %v2818 = vadd.f32 %v2670, %v2760
  %v2819 = vadd.f32 %v2671, %v2760
  %v2820 = vadd.f32 %v2672, %v2760
  %v2821 = vadd.f32 %v2673, %v2760
  %v2822 = vadd.f32 %v2674, %v2760
  %v2823 = vadd.f32 %v2675, %v2760
  %v2824 = vadd.f32 %v2676, %v2760
  %v2825 = vadd.f32 %v2677, %v2760
  %v2826 = vadd.f32 %v2678, %v2760
  %v2827 = vadd.f32 %v2679, %v2760
  %v2828 = vadd.f32 %v2680, %v2760
  %v2829 = vadd.f32 %v2681, %v2760
  %v2830 = vadd.f32 %v2682, %v2760
  %v2831 = vadd.f32 %v2683, %v2760
  %v2832 = vadd.f32 %v2684, %v2760
  %v2833 = vadd.f32 %v2685, %v2760
  %v2834 = vadd.f32 %v2686, %v2760
  %v2835 = vadd.f32 %v2687, %v2760
  %v2836 = vadd.f32 %v2688, %v2760
  %v2837 = vadd.f32 %v2689, %v2760
  %v2838 = vadd.f32 %v2690, %v2760
  %v2839 = vadd.f32 %v2691, %v2760
  %v2840 = vadd.f32 %v2692, %v2760
  %v2841 = vadd.f32 %v2693, %v2760
  %v2842 = vadd.f32 %v2694, %v2760
  %v2843 = vadd.f32 %v2695, %v2760
  %v2844 = vadd.f32 %v2696, %v2760
  %v2845 = vadd.f32 %v2697, %v2760
  %v2846 = vadd.f32 %v2698, %v2760
  %v2847 = vadd.f32 %v2699, %v2760
  %v2848 = vadd.f32 %v2700, %v2760
  %v2849 = vadd.f32 %v2701, %v2760
  %v2850 = vadd.f32 %v2702, %v2760
  %v2851 = vadd.f32 %v2703, %v2760
  %v2852 = vadd.f32 %v2704, %v2760
  %v2853 = vadd.f32 %v2705, %v2760
  %v2854 = vadd.f32 %v2706, %v2760
  %v2855 = vadd.f32 %v2707, %v2760
  %v2856 = vadd.f32 %v2708, %v2760
  %v2857 = vadd.f32 %v2709, %v2760
  %v2858 = vadd.f32 %v2710, %v2760
  %v2859 = vadd.f32 %v2711, %v2760
  %v2860 = vadd.f32 %v2712, %v2760
  %v2861 = vadd.f32 %v2713, %v2760
  %v2862 = vadd.f32 %v2714, %v2760
  %v2863 = vadd.f32 %v2715, %v2760
  %v2864 = vadd.f32 %v2716, %v2760
  %v2865 = vadd.f32 %v2717, %v2760
  %v2866 = vadd.f32 %v2718, %v2760
  %v2867 = vadd.f32 %v2719, %v2760
  %v2868 = vadd.f32 %v2720, %v2760
  %v2869 = vadd.f32 %v2721, %v2760
  %v2870 = vadd.f32 %v2722, %v2760
  %v2871 = vadd.f32 %v2723, %v2760
  %v2872 = vadd.f32 %v2724, %v2760
  %v2873 = vadd.f32 %v2725, %v2760
  %v2874 = vadd.f32 %v2726, %v2760
  %v2875 = vadd.f32 %v2727, %v2760
  %v2876 = vadd.f32 %v2728, %v2760
  %v2877 = vadd.f32 %v2729, %v2760
  %v2878 = vadd.f32 %v2730, %v2760
  %v2879 = vadd.f32 %v2731, %v2760
  %v2880 = vadd.f32 %v2732, %v2760
  %v2881 = vadd.f32 %v2733, %v2760
  %v2882 = vadd.f32 %v2734, %v2760
  %v2883 = vadd.f32 %v2735, %v2760
  %v2884 = vadd.f32 %v2736, %v2760
  %v2885 = vadd.f32 %v2737, %v2760
  %v2886 = vadd.f32 %v2738, %v2760
  %v2887 = vadd.f32 %v2739, %v2760
  %v2888 = vadd.f32 %v2740, %v2760
  %v2889 = vadd.f32 %v2741, %v2760
  %v2890 = vadd.f32 %v2742, %v2760
  %v2891 = vadd.f32 %v2743, %v2760
  %v2892 = vadd.f32 %v2744, %v2760
  %v2893 = vadd.f32 %v2745, %v2760
  %v2894 = vadd.f32 %v2746, %v2760
  %v2895 = vadd.f32 %v2747, %v2760
  %v2896 = vadd.f32 %v2748, %v2760
  %v2897 = vadd.f32 %v2749, %v2760
  %v2898 = vadd.f32 %v2750, %v2760
  %v2899 = vadd.f32 %v2751, %v2760
  %v2900 = vadd.f32 %v2752, %v2760
  %v2901 = vadd.f32 %v2753, %v2760
  %v2902 = vadd.f32 %v2754, %v2760
  %v2903 = vadd.f32 %v2755, %v2760
  %v2904 = vadd.f32 %v2756, %v2760
  %v2905 = vadd.f32 %v2757, %v2760
  %v2906 = vmax.f32 %v2762, 0.0
  %v2907 = vmax.f32 %v2763, 0.0
  %v2908 = vmax.f32 %v2764, 0.0
  %v2909 = vmax.f32 %v2765, 0.0
  %v2910 = vmax.f32 %v2766, 0.0
  %v2911 = vmax.f32 %v2767, 0.0
  %v2912 = vmax.f32 %v2768, 0.0
  %v2913 = vmax.f32 %v2769, 0.0
  %v2914 = vmax.f32 %v2770, 0.0
  %v2915 = vmax.f32 %v2771, 0.0
  %v2916 = vmax.f32 %v2772, 0.0
  %v2917 = vmax.f32 %v2773, 0.0
  %v2918 = vmax.f32 %v2774, 0.0
  %v2919 = vmax.f32 %v2775, 0.0
  %v2920 = vmax.f32 %v2776, 0.0
  %v2921 = vmax.f32 %v2777, 0.0
  %v2922 = vmax.f32 %v2778, 0.0
  %v2923 = vmax.f32 %v2779, 0.0
  %v2924 = vmax.f32 %v2780, 0.0
  %v2925 = vmax.f32 %v2781, 0.0
  %v2926 = vmax.f32 %v2782, 0.0
  %v2927 = vmax.f32 %v2783, 0.0
  %v2928 = vmax.f32 %v2784, 0.0
  %v2929 = vmax.f32 %v2785, 0.0
  %v2930 = vmax.f32 %v2786, 0.0
  %v2931 = vmax.f32 %v2787, 0.0
  %v2932 = vmax.f32 %v2788, 0.0
  %v2933 = vmax.f32 %v2789, 0.0
  %v2934 = vmax.f32 %v2790, 0.0
  %v2935 = vmax.f32 %v2791, 0.0
  %v2936 = vmax.f32 %v2792, 0.0
  %v2937 = vmax.f32 %v2793, 0.0
  %v2938 = vmax.f32 %v2794, 0.0
  %v2939 = vmax.f32 %v2795, 0.0
  %v2940 = vmax.f32 %v2796, 0.0
  %v2941 = vmax.f32 %v2797, 0.0
  %v2942 = vmax.f32 %v2798, 0.0
  %v2943 = vmax.f32 %v2799, 0.0
  %v2944 = vmax.f32 %v2800, 0.0
  %v2945 = vmax.f32 %v2801, 0.0
  %v2946 = vmax.f32 %v2802, 0.0
  %v2947 = vmax.f32 %v2803, 0.0
  %v2948 = vmax.f32 %v2804, 0.0
  %v2949 = vmax.f32 %v2805, 0.0
  %v2950 = vmax.f32 %v2806, 0.0
  %v2951 = vmax.f32 %v2807, 0.0
  %v2952 = vmax.f32 %v2808, 0.0
  %v2953 = vmax.f32 %v2809, 0.0
  %v2954 = vmax.f32 %v2810, 0.0
  %v2955 = vmax.f32 %v2811, 0.0
  %v2956 = vmax.f32 %v2812, 0.0
  %v2957 = vmax.f32 %v2813, 0.0
  %v2958 = vmax.f32 %v2814, 0.0
  %v2959 = vmax.f32 %v2815, 0.0
  %v2960 = vmax.f32 %v2816, 0.0
  %v2961 = vmax.f32 %v2817, 0.0
  %v2962 = vmax.f32 %v2818, 0.0
  %v2963 = vmax.f32 %v2819, 0.0
  %v2964 = vmax.f32 %v2820, 0.0
  %v2965 = vmax.f32 %v2821, 0.0
  %v2966 = vmax.f32 %v2822, 0.0
  %v2967 = vmax.f32 %v2823, 0.0
  %v2968 = vmax.f32 %v2824, 0.0
  %v2969 = vmax.f32 %v2825, 0.0
  %v2970 = vmax.f32 %v2826, 0.0
  %v2971 = vmax.f32 %v2827, 0.0
  %v2972 = vmax.f32 %v2828, 0.0
  %v2973 = vmax.f32 %v2829, 0.0
  %v2974 = vmax.f32 %v2830, 0.0
  %v2975 = vmax.f32 %v2831, 0.0
  %v2976 = vmax.f32 %v2832, 0.0
  %v2977 = vmax.f32 %v2833, 0.0
  %v2978 = vmax.f32 %v2834, 0.0
  %v2979 = vmax.f32 %v2835, 0.0
  %v2980 = vmax.f32 %v2836, 0.0
  %v2981 = vmax.f32 %v2837, 0.0
  %v2982 = vmax.f32 %v2838, 0.0
  %v2983 = vmax.f32 %v2839, 0.0
  %v2984 = vmax.f32 %v2840, 0.0
  %v2985 = vmax.f32 %v2841, 0.0
  %v2986 = vmax.f32 %v2842, 0.0
  %v2987 = vmax.f32 %v2843, 0.0
  %v2988 = vmax.f32 %v2844, 0.0
  %v2989 = vmax.f32 %v2845, 0.0
  %v2990 = vmax.f32 %v2846, 0.0
  %v2991 = vmax.f32 %v2847, 0.0
  %v2992 = vmax.f32 %v2848, 0.0
  %v2993 = vmax.f32 %v2849, 0.0
  %v2994 = vmax.f32 %v2850, 0.0
  %v2995 = vmax.f32 %v2851, 0.0
  %v2996 = vmax.f32 %v2852, 0.0
  %v2997 = vmax.f32 %v2853, 0.0
  %v2998 = vmax.f32 %v2854, 0.0
  %v2999 = vmax.f32 %v2855, 0.0
  %v3000 = vmax.f32 %v2856, 0.0
  %v3001 = vmax.f32 %v2857, 0.0
  %v3002 = vmax.f32 %v2858, 0.0
  %v3003 = vmax.f32 %v2859, 0.0
  %v3004 = vmax.f32 %v2860, 0.0
  %v3005 = vmax.f32 %v2861, 0.0
  %v3006 = vmax.f32 %v2862, 0.0
  %v3007 = vmax.f32 %v2863, 0.0
  %v3008 = vmax.f32 %v2864, 0.0
  %v3009 = vmax.f32 %v2865, 0.0
  %v3010 = vmax.f32 %v2866, 0.0
  %v3011 = vmax.f32 %v2867, 0.0
  %v3012 = vmax.f32 %v2868, 0.0
  %v3013 = vmax.f32 %v2869, 0.0
  %v3014 = vmax.f32 %v2870, 0.0
  %v3015 = vmax.f32 %v2871, 0.0
  %v3016 = vmax.f32 %v2872, 0.0
  %v3017 = vmax.f32 %v2873, 0.0
  %v3018 = vmax.f32 %v2874, 0.0
  %v3019 = vmax.f32 %v2875, 0.0
  %v3020 = vmax.f32 %v2876, 0.0
  %v3021 = vmax.f32 %v2877, 0.0
  %v3022 = vmax.f32 %v2878, 0.0
  %v3023 = vmax.f32 %v2879, 0.0
  %v3024 = vmax.f32 %v2880, 0.0
  %v3025 = vmax.f32 %v2881, 0.0
  %v3026 = vmax.f32 %v2882, 0.0
  %v3027 = vmax.f32 %v2883, 0.0
  %v3028 = vmax.f32 %v2884, 0.0
  %v3029 = vmax.f32 %v2885, 0.0
  %v3030 = vmax.f32 %v2886, 0.0
  %v3031 = vmax.f32 %v2887, 0.0
  %v3032 = vmax.f32 %v2888, 0.0
  %v3033 = vmax.f32 %v2889, 0.0
  %v3034 = vmax.f32 %v2890, 0.0
  %v3035 = vmax.f32 %v2891, 0.0
  %v3036 = vmax.f32 %v2892, 0.0
  %v3037 = vmax.f32 %v2893, 0.0
  %v3038 = vmax.f32 %v2894, 0.0
  %v3039 = vmax.f32 %v2895, 0.0
  %v3040 = vmax.f32 %v2896, 0.0
  %v3041 = vmax.f32 %v2897, 0.0
  %v3042 = vmax.f32 %v2898, 0.0
  %v3043 = vmax.f32 %v2899, 0.0
  %v3044 = vmax.f32 %v2900, 0.0
  %v3045 = vmax.f32 %v2901, 0.0
  %v3046 = vmax.f32 %v2902, 0.0
  %v3047 = vmax.f32 %v2903, 0.0
  %v3048 = vmax.f32 %v2904, 0.0
  %v3049 = vmax.f32 %v2905, 0.0
  %3050 = vst [vmem:[#allocation2] sm:$0xff] %v2906
  %3051 = vst [vmem:[#allocation2 + $0x8] sm:$0xff] %v2907
  %3052 = vst [vmem:[#allocation2 + $0x10] sm:$0xff] %v2908
  %3053 = vst [vmem:[#allocation2 + $0x18] sm:$0xff] %v2909
  %3054 = vst [vmem:[#allocation2 + $0x20] sm:$0xff] %v2910
  %3055 = vst [vmem:[#allocation2 + $0x28] sm:$0xff] %v2911
  %3056 = vst [vmem:[#allocation2 + $0x30] sm:$0xff] %v2912
  %3057 = vst [vmem:[#allocation2 + $0x38] sm:$0xff] %v2913
  %3058 = vst [vmem:[#allocation2 + $0x40] sm:$0xff] %v2914
  %3059 = vst [vmem:[#allocation2 + $0x48] sm:$0xff] %v2915
  %3060 = vst [vmem:[#allocation2 + $0x50] sm:$0xff] %v2916
  %3061 = vst [vmem:[#allocation2 + $0x58] sm:$0xff] %v2917
  %3062 = vst [vmem:[#allocation2 + $0x60] sm:$0xff] %v2918
  %3063 = vst [vmem:[#allocation2 + $0x68] sm:$0xff] %v2919
  %3064 = vst [vmem:[#allocation2 + $0x70] sm:$0xff] %v2920
  %3065 = vst [vmem:[#allocation2 + $0x78] sm:$0xff] %v2921
  %3066 = vst [vmem:[#allocation2 + $0x80] sm:$0xff] %v2922
  %3067 = vst [vmem:[#allocation2 + $0x88] sm:$0xff] %v2923
  %3068 = vst [vmem:[#allocation2 + $0x90] sm:$0xff] %v2924
  %3069 = vst [vmem:[#allocation2 + $0x98] sm:$0xff] %v2925
  %3070 = vst [vmem:[#allocation2 + $0xa0] sm:$0xff] %v2926
  %3071 = vst [vmem:[#allocation2 + $0xa8] sm:$0xff] %v2927
  %3072 = vst [vmem:[#allocation2 + $0xb0] sm:$0xff] %v2928
  %3073 = vst [vmem:[#allocation2 + $0xb8] sm:$0xff] %v2929
  %3074 = vst [vmem:[#allocation2 + $0xc0] sm:$0xff] %v2930
  %3075 = vst [vmem:[#allocation2 + $0xc8] sm:$0xff] %v2931
  %3076 = vst [vmem:[#allocation2 + $0xd0] sm:$0xff] %v2932
  %3077 = vst [vmem:[#allocation2 + $0xd8] sm:$0xff] %v2933
  %3078 = vst [vmem:[#allocation2 + $0xe0] sm:$0xff] %v2934
  %3079 = vst [vmem:[#allocation2 + $0xe8] sm:$0xff] %v2935
  %3080 = vst [vmem:[#allocation2 + $0xf0] sm:$0xff] %v2936
  %3081 = vst [vmem:[#allocation2 + $0xf8] sm:$0xff] %v2937
  %3082 = vst [vmem:[#allocation2 + $0x100] sm:$0xff] %v2938
  %3083 = vst [vmem:[#allocation2 + $0x108] sm:$0xff] %v2939
  %3084 = vst [vmem:[#allocation2 + $0x110] sm:$0xff] %v2940
  %3085 = vst [vmem:[#allocation2 + $0x118] sm:$0xff] %v2941
  %3086 = vst [vmem:[#allocation2 + $0x120] sm:$0xff] %v2942
  %3087 = vst [vmem:[#allocation2 + $0x128] sm:$0xff] %v2943
  %3088 = vst [vmem:[#allocation2 + $0x130] sm:$0xff] %v2944
  %3089 = vst [vmem:[#allocation2 + $0x138] sm:$0xff] %v2945
  %3090 = vst [vmem:[#allocation2 + $0x140] sm:$0xff] %v2946
  %3091 = vst [vmem:[#allocation2 + $0x148] sm:$0xff] %v2947
  %3092 = vst [vmem:[#allocation2 + $0x150] sm:$0xff] %v2948
  %3093 = vst [vmem:[#allocation2 + $0x158] sm:$0xff] %v2949
  %3094 = vst [vmem:[#allocation2 + $0x160] sm:$0xff] %v2950
  %3095 = vst [vmem:[#allocation2 + $0x168] sm:$0xff] %v2951
  %3096 = vst [vmem:[#allocation2 + $0x170] sm:$0xff] %v2952
  %3097 = vst [vmem:[#allocation2 + $0x178] sm:$0xff] %v2953
  %3098 = vst [vmem:[#allocation2 + $0x180] sm:$0xff] %v2954
  %3099 = vst [vmem:[#allocation2 + $0x188] sm:$0xff] %v2955
  %3100 = vst [vmem:[#allocation2 + $0x190] sm:$0xff] %v2956
  %3101 = vst [vmem:[#allocation2 + $0x198] sm:$0xff] %v2957
  %3102 = vst [vmem:[#allocation2 + $0x1a0] sm:$0xff] %v2958
  %3103 = vst [vmem:[#allocation2 + $0x1a8] sm:$0xff] %v2959
  %3104 = vst [vmem:[#allocation2 + $0x1b0] sm:$0xff] %v2960
  %3105 = vst [vmem:[#allocation2 + $0x1b8] sm:$0xff] %v2961
  %3106 = vst [vmem:[#allocation2 + $0x1c0] sm:$0xff] %v2962
  %3107 = vst [vmem:[#allocation2 + $0x1c8] sm:$0xff] %v2963
  %3108 = vst [vmem:[#allocation2 + $0x1d0] sm:$0xff] %v2964
  %3109 = vst [vmem:[#allocation2 + $0x1d8] sm:$0xff] %v2965
  %3110 = vst [vmem:[#allocation2 + $0x1e0] sm:$0xff] %v2966
  %3111 = vst [vmem:[#allocation2 + $0x1e8] sm:$0xff] %v2967
  %3112 = vst [vmem:[#allocation2 + $0x1f0] sm:$0xff] %v2968
  %3113 = vst [vmem:[#allocation2 + $0x1f8] sm:$0xff] %v2969
  %3114 = vst [vmem:[#allocation2 + $0x200] sm:$0xff] %v2970
  %3115 = vst [vmem:[#allocation2 + $0x208] sm:$0xff] %v2971
  %3116 = vst [vmem:[#allocation2 + $0x210] sm:$0xff] %v2972
  %3117 = vst [vmem:[#allocation2 + $0x218] sm:$0xff] %v2973
  %3118 = vst [vmem:[#allocation2 + $0x220] sm:$0xff] %v2974
  %3119 = vst [vmem:[#allocation2 + $0x228] sm:$0xff] %v2975
  %3120 = vst [vmem:[#allocation2 + $0x230] sm:$0xff] %v2976
  %3121 = vst [vmem:[#allocation2 + $0x238] sm:$0xff] %v2977
  %3122 = vst [vmem:[#allocation2 + $0x240] sm:$0xff] %v2978
  %3123 = vst [vmem:[#allocation2 + $0x248] sm:$0xff] %v2979
  %3124 = vst [vmem:[#allocation2 + $0x250] sm:$0xff] %v2980
  %3125 = vst [vmem:[#allocation2 + $0x258] sm:$0xff] %v2981
  %3126 = vst [vmem:[#allocation2 + $0x260] sm:$0xff] %v2982
  %3127 = vst [vmem:[#allocation2 + $0x268] sm:$0xff] %v2983
  %3128 = vst [vmem:[#allocation2 + $0x270] sm:$0xff] %v2984
  %3129 = vst [vmem:[#allocation2 + $0x278] sm:$0xff] %v2985
  %3130 = vst [vmem:[#allocation2 + $0x280] sm:$0xff] %v2986
  %3131 = vst [vmem:[#allocation2 + $0x288] sm:$0xff] %v2987
  %3132 = vst [vmem:[#allocation2 + $0x290] sm:$0xff] %v2988
  %3133 = vst [vmem:[#allocation2 + $0x298] sm:$0xff] %v2989
  %3134 = vst [vmem:[#allocation2 + $0x2a0] sm:$0xff] %v2990
  %3135 = vst [vmem:[#allocation2 + $0x2a8] sm:$0xff] %v2991
  %3136 = vst [vmem:[#allocation2 + $0x2b0] sm:$0xff] %v2992
  %3137 = vst [vmem:[#allocation2 + $0x2b8] sm:$0xff] %v2993
  %3138 = vst [vmem:[#allocation2 + $0x2c0] sm:$0xff] %v2994
  %3139 = vst [vmem:[#allocation2 + $0x2c8] sm:$0xff] %v2995
  %3140 = vst [vmem:[#allocation2 + $0x2d0] sm:$0xff] %v2996
  %3141 = vst [vmem:[#allocation2 + $0x2d8] sm:$0xff] %v2997
  %3142 = vst [vmem:[#allocation2 + $0x2e0] sm:$0xff] %v2998
  %3143 = vst [vmem:[#allocation2 + $0x2e8] sm:$0xff] %v2999
  %3144 = vst [vmem:[#allocation2 + $0x2f0] sm:$0xff] %v3000
  %3145 = vst [vmem:[#allocation2 + $0x2f8] sm:$0xff] %v3001
  %3146 = vst [vmem:[#allocation2 + $0x300] sm:$0xff] %v3002
  %3147 = vst [vmem:[#allocation2 + $0x308] sm:$0xff] %v3003
  %3148 = vst [vmem:[#allocation2 + $0x310] sm:$0xff] %v3004
  %3149 = vst [vmem:[#allocation2 + $0x318] sm:$0xff] %v3005
  %3150 = vst [vmem:[#allocation2 + $0x320] sm:$0xff] %v3006
  %3151 = vst [vmem:[#allocation2 + $0x328] sm:$0xff] %v3007
  %3152 = vst [vmem:[#allocation2 + $0x330] sm:$0xff] %v3008
  %3153 = vst [vmem:[#allocation2 + $0x338] sm:$0xff] %v3009
  %3154 = vst [vmem:[#allocation2 + $0x340] sm:$0xff] %v3010
  %3155 = vst [vmem:[#allocation2 + $0x348] sm:$0xff] %v3011
  %3156 = vst [vmem:[#allocation2 + $0x350] sm:$0xff] %v3012
  %3157 = vst [vmem:[#allocation2 + $0x358] sm:$0xff] %v3013
  %3158 = vst [vmem:[#allocation2 + $0x360] sm:$0xff] %v3014
  %3159 = vst [vmem:[#allocation2 + $0x368] sm:$0xff] %v3015
  %3160 = vst [vmem:[#allocation2 + $0x370] sm:$0xff] %v3016
  %3161 = vst [vmem:[#allocation2 + $0x378] sm:$0xff] %v3017
  %3162 = vst [vmem:[#allocation2 + $0x380] sm:$0xff] %v3018
  %3163 = vst [vmem:[#allocation2 + $0x388] sm:$0xff] %v3019
  %3164 = vst [vmem:[#allocation2 + $0x390] sm:$0xff] %v3020
  %3165 = vst [vmem:[#allocation2 + $0x398] sm:$0xff] %v3021
  %3166 = vst [vmem:[#allocation2 + $0x3a0] sm:$0xff] %v3022
  %3167 = vst [vmem:[#allocation2 + $0x3a8] sm:$0xff] %v3023
  %3168 = vst [vmem:[#allocation2 + $0x3b0] sm:$0xff] %v3024
  %3169 = vst [vmem:[#allocation2 + $0x3b8] sm:$0xff] %v3025
  %3170 = vst [vmem:[#allocation2 + $0x3c0] sm:$0xff] %v3026
  %3171 = vst [vmem:[#allocation2 + $0x3c8] sm:$0xff] %v3027
  %3172 = vst [vmem:[#allocation2 + $0x3d0] sm:$0xff] %v3028
  %3173 = vst [vmem:[#allocation2 + $0x3d8] sm:$0xff] %v3029
  %3174 = vst [vmem:[#allocation2 + $0x3e0] sm:$0xff] %v3030
  %3175 = vst [vmem:[#allocation2 + $0x3e8] sm:$0xff] %v3031
  %3176 = vst [vmem:[#allocation2 + $0x3f0] sm:$0xff] %v3032
  %3177 = vst [vmem:[#allocation2 + $0x3f8] sm:$0xff] %v3033
  %3178 = vst [vmem:[#allocation2 + $0x400] sm:$0xff] %v3034
  %3179 = vst [vmem:[#allocation2 + $0x408] sm:$0xff] %v3035
  %3180 = vst [vmem:[#allocation2 + $0x410] sm:$0xff] %v3036
  %3181 = vst [vmem:[#allocation2 + $0x418] sm:$0xff] %v3037
  %3182 = vst [vmem:[#allocation2 + $0x420] sm:$0xff] %v3038
  %3183 = vst [vmem:[#allocation2 + $0x428] sm:$0xff] %v3039
  %3184 = vst [vmem:[#allocation2 + $0x430] sm:$0xff] %v3040
  %3185 = vst [vmem:[#allocation2 + $0x438] sm:$0xff] %v3041
  %3186 = vst [vmem:[#allocation2 + $0x440] sm:$0xff] %v3042
  %3187 = vst [vmem:[#allocation2 + $0x448] sm:$0xff] %v3043
  %3188 = vst [vmem:[#allocation2 + $0x450] sm:$0xff] %v3044
  %3189 = vst [vmem:[#allocation2 + $0x458] sm:$0xff] %v3045
  %3190 = vst [vmem:[#allocation2 + $0x460] sm:$0xff] %v3046
  %3191 = vst [vmem:[#allocation2 + $0x468] sm:$0xff] %v3047
  %3192 = vst [vmem:[#allocation2 + $0x470] sm:$0xff] %v3048
  %3193 = vst [vmem:[#allocation2 + $0x478] sm:$0xff] %v3049
  %v3194 = vld [vmem:[#allocation2] sm:$0xff]
  %v3195 = vld [vmem:[#allocation2 + $0x8] sm:$0xff]
  %v3196 = vld [vmem:[#allocation2 + $0x10] sm:$0xff]
  %v3197 = vld [vmem:[#allocation2 + $0x18] sm:$0xff]
  %v3198 = vld [vmem:[#allocation2 + $0x20] sm:$0xff]
  %v3199 = vld [vmem:[#allocation2 + $0x28] sm:$0xff]
  %v3200 = vld [vmem:[#allocation2 + $0x30] sm:$0xff]
  %v3201 = vld [vmem:[#allocation2 + $0x38] sm:$0xff]
  %v3202 = vld [vmem:[#allocation2 + $0x40] sm:$0xff]
  %v3203 = vld [vmem:[#allocation2 + $0x48] sm:$0xff]
  %v3204 = vld [vmem:[#allocation2 + $0x50] sm:$0xff]
  %v3205 = vld [vmem:[#allocation2 + $0x58] sm:$0xff]
  %v3206 = vld [vmem:[#allocation2 + $0x60] sm:$0xff]
  %v3207 = vld [vmem:[#allocation2 + $0x68] sm:$0xff]
  %v3208 = vld [vmem:[#allocation2 + $0x70] sm:$0xff]
  %v3209 = vld [vmem:[#allocation2 + $0x78] sm:$0xff]
  %v3210 = vld [vmem:[#allocation2 + $0xc0] sm:$0xff]
  %v3211 = vld [vmem:[#allocation2 + $0xc8] sm:$0xff]
  %v3212 = vld [vmem:[#allocation2 + $0xd0] sm:$0xff]
  %v3213 = vld [vmem:[#allocation2 + $0xd8] sm:$0xff]
  %v3214 = vld [vmem:[#allocation2 + $0xe0] sm:$0xff]
  %v3215 = vld [vmem:[#allocation2 + $0xe8] sm:$0xff]
  %v3216 = vld [vmem:[#allocation2 + $0xf0] sm:$0xff]
  %v3217 = vld [vmem:[#allocation2 + $0xf8] sm:$0xff]
  %v3218 = vld [vmem:[#allocation2 + $0x100] sm:$0xff]
  %v3219 = vld [vmem:[#allocation2 + $0x108] sm:$0xff]
  %v3220 = vld [vmem:[#allocation2 + $0x110] sm:$0xff]
  %v3221 = vld [vmem:[#allocation2 + $0x118] sm:$0xff]
  %v3222 = vld [vmem:[#allocation2 + $0x120] sm:$0xff]
  %v3223 = vld [vmem:[#allocation2 + $0x128] sm:$0xff]
  %v3224 = vld [vmem:[#allocation2 + $0x130] sm:$0xff]
  %v3225 = vld [vmem:[#allocation2 + $0x138] sm:$0xff]
  %v3226 = vld [vmem:[#allocation2 + $0x180] sm:$0xff]
  %v3227 = vld [vmem:[#allocation2 + $0x188] sm:$0xff]
  %v3228 = vld [vmem:[#allocation2 + $0x190] sm:$0xff]
  %v3229 = vld [vmem:[#allocation2 + $0x198] sm:$0xff]
  %v3230 = vld [vmem:[#allocation2 + $0x1a0] sm:$0xff]
  %v3231 = vld [vmem:[#allocation2 + $0x1a8] sm:$0xff]
  %v3232 = vld [vmem:[#allocation2 + $0x1b0] sm:$0xff]
  %v3233 = vld [vmem:[#allocation2 + $0x1b8] sm:$0xff]
  %v3234 = vld [vmem:[#allocation2 + $0x1c0] sm:$0xff]
  %v3235 = vld [vmem:[#allocation2 + $0x1c8] sm:$0xff]
  %v3236 = vld [vmem:[#allocation2 + $0x1d0] sm:$0xff]
  %v3237 = vld [vmem:[#allocation2 + $0x1d8] sm:$0xff]
  %v3238 = vld [vmem:[#allocation2 + $0x1e0] sm:$0xff]
  %v3239 = vld [vmem:[#allocation2 + $0x1e8] sm:$0xff]
  %v3240 = vld [vmem:[#allocation2 + $0x1f0] sm:$0xff]
  %v3241 = vld [vmem:[#allocation2 + $0x1f8] sm:$0xff]
  %v3242 = vld [vmem:[#allocation2 + $0x240] sm:$0xff]
  %v3243 = vld [vmem:[#allocation2 + $0x248] sm:$0xff]
  %v3244 = vld [vmem:[#allocation2 + $0x250] sm:$0xff]
  %v3245 = vld [vmem:[#allocation2 + $0x258] sm:$0xff]
  %v3246 = vld [vmem:[#allocation2 + $0x260] sm:$0xff]
  %v3247 = vld [vmem:[#allocation2 + $0x268] sm:$0xff]
  %v3248 = vld [vmem:[#allocation2 + $0x270] sm:$0xff]
  %v3249 = vld [vmem:[#allocation2 + $0x278] sm:$0xff]
  %v3250 = vld [vmem:[#allocation2 + $0x280] sm:$0xff]
  %v3251 = vld [vmem:[#allocation2 + $0x288] sm:$0xff]
  %v3252 = vld [vmem:[#allocation2 + $0x290] sm:$0xff]
  %v3253 = vld [vmem:[#allocation2 + $0x298] sm:$0xff]
  %v3254 = vld [vmem:[#allocation2 + $0x2a0] sm:$0xff]
  %v3255 = vld [vmem:[#allocation2 + $0x2a8] sm:$0xff]
  %v3256 = vld [vmem:[#allocation2 + $0x2b0] sm:$0xff]
  %v3257 = vld [vmem:[#allocation2 + $0x2b8] sm:$0xff]
  %v3258 = vpack.c.bf16 %v3194, %v3194
  %v3259 = vpack.c.bf16 %v3195, %v3195
  %v3260 = vpack.c.bf16 %v3196, %v3196
  %v3261 = vpack.c.bf16 %v3197, %v3197
  %v3262 = vpack.c.bf16 %v3198, %v3198
  %v3263 = vpack.c.bf16 %v3199, %v3199
  %v3264 = vpack.c.bf16 %v3200, %v3200
  %v3265 = vpack.c.bf16 %v3201, %v3201
  %v3266 = vpack.c.bf16 %v3202, %v3202
  %v3267 = vpack.c.bf16 %v3203, %v3203
  %v3268 = vpack.c.bf16 %v3204, %v3204
  %v3269 = vpack.c.bf16 %v3205, %v3205
  %v3270 = vpack.c.bf16 %v3206, %v3206
  %v3271 = vpack.c.bf16 %v3207, %v3207
  %v3272 = vpack.c.bf16 %v3208, %v3208
  %v3273 = vpack.c.bf16 %v3209, %v3209
  %v3274 = vpack.c.bf16 %v3210, %v3210
  %v3275 = vpack.c.bf16 %v3211, %v3211
  %v3276 = vpack.c.bf16 %v3212, %v3212
  %v3277 = vpack.c.bf16 %v3213, %v3213
  %v3278 = vpack.c.bf16 %v3214, %v3214
  %v3279 = vpack.c.bf16 %v3215, %v3215
  %v3280 = vpack.c.bf16 %v3216, %v3216
  %v3281 = vpack.c.bf16 %v3217, %v3217
  %v3282 = vpack.c.bf16 %v3218, %v3218
  %v3283 = vpack.c.bf16 %v3219, %v3219
  %v3284 = vpack.c.bf16 %v3220, %v3220
  %v3285 = vpack.c.bf16 %v3221, %v3221
  %v3286 = vpack.c.bf16 %v3222, %v3222
  %v3287 = vpack.c.bf16 %v3223, %v3223
  %v3288 = vpack.c.bf16 %v3224, %v3224
  %v3289 = vpack.c.bf16 %v3225, %v3225
  %v3290 = vpack.c.bf16 %v3226, %v3226
  %v3291 = vpack.c.bf16 %v3227, %v3227
  %v3292 = vpack.c.bf16 %v3228, %v3228
  %v3293 = vpack.c.bf16 %v3229, %v3229
  %v3294 = vpack.c.bf16 %v3230, %v3230
  %v3295 = vpack.c.bf16 %v3231, %v3231
  %v3296 = vpack.c.bf16 %v3232, %v3232
  %v3297 = vpack.c.bf16 %v3233, %v3233
  %v3298 = vpack.c.bf16 %v3234, %v3234
  %v3299 = vpack.c.bf16 %v3235, %v3235
  %v3300 = vpack.c.bf16 %v3236, %v3236
  %v3301 = vpack.c.bf16 %v3237, %v3237
  %v3302 = vpack.c.bf16 %v3238, %v3238
  %v3303 = vpack.c.bf16 %v3239, %v3239
  %v3304 = vpack.c.bf16 %v3240, %v3240
  %v3305 = vpack.c.bf16 %v3241, %v3241
  %v3306 = vpack.c.bf16 %v3242, %v3242
  %v3307 = vpack.c.bf16 %v3243, %v3243
  %v3308 = vpack.c.bf16 %v3244, %v3244
  %v3309 = vpack.c.bf16 %v3245, %v3245
  %v3310 = vpack.c.bf16 %v3246, %v3246
  %v3311 = vpack.c.bf16 %v3247, %v3247
  %v3312 = vpack.c.bf16 %v3248, %v3248
  %v3313 = vpack.c.bf16 %v3249, %v3249
  %v3314 = vpack.c.bf16 %v3250, %v3250
  %v3315 = vpack.c.bf16 %v3251, %v3251
  %v3316 = vpack.c.bf16 %v3252, %v3252
  %v3317 = vpack.c.bf16 %v3253, %v3253
  %v3318 = vpack.c.bf16 %v3254, %v3254
  %v3319 = vpack.c.bf16 %v3255, %v3255
  %v3320 = vpack.c.bf16 %v3256, %v3256
  %v3321 = vpack.c.bf16 %v3257, %v3257
  %s3322 = scalar_lea.vmem [#allocation2], 32
  %v3323 = vld [vmem:[%s3322] sm:$0xff]
  %v3324 = vld [vmem:[%s3322 + $0x8] sm:$0xff]
  %v3325 = vld [vmem:[%s3322 + $0x10] sm:$0xff]
  %v3326 = vld [vmem:[%s3322 + $0x18] sm:$0xff]
  %v3327 = vld [vmem:[%s3322 + $0x20] sm:$0xff]
  %v3328 = vld [vmem:[%s3322 + $0x28] sm:$0xff]
  %v3329 = vld [vmem:[%s3322 + $0x30] sm:$0xff]
  %v3330 = vld [vmem:[%s3322 + $0x38] sm:$0xff]
  %v3331 = vld [vmem:[%s3322 + $0x40] sm:$0xff]
  %v3332 = vld [vmem:[%s3322 + $0x48] sm:$0xff]
  %v3333 = vld [vmem:[%s3322 + $0x50] sm:$0xff]
  %v3334 = vld [vmem:[%s3322 + $0x58] sm:$0xff]
  %v3335 = vld [vmem:[%s3322 + $0x60] sm:$0xff]
  %v3336 = vld [vmem:[%s3322 + $0x68] sm:$0xff]
  %v3337 = vld [vmem:[%s3322 + $0x70] sm:$0xff]
  %v3338 = vld [vmem:[%s3322 + $0x78] sm:$0xff]
  %v3339 = vld [vmem:[%s3322 + $0xc0] sm:$0xff]
  %v3340 = vld [vmem:[%s3322 + $0xc8] sm:$0xff]
  %v3341 = vld [vmem:[%s3322 + $0xd0] sm:$0xff]
  %v3342 = vld [vmem:[%s3322 + $0xd8] sm:$0xff]
  %v3343 = vld [vmem:[%s3322 + $0xe0] sm:$0xff]
  %v3344 = vld [vmem:[%s3322 + $0xe8] sm:$0xff]
  %v3345 = vld [vmem:[%s3322 + $0xf0] sm:$0xff]
  %v3346 = vld [vmem:[%s3322 + $0xf8] sm:$0xff]
  %v3347 = vld [vmem:[%s3322 + $0x100] sm:$0xff]
  %v3348 = vld [vmem:[%s3322 + $0x108] sm:$0xff]
  %v3349 = vld [vmem:[%s3322 + $0x110] sm:$0xff]
  %v3350 = vld [vmem:[%s3322 + $0x118] sm:$0xff]
  %v3351 = vld [vmem:[%s3322 + $0x120] sm:$0xff]
  %v3352 = vld [vmem:[%s3322 + $0x128] sm:$0xff]
  %v3353 = vld [vmem:[%s3322 + $0x130] sm:$0xff]
  %v3354 = vld [vmem:[%s3322 + $0x138] sm:$0xff]
  %v3355 = vld [vmem:[%s3322 + $0x180] sm:$0xff]
  %v3356 = vld [vmem:[%s3322 + $0x188] sm:$0xff]
  %v3357 = vld [vmem:[%s3322 + $0x190] sm:$0xff]
  %v3358 = vld [vmem:[%s3322 + $0x198] sm:$0xff]
  %v3359 = vld [vmem:[%s3322 + $0x1a0] sm:$0xff]
  %v3360 = vld [vmem:[%s3322 + $0x1a8] sm:$0xff]
  %v3361 = vld [vmem:[%s3322 + $0x1b0] sm:$0xff]
  %v3362 = vld [vmem:[%s3322 + $0x1b8] sm:$0xff]
  %v3363 = vld [vmem:[%s3322 + $0x1c0] sm:$0xff]
  %v3364 = vld [vmem:[%s3322 + $0x1c8] sm:$0xff]
  %v3365 = vld [vmem:[%s3322 + $0x1d0] sm:$0xff]
  %v3366 = vld [vmem:[%s3322 + $0x1d8] sm:$0xff]
  %v3367 = vld [vmem:[%s3322 + $0x1e0] sm:$0xff]
  %v3368 = vld [vmem:[%s3322 + $0x1e8] sm:$0xff]
  %v3369 = vld [vmem:[%s3322 + $0x1f0] sm:$0xff]
  %v3370 = vld [vmem:[%s3322 + $0x1f8] sm:$0xff]
  %v3371 = vld [vmem:[%s3322 + $0x240] sm:$0xff]
  %v3372 = vld [vmem:[%s3322 + $0x248] sm:$0xff]
  %v3373 = vld [vmem:[%s3322 + $0x250] sm:$0xff]
  %v3374 = vld [vmem:[%s3322 + $0x258] sm:$0xff]
  %v3375 = vld [vmem:[%s3322 + $0x260] sm:$0xff]
  %v3376 = vld [vmem:[%s3322 + $0x268] sm:$0xff]
  %v3377 = vld [vmem:[%s3322 + $0x270] sm:$0xff]
  %v3378 = vld [vmem:[%s3322 + $0x278] sm:$0xff]
  %v3379 = vld [vmem:[%s3322 + $0x280] sm:$0xff]
  %v3380 = vld [vmem:[%s3322 + $0x288] sm:$0xff]
  %v3381 = vld [vmem:[%s3322 + $0x290] sm:$0xff]
  %v3382 = vld [vmem:[%s3322 + $0x298] sm:$0xff]
  %v3383 = vld [vmem:[%s3322 + $0x2a0] sm:$0xff]
  %v3384 = vld [vmem:[%s3322 + $0x2a8] sm:$0xff]
  %v3385 = vld [vmem:[%s3322 + $0x2b0] sm:$0xff]
  %v3386 = vld [vmem:[%s3322 + $0x2b8] sm:$0xff]
  %v3387 = vpack.c.bf16 %v3323, %v3323
  %v3388 = vpack.c.bf16 %v3324, %v3324
  %v3389 = vpack.c.bf16 %v3325, %v3325
  %v3390 = vpack.c.bf16 %v3326, %v3326
  %v3391 = vpack.c.bf16 %v3327, %v3327
  %v3392 = vpack.c.bf16 %v3328, %v3328
  %v3393 = vpack.c.bf16 %v3329, %v3329
  %v3394 = vpack.c.bf16 %v3330, %v3330
  %v3395 = vpack.c.bf16 %v3331, %v3331
  %v3396 = vpack.c.bf16 %v3332, %v3332
  %v3397 = vpack.c.bf16 %v3333, %v3333
  %v3398 = vpack.c.bf16 %v3334, %v3334
  %v3399 = vpack.c.bf16 %v3335, %v3335
  %v3400 = vpack.c.bf16 %v3336, %v3336
  %v3401 = vpack.c.bf16 %v3337, %v3337
  %v3402 = vpack.c.bf16 %v3338, %v3338
  %v3403 = vpack.c.bf16 %v3339, %v3339
  %v3404 = vpack.c.bf16 %v3340, %v3340
  %v3405 = vpack.c.bf16 %v3341, %v3341
  %v3406 = vpack.c.bf16 %v3342, %v3342
  %v3407 = vpack.c.bf16 %v3343, %v3343
  %v3408 = vpack.c.bf16 %v3344, %v3344
  %v3409 = vpack.c.bf16 %v3345, %v3345
  %v3410 = vpack.c.bf16 %v3346, %v3346
  %v3411 = vpack.c.bf16 %v3347, %v3347
  %v3412 = vpack.c.bf16 %v3348, %v3348
  %v3413 = vpack.c.bf16 %v3349, %v3349
  %v3414 = vpack.c.bf16 %v3350, %v3350
  %v3415 = vpack.c.bf16 %v3351, %v3351
  %v3416 = vpack.c.bf16 %v3352, %v3352
  %v3417 = vpack.c.bf16 %v3353, %v3353
  %v3418 = vpack.c.bf16 %v3354, %v3354
  %v3419 = vpack.c.bf16 %v3355, %v3355
  %v3420 = vpack.c.bf16 %v3356, %v3356
  %v3421 = vpack.c.bf16 %v3357, %v3357
  %v3422 = vpack.c.bf16 %v3358, %v3358
  %v3423 = vpack.c.bf16 %v3359, %v3359
  %v3424 = vpack.c.bf16 %v3360, %v3360
  %v3425 = vpack.c.bf16 %v3361, %v3361
  %v3426 = vpack.c.bf16 %v3362, %v3362
  %v3427 = vpack.c.bf16 %v3363, %v3363
  %v3428 = vpack.c.bf16 %v3364, %v3364
  %v3429 = vpack.c.bf16 %v3365, %v3365
  %v3430 = vpack.c.bf16 %v3366, %v3366
  %v3431 = vpack.c.bf16 %v3367, %v3367
  %v3432 = vpack.c.bf16 %v3368, %v3368
  %v3433 = vpack.c.bf16 %v3369, %v3369
  %v3434 = vpack.c.bf16 %v3370, %v3370
  %v3435 = vpack.c.bf16 %v3371, %v3371
  %v3436 = vpack.c.bf16 %v3372, %v3372
  %v3437 = vpack.c.bf16 %v3373, %v3373
  %v3438 = vpack.c.bf16 %v3374, %v3374
  %v3439 = vpack.c.bf16 %v3375, %v3375
  %v3440 = vpack.c.bf16 %v3376, %v3376
  %v3441 = vpack.c.bf16 %v3377, %v3377
  %v3442 = vpack.c.bf16 %v3378, %v3378
  %v3443 = vpack.c.bf16 %v3379, %v3379
  %v3444 = vpack.c.bf16 %v3380, %v3380
  %v3445 = vpack.c.bf16 %v3381, %v3381
  %v3446 = vpack.c.bf16 %v3382, %v3382
  %v3447 = vpack.c.bf16 %v3383, %v3383
  %v3448 = vpack.c.bf16 %v3384, %v3384
  %v3449 = vpack.c.bf16 %v3385, %v3385
  %v3450 = vpack.c.bf16 %v3386, %v3386
  %s3451 = scalar_lea.vmem [#allocation2], 64
  %v3452 = vld [vmem:[%s3451] sm:$0xff]
  %v3453 = vld [vmem:[%s3451 + $0x8] sm:$0xff]
  %v3454 = vld [vmem:[%s3451 + $0x10] sm:$0xff]
  %v3455 = vld [vmem:[%s3451 + $0x18] sm:$0xff]
  %v3456 = vld [vmem:[%s3451 + $0x20] sm:$0xff]
  %v3457 = vld [vmem:[%s3451 + $0x28] sm:$0xff]
  %v3458 = vld [vmem:[%s3451 + $0x30] sm:$0xff]
  %v3459 = vld [vmem:[%s3451 + $0x38] sm:$0xff]
  %v3460 = vld [vmem:[%s3451 + $0x40] sm:$0xff]
  %v3461 = vld [vmem:[%s3451 + $0x48] sm:$0xff]
  %v3462 = vld [vmem:[%s3451 + $0x50] sm:$0xff]
  %v3463 = vld [vmem:[%s3451 + $0x58] sm:$0xff]
  %v3464 = vld [vmem:[%s3451 + $0x60] sm:$0xff]
  %v3465 = vld [vmem:[%s3451 + $0x68] sm:$0xff]
  %v3466 = vld [vmem:[%s3451 + $0x70] sm:$0xff]
  %v3467 = vld [vmem:[%s3451 + $0x78] sm:$0xff]
  %v3468 = vld [vmem:[%s3451 + $0xc0] sm:$0xff]
  %v3469 = vld [vmem:[%s3451 + $0xc8] sm:$0xff]
  %v3470 = vld [vmem:[%s3451 + $0xd0] sm:$0xff]
  %v3471 = vld [vmem:[%s3451 + $0xd8] sm:$0xff]
  %v3472 = vld [vmem:[%s3451 + $0xe0] sm:$0xff]
  %v3473 = vld [vmem:[%s3451 + $0xe8] sm:$0xff]
  %v3474 = vld [vmem:[%s3451 + $0xf0] sm:$0xff]
  %v3475 = vld [vmem:[%s3451 + $0xf8] sm:$0xff]
  %v3476 = vld [vmem:[%s3451 + $0x100] sm:$0xff]
  %v3477 = vld [vmem:[%s3451 + $0x108] sm:$0xff]
  %v3478 = vld [vmem:[%s3451 + $0x110] sm:$0xff]
  %v3479 = vld [vmem:[%s3451 + $0x118] sm:$0xff]
  %v3480 = vld [vmem:[%s3451 + $0x120] sm:$0xff]
  %v3481 = vld [vmem:[%s3451 + $0x128] sm:$0xff]
  %v3482 = vld [vmem:[%s3451 + $0x130] sm:$0xff]
  %v3483 = vld [vmem:[%s3451 + $0x138] sm:$0xff]
  %v3484 = vld [vmem:[%s3451 + $0x180] sm:$0xff]
  %v3485 = vld [vmem:[%s3451 + $0x188] sm:$0xff]
  %v3486 = vld [vmem:[%s3451 + $0x190] sm:$0xff]
  %v3487 = vld [vmem:[%s3451 + $0x198] sm:$0xff]
  %v3488 = vld [vmem:[%s3451 + $0x1a0] sm:$0xff]
  %v3489 = vld [vmem:[%s3451 + $0x1a8] sm:$0xff]
  %v3490 = vld [vmem:[%s3451 + $0x1b0] sm:$0xff]
  %v3491 = vld [vmem:[%s3451 + $0x1b8] sm:$0xff]
  %v3492 = vld [vmem:[%s3451 + $0x1c0] sm:$0xff]
  %v3493 = vld [vmem:[%s3451 + $0x1c8] sm:$0xff]
  %v3494 = vld [vmem:[%s3451 + $0x1d0] sm:$0xff]
  %v3495 = vld [vmem:[%s3451 + $0x1d8] sm:$0xff]
  %v3496 = vld [vmem:[%s3451 + $0x1e0] sm:$0xff]
  %v3497 = vld [vmem:[%s3451 + $0x1e8] sm:$0xff]
  %v3498 = vld [vmem:[%s3451 + $0x1f0] sm:$0xff]
  %v3499 = vld [vmem:[%s3451 + $0x1f8] sm:$0xff]
  %v3500 = vld [vmem:[%s3451 + $0x240] sm:$0xff]
  %v3501 = vld [vmem:[%s3451 + $0x248] sm:$0xff]
  %v3502 = vld [vmem:[%s3451 + $0x250] sm:$0xff]
  %v3503 = vld [vmem:[%s3451 + $0x258] sm:$0xff]
  %v3504 = vld [vmem:[%s3451 + $0x260] sm:$0xff]
  %v3505 = vld [vmem:[%s3451 + $0x268] sm:$0xff]
  %v3506 = vld [vmem:[%s3451 + $0x270] sm:$0xff]
  %v3507 = vld [vmem:[%s3451 + $0x278] sm:$0xff]
  %v3508 = vld [vmem:[%s3451 + $0x280] sm:$0xff]
  %v3509 = vld [vmem:[%s3451 + $0x288] sm:$0xff]
  %v3510 = vld [vmem:[%s3451 + $0x290] sm:$0xff]
  %v3511 = vld [vmem:[%s3451 + $0x298] sm:$0xff]
  %v3512 = vld [vmem:[%s3451 + $0x2a0] sm:$0xff]
  %v3513 = vld [vmem:[%s3451 + $0x2a8] sm:$0xff]
  %v3514 = vld [vmem:[%s3451 + $0x2b0] sm:$0xff]
  %v3515 = vld [vmem:[%s3451 + $0x2b8] sm:$0xff]
  %v3516 = vpack.c.bf16 %v3452, %v3452
  %v3517 = vpack.c.bf16 %v3453, %v3453
  %v3518 = vpack.c.bf16 %v3454, %v3454
  %v3519 = vpack.c.bf16 %v3455, %v3455
  %v3520 = vpack.c.bf16 %v3456, %v3456
  %v3521 = vpack.c.bf16 %v3457, %v3457
  %v3522 = vpack.c.bf16 %v3458, %v3458
  %v3523 = vpack.c.bf16 %v3459, %v3459
  %v3524 = vpack.c.bf16 %v3460, %v3460
  %v3525 = vpack.c.bf16 %v3461, %v3461
  %v3526 = vpack.c.bf16 %v3462, %v3462
  %v3527 = vpack.c.bf16 %v3463, %v3463
  %v3528 = vpack.c.bf16 %v3464, %v3464
  %v3529 = vpack.c.bf16 %v3465, %v3465
  %v3530 = vpack.c.bf16 %v3466, %v3466
  %v3531 = vpack.c.bf16 %v3467, %v3467
  %v3532 = vpack.c.bf16 %v3468, %v3468
  %v3533 = vpack.c.bf16 %v3469, %v3469
  %v3534 = vpack.c.bf16 %v3470, %v3470
  %v3535 = vpack.c.bf16 %v3471, %v3471
  %v3536 = vpack.c.bf16 %v3472, %v3472
  %v3537 = vpack.c.bf16 %v3473, %v3473
  %v3538 = vpack.c.bf16 %v3474, %v3474
  %v3539 = vpack.c.bf16 %v3475, %v3475
  %v3540 = vpack.c.bf16 %v3476, %v3476
  %v3541 = vpack.c.bf16 %v3477, %v3477
  %v3542 = vpack.c.bf16 %v3478, %v3478
  %v3543 = vpack.c.bf16 %v3479, %v3479
  %v3544 = vpack.c.bf16 %v3480, %v3480
  %v3545 = vpack.c.bf16 %v3481, %v3481
  %v3546 = vpack.c.bf16 %v3482, %v3482
  %v3547 = vpack.c.bf16 %v3483, %v3483
  %v3548 = vpack.c.bf16 %v3484, %v3484
  %v3549 = vpack.c.bf16 %v3485, %v3485
  %v3550 = vpack.c.bf16 %v3486, %v3486
  %v3551 = vpack.c.bf16 %v3487, %v3487
  %v3552 = vpack.c.bf16 %v3488, %v3488
  %v3553 = vpack.c.bf16 %v3489, %v3489
  %v3554 = vpack.c.bf16 %v3490, %v3490
  %v3555 = vpack.c.bf16 %v3491, %v3491
  %v3556 = vpack.c.bf16 %v3492, %v3492
  %v3557 = vpack.c.bf16 %v3493, %v3493
  %v3558 = vpack.c.bf16 %v3494, %v3494
  %v3559 = vpack.c.bf16 %v3495, %v3495
  %v3560 = vpack.c.bf16 %v3496, %v3496
  %v3561 = vpack.c.bf16 %v3497, %v3497
  %v3562 = vpack.c.bf16 %v3498, %v3498
  %v3563 = vpack.c.bf16 %v3499, %v3499
  %v3564 = vpack.c.bf16 %v3500, %v3500
  %v3565 = vpack.c.bf16 %v3501, %v3501
  %v3566 = vpack.c.bf16 %v3502, %v3502
  %v3567 = vpack.c.bf16 %v3503, %v3503
  %v3568 = vpack.c.bf16 %v3504, %v3504
  %v3569 = vpack.c.bf16 %v3505, %v3505
  %v3570 = vpack.c.bf16 %v3506, %v3506
  %v3571 = vpack.c.bf16 %v3507, %v3507
  %v3572 = vpack.c.bf16 %v3508, %v3508
  %v3573 = vpack.c.bf16 %v3509, %v3509
  %v3574 = vpack.c.bf16 %v3510, %v3510
  %v3575 = vpack.c.bf16 %v3511, %v3511
  %v3576 = vpack.c.bf16 %v3512, %v3512
  %v3577 = vpack.c.bf16 %v3513, %v3513
  %v3578 = vpack.c.bf16 %v3514, %v3514
  %v3579 = vpack.c.bf16 %v3515, %v3515
  %s3580 = scalar_lea.vmem [#allocation2], 192
  %v3581 = vld [vmem:[%s3580] sm:$0xff]
  %v3582 = vld [vmem:[%s3580 + $0x8] sm:$0xff]
  %v3583 = vld [vmem:[%s3580 + $0x10] sm:$0xff]
  %v3584 = vld [vmem:[%s3580 + $0x18] sm:$0xff]
  %v3585 = vld [vmem:[%s3580 + $0x20] sm:$0xff]
  %v3586 = vld [vmem:[%s3580 + $0x28] sm:$0xff]
  %v3587 = vld [vmem:[%s3580 + $0x30] sm:$0xff]
  %v3588 = vld [vmem:[%s3580 + $0x38] sm:$0xff]
  %v3589 = vld [vmem:[%s3580 + $0x40] sm:$0xff]
  %v3590 = vld [vmem:[%s3580 + $0x48] sm:$0xff]
  %v3591 = vld [vmem:[%s3580 + $0x50] sm:$0xff]
  %v3592 = vld [vmem:[%s3580 + $0x58] sm:$0xff]
  %v3593 = vld [vmem:[%s3580 + $0x60] sm:$0xff]
  %v3594 = vld [vmem:[%s3580 + $0x68] sm:$0xff]
  %v3595 = vld [vmem:[%s3580 + $0x70] sm:$0xff]
  %v3596 = vld [vmem:[%s3580 + $0x78] sm:$0xff]
  %v3597 = vld [vmem:[%s3580 + $0xc0] sm:$0xff]
  %v3598 = vld [vmem:[%s3580 + $0xc8] sm:$0xff]
  %v3599 = vld [vmem:[%s3580 + $0xd0] sm:$0xff]
  %v3600 = vld [vmem:[%s3580 + $0xd8] sm:$0xff]
  %v3601 = vld [vmem:[%s3580 + $0xe0] sm:$0xff]
  %v3602 = vld [vmem:[%s3580 + $0xe8] sm:$0xff]
  %v3603 = vld [vmem:[%s3580 + $0xf0] sm:$0xff]
  %v3604 = vld [vmem:[%s3580 + $0xf8] sm:$0xff]
  %v3605 = vld [vmem:[%s3580 + $0x100] sm:$0xff]
  %v3606 = vld [vmem:[%s3580 + $0x108] sm:$0xff]
  %v3607 = vld [vmem:[%s3580 + $0x110] sm:$0xff]
  %v3608 = vld [vmem:[%s3580 + $0x118] sm:$0xff]
  %v3609 = vld [vmem:[%s3580 + $0x120] sm:$0xff]
  %v3610 = vld [vmem:[%s3580 + $0x128] sm:$0xff]
  %v3611 = vld [vmem:[%s3580 + $0x130] sm:$0xff]
  %v3612 = vld [vmem:[%s3580 + $0x138] sm:$0xff]
  %v3613 = vld [vmem:[%s3580 + $0x180] sm:$0xff]
  %v3614 = vld [vmem:[%s3580 + $0x188] sm:$0xff]
  %v3615 = vld [vmem:[%s3580 + $0x190] sm:$0xff]
  %v3616 = vld [vmem:[%s3580 + $0x198] sm:$0xff]
  %v3617 = vld [vmem:[%s3580 + $0x1a0] sm:$0xff]
  %v3618 = vld [vmem:[%s3580 + $0x1a8] sm:$0xff]
  %v3619 = vld [vmem:[%s3580 + $0x1b0] sm:$0xff]
  %v3620 = vld [vmem:[%s3580 + $0x1b8] sm:$0xff]
  %v3621 = vld [vmem:[%s3580 + $0x1c0] sm:$0xff]
  %v3622 = vld [vmem:[%s3580 + $0x1c8] sm:$0xff]
  %v3623 = vld [vmem:[%s3580 + $0x1d0] sm:$0xff]
  %v3624 = vld [vmem:[%s3580 + $0x1d8] sm:$0xff]
  %v3625 = vld [vmem:[%s3580 + $0x1e0] sm:$0xff]
  %v3626 = vld [vmem:[%s3580 + $0x1e8] sm:$0xff]
  %v3627 = vld [vmem:[%s3580 + $0x1f0] sm:$0xff]
  %v3628 = vld [vmem:[%s3580 + $0x1f8] sm:$0xff]
  %v3629 = vld [vmem:[%s3580 + $0x240] sm:$0xff]
  %v3630 = vld [vmem:[%s3580 + $0x248] sm:$0xff]
  %v3631 = vld [vmem:[%s3580 + $0x250] sm:$0xff]
  %v3632 = vld [vmem:[%s3580 + $0x258] sm:$0xff]
  %v3633 = vld [vmem:[%s3580 + $0x260] sm:$0xff]
  %v3634 = vld [vmem:[%s3580 + $0x268] sm:$0xff]
  %v3635 = vld [vmem:[%s3580 + $0x270] sm:$0xff]
  %v3636 = vld [vmem:[%s3580 + $0x278] sm:$0xff]
  %v3637 = vld [vmem:[%s3580 + $0x280] sm:$0xff]
  %v3638 = vld [vmem:[%s3580 + $0x288] sm:$0xff]
  %v3639 = vld [vmem:[%s3580 + $0x290] sm:$0xff]
  %v3640 = vld [vmem:[%s3580 + $0x298] sm:$0xff]
  %v3641 = vld [vmem:[%s3580 + $0x2a0] sm:$0xff]
  %v3642 = vld [vmem:[%s3580 + $0x2a8] sm:$0xff]
  %v3643 = vld [vmem:[%s3580 + $0x2b0] sm:$0xff]
  %v3644 = vld [vmem:[%s3580 + $0x2b8] sm:$0xff]
  %v3645 = vpack.c.bf16 %v3581, %v3581
  %v3646 = vpack.c.bf16 %v3582, %v3582
  %v3647 = vpack.c.bf16 %v3583, %v3583
  %v3648 = vpack.c.bf16 %v3584, %v3584
  %v3649 = vpack.c.bf16 %v3585, %v3585
  %v3650 = vpack.c.bf16 %v3586, %v3586
  %v3651 = vpack.c.bf16 %v3587, %v3587
  %v3652 = vpack.c.bf16 %v3588, %v3588
  %v3653 = vpack.c.bf16 %v3589, %v3589
  %v3654 = vpack.c.bf16 %v3590, %v3590
  %v3655 = vpack.c.bf16 %v3591, %v3591
  %v3656 = vpack.c.bf16 %v3592, %v3592
  %v3657 = vpack.c.bf16 %v3593, %v3593
  %v3658 = vpack.c.bf16 %v3594, %v3594
  %v3659 = vpack.c.bf16 %v3595, %v3595
  %v3660 = vpack.c.bf16 %v3596, %v3596
  %v3661 = vpack.c.bf16 %v3597, %v3597
  %v3662 = vpack.c.bf16 %v3598, %v3598
  %v3663 = vpack.c.bf16 %v3599, %v3599
  %v3664 = vpack.c.bf16 %v3600, %v3600
  %v3665 = vpack.c.bf16 %v3601, %v3601
  %v3666 = vpack.c.bf16 %v3602, %v3602
  %v3667 = vpack.c.bf16 %v3603, %v3603
  %v3668 = vpack.c.bf16 %v3604, %v3604
  %v3669 = vpack.c.bf16 %v3605, %v3605
  %v3670 = vpack.c.bf16 %v3606, %v3606
  %v3671 = vpack.c.bf16 %v3607, %v3607
  %v3672 = vpack.c.bf16 %v3608, %v3608
  %v3673 = vpack.c.bf16 %v3609, %v3609
  %v3674 = vpack.c.bf16 %v3610, %v3610
  %v3675 = vpack.c.bf16 %v3611, %v3611
  %v3676 = vpack.c.bf16 %v3612, %v3612
  %v3677 = vpack.c.bf16 %v3613, %v3613
  %v3678 = vpack.c.bf16 %v3614, %v3614
  %v3679 = vpack.c.bf16 %v3615, %v3615
  %v3680 = vpack.c.bf16 %v3616, %v3616
  %v3681 = vpack.c.bf16 %v3617, %v3617
  %v3682 = vpack.c.bf16 %v3618, %v3618
  %v3683 = vpack.c.bf16 %v3619, %v3619
  %v3684 = vpack.c.bf16 %v3620, %v3620
  %v3685 = vpack.c.bf16 %v3621, %v3621
  %v3686 = vpack.c.bf16 %v3622, %v3622
  %v3687 = vpack.c.bf16 %v3623, %v3623
  %v3688 = vpack.c.bf16 %v3624, %v3624
  %v3689 = vpack.c.bf16 %v3625, %v3625
  %v3690 = vpack.c.bf16 %v3626, %v3626
  %v3691 = vpack.c.bf16 %v3627, %v3627
  %v3692 = vpack.c.bf16 %v3628, %v3628
  %v3693 = vpack.c.bf16 %v3629, %v3629
  %v3694 = vpack.c.bf16 %v3630, %v3630
  %v3695 = vpack.c.bf16 %v3631, %v3631
  %v3696 = vpack.c.bf16 %v3632, %v3632
  %v3697 = vpack.c.bf16 %v3633, %v3633
  %v3698 = vpack.c.bf16 %v3634, %v3634
  %v3699 = vpack.c.bf16 %v3635, %v3635
  %v3700 = vpack.c.bf16 %v3636, %v3636
  %v3701 = vpack.c.bf16 %v3637, %v3637
  %v3702 = vpack.c.bf16 %v3638, %v3638
  %v3703 = vpack.c.bf16 %v3639, %v3639
  %v3704 = vpack.c.bf16 %v3640, %v3640
  %v3705 = vpack.c.bf16 %v3641, %v3641
  %v3706 = vpack.c.bf16 %v3642, %v3642
  %v3707 = vpack.c.bf16 %v3643, %v3643
  %v3708 = vpack.c.bf16 %v3644, %v3644
  %s3709 = scalar_lea.vmem [#allocation2], 224
  %v3710 = vld [vmem:[%s3709] sm:$0xff]
  %v3711 = vld [vmem:[%s3709 + $0x8] sm:$0xff]
  %v3712 = vld [vmem:[%s3709 + $0x10] sm:$0xff]
  %v3713 = vld [vmem:[%s3709 + $0x18] sm:$0xff]
  %v3714 = vld [vmem:[%s3709 + $0x20] sm:$0xff]
  %v3715 = vld [vmem:[%s3709 + $0x28] sm:$0xff]
  %v3716 = vld [vmem:[%s3709 + $0x30] sm:$0xff]
  %v3717 = vld [vmem:[%s3709 + $0x38] sm:$0xff]
  %v3718 = vld [vmem:[%s3709 + $0x40] sm:$0xff]
  %v3719 = vld [vmem:[%s3709 + $0x48] sm:$0xff]
  %v3720 = vld [vmem:[%s3709 + $0x50] sm:$0xff]
  %v3721 = vld [vmem:[%s3709 + $0x58] sm:$0xff]
  %v3722 = vld [vmem:[%s3709 + $0x60] sm:$0xff]
  %v3723 = vld [vmem:[%s3709 + $0x68] sm:$0xff]
  %v3724 = vld [vmem:[%s3709 + $0x70] sm:$0xff]
  %v3725 = vld [vmem:[%s3709 + $0x78] sm:$0xff]
  %v3726 = vld [vmem:[%s3709 + $0xc0] sm:$0xff]
  %v3727 = vld [vmem:[%s3709 + $0xc8] sm:$0xff]
  %v3728 = vld [vmem:[%s3709 + $0xd0] sm:$0xff]
  %v3729 = vld [vmem:[%s3709 + $0xd8] sm:$0xff]
  %v3730 = vld [vmem:[%s3709 + $0xe0] sm:$0xff]
  %v3731 = vld [vmem:[%s3709 + $0xe8] sm:$0xff]
  %v3732 = vld [vmem:[%s3709 + $0xf0] sm:$0xff]
  %v3733 = vld [vmem:[%s3709 + $0xf8] sm:$0xff]
  %v3734 = vld [vmem:[%s3709 + $0x100] sm:$0xff]
  %v3735 = vld [vmem:[%s3709 + $0x108] sm:$0xff]
  %v3736 = vld [vmem:[%s3709 + $0x110] sm:$0xff]
  %v3737 = vld [vmem:[%s3709 + $0x118] sm:$0xff]
  %v3738 = vld [vmem:[%s3709 + $0x120] sm:$0xff]
  %v3739 = vld [vmem:[%s3709 + $0x128] sm:$0xff]
  %v3740 = vld [vmem:[%s3709 + $0x130] sm:$0xff]
  %v3741 = vld [vmem:[%s3709 + $0x138] sm:$0xff]
  %v3742 = vld [vmem:[%s3709 + $0x180] sm:$0xff]
  %v3743 = vld [vmem:[%s3709 + $0x188] sm:$0xff]
  %v3744 = vld [vmem:[%s3709 + $0x190] sm:$0xff]
  %v3745 = vld [vmem:[%s3709 + $0x198] sm:$0xff]
  %v3746 = vld [vmem:[%s3709 + $0x1a0] sm:$0xff]
  %v3747 = vld [vmem:[%s3709 + $0x1a8] sm:$0xff]
  %v3748 = vld [vmem:[%s3709 + $0x1b0] sm:$0xff]
  %v3749 = vld [vmem:[%s3709 + $0x1b8] sm:$0xff]
  %v3750 = vld [vmem:[%s3709 + $0x1c0] sm:$0xff]
  %v3751 = vld [vmem:[%s3709 + $0x1c8] sm:$0xff]
  %v3752 = vld [vmem:[%s3709 + $0x1d0] sm:$0xff]
  %v3753 = vld [vmem:[%s3709 + $0x1d8] sm:$0xff]
  %v3754 = vld [vmem:[%s3709 + $0x1e0] sm:$0xff]
  %v3755 = vld [vmem:[%s3709 + $0x1e8] sm:$0xff]
  %v3756 = vld [vmem:[%s3709 + $0x1f0] sm:$0xff]
  %v3757 = vld [vmem:[%s3709 + $0x1f8] sm:$0xff]
  %v3758 = vld [vmem:[%s3709 + $0x240] sm:$0xff]
  %v3759 = vld [vmem:[%s3709 + $0x248] sm:$0xff]
  %v3760 = vld [vmem:[%s3709 + $0x250] sm:$0xff]
  %v3761 = vld [vmem:[%s3709 + $0x258] sm:$0xff]
  %v3762 = vld [vmem:[%s3709 + $0x260] sm:$0xff]
  %v3763 = vld [vmem:[%s3709 + $0x268] sm:$0xff]
  %v3764 = vld [vmem:[%s3709 + $0x270] sm:$0xff]
  %v3765 = vld [vmem:[%s3709 + $0x278] sm:$0xff]
  %v3766 = vld [vmem:[%s3709 + $0x280] sm:$0xff]
  %v3767 = vld [vmem:[%s3709 + $0x288] sm:$0xff]
  %v3768 = vld [vmem:[%s3709 + $0x290] sm:$0xff]
  %v3769 = vld [vmem:[%s3709 + $0x298] sm:$0xff]
  %v3770 = vld [vmem:[%s3709 + $0x2a0] sm:$0xff]
  %v3771 = vld [vmem:[%s3709 + $0x2a8] sm:$0xff]
  %v3772 = vld [vmem:[%s3709 + $0x2b0] sm:$0xff]
  %v3773 = vld [vmem:[%s3709 + $0x2b8] sm:$0xff]
  %v3774 = vpack.c.bf16 %v3710, %v3710
  %v3775 = vpack.c.bf16 %v3711, %v3711
  %v3776 = vpack.c.bf16 %v3712, %v3712
  %v3777 = vpack.c.bf16 %v3713, %v3713
  %v3778 = vpack.c.bf16 %v3714, %v3714
  %v3779 = vpack.c.bf16 %v3715, %v3715
  %v3780 = vpack.c.bf16 %v3716, %v3716
  %v3781 = vpack.c.bf16 %v3717, %v3717
  %v3782 = vpack.c.bf16 %v3718, %v3718
  %v3783 = vpack.c.bf16 %v3719, %v3719
  %v3784 = vpack.c.bf16 %v3720, %v3720
  %v3785 = vpack.c.bf16 %v3721, %v3721
  %v3786 = vpack.c.bf16 %v3722, %v3722
  %v3787 = vpack.c.bf16 %v3723, %v3723
  %v3788 = vpack.c.bf16 %v3724, %v3724
  %v3789 = vpack.c.bf16 %v3725, %v3725
  %v3790 = vpack.c.bf16 %v3726, %v3726
  %v3791 = vpack.c.bf16 %v3727, %v3727
  %v3792 = vpack.c.bf16 %v3728, %v3728
  %v3793 = vpack.c.bf16 %v3729, %v3729
  %v3794 = vpack.c.bf16 %v3730, %v3730
  %v3795 = vpack.c.bf16 %v3731, %v3731
  %v3796 = vpack.c.bf16 %v3732, %v3732
  %v3797 = vpack.c.bf16 %v3733, %v3733
  %v3798 = vpack.c.bf16 %v3734, %v3734
  %v3799 = vpack.c.bf16 %v3735, %v3735
  %v3800 = vpack.c.bf16 %v3736, %v3736
  %v3801 = vpack.c.bf16 %v3737, %v3737
  %v3802 = vpack.c.bf16 %v3738, %v3738
  %v3803 = vpack.c.bf16 %v3739, %v3739
  %v3804 = vpack.c.bf16 %v3740, %v3740
  %v3805 = vpack.c.bf16 %v3741, %v3741
  %v3806 = vpack.c.bf16 %v3742, %v3742
  %v3807 = vpack.c.bf16 %v3743, %v3743
  %v3808 = vpack.c.bf16 %v3744, %v3744
  %v3809 = vpack.c.bf16 %v3745, %v3745
  %v3810 = vpack.c.bf16 %v3746, %v3746
  %v3811 = vpack.c.bf16 %v3747, %v3747
  %v3812 = vpack.c.bf16 %v3748, %v3748
  %v3813 = vpack.c.bf16 %v3749, %v3749
  %v3814 = vpack.c.bf16 %v3750, %v3750
  %v3815 = vpack.c.bf16 %v3751, %v3751
  %v3816 = vpack.c.bf16 %v3752, %v3752
  %v3817 = vpack.c.bf16 %v3753, %v3753
  %v3818 = vpack.c.bf16 %v3754, %v3754
  %v3819 = vpack.c.bf16 %v3755, %v3755
  %v3820 = vpack.c.bf16 %v3756, %v3756
  %v3821 = vpack.c.bf16 %v3757, %v3757
  %v3822 = vpack.c.bf16 %v3758, %v3758
  %v3823 = vpack.c.bf16 %v3759, %v3759
  %v3824 = vpack.c.bf16 %v3760, %v3760
  %v3825 = vpack.c.bf16 %v3761, %v3761
  %v3826 = vpack.c.bf16 %v3762, %v3762
  %v3827 = vpack.c.bf16 %v3763, %v3763
  %v3828 = vpack.c.bf16 %v3764, %v3764
  %v3829 = vpack.c.bf16 %v3765, %v3765
  %v3830 = vpack.c.bf16 %v3766, %v3766
  %v3831 = vpack.c.bf16 %v3767, %v3767
  %v3832 = vpack.c.bf16 %v3768, %v3768
  %v3833 = vpack.c.bf16 %v3769, %v3769
  %v3834 = vpack.c.bf16 %v3770, %v3770
  %v3835 = vpack.c.bf16 %v3771, %v3771
  %v3836 = vpack.c.bf16 %v3772, %v3772
  %v3837 = vpack.c.bf16 %v3773, %v3773
  %s3838 = scalar_lea.vmem [#allocation2], 256
  %v3839 = vld [vmem:[%s3838] sm:$0xff]
  %v3840 = vld [vmem:[%s3838 + $0x8] sm:$0xff]
  %v3841 = vld [vmem:[%s3838 + $0x10] sm:$0xff]
  %v3842 = vld [vmem:[%s3838 + $0x18] sm:$0xff]
  %v3843 = vld [vmem:[%s3838 + $0x20] sm:$0xff]
  %v3844 = vld [vmem:[%s3838 + $0x28] sm:$0xff]
  %v3845 = vld [vmem:[%s3838 + $0x30] sm:$0xff]
  %v3846 = vld [vmem:[%s3838 + $0x38] sm:$0xff]
  %v3847 = vld [vmem:[%s3838 + $0x40] sm:$0xff]
  %v3848 = vld [vmem:[%s3838 + $0x48] sm:$0xff]
  %v3849 = vld [vmem:[%s3838 + $0x50] sm:$0xff]
  %v3850 = vld [vmem:[%s3838 + $0x58] sm:$0xff]
  %v3851 = vld [vmem:[%s3838 + $0x60] sm:$0xff]
  %v3852 = vld [vmem:[%s3838 + $0x68] sm:$0xff]
  %v3853 = vld [vmem:[%s3838 + $0x70] sm:$0xff]
  %v3854 = vld [vmem:[%s3838 + $0x78] sm:$0xff]
  %v3855 = vld [vmem:[%s3838 + $0xc0] sm:$0xff]
  %v3856 = vld [vmem:[%s3838 + $0xc8] sm:$0xff]
  %v3857 = vld [vmem:[%s3838 + $0xd0] sm:$0xff]
  %v3858 = vld [vmem:[%s3838 + $0xd8] sm:$0xff]
  %v3859 = vld [vmem:[%s3838 + $0xe0] sm:$0xff]
  %v3860 = vld [vmem:[%s3838 + $0xe8] sm:$0xff]
  %v3861 = vld [vmem:[%s3838 + $0xf0] sm:$0xff]
  %v3862 = vld [vmem:[%s3838 + $0xf8] sm:$0xff]
  %v3863 = vld [vmem:[%s3838 + $0x100] sm:$0xff]
  %v3864 = vld [vmem:[%s3838 + $0x108] sm:$0xff]
  %v3865 = vld [vmem:[%s3838 + $0x110] sm:$0xff]
  %v3866 = vld [vmem:[%s3838 + $0x118] sm:$0xff]
  %v3867 = vld [vmem:[%s3838 + $0x120] sm:$0xff]
  %v3868 = vld [vmem:[%s3838 + $0x128] sm:$0xff]
  %v3869 = vld [vmem:[%s3838 + $0x130] sm:$0xff]
  %v3870 = vld [vmem:[%s3838 + $0x138] sm:$0xff]
  %v3871 = vld [vmem:[%s3838 + $0x180] sm:$0xff]
  %v3872 = vld [vmem:[%s3838 + $0x188] sm:$0xff]
  %v3873 = vld [vmem:[%s3838 + $0x190] sm:$0xff]
  %v3874 = vld [vmem:[%s3838 + $0x198] sm:$0xff]
  %v3875 = vld [vmem:[%s3838 + $0x1a0] sm:$0xff]
  %v3876 = vld [vmem:[%s3838 + $0x1a8] sm:$0xff]
  %v3877 = vld [vmem:[%s3838 + $0x1b0] sm:$0xff]
  %v3878 = vld [vmem:[%s3838 + $0x1b8] sm:$0xff]
  %v3879 = vld [vmem:[%s3838 + $0x1c0] sm:$0xff]
  %v3880 = vld [vmem:[%s3838 + $0x1c8] sm:$0xff]
  %v3881 = vld [vmem:[%s3838 + $0x1d0] sm:$0xff]
  %v3882 = vld [vmem:[%s3838 + $0x1d8] sm:$0xff]
  %v3883 = vld [vmem:[%s3838 + $0x1e0] sm:$0xff]
  %v3884 = vld [vmem:[%s3838 + $0x1e8] sm:$0xff]
  %v3885 = vld [vmem:[%s3838 + $0x1f0] sm:$0xff]
  %v3886 = vld [vmem:[%s3838 + $0x1f8] sm:$0xff]
  %v3887 = vld [vmem:[%s3838 + $0x240] sm:$0xff]
  %v3888 = vld [vmem:[%s3838 + $0x248] sm:$0xff]
  %v3889 = vld [vmem:[%s3838 + $0x250] sm:$0xff]
  %v3890 = vld [vmem:[%s3838 + $0x258] sm:$0xff]
  %v3891 = vld [vmem:[%s3838 + $0x260] sm:$0xff]
  %v3892 = vld [vmem:[%s3838 + $0x268] sm:$0xff]
  %v3893 = vld [vmem:[%s3838 + $0x270] sm:$0xff]
  %v3894 = vld [vmem:[%s3838 + $0x278] sm:$0xff]
  %v3895 = vld [vmem:[%s3838 + $0x280] sm:$0xff]
  %v3896 = vld [vmem:[%s3838 + $0x288] sm:$0xff]
  %v3897 = vld [vmem:[%s3838 + $0x290] sm:$0xff]
  %v3898 = vld [vmem:[%s3838 + $0x298] sm:$0xff]
  %v3899 = vld [vmem:[%s3838 + $0x2a0] sm:$0xff]
  %v3900 = vld [vmem:[%s3838 + $0x2a8] sm:$0xff]
  %v3901 = vld [vmem:[%s3838 + $0x2b0] sm:$0xff]
  %v3902 = vld [vmem:[%s3838 + $0x2b8] sm:$0xff]
  %v3903 = vpack.c.bf16 %v3839, %v3839
  %v3904 = vpack.c.bf16 %v3840, %v3840
  %v3905 = vpack.c.bf16 %v3841, %v3841
  %v3906 = vpack.c.bf16 %v3842, %v3842
  %v3907 = vpack.c.bf16 %v3843, %v3843
  %v3908 = vpack.c.bf16 %v3844, %v3844
  %v3909 = vpack.c.bf16 %v3845, %v3845
  %v3910 = vpack.c.bf16 %v3846, %v3846
  %v3911 = vpack.c.bf16 %v3847, %v3847
  %v3912 = vpack.c.bf16 %v3848, %v3848
  %v3913 = vpack.c.bf16 %v3849, %v3849
  %v3914 = vpack.c.bf16 %v3850, %v3850
  %v3915 = vpack.c.bf16 %v3851, %v3851
  %v3916 = vpack.c.bf16 %v3852, %v3852
  %v3917 = vpack.c.bf16 %v3853, %v3853
  %v3918 = vpack.c.bf16 %v3854, %v3854
  %v3919 = vpack.c.bf16 %v3855, %v3855
  %v3920 = vpack.c.bf16 %v3856, %v3856
  %v3921 = vpack.c.bf16 %v3857, %v3857
  %v3922 = vpack.c.bf16 %v3858, %v3858
  %v3923 = vpack.c.bf16 %v3859, %v3859
  %v3924 = vpack.c.bf16 %v3860, %v3860
  %v3925 = vpack.c.bf16 %v3861, %v3861
  %v3926 = vpack.c.bf16 %v3862, %v3862
  %v3927 = vpack.c.bf16 %v3863, %v3863
  %v3928 = vpack.c.bf16 %v3864, %v3864
  %v3929 = vpack.c.bf16 %v3865, %v3865
  %v3930 = vpack.c.bf16 %v3866, %v3866
  %v3931 = vpack.c.bf16 %v3867, %v3867
  %v3932 = vpack.c.bf16 %v3868, %v3868
  %v3933 = vpack.c.bf16 %v3869, %v3869
  %v3934 = vpack.c.bf16 %v3870, %v3870
  %v3935 = vpack.c.bf16 %v3871, %v3871
  %v3936 = vpack.c.bf16 %v3872, %v3872
  %v3937 = vpack.c.bf16 %v3873, %v3873
  %v3938 = vpack.c.bf16 %v3874, %v3874
  %v3939 = vpack.c.bf16 %v3875, %v3875
  %v3940 = vpack.c.bf16 %v3876, %v3876
  %v3941 = vpack.c.bf16 %v3877, %v3877
  %v3942 = vpack.c.bf16 %v3878, %v3878
  %v3943 = vpack.c.bf16 %v3879, %v3879
  %v3944 = vpack.c.bf16 %v3880, %v3880
  %v3945 = vpack.c.bf16 %v3881, %v3881
  %v3946 = vpack.c.bf16 %v3882, %v3882
  %v3947 = vpack.c.bf16 %v3883, %v3883
  %v3948 = vpack.c.bf16 %v3884, %v3884
  %v3949 = vpack.c.bf16 %v3885, %v3885
  %v3950 = vpack.c.bf16 %v3886, %v3886
  %v3951 = vpack.c.bf16 %v3887, %v3887
  %v3952 = vpack.c.bf16 %v3888, %v3888
  %v3953 = vpack.c.bf16 %v3889, %v3889
  %v3954 = vpack.c.bf16 %v3890, %v3890
  %v3955 = vpack.c.bf16 %v3891, %v3891
  %v3956 = vpack.c.bf16 %v3892, %v3892
  %v3957 = vpack.c.bf16 %v3893, %v3893
  %v3958 = vpack.c.bf16 %v3894, %v3894
  %v3959 = vpack.c.bf16 %v3895, %v3895
  %v3960 = vpack.c.bf16 %v3896, %v3896
  %v3961 = vpack.c.bf16 %v3897, %v3897
  %v3962 = vpack.c.bf16 %v3898, %v3898
  %v3963 = vpack.c.bf16 %v3899, %v3899
  %v3964 = vpack.c.bf16 %v3900, %v3900
  %v3965 = vpack.c.bf16 %v3901, %v3901
  %v3966 = vpack.c.bf16 %v3902, %v3902
  %s3967 = scalar_lea.vmem [#allocation2], 384
  %v3968 = vld [vmem:[%s3967] sm:$0xff]
  %v3969 = vld [vmem:[%s3967 + $0x8] sm:$0xff]
  %v3970 = vld [vmem:[%s3967 + $0x10] sm:$0xff]
  %v3971 = vld [vmem:[%s3967 + $0x18] sm:$0xff]
  %v3972 = vld [vmem:[%s3967 + $0x20] sm:$0xff]
  %v3973 = vld [vmem:[%s3967 + $0x28] sm:$0xff]
  %v3974 = vld [vmem:[%s3967 + $0x30] sm:$0xff]
  %v3975 = vld [vmem:[%s3967 + $0x38] sm:$0xff]
  %v3976 = vld [vmem:[%s3967 + $0x40] sm:$0xff]
  %v3977 = vld [vmem:[%s3967 + $0x48] sm:$0xff]
  %v3978 = vld [vmem:[%s3967 + $0x50] sm:$0xff]
  %v3979 = vld [vmem:[%s3967 + $0x58] sm:$0xff]
  %v3980 = vld [vmem:[%s3967 + $0x60] sm:$0xff]
  %v3981 = vld [vmem:[%s3967 + $0x68] sm:$0xff]
  %v3982 = vld [vmem:[%s3967 + $0x70] sm:$0xff]
  %v3983 = vld [vmem:[%s3967 + $0x78] sm:$0xff]
  %v3984 = vld [vmem:[%s3967 + $0xc0] sm:$0xff]
  %v3985 = vld [vmem:[%s3967 + $0xc8] sm:$0xff]
  %v3986 = vld [vmem:[%s3967 + $0xd0] sm:$0xff]
  %v3987 = vld [vmem:[%s3967 + $0xd8] sm:$0xff]
  %v3988 = vld [vmem:[%s3967 + $0xe0] sm:$0xff]
  %v3989 = vld [vmem:[%s3967 + $0xe8] sm:$0xff]
  %v3990 = vld [vmem:[%s3967 + $0xf0] sm:$0xff]
  %v3991 = vld [vmem:[%s3967 + $0xf8] sm:$0xff]
  %v3992 = vld [vmem:[%s3967 + $0x100] sm:$0xff]
  %v3993 = vld [vmem:[%s3967 + $0x108] sm:$0xff]
  %v3994 = vld [vmem:[%s3967 + $0x110] sm:$0xff]
  %v3995 = vld [vmem:[%s3967 + $0x118] sm:$0xff]
  %v3996 = vld [vmem:[%s3967 + $0x120] sm:$0xff]
  %v3997 = vld [vmem:[%s3967 + $0x128] sm:$0xff]
  %v3998 = vld [vmem:[%s3967 + $0x130] sm:$0xff]
  %v3999 = vld [vmem:[%s3967 + $0x138] sm:$0xff]
  %v4000 = vld [vmem:[%s3967 + $0x180] sm:$0xff]
  %v4001 = vld [vmem:[%s3967 + $0x188] sm:$0xff]
  %v4002 = vld [vmem:[%s3967 + $0x190] sm:$0xff]
  %v4003 = vld [vmem:[%s3967 + $0x198] sm:$0xff]
  %v4004 = vld [vmem:[%s3967 + $0x1a0] sm:$0xff]
  %v4005 = vld [vmem:[%s3967 + $0x1a8] sm:$0xff]
  %v4006 = vld [vmem:[%s3967 + $0x1b0] sm:$0xff]
  %v4007 = vld [vmem:[%s3967 + $0x1b8] sm:$0xff]
  %v4008 = vld [vmem:[%s3967 + $0x1c0] sm:$0xff]
  %v4009 = vld [vmem:[%s3967 + $0x1c8] sm:$0xff]
  %v4010 = vld [vmem:[%s3967 + $0x1d0] sm:$0xff]
  %v4011 = vld [vmem:[%s3967 + $0x1d8] sm:$0xff]
  %v4012 = vld [vmem:[%s3967 + $0x1e0] sm:$0xff]
  %v4013 = vld [vmem:[%s3967 + $0x1e8] sm:$0xff]
  %v4014 = vld [vmem:[%s3967 + $0x1f0] sm:$0xff]
  %v4015 = vld [vmem:[%s3967 + $0x1f8] sm:$0xff]
  %v4016 = vld [vmem:[%s3967 + $0x240] sm:$0xff]
  %v4017 = vld [vmem:[%s3967 + $0x248] sm:$0xff]
  %v4018 = vld [vmem:[%s3967 + $0x250] sm:$0xff]
  %v4019 = vld [vmem:[%s3967 + $0x258] sm:$0xff]
  %v4020 = vld [vmem:[%s3967 + $0x260] sm:$0xff]
  %v4021 = vld [vmem:[%s3967 + $0x268] sm:$0xff]
  %v4022 = vld [vmem:[%s3967 + $0x270] sm:$0xff]
  %v4023 = vld [vmem:[%s3967 + $0x278] sm:$0xff]
  %v4024 = vld [vmem:[%s3967 + $0x280] sm:$0xff]
  %v4025 = vld [vmem:[%s3967 + $0x288] sm:$0xff]
  %v4026 = vld [vmem:[%s3967 + $0x290] sm:$0xff]
  %v4027 = vld [vmem:[%s3967 + $0x298] sm:$0xff]
  %v4028 = vld [vmem:[%s3967 + $0x2a0] sm:$0xff]
  %v4029 = vld [vmem:[%s3967 + $0x2a8] sm:$0xff]
  %v4030 = vld [vmem:[%s3967 + $0x2b0] sm:$0xff]
  %v4031 = vld [vmem:[%s3967 + $0x2b8] sm:$0xff]
  %v4032 = vpack.c.bf16 %v3968, %v3968
  %v4033 = vpack.c.bf16 %v3969, %v3969
  %v4034 = vpack.c.bf16 %v3970, %v3970
  %v4035 = vpack.c.bf16 %v3971, %v3971
  %v4036 = vpack.c.bf16 %v3972, %v3972
  %v4037 = vpack.c.bf16 %v3973, %v3973
  %v4038 = vpack.c.bf16 %v3974, %v3974
  %v4039 = vpack.c.bf16 %v3975, %v3975
  %v4040 = vpack.c.bf16 %v3976, %v3976
  %v4041 = vpack.c.bf16 %v3977, %v3977
  %v4042 = vpack.c.bf16 %v3978, %v3978
  %v4043 = vpack.c.bf16 %v3979, %v3979
  %v4044 = vpack.c.bf16 %v3980, %v3980
  %v4045 = vpack.c.bf16 %v3981, %v3981
  %v4046 = vpack.c.bf16 %v3982, %v3982
  %v4047 = vpack.c.bf16 %v3983, %v3983
  %v4048 = vpack.c.bf16 %v3984, %v3984
  %v4049 = vpack.c.bf16 %v3985, %v3985
  %v4050 = vpack.c.bf16 %v3986, %v3986
  %v4051 = vpack.c.bf16 %v3987, %v3987
  %v4052 = vpack.c.bf16 %v3988, %v3988
  %v4053 = vpack.c.bf16 %v3989, %v3989
  %v4054 = vpack.c.bf16 %v3990, %v3990
  %v4055 = vpack.c.bf16 %v3991, %v3991
  %v4056 = vpack.c.bf16 %v3992, %v3992
  %v4057 = vpack.c.bf16 %v3993, %v3993
  %v4058 = vpack.c.bf16 %v3994, %v3994
  %v4059 = vpack.c.bf16 %v3995, %v3995
  %v4060 = vpack.c.bf16 %v3996, %v3996
  %v4061 = vpack.c.bf16 %v3997, %v3997
  %v4062 = vpack.c.bf16 %v3998, %v3998
  %v4063 = vpack.c.bf16 %v3999, %v3999
  %v4064 = vpack.c.bf16 %v4000, %v4000
  %v4065 = vpack.c.bf16 %v4001, %v4001
  %v4066 = vpack.c.bf16 %v4002, %v4002
  %v4067 = vpack.c.bf16 %v4003, %v4003
  %v4068 = vpack.c.bf16 %v4004, %v4004
  %v4069 = vpack.c.bf16 %v4005, %v4005
  %v4070 = vpack.c.bf16 %v4006, %v4006
  %v4071 = vpack.c.bf16 %v4007, %v4007
  %v4072 = vpack.c.bf16 %v4008, %v4008
  %v4073 = vpack.c.bf16 %v4009, %v4009
  %v4074 = vpack.c.bf16 %v4010, %v4010
  %v4075 = vpack.c.bf16 %v4011, %v4011
  %v4076 = vpack.c.bf16 %v4012, %v4012
  %v4077 = vpack.c.bf16 %v4013, %v4013
  %v4078 = vpack.c.bf16 %v4014, %v4014
  %v4079 = vpack.c.bf16 %v4015, %v4015
  %v4080 = vpack.c.bf16 %v4016, %v4016
  %v4081 = vpack.c.bf16 %v4017, %v4017
  %v4082 = vpack.c.bf16 %v4018, %v4018
  %v4083 = vpack.c.bf16 %v4019, %v4019
  %v4084 = vpack.c.bf16 %v4020, %v4020
  %v4085 = vpack.c.bf16 %v4021, %v4021
  %v4086 = vpack.c.bf16 %v4022, %v4022
  %v4087 = vpack.c.bf16 %v4023, %v4023
  %v4088 = vpack.c.bf16 %v4024, %v4024
  %v4089 = vpack.c.bf16 %v4025, %v4025
  %v4090 = vpack.c.bf16 %v4026, %v4026
  %v4091 = vpack.c.bf16 %v4027, %v4027
  %v4092 = vpack.c.bf16 %v4028, %v4028
  %v4093 = vpack.c.bf16 %v4029, %v4029
  %v4094 = vpack.c.bf16 %v4030, %v4030
  %v4095 = vpack.c.bf16 %v4031, %v4031
  %s4096 = scalar_lea.vmem [#allocation2], 416
  %v4097 = vld [vmem:[%s4096] sm:$0xff]
  %v4098 = vld [vmem:[%s4096 + $0x8] sm:$0xff]
  %v4099 = vld [vmem:[%s4096 + $0x10] sm:$0xff]
  %v4100 = vld [vmem:[%s4096 + $0x18] sm:$0xff]
  %v4101 = vld [vmem:[%s4096 + $0x20] sm:$0xff]
  %v4102 = vld [vmem:[%s4096 + $0x28] sm:$0xff]
  %v4103 = vld [vmem:[%s4096 + $0x30] sm:$0xff]
  %v4104 = vld [vmem:[%s4096 + $0x38] sm:$0xff]
  %v4105 = vld [vmem:[%s4096 + $0x40] sm:$0xff]
  %v4106 = vld [vmem:[%s4096 + $0x48] sm:$0xff]
  %v4107 = vld [vmem:[%s4096 + $0x50] sm:$0xff]
  %v4108 = vld [vmem:[%s4096 + $0x58] sm:$0xff]
  %v4109 = vld [vmem:[%s4096 + $0x60] sm:$0xff]
  %v4110 = vld [vmem:[%s4096 + $0x68] sm:$0xff]
  %v4111 = vld [vmem:[%s4096 + $0x70] sm:$0xff]
  %v4112 = vld [vmem:[%s4096 + $0x78] sm:$0xff]
  %v4113 = vld [vmem:[%s4096 + $0xc0] sm:$0xff]
  %v4114 = vld [vmem:[%s4096 + $0xc8] sm:$0xff]
  %v4115 = vld [vmem:[%s4096 + $0xd0] sm:$0xff]
  %v4116 = vld [vmem:[%s4096 + $0xd8] sm:$0xff]
  %v4117 = vld [vmem:[%s4096 + $0xe0] sm:$0xff]
  %v4118 = vld [vmem:[%s4096 + $0xe8] sm:$0xff]
  %v4119 = vld [vmem:[%s4096 + $0xf0] sm:$0xff]
  %v4120 = vld [vmem:[%s4096 + $0xf8] sm:$0xff]
  %v4121 = vld [vmem:[%s4096 + $0x100] sm:$0xff]
  %v4122 = vld [vmem:[%s4096 + $0x108] sm:$0xff]
  %v4123 = vld [vmem:[%s4096 + $0x110] sm:$0xff]
  %v4124 = vld [vmem:[%s4096 + $0x118] sm:$0xff]
  %v4125 = vld [vmem:[%s4096 + $0x120] sm:$0xff]
  %v4126 = vld [vmem:[%s4096 + $0x128] sm:$0xff]
  %v4127 = vld [vmem:[%s4096 + $0x130] sm:$0xff]
  %v4128 = vld [vmem:[%s4096 + $0x138] sm:$0xff]
  %v4129 = vld [vmem:[%s4096 + $0x180] sm:$0xff]
  %v4130 = vld [vmem:[%s4096 + $0x188] sm:$0xff]
  %v4131 = vld [vmem:[%s4096 + $0x190] sm:$0xff]
  %v4132 = vld [vmem:[%s4096 + $0x198] sm:$0xff]
  %v4133 = vld [vmem:[%s4096 + $0x1a0] sm:$0xff]
  %v4134 = vld [vmem:[%s4096 + $0x1a8] sm:$0xff]
  %v4135 = vld [vmem:[%s4096 + $0x1b0] sm:$0xff]
  %v4136 = vld [vmem:[%s4096 + $0x1b8] sm:$0xff]
  %v4137 = vld [vmem:[%s4096 + $0x1c0] sm:$0xff]
  %v4138 = vld [vmem:[%s4096 + $0x1c8] sm:$0xff]
  %v4139 = vld [vmem:[%s4096 + $0x1d0] sm:$0xff]
  %v4140 = vld [vmem:[%s4096 + $0x1d8] sm:$0xff]
  %v4141 = vld [vmem:[%s4096 + $0x1e0] sm:$0xff]
  %v4142 = vld [vmem:[%s4096 + $0x1e8] sm:$0xff]
  %v4143 = vld [vmem:[%s4096 + $0x1f0] sm:$0xff]
  %v4144 = vld [vmem:[%s4096 + $0x1f8] sm:$0xff]
  %v4145 = vld [vmem:[%s4096 + $0x240] sm:$0xff]
  %v4146 = vld [vmem:[%s4096 + $0x248] sm:$0xff]
  %v4147 = vld [vmem:[%s4096 + $0x250] sm:$0xff]
  %v4148 = vld [vmem:[%s4096 + $0x258] sm:$0xff]
  %v4149 = vld [vmem:[%s4096 + $0x260] sm:$0xff]
  %v4150 = vld [vmem:[%s4096 + $0x268] sm:$0xff]
  %v4151 = vld [vmem:[%s4096 + $0x270] sm:$0xff]
  %v4152 = vld [vmem:[%s4096 + $0x278] sm:$0xff]
  %v4153 = vld [vmem:[%s4096 + $0x280] sm:$0xff]
  %v4154 = vld [vmem:[%s4096 + $0x288] sm:$0xff]
  %v4155 = vld [vmem:[%s4096 + $0x290] sm:$0xff]
  %v4156 = vld [vmem:[%s4096 + $0x298] sm:$0xff]
  %v4157 = vld [vmem:[%s4096 + $0x2a0] sm:$0xff]
  %v4158 = vld [vmem:[%s4096 + $0x2a8] sm:$0xff]
  %v4159 = vld [vmem:[%s4096 + $0x2b0] sm:$0xff]
  %v4160 = vld [vmem:[%s4096 + $0x2b8] sm:$0xff]
  %v4161 = vpack.c.bf16 %v4097, %v4097
  %v4162 = vpack.c.bf16 %v4098, %v4098
  %v4163 = vpack.c.bf16 %v4099, %v4099
  %v4164 = vpack.c.bf16 %v4100, %v4100
  %v4165 = vpack.c.bf16 %v4101, %v4101
  %v4166 = vpack.c.bf16 %v4102, %v4102
  %v4167 = vpack.c.bf16 %v4103, %v4103
  %v4168 = vpack.c.bf16 %v4104, %v4104
  %v4169 = vpack.c.bf16 %v4105, %v4105
  %v4170 = vpack.c.bf16 %v4106, %v4106
  %v4171 = vpack.c.bf16 %v4107, %v4107
  %v4172 = vpack.c.bf16 %v4108, %v4108
  %v4173 = vpack.c.bf16 %v4109, %v4109
  %v4174 = vpack.c.bf16 %v4110, %v4110
  %v4175 = vpack.c.bf16 %v4111, %v4111
  %v4176 = vpack.c.bf16 %v4112, %v4112
  %v4177 = vpack.c.bf16 %v4113, %v4113
  %v4178 = vpack.c.bf16 %v4114, %v4114
  %v4179 = vpack.c.bf16 %v4115, %v4115
  %v4180 = vpack.c.bf16 %v4116, %v4116
  %v4181 = vpack.c.bf16 %v4117, %v4117
  %v4182 = vpack.c.bf16 %v4118, %v4118
  %v4183 = vpack.c.bf16 %v4119, %v4119
  %v4184 = vpack.c.bf16 %v4120, %v4120
  %v4185 = vpack.c.bf16 %v4121, %v4121
  %v4186 = vpack.c.bf16 %v4122, %v4122
  %v4187 = vpack.c.bf16 %v4123, %v4123
  %v4188 = vpack.c.bf16 %v4124, %v4124
  %v4189 = vpack.c.bf16 %v4125, %v4125
  %v4190 = vpack.c.bf16 %v4126, %v4126
  %v4191 = vpack.c.bf16 %v4127, %v4127
  %v4192 = vpack.c.bf16 %v4128, %v4128
  %v4193 = vpack.c.bf16 %v4129, %v4129
  %v4194 = vpack.c.bf16 %v4130, %v4130
  %v4195 = vpack.c.bf16 %v4131, %v4131
  %v4196 = vpack.c.bf16 %v4132, %v4132
  %v4197 = vpack.c.bf16 %v4133, %v4133
  %v4198 = vpack.c.bf16 %v4134, %v4134
  %v4199 = vpack.c.bf16 %v4135, %v4135
  %v4200 = vpack.c.bf16 %v4136, %v4136
  %v4201 = vpack.c.bf16 %v4137, %v4137
  %v4202 = vpack.c.bf16 %v4138, %v4138
  %v4203 = vpack.c.bf16 %v4139, %v4139
  %v4204 = vpack.c.bf16 %v4140, %v4140
  %v4205 = vpack.c.bf16 %v4141, %v4141
  %v4206 = vpack.c.bf16 %v4142, %v4142
  %v4207 = vpack.c.bf16 %v4143, %v4143
  %v4208 = vpack.c.bf16 %v4144, %v4144
  %v4209 = vpack.c.bf16 %v4145, %v4145
  %v4210 = vpack.c.bf16 %v4146, %v4146
  %v4211 = vpack.c.bf16 %v4147, %v4147
  %v4212 = vpack.c.bf16 %v4148, %v4148
  %v4213 = vpack.c.bf16 %v4149, %v4149
  %v4214 = vpack.c.bf16 %v4150, %v4150
  %v4215 = vpack.c.bf16 %v4151, %v4151
  %v4216 = vpack.c.bf16 %v4152, %v4152
  %v4217 = vpack.c.bf16 %v4153, %v4153
  %v4218 = vpack.c.bf16 %v4154, %v4154
  %v4219 = vpack.c.bf16 %v4155, %v4155
  %v4220 = vpack.c.bf16 %v4156, %v4156
  %v4221 = vpack.c.bf16 %v4157, %v4157
  %v4222 = vpack.c.bf16 %v4158, %v4158
  %v4223 = vpack.c.bf16 %v4159, %v4159
  %v4224 = vpack.c.bf16 %v4160, %v4160
  %s4225 = scalar_lea.vmem [#allocation2], 448
  %v4226 = vld [vmem:[%s4225] sm:$0xff]
  %v4227 = vld [vmem:[%s4225 + $0x8] sm:$0xff]
  %v4228 = vld [vmem:[%s4225 + $0x10] sm:$0xff]
  %v4229 = vld [vmem:[%s4225 + $0x18] sm:$0xff]
  %v4230 = vld [vmem:[%s4225 + $0x20] sm:$0xff]
  %v4231 = vld [vmem:[%s4225 + $0x28] sm:$0xff]
  %v4232 = vld [vmem:[%s4225 + $0x30] sm:$0xff]
  %v4233 = vld [vmem:[%s4225 + $0x38] sm:$0xff]
  %v4234 = vld [vmem:[%s4225 + $0x40] sm:$0xff]
  %v4235 = vld [vmem:[%s4225 + $0x48] sm:$0xff]
  %v4236 = vld [vmem:[%s4225 + $0x50] sm:$0xff]
  %v4237 = vld [vmem:[%s4225 + $0x58] sm:$0xff]
  %v4238 = vld [vmem:[%s4225 + $0x60] sm:$0xff]
  %v4239 = vld [vmem:[%s4225 + $0x68] sm:$0xff]
  %v4240 = vld [vmem:[%s4225 + $0x70] sm:$0xff]
  %v4241 = vld [vmem:[%s4225 + $0x78] sm:$0xff]
  %v4242 = vld [vmem:[%s4225 + $0xc0] sm:$0xff]
  %v4243 = vld [vmem:[%s4225 + $0xc8] sm:$0xff]
  %v4244 = vld [vmem:[%s4225 + $0xd0] sm:$0xff]
  %v4245 = vld [vmem:[%s4225 + $0xd8] sm:$0xff]
  %v4246 = vld [vmem:[%s4225 + $0xe0] sm:$0xff]
  %v4247 = vld [vmem:[%s4225 + $0xe8] sm:$0xff]
  %v4248 = vld [vmem:[%s4225 + $0xf0] sm:$0xff]
  %v4249 = vld [vmem:[%s4225 + $0xf8] sm:$0xff]
  %v4250 = vld [vmem:[%s4225 + $0x100] sm:$0xff]
  %v4251 = vld [vmem:[%s4225 + $0x108] sm:$0xff]
  %v4252 = vld [vmem:[%s4225 + $0x110] sm:$0xff]
  %v4253 = vld [vmem:[%s4225 + $0x118] sm:$0xff]
  %v4254 = vld [vmem:[%s4225 + $0x120] sm:$0xff]
  %v4255 = vld [vmem:[%s4225 + $0x128] sm:$0xff]
  %v4256 = vld [vmem:[%s4225 + $0x130] sm:$0xff]
  %v4257 = vld [vmem:[%s4225 + $0x138] sm:$0xff]
  %v4258 = vld [vmem:[%s4225 + $0x180] sm:$0xff]
  %v4259 = vld [vmem:[%s4225 + $0x188] sm:$0xff]
  %v4260 = vld [vmem:[%s4225 + $0x190] sm:$0xff]
  %v4261 = vld [vmem:[%s4225 + $0x198] sm:$0xff]
  %v4262 = vld [vmem:[%s4225 + $0x1a0] sm:$0xff]
  %v4263 = vld [vmem:[%s4225 + $0x1a8] sm:$0xff]
  %v4264 = vld [vmem:[%s4225 + $0x1b0] sm:$0xff]
  %v4265 = vld [vmem:[%s4225 + $0x1b8] sm:$0xff]
  %v4266 = vld [vmem:[%s4225 + $0x1c0] sm:$0xff]
  %v4267 = vld [vmem:[%s4225 + $0x1c8] sm:$0xff]
  %v4268 = vld [vmem:[%s4225 + $0x1d0] sm:$0xff]
  %v4269 = vld [vmem:[%s4225 + $0x1d8] sm:$0xff]
  %v4270 = vld [vmem:[%s4225 + $0x1e0] sm:$0xff]
  %v4271 = vld [vmem:[%s4225 + $0x1e8] sm:$0xff]
  %v4272 = vld [vmem:[%s4225 + $0x1f0] sm:$0xff]
  %v4273 = vld [vmem:[%s4225 + $0x1f8] sm:$0xff]
  %v4274 = vld [vmem:[%s4225 + $0x240] sm:$0xff]
  %v4275 = vld [vmem:[%s4225 + $0x248] sm:$0xff]
  %v4276 = vld [vmem:[%s4225 + $0x250] sm:$0xff]
  %v4277 = vld [vmem:[%s4225 + $0x258] sm:$0xff]
  %v4278 = vld [vmem:[%s4225 + $0x260] sm:$0xff]
  %v4279 = vld [vmem:[%s4225 + $0x268] sm:$0xff]
  %v4280 = vld [vmem:[%s4225 + $0x270] sm:$0xff]
  %v4281 = vld [vmem:[%s4225 + $0x278] sm:$0xff]
  %v4282 = vld [vmem:[%s4225 + $0x280] sm:$0xff]
  %v4283 = vld [vmem:[%s4225 + $0x288] sm:$0xff]
  %v4284 = vld [vmem:[%s4225 + $0x290] sm:$0xff]
  %v4285 = vld [vmem:[%s4225 + $0x298] sm:$0xff]
  %v4286 = vld [vmem:[%s4225 + $0x2a0] sm:$0xff]
  %v4287 = vld [vmem:[%s4225 + $0x2a8] sm:$0xff]
  %v4288 = vld [vmem:[%s4225 + $0x2b0] sm:$0xff]
  %v4289 = vld [vmem:[%s4225 + $0x2b8] sm:$0xff]
  %v4290 = vpack.c.bf16 %v4226, %v4226
  %v4291 = vpack.c.bf16 %v4227, %v4227
  %v4292 = vpack.c.bf16 %v4228, %v4228
  %v4293 = vpack.c.bf16 %v4229, %v4229
  %v4294 = vpack.c.bf16 %v4230, %v4230
  %v4295 = vpack.c.bf16 %v4231, %v4231
  %v4296 = vpack.c.bf16 %v4232, %v4232
  %v4297 = vpack.c.bf16 %v4233, %v4233
  %v4298 = vpack.c.bf16 %v4234, %v4234
  %v4299 = vpack.c.bf16 %v4235, %v4235
  %v4300 = vpack.c.bf16 %v4236, %v4236
  %v4301 = vpack.c.bf16 %v4237, %v4237
  %v4302 = vpack.c.bf16 %v4238, %v4238
  %v4303 = vpack.c.bf16 %v4239, %v4239
  %v4304 = vpack.c.bf16 %v4240, %v4240
  %v4305 = vpack.c.bf16 %v4241, %v4241
  %v4306 = vpack.c.bf16 %v4242, %v4242
  %v4307 = vpack.c.bf16 %v4243, %v4243
  %v4308 = vpack.c.bf16 %v4244, %v4244
  %v4309 = vpack.c.bf16 %v4245, %v4245
  %v4310 = vpack.c.bf16 %v4246, %v4246
  %v4311 = vpack.c.bf16 %v4247, %v4247
  %v4312 = vpack.c.bf16 %v4248, %v4248
  %v4313 = vpack.c.bf16 %v4249, %v4249
  %v4314 = vpack.c.bf16 %v4250, %v4250
  %v4315 = vpack.c.bf16 %v4251, %v4251
  %v4316 = vpack.c.bf16 %v4252, %v4252
  %v4317 = vpack.c.bf16 %v4253, %v4253
  %v4318 = vpack.c.bf16 %v4254, %v4254
  %v4319 = vpack.c.bf16 %v4255, %v4255
  %v4320 = vpack.c.bf16 %v4256, %v4256
  %v4321 = vpack.c.bf16 %v4257, %v4257
  %v4322 = vpack.c.bf16 %v4258, %v4258
  %v4323 = vpack.c.bf16 %v4259, %v4259
  %v4324 = vpack.c.bf16 %v4260, %v4260
  %v4325 = vpack.c.bf16 %v4261, %v4261
  %v4326 = vpack.c.bf16 %v4262, %v4262
  %v4327 = vpack.c.bf16 %v4263, %v4263
  %v4328 = vpack.c.bf16 %v4264, %v4264
  %v4329 = vpack.c.bf16 %v4265, %v4265
  %v4330 = vpack.c.bf16 %v4266, %v4266
  %v4331 = vpack.c.bf16 %v4267, %v4267
  %v4332 = vpack.c.bf16 %v4268, %v4268
  %v4333 = vpack.c.bf16 %v4269, %v4269
  %v4334 = vpack.c.bf16 %v4270, %v4270
  %v4335 = vpack.c.bf16 %v4271, %v4271
  %v4336 = vpack.c.bf16 %v4272, %v4272
  %v4337 = vpack.c.bf16 %v4273, %v4273
  %v4338 = vpack.c.bf16 %v4274, %v4274
  %v4339 = vpack.c.bf16 %v4275, %v4275
  %v4340 = vpack.c.bf16 %v4276, %v4276
  %v4341 = vpack.c.bf16 %v4277, %v4277
  %v4342 = vpack.c.bf16 %v4278, %v4278
  %v4343 = vpack.c.bf16 %v4279, %v4279
  %v4344 = vpack.c.bf16 %v4280, %v4280
  %v4345 = vpack.c.bf16 %v4281, %v4281
  %v4346 = vpack.c.bf16 %v4282, %v4282
  %v4347 = vpack.c.bf16 %v4283, %v4283
  %v4348 = vpack.c.bf16 %v4284, %v4284
  %v4349 = vpack.c.bf16 %v4285, %v4285
  %v4350 = vpack.c.bf16 %v4286, %v4286
  %v4351 = vpack.c.bf16 %v4287, %v4287
  %v4352 = vpack.c.bf16 %v4288, %v4288
  %v4353 = vpack.c.bf16 %v4289, %v4289
  %v4418 = vunpack.c.l.b16 %v3258
  %v4419 = vunpack.c.l.b16 %v3259
  %v4420 = vunpack.c.l.b16 %v3260
  %v4421 = vunpack.c.l.b16 %v3261
  %v4422 = vunpack.c.l.b16 %v3262
  %v4423 = vunpack.c.l.b16 %v3263
  %v4424 = vunpack.c.l.b16 %v3264
  %v4425 = vunpack.c.l.b16 %v3265
  %v4426 = vunpack.c.l.b16 %v3266
  %v4427 = vunpack.c.l.b16 %v3267
  %v4428 = vunpack.c.l.b16 %v3268
  %v4429 = vunpack.c.l.b16 %v3269
  %v4430 = vunpack.c.l.b16 %v3270
  %v4431 = vunpack.c.l.b16 %v3271
  %v4432 = vunpack.c.l.b16 %v3272
  %v4433 = vunpack.c.l.b16 %v3273
  %v4434 = vunpack.c.l.b16 %v3274
  %v4435 = vunpack.c.l.b16 %v3275
  %v4436 = vunpack.c.l.b16 %v3276
  %v4437 = vunpack.c.l.b16 %v3277
  %v4438 = vunpack.c.l.b16 %v3278
  %v4439 = vunpack.c.l.b16 %v3279
  %v4440 = vunpack.c.l.b16 %v3280
  %v4441 = vunpack.c.l.b16 %v3281
  %v4442 = vunpack.c.l.b16 %v3282
  %v4443 = vunpack.c.l.b16 %v3283
  %v4444 = vunpack.c.l.b16 %v3284
  %v4445 = vunpack.c.l.b16 %v3285
  %v4446 = vunpack.c.l.b16 %v3286
  %v4447 = vunpack.c.l.b16 %v3287
  %v4448 = vunpack.c.l.b16 %v3288
  %v4449 = vunpack.c.l.b16 %v3289
  %v4450 = vunpack.c.l.b16 %v3290
  %v4451 = vunpack.c.l.b16 %v3291
  %v4452 = vunpack.c.l.b16 %v3292
  %v4453 = vunpack.c.l.b16 %v3293
  %v4454 = vunpack.c.l.b16 %v3294
  %v4455 = vunpack.c.l.b16 %v3295
  %v4456 = vunpack.c.l.b16 %v3296
  %v4457 = vunpack.c.l.b16 %v3297
  %v4458 = vunpack.c.l.b16 %v3298
  %v4459 = vunpack.c.l.b16 %v3299
  %v4460 = vunpack.c.l.b16 %v3300
  %v4461 = vunpack.c.l.b16 %v3301
  %v4462 = vunpack.c.l.b16 %v3302
  %v4463 = vunpack.c.l.b16 %v3303
  %v4464 = vunpack.c.l.b16 %v3304
  %v4465 = vunpack.c.l.b16 %v3305
  %v4466 = vunpack.c.l.b16 %v3306
  %v4467 = vunpack.c.l.b16 %v3307
  %v4468 = vunpack.c.l.b16 %v3308
  %v4469 = vunpack.c.l.b16 %v3309
  %v4470 = vunpack.c.l.b16 %v3310
  %v4471 = vunpack.c.l.b16 %v3311
  %v4472 = vunpack.c.l.b16 %v3312
  %v4473 = vunpack.c.l.b16 %v3313
  %v4474 = vunpack.c.l.b16 %v3314
  %v4475 = vunpack.c.l.b16 %v3315
  %v4476 = vunpack.c.l.b16 %v3316
  %v4477 = vunpack.c.l.b16 %v3317
  %v4478 = vunpack.c.l.b16 %v3318
  %v4479 = vunpack.c.l.b16 %v3319
  %v4480 = vunpack.c.l.b16 %v3320
  %v4481 = vunpack.c.l.b16 %v3321
  %v4482 = vpack.c.b16 %v4419, %v4418
  %v4483 = vpack.c.b16 %v4421, %v4420
  %v4484 = vpack.c.b16 %v4423, %v4422
  %v4485 = vpack.c.b16 %v4425, %v4424
  %v4486 = vpack.c.b16 %v4427, %v4426
  %v4487 = vpack.c.b16 %v4429, %v4428
  %v4488 = vpack.c.b16 %v4431, %v4430
  %v4489 = vpack.c.b16 %v4433, %v4432
  %v4490 = vpack.c.b16 %v4435, %v4434
  %v4491 = vpack.c.b16 %v4437, %v4436
  %v4492 = vpack.c.b16 %v4439, %v4438
  %v4493 = vpack.c.b16 %v4441, %v4440
  %v4494 = vpack.c.b16 %v4443, %v4442
  %v4495 = vpack.c.b16 %v4445, %v4444
  %v4496 = vpack.c.b16 %v4447, %v4446
  %v4497 = vpack.c.b16 %v4449, %v4448
  %v4498 = vpack.c.b16 %v4451, %v4450
  %v4499 = vpack.c.b16 %v4453, %v4452
  %v4500 = vpack.c.b16 %v4455, %v4454
  %v4501 = vpack.c.b16 %v4457, %v4456
  %v4502 = vpack.c.b16 %v4459, %v4458
  %v4503 = vpack.c.b16 %v4461, %v4460
  %v4504 = vpack.c.b16 %v4463, %v4462
  %v4505 = vpack.c.b16 %v4465, %v4464
  %v4506 = vpack.c.b16 %v4467, %v4466
  %v4507 = vpack.c.b16 %v4469, %v4468
  %v4508 = vpack.c.b16 %v4471, %v4470
  %v4509 = vpack.c.b16 %v4473, %v4472
  %v4510 = vpack.c.b16 %v4475, %v4474
  %v4511 = vpack.c.b16 %v4477, %v4476
  %v4512 = vpack.c.b16 %v4479, %v4478
  %v4513 = vpack.c.b16 %v4481, %v4480
  %v4610 = vunpack.c.l.b16 %v3387
  %v4611 = vunpack.c.l.b16 %v3388
  %v4612 = vunpack.c.l.b16 %v3389
  %v4613 = vunpack.c.l.b16 %v3390
  %v4614 = vunpack.c.l.b16 %v3391
  %v4615 = vunpack.c.l.b16 %v3392
  %v4616 = vunpack.c.l.b16 %v3393
  %v4617 = vunpack.c.l.b16 %v3394
  %v4618 = vunpack.c.l.b16 %v3395
  %v4619 = vunpack.c.l.b16 %v3396
  %v4620 = vunpack.c.l.b16 %v3397
  %v4621 = vunpack.c.l.b16 %v3398
  %v4622 = vunpack.c.l.b16 %v3399
  %v4623 = vunpack.c.l.b16 %v3400
  %v4624 = vunpack.c.l.b16 %v3401
  %v4625 = vunpack.c.l.b16 %v3402
  %v4626 = vunpack.c.l.b16 %v3403
  %v4627 = vunpack.c.l.b16 %v3404
  %v4628 = vunpack.c.l.b16 %v3405
  %v4629 = vunpack.c.l.b16 %v3406
  %v4630 = vunpack.c.l.b16 %v3407
  %v4631 = vunpack.c.l.b16 %v3408
  %v4632 = vunpack.c.l.b16 %v3409
  %v4633 = vunpack.c.l.b16 %v3410
  %v4634 = vunpack.c.l.b16 %v3411
  %v4635 = vunpack.c.l.b16 %v3412
  %v4636 = vunpack.c.l.b16 %v3413
  %v4637 = vunpack.c.l.b16 %v3414
  %v4638 = vunpack.c.l.b16 %v3415
  %v4639 = vunpack.c.l.b16 %v3416
  %v4640 = vunpack.c.l.b16 %v3417
  %v4641 = vunpack.c.l.b16 %v3418
  %v4642 = vunpack.c.l.b16 %v3419
  %v4643 = vunpack.c.l.b16 %v3420
  %v4644 = vunpack.c.l.b16 %v3421
  %v4645 = vunpack.c.l.b16 %v3422
  %v4646 = vunpack.c.l.b16 %v3423
  %v4647 = vunpack.c.l.b16 %v3424
  %v4648 = vunpack.c.l.b16 %v3425
  %v4649 = vunpack.c.l.b16 %v3426
  %v4650 = vunpack.c.l.b16 %v3427
  %v4651 = vunpack.c.l.b16 %v3428
  %v4652 = vunpack.c.l.b16 %v3429
  %v4653 = vunpack.c.l.b16 %v3430
  %v4654 = vunpack.c.l.b16 %v3431
  %v4655 = vunpack.c.l.b16 %v3432
  %v4656 = vunpack.c.l.b16 %v3433
  %v4657 = vunpack.c.l.b16 %v3434
  %v4658 = vunpack.c.l.b16 %v3435
  %v4659 = vunpack.c.l.b16 %v3436
  %v4660 = vunpack.c.l.b16 %v3437
  %v4661 = vunpack.c.l.b16 %v3438
  %v4662 = vunpack.c.l.b16 %v3439
  %v4663 = vunpack.c.l.b16 %v3440
  %v4664 = vunpack.c.l.b16 %v3441
  %v4665 = vunpack.c.l.b16 %v3442
  %v4666 = vunpack.c.l.b16 %v3443
  %v4667 = vunpack.c.l.b16 %v3444
  %v4668 = vunpack.c.l.b16 %v3445
  %v4669 = vunpack.c.l.b16 %v3446
  %v4670 = vunpack.c.l.b16 %v3447
  %v4671 = vunpack.c.l.b16 %v3448
  %v4672 = vunpack.c.l.b16 %v3449
  %v4673 = vunpack.c.l.b16 %v3450
  %v4674 = vpack.c.b16 %v4611, %v4610
  %v4675 = vpack.c.b16 %v4613, %v4612
  %v4676 = vpack.c.b16 %v4615, %v4614
  %v4677 = vpack.c.b16 %v4617, %v4616
  %v4678 = vpack.c.b16 %v4619, %v4618
  %v4679 = vpack.c.b16 %v4621, %v4620
  %v4680 = vpack.c.b16 %v4623, %v4622
  %v4681 = vpack.c.b16 %v4625, %v4624
  %v4682 = vpack.c.b16 %v4627, %v4626
  %v4683 = vpack.c.b16 %v4629, %v4628
  %v4684 = vpack.c.b16 %v4631, %v4630
  %v4685 = vpack.c.b16 %v4633, %v4632
  %v4686 = vpack.c.b16 %v4635, %v4634
  %v4687 = vpack.c.b16 %v4637, %v4636
  %v4688 = vpack.c.b16 %v4639, %v4638
  %v4689 = vpack.c.b16 %v4641, %v4640
  %v4690 = vpack.c.b16 %v4643, %v4642
  %v4691 = vpack.c.b16 %v4645, %v4644
  %v4692 = vpack.c.b16 %v4647, %v4646
  %v4693 = vpack.c.b16 %v4649, %v4648
  %v4694 = vpack.c.b16 %v4651, %v4650
  %v4695 = vpack.c.b16 %v4653, %v4652
  %v4696 = vpack.c.b16 %v4655, %v4654
  %v4697 = vpack.c.b16 %v4657, %v4656
  %v4698 = vpack.c.b16 %v4659, %v4658
  %v4699 = vpack.c.b16 %v4661, %v4660
  %v4700 = vpack.c.b16 %v4663, %v4662
  %v4701 = vpack.c.b16 %v4665, %v4664
  %v4702 = vpack.c.b16 %v4667, %v4666
  %v4703 = vpack.c.b16 %v4669, %v4668
  %v4704 = vpack.c.b16 %v4671, %v4670
  %v4705 = vpack.c.b16 %v4673, %v4672
  %v4802 = vunpack.c.l.b16 %v3516
  %v4803 = vunpack.c.l.b16 %v3517
  %v4804 = vunpack.c.l.b16 %v3518
  %v4805 = vunpack.c.l.b16 %v3519
  %v4806 = vunpack.c.l.b16 %v3520
  %v4807 = vunpack.c.l.b16 %v3521
  %v4808 = vunpack.c.l.b16 %v3522
  %v4809 = vunpack.c.l.b16 %v3523
  %v4810 = vunpack.c.l.b16 %v3524
  %v4811 = vunpack.c.l.b16 %v3525
  %v4812 = vunpack.c.l.b16 %v3526
  %v4813 = vunpack.c.l.b16 %v3527
  %v4814 = vunpack.c.l.b16 %v3528
  %v4815 = vunpack.c.l.b16 %v3529
  %v4816 = vunpack.c.l.b16 %v3530
  %v4817 = vunpack.c.l.b16 %v3531
  %v4818 = vunpack.c.l.b16 %v3532
  %v4819 = vunpack.c.l.b16 %v3533
  %v4820 = vunpack.c.l.b16 %v3534
  %v4821 = vunpack.c.l.b16 %v3535
  %v4822 = vunpack.c.l.b16 %v3536
  %v4823 = vunpack.c.l.b16 %v3537
  %v4824 = vunpack.c.l.b16 %v3538
  %v4825 = vunpack.c.l.b16 %v3539
  %v4826 = vunpack.c.l.b16 %v3540
  %v4827 = vunpack.c.l.b16 %v3541
  %v4828 = vunpack.c.l.b16 %v3542
  %v4829 = vunpack.c.l.b16 %v3543
  %v4830 = vunpack.c.l.b16 %v3544
  %v4831 = vunpack.c.l.b16 %v3545
  %v4832 = vunpack.c.l.b16 %v3546
  %v4833 = vunpack.c.l.b16 %v3547
  %v4834 = vunpack.c.l.b16 %v3548
  %v4835 = vunpack.c.l.b16 %v3549
  %v4836 = vunpack.c.l.b16 %v3550
  %v4837 = vunpack.c.l.b16 %v3551
  %v4838 = vunpack.c.l.b16 %v3552
  %v4839 = vunpack.c.l.b16 %v3553
  %v4840 = vunpack.c.l.b16 %v3554
  %v4841 = vunpack.c.l.b16 %v3555
  %v4842 = vunpack.c.l.b16 %v3556
  %v4843 = vunpack.c.l.b16 %v3557
  %v4844 = vunpack.c.l.b16 %v3558
  %v4845 = vunpack.c.l.b16 %v3559
  %v4846 = vunpack.c.l.b16 %v3560
  %v4847 = vunpack.c.l.b16 %v3561
  %v4848 = vunpack.c.l.b16 %v3562
  %v4849 = vunpack.c.l.b16 %v3563
  %v4850 = vunpack.c.l.b16 %v3564
  %v4851 = vunpack.c.l.b16 %v3565
  %v4852 = vunpack.c.l.b16 %v3566
  %v4853 = vunpack.c.l.b16 %v3567
  %v4854 = vunpack.c.l.b16 %v3568
  %v4855 = vunpack.c.l.b16 %v3569
  %v4856 = vunpack.c.l.b16 %v3570
  %v4857 = vunpack.c.l.b16 %v3571
  %v4858 = vunpack.c.l.b16 %v3572
  %v4859 = vunpack.c.l.b16 %v3573
  %v4860 = vunpack.c.l.b16 %v3574
  %v4861 = vunpack.c.l.b16 %v3575
  %v4862 = vunpack.c.l.b16 %v3576
  %v4863 = vunpack.c.l.b16 %v3577
  %v4864 = vunpack.c.l.b16 %v3578
  %v4865 = vunpack.c.l.b16 %v3579
  %v4866 = vpack.c.b16 %v4803, %v4802
  %v4867 = vpack.c.b16 %v4805, %v4804
  %v4868 = vpack.c.b16 %v4807, %v4806
  %v4869 = vpack.c.b16 %v4809, %v4808
  %v4870 = vpack.c.b16 %v4811, %v4810
  %v4871 = vpack.c.b16 %v4813, %v4812
  %v4872 = vpack.c.b16 %v4815, %v4814
  %v4873 = vpack.c.b16 %v4817, %v4816
  %v4874 = vpack.c.b16 %v4819, %v4818
  %v4875 = vpack.c.b16 %v4821, %v4820
  %v4876 = vpack.c.b16 %v4823, %v4822
  %v4877 = vpack.c.b16 %v4825, %v4824
  %v4878 = vpack.c.b16 %v4827, %v4826
  %v4879 = vpack.c.b16 %v4829, %v4828
  %v4880 = vpack.c.b16 %v4831, %v4830
  %v4881 = vpack.c.b16 %v4833, %v4832
  %v4882 = vpack.c.b16 %v4835, %v4834
  %v4883 = vpack.c.b16 %v4837, %v4836
  %v4884 = vpack.c.b16 %v4839, %v4838
  %v4885 = vpack.c.b16 %v4841, %v4840
  %v4886 = vpack.c.b16 %v4843, %v4842
  %v4887 = vpack.c.b16 %v4845, %v4844
  %v4888 = vpack.c.b16 %v4847, %v4846
  %v4889 = vpack.c.b16 %v4849, %v4848
  %v4890 = vpack.c.b16 %v4851, %v4850
  %v4891 = vpack.c.b16 %v4853, %v4852
  %v4892 = vpack.c.b16 %v4855, %v4854
  %v4893 = vpack.c.b16 %v4857, %v4856
  %v4894 = vpack.c.b16 %v4859, %v4858
  %v4895 = vpack.c.b16 %v4861, %v4860
  %v4896 = vpack.c.b16 %v4863, %v4862
  %v4897 = vpack.c.b16 %v4865, %v4864
  %v4994 = vunpack.c.l.b16 %v3645
  %v4995 = vunpack.c.l.b16 %v3646
  %v4996 = vunpack.c.l.b16 %v3647
  %v4997 = vunpack.c.l.b16 %v3648
  %v4998 = vunpack.c.l.b16 %v3649
  %v4999 = vunpack.c.l.b16 %v3650
  %v5000 = vunpack.c.l.b16 %v3651
  %v5001 = vunpack.c.l.b16 %v3652
  %v5002 = vunpack.c.l.b16 %v3653
  %v5003 = vunpack.c.l.b16 %v3654
  %v5004 = vunpack.c.l.b16 %v3655
  %v5005 = vunpack.c.l.b16 %v3656
  %v5006 = vunpack.c.l.b16 %v3657
  %v5007 = vunpack.c.l.b16 %v3658
  %v5008 = vunpack.c.l.b16 %v3659
  %v5009 = vunpack.c.l.b16 %v3660
  %v5010 = vunpack.c.l.b16 %v3661
  %v5011 = vunpack.c.l.b16 %v3662
  %v5012 = vunpack.c.l.b16 %v3663
  %v5013 = vunpack.c.l.b16 %v3664
  %v5014 = vunpack.c.l.b16 %v3665
  %v5015 = vunpack.c.l.b16 %v3666
  %v5016 = vunpack.c.l.b16 %v3667
  %v5017 = vunpack.c.l.b16 %v3668
  %v5018 = vunpack.c.l.b16 %v3669
  %v5019 = vunpack.c.l.b16 %v3670
  %v5020 = vunpack.c.l.b16 %v3671
  %v5021 = vunpack.c.l.b16 %v3672
  %v5022 = vunpack.c.l.b16 %v3673
  %v5023 = vunpack.c.l.b16 %v3674
  %v5024 = vunpack.c.l.b16 %v3675
  %v5025 = vunpack.c.l.b16 %v3676
  %v5026 = vunpack.c.l.b16 %v3677
  %v5027 = vunpack.c.l.b16 %v3678
  %v5028 = vunpack.c.l.b16 %v3679
  %v5029 = vunpack.c.l.b16 %v3680
  %v5030 = vunpack.c.l.b16 %v3681
  %v5031 = vunpack.c.l.b16 %v3682
  %v5032 = vunpack.c.l.b16 %v3683
  %v5033 = vunpack.c.l.b16 %v3684
  %v5034 = vunpack.c.l.b16 %v3685
  %v5035 = vunpack.c.l.b16 %v3686
  %v5036 = vunpack.c.l.b16 %v3687
  %v5037 = vunpack.c.l.b16 %v3688
  %v5038 = vunpack.c.l.b16 %v3689
  %v5039 = vunpack.c.l.b16 %v3690
  %v5040 = vunpack.c.l.b16 %v3691
  %v5041 = vunpack.c.l.b16 %v3692
  %v5042 = vunpack.c.l.b16 %v3693
  %v5043 = vunpack.c.l.b16 %v3694
  %v5044 = vunpack.c.l.b16 %v3695
  %v5045 = vunpack.c.l.b16 %v3696
  %v5046 = vunpack.c.l.b16 %v3697
  %v5047 = vunpack.c.l.b16 %v3698
  %v5048 = vunpack.c.l.b16 %v3699
  %v5049 = vunpack.c.l.b16 %v3700
  %v5050 = vunpack.c.l.b16 %v3701
  %v5051 = vunpack.c.l.b16 %v3702
  %v5052 = vunpack.c.l.b16 %v3703
  %v5053 = vunpack.c.l.b16 %v3704
  %v5054 = vunpack.c.l.b16 %v3705
  %v5055 = vunpack.c.l.b16 %v3706
  %v5056 = vunpack.c.l.b16 %v3707
  %v5057 = vunpack.c.l.b16 %v3708
  %v5058 = vpack.c.b16 %v4995, %v4994
  %v5059 = vpack.c.b16 %v4997, %v4996
  %v5060 = vpack.c.b16 %v4999, %v4998
  %v5061 = vpack.c.b16 %v5001, %v5000
  %v5062 = vpack.c.b16 %v5003, %v5002
  %v5063 = vpack.c.b16 %v5005, %v5004
  %v5064 = vpack.c.b16 %v5007, %v5006
  %v5065 = vpack.c.b16 %v5009, %v5008
  %v5066 = vpack.c.b16 %v5011, %v5010
  %v5067 = vpack.c.b16 %v5013, %v5012
  %v5068 = vpack.c.b16 %v5015, %v5014
  %v5069 = vpack.c.b16 %v5017, %v5016
  %v5070 = vpack.c.b16 %v5019, %v5018
  %v5071 = vpack.c.b16 %v5021, %v5020
  %v5072 = vpack.c.b16 %v5023, %v5022
  %v5073 = vpack.c.b16 %v5025, %v5024
  %v5074 = vpack.c.b16 %v5027, %v5026
  %v5075 = vpack.c.b16 %v5029, %v5028
  %v5076 = vpack.c.b16 %v5031, %v5030
  %v5077 = vpack.c.b16 %v5033, %v5032
  %v5078 = vpack.c.b16 %v5035, %v5034
  %v5079 = vpack.c.b16 %v5037, %v5036
  %v5080 = vpack.c.b16 %v5039, %v5038
  %v5081 = vpack.c.b16 %v5041, %v5040
  %v5082 = vpack.c.b16 %v5043, %v5042
  %v5083 = vpack.c.b16 %v5045, %v5044
  %v5084 = vpack.c.b16 %v5047, %v5046
  %v5085 = vpack.c.b16 %v5049, %v5048
  %v5086 = vpack.c.b16 %v5051, %v5050
  %v5087 = vpack.c.b16 %v5053, %v5052
  %v5088 = vpack.c.b16 %v5055, %v5054
  %v5089 = vpack.c.b16 %v5057, %v5056
  %v5186 = vunpack.c.l.b16 %v3774
  %v5187 = vunpack.c.l.b16 %v3775
  %v5188 = vunpack.c.l.b16 %v3776
  %v5189 = vunpack.c.l.b16 %v3777
  %v5190 = vunpack.c.l.b16 %v3778
  %v5191 = vunpack.c.l.b16 %v3779
  %v5192 = vunpack.c.l.b16 %v3780
  %v5193 = vunpack.c.l.b16 %v3781
  %v5194 = vunpack.c.l.b16 %v3782
  %v5195 = vunpack.c.l.b16 %v3783
  %v5196 = vunpack.c.l.b16 %v3784
  %v5197 = vunpack.c.l.b16 %v3785
  %v5198 = vunpack.c.l.b16 %v3786
  %v5199 = vunpack.c.l.b16 %v3787
  %v5200 = vunpack.c.l.b16 %v3788
  %v5201 = vunpack.c.l.b16 %v3789
  %v5202 = vunpack.c.l.b16 %v3790
  %v5203 = vunpack.c.l.b16 %v3791
  %v5204 = vunpack.c.l.b16 %v3792
  %v5205 = vunpack.c.l.b16 %v3793
  %v5206 = vunpack.c.l.b16 %v3794
  %v5207 = vunpack.c.l.b16 %v3795
  %v5208 = vunpack.c.l.b16 %v3796
  %v5209 = vunpack.c.l.b16 %v3797
  %v5210 = vunpack.c.l.b16 %v3798
  %v5211 = vunpack.c.l.b16 %v3799
  %v5212 = vunpack.c.l.b16 %v3800
  %v5213 = vunpack.c.l.b16 %v3801
  %v5214 = vunpack.c.l.b16 %v3802
  %v5215 = vunpack.c.l.b16 %v3803
  %v5216 = vunpack.c.l.b16 %v3804
  %v5217 = vunpack.c.l.b16 %v3805
  %v5218 = vunpack.c.l.b16 %v3806
  %v5219 = vunpack.c.l.b16 %v3807
  %v5220 = vunpack.c.l.b16 %v3808
  %v5221 = vunpack.c.l.b16 %v3809
  %v5222 = vunpack.c.l.b16 %v3810
  %v5223 = vunpack.c.l.b16 %v3811
  %v5224 = vunpack.c.l.b16 %v3812
  %v5225 = vunpack.c.l.b16 %v3813
  %v5226 = vunpack.c.l.b16 %v3814
  %v5227 = vunpack.c.l.b16 %v3815
  %v5228 = vunpack.c.l.b16 %v3816
  %v5229 = vunpack.c.l.b16 %v3817
  %v5230 = vunpack.c.l.b16 %v3818
  %v5231 = vunpack.c.l.b16 %v3819
  %v5232 = vunpack.c.l.b16 %v3820
  %v5233 = vunpack.c.l.b16 %v3821
  %v5234 = vunpack.c.l.b16 %v3822
  %v5235 = vunpack.c.l.b16 %v3823
  %v5236 = vunpack.c.l.b16 %v3824
  %v5237 = vunpack.c.l.b16 %v3825
  %v5238 = vunpack.c.l.b16 %v3826
  %v5239 = vunpack.c.l.b16 %v3827
  %v5240 = vunpack.c.l.b16 %v3828
  %v5241 = vunpack.c.l.b16 %v3829
  %v5242 = vunpack.c.l.b16 %v3830
  %v5243 = vunpack.c.l.b16 %v3831
  %v5244 = vunpack.c.l.b16 %v3832
  %v5245 = vunpack.c.l.b16 %v3833
  %v5246 = vunpack.c.l.b16 %v3834
  %v5247 = vunpack.c.l.b16 %v3835
  %v5248 = vunpack.c.l.b16 %v3836
  %v5249 = vunpack.c.l.b16 %v3837
  %v5250 = vpack.c.b16 %v5187, %v5186
  %v5251 = vpack.c.b16 %v5189, %v5188
  %v5252 = vpack.c.b16 %v5191, %v5190
  %v5253 = vpack.c.b16 %v5193, %v5192
  %v5254 = vpack.c.b16 %v5195, %v5194
  %v5255 = vpack.c.b16 %v5197, %v5196
  %v5256 = vpack.c.b16 %v5199, %v5198
  %v5257 = vpack.c.b16 %v5201, %v5200
  %v5258 = vpack.c.b16 %v5203, %v5202
  %v5259 = vpack.c.b16 %v5205, %v5204
  %v5260 = vpack.c.b16 %v5207, %v5206
  %v5261 = vpack.c.b16 %v5209, %v5208
  %v5262 = vpack.c.b16 %v5211, %v5210
  %v5263 = vpack.c.b16 %v5213, %v5212
  %v5264 = vpack.c.b16 %v5215, %v5214
  %v5265 = vpack.c.b16 %v5217, %v5216
  %v5266 = vpack.c.b16 %v5219, %v5218
  %v5267 = vpack.c.b16 %v5221, %v5220
  %v5268 = vpack.c.b16 %v5223, %v5222
  %v5269 = vpack.c.b16 %v5225, %v5224
  %v5270 = vpack.c.b16 %v5227, %v5226
  %v5271 = vpack.c.b16 %v5229, %v5228
  %v5272 = vpack.c.b16 %v5231, %v5230
  %v5273 = vpack.c.b16 %v5233, %v5232
  %v5274 = vpack.c.b16 %v5235, %v5234
  %v5275 = vpack.c.b16 %v5237, %v5236
  %v5276 = vpack.c.b16 %v5239, %v5238
  %v5277 = vpack.c.b16 %v5241, %v5240
  %v5278 = vpack.c.b16 %v5243, %v5242
  %v5279 = vpack.c.b16 %v5245, %v5244
  %v5280 = vpack.c.b16 %v5247, %v5246
  %v5281 = vpack.c.b16 %v5249, %v5248
  %v5378 = vunpack.c.l.b16 %v3903
  %v5379 = vunpack.c.l.b16 %v3904
  %v5380 = vunpack.c.l.b16 %v3905
  %v5381 = vunpack.c.l.b16 %v3906
  %v5382 = vunpack.c.l.b16 %v3907
  %v5383 = vunpack.c.l.b16 %v3908
  %v5384 = vunpack.c.l.b16 %v3909
  %v5385 = vunpack.c.l.b16 %v3910
  %v5386 = vunpack.c.l.b16 %v3911
  %v5387 = vunpack.c.l.b16 %v3912
  %v5388 = vunpack.c.l.b16 %v3913
  %v5389 = vunpack.c.l.b16 %v3914
  %v5390 = vunpack.c.l.b16 %v3915
  %v5391 = vunpack.c.l.b16 %v3916
  %v5392 = vunpack.c.l.b16 %v3917
  %v5393 = vunpack.c.l.b16 %v3918
  %v5394 = vunpack.c.l.b16 %v3919
  %v5395 = vunpack.c.l.b16 %v3920
  %v5396 = vunpack.c.l.b16 %v3921
  %v5397 = vunpack.c.l.b16 %v3922
  %v5398 = vunpack.c.l.b16 %v3923
  %v5399 = vunpack.c.l.b16 %v3924
  %v5400 = vunpack.c.l.b16 %v3925
  %v5401 = vunpack.c.l.b16 %v3926
  %v5402 = vunpack.c.l.b16 %v3927
  %v5403 = vunpack.c.l.b16 %v3928
  %v5404 = vunpack.c.l.b16 %v3929
  %v5405 = vunpack.c.l.b16 %v3930
  %v5406 = vunpack.c.l.b16 %v3931
  %v5407 = vunpack.c.l.b16 %v3932
  %v5408 = vunpack.c.l.b16 %v3933
  %v5409 = vunpack.c.l.b16 %v3934
  %v5410 = vunpack.c.l.b16 %v3935
  %v5411 = vunpack.c.l.b16 %v3936
  %v5412 = vunpack.c.l.b16 %v3937
  %v5413 = vunpack.c.l.b16 %v3938
  %v5414 = vunpack.c.l.b16 %v3939
  %v5415 = vunpack.c.l.b16 %v3940
  %v5416 = vunpack.c.l.b16 %v3941
  %v5417 = vunpack.c.l.b16 %v3942
  %v5418 = vunpack.c.l.b16 %v3943
  %v5419 = vunpack.c.l.b16 %v3944
  %v5420 = vunpack.c.l.b16 %v3945
  %v5421 = vunpack.c.l.b16 %v3946
  %v5422 = vunpack.c.l.b16 %v3947
  %v5423 = vunpack.c.l.b16 %v3948
  %v5424 = vunpack.c.l.b16 %v3949
  %v5425 = vunpack.c.l.b16 %v3950
  %v5426 = vunpack.c.l.b16 %v3951
  %v5427 = vunpack.c.l.b16 %v3952
  %v5428 = vunpack.c.l.b16 %v3953
  %v5429 = vunpack.c.l.b16 %v3954
  %v5430 = vunpack.c.l.b16 %v3955
  %v5431 = vunpack.c.l.b16 %v3956
  %v5432 = vunpack.c.l.b16 %v3957
  %v5433 = vunpack.c.l.b16 %v3958
  %v5434 = vunpack.c.l.b16 %v3959
  %v5435 = vunpack.c.l.b16 %v3960
  %v5436 = vunpack.c.l.b16 %v3961
  %v5437 = vunpack.c.l.b16 %v3962
  %v5438 = vunpack.c.l.b16 %v3963
  %v5439 = vunpack.c.l.b16 %v3964
  %v5440 = vunpack.c.l.b16 %v3965
  %v5441 = vunpack.c.l.b16 %v3966
  %v5442 = vpack.c.b16 %v5379, %v5378
  %v5443 = vpack.c.b16 %v5381, %v5380
  %v5444 = vpack.c.b16 %v5383, %v5382
  %v5445 = vpack.c.b16 %v5385, %v5384
  %v5446 = vpack.c.b16 %v5387, %v5386
  %v5447 = vpack.c.b16 %v5389, %v5388
  %v5448 = vpack.c.b16 %v5391, %v5390
  %v5449 = vpack.c.b16 %v5393, %v5392
  %v5450 = vpack.c.b16 %v5395, %v5394
  %v5451 = vpack.c.b16 %v5397, %v5396
  %v5452 = vpack.c.b16 %v5399, %v5398
  %v5453 = vpack.c.b16 %v5401, %v5400
  %v5454 = vpack.c.b16 %v5403, %v5402
  %v5455 = vpack.c.b16 %v5405, %v5404
  %v5456 = vpack.c.b16 %v5407, %v5406
  %v5457 = vpack.c.b16 %v5409, %v5408
  %v5458 = vpack.c.b16 %v5411, %v5410
  %v5459 = vpack.c.b16 %v5413, %v5412
  %v5460 = vpack.c.b16 %v5415, %v5414
  %v5461 = vpack.c.b16 %v5417, %v5416
  %v5462 = vpack.c.b16 %v5419, %v5418
  %v5463 = vpack.c.b16 %v5421, %v5420
  %v5464 = vpack.c.b16 %v5423, %v5422
  %v5465 = vpack.c.b16 %v5425, %v5424
  %v5466 = vpack.c.b16 %v5427, %v5426
  %v5467 = vpack.c.b16 %v5429, %v5428
  %v5468 = vpack.c.b16 %v5431, %v5430
  %v5469 = vpack.c.b16 %v5433, %v5432
  %v5470 = vpack.c.b16 %v5435, %v5434
  %v5471 = vpack.c.b16 %v5437, %v5436
  %v5472 = vpack.c.b16 %v5439, %v5438
  %v5473 = vpack.c.b16 %v5441, %v5440
  %v5570 = vunpack.c.l.b16 %v4032
  %v5571 = vunpack.c.l.b16 %v4033
  %v5572 = vunpack.c.l.b16 %v4034
  %v5573 = vunpack.c.l.b16 %v4035
  %v5574 = vunpack.c.l.b16 %v4036
  %v5575 = vunpack.c.l.b16 %v4037
  %v5576 = vunpack.c.l.b16 %v4038
  %v5577 = vunpack.c.l.b16 %v4039
  %v5578 = vunpack.c.l.b16 %v4040
  %v5579 = vunpack.c.l.b16 %v4041
  %v5580 = vunpack.c.l.b16 %v4042
  %v5581 = vunpack.c.l.b16 %v4043
  %v5582 = vunpack.c.l.b16 %v4044
  %v5583 = vunpack.c.l.b16 %v4045
  %v5584 = vunpack.c.l.b16 %v4046
  %v5585 = vunpack.c.l.b16 %v4047
  %v5586 = vunpack.c.l.b16 %v4048
  %v5587 = vunpack.c.l.b16 %v4049
  %v5588 = vunpack.c.l.b16 %v4050
  %v5589 = vunpack.c.l.b16 %v4051
  %v5590 = vunpack.c.l.b16 %v4052
  %v5591 = vunpack.c.l.b16 %v4053
  %v5592 = vunpack.c.l.b16 %v4054
  %v5593 = vunpack.c.l.b16 %v4055
  %v5594 = vunpack.c.l.b16 %v4056
  %v5595 = vunpack.c.l.b16 %v4057
  %v5596 = vunpack.c.l.b16 %v4058
  %v5597 = vunpack.c.l.b16 %v4059
  %v5598 = vunpack.c.l.b16 %v4060
  %v5599 = vunpack.c.l.b16 %v4061
  %v5600 = vunpack.c.l.b16 %v4062
  %v5601 = vunpack.c.l.b16 %v4063
  %v5602 = vunpack.c.l.b16 %v4064
  %v5603 = vunpack.c.l.b16 %v4065
  %v5604 = vunpack.c.l.b16 %v4066
  %v5605 = vunpack.c.l.b16 %v4067
  %v5606 = vunpack.c.l.b16 %v4068
  %v5607 = vunpack.c.l.b16 %v4069
  %v5608 = vunpack.c.l.b16 %v4070
  %v5609 = vunpack.c.l.b16 %v4071
  %v5610 = vunpack.c.l.b16 %v4072
  %v5611 = vunpack.c.l.b16 %v4073
  %v5612 = vunpack.c.l.b16 %v4074
  %v5613 = vunpack.c.l.b16 %v4075
  %v5614 = vunpack.c.l.b16 %v4076
  %v5615 = vunpack.c.l.b16 %v4077
  %v5616 = vunpack.c.l.b16 %v4078
  %v5617 = vunpack.c.l.b16 %v4079
  %v5618 = vunpack.c.l.b16 %v4080
  %v5619 = vunpack.c.l.b16 %v4081
  %v5620 = vunpack.c.l.b16 %v4082
  %v5621 = vunpack.c.l.b16 %v4083
  %v5622 = vunpack.c.l.b16 %v4084
  %v5623 = vunpack.c.l.b16 %v4085
  %v5624 = vunpack.c.l.b16 %v4086
  %v5625 = vunpack.c.l.b16 %v4087
  %v5626 = vunpack.c.l.b16 %v4088
  %v5627 = vunpack.c.l.b16 %v4089
  %v5628 = vunpack.c.l.b16 %v4090
  %v5629 = vunpack.c.l.b16 %v4091
  %v5630 = vunpack.c.l.b16 %v4092
  %v5631 = vunpack.c.l.b16 %v4093
  %v5632 = vunpack.c.l.b16 %v4094
  %v5633 = vunpack.c.l.b16 %v4095
  %v5634 = vpack.c.b16 %v5571, %v5570
  %v5635 = vpack.c.b16 %v5573, %v5572
  %v5636 = vpack.c.b16 %v5575, %v5574
  %v5637 = vpack.c.b16 %v5577, %v5576
  %v5638 = vpack.c.b16 %v5579, %v5578
  %v5639 = vpack.c.b16 %v5581, %v5580
  %v5640 = vpack.c.b16 %v5583, %v5582
  %v5641 = vpack.c.b16 %v5585, %v5584
  %v5642 = vpack.c.b16 %v5587, %v5586
  %v5643 = vpack.c.b16 %v5589, %v5588
  %v5644 = vpack.c.b16 %v5591, %v5590
  %v5645 = vpack.c.b16 %v5593, %v5592
  %v5646 = vpack.c.b16 %v5595, %v5594
  %v5647 = vpack.c.b16 %v5597, %v5596
  %v5648 = vpack.c.b16 %v5599, %v5598
  %v5649 = vpack.c.b16 %v5601, %v5600
  %v5650 = vpack.c.b16 %v5603, %v5602
  %v5651 = vpack.c.b16 %v5605, %v5604
  %v5652 = vpack.c.b16 %v5607, %v5606
  %v5653 = vpack.c.b16 %v5609, %v5608
  %v5654 = vpack.c.b16 %v5611, %v5610
  %v5655 = vpack.c.b16 %v5613, %v5612
  %v5656 = vpack.c.b16 %v5615, %v5614
  %v5657 = vpack.c.b16 %v5617, %v5616
  %v5658 = vpack.c.b16 %v5619, %v5618
  %v5659 = vpack.c.b16 %v5621, %v5620
  %v5660 = vpack.c.b16 %v5623, %v5622
  %v5661 = vpack.c.b16 %v5625, %v5624
  %v5662 = vpack.c.b16 %v5627, %v5626
  %v5663 = vpack.c.b16 %v5629, %v5628
  %v5664 = vpack.c.b16 %v5631, %v5630
  %v5665 = vpack.c.b16 %v5633, %v5632
  %v5762 = vunpack.c.l.b16 %v4161
  %v5763 = vunpack.c.l.b16 %v4162
  %v5764 = vunpack.c.l.b16 %v4163
  %v5765 = vunpack.c.l.b16 %v4164
  %v5766 = vunpack.c.l.b16 %v4165
  %v5767 = vunpack.c.l.b16 %v4166
  %v5768 = vunpack.c.l.b16 %v4167
  %v5769 = vunpack.c.l.b16 %v4168
  %v5770 = vunpack.c.l.b16 %v4169
  %v5771 = vunpack.c.l.b16 %v4170
  %v5772 = vunpack.c.l.b16 %v4171
  %v5773 = vunpack.c.l.b16 %v4172
  %v5774 = vunpack.c.l.b16 %v4173
  %v5775 = vunpack.c.l.b16 %v4174
  %v5776 = vunpack.c.l.b16 %v4175
  %v5777 = vunpack.c.l.b16 %v4176
  %v5778 = vunpack.c.l.b16 %v4177
  %v5779 = vunpack.c.l.b16 %v4178
  %v5780 = vunpack.c.l.b16 %v4179
  %v5781 = vunpack.c.l.b16 %v4180
  %v5782 = vunpack.c.l.b16 %v4181
  %v5783 = vunpack.c.l.b16 %v4182
  %v5784 = vunpack.c.l.b16 %v4183
  %v5785 = vunpack.c.l.b16 %v4184
  %v5786 = vunpack.c.l.b16 %v4185
  %v5787 = vunpack.c.l.b16 %v4186
  %v5788 = vunpack.c.l.b16 %v4187
  %v5789 = vunpack.c.l.b16 %v4188
  %v5790 = vunpack.c.l.b16 %v4189
  %v5791 = vunpack.c.l.b16 %v4190
  %v5792 = vunpack.c.l.b16 %v4191
  %v5793 = vunpack.c.l.b16 %v4192
  %v5794 = vunpack.c.l.b16 %v4193
  %v5795 = vunpack.c.l.b16 %v4194
  %v5796 = vunpack.c.l.b16 %v4195
  %v5797 = vunpack.c.l.b16 %v4196
  %v5798 = vunpack.c.l.b16 %v4197
  %v5799 = vunpack.c.l.b16 %v4198
  %v5800 = vunpack.c.l.b16 %v4199
  %v5801 = vunpack.c.l.b16 %v4200
  %v5802 = vunpack.c.l.b16 %v4201
  %v5803 = vunpack.c.l.b16 %v4202
  %v5804 = vunpack.c.l.b16 %v4203
  %v5805 = vunpack.c.l.b16 %v4204
  %v5806 = vunpack.c.l.b16 %v4205
  %v5807 = vunpack.c.l.b16 %v4206
  %v5808 = vunpack.c.l.b16 %v4207
  %v5809 = vunpack.c.l.b16 %v4208
  %v5810 = vunpack.c.l.b16 %v4209
  %v5811 = vunpack.c.l.b16 %v4210
  %v5812 = vunpack.c.l.b16 %v4211
  %v5813 = vunpack.c.l.b16 %v4212
  %v5814 = vunpack.c.l.b16 %v4213
  %v5815 = vunpack.c.l.b16 %v4214
  %v5816 = vunpack.c.l.b16 %v4215
  %v5817 = vunpack.c.l.b16 %v4216
  %v5818 = vunpack.c.l.b16 %v4217
  %v5819 = vunpack.c.l.b16 %v4218
  %v5820 = vunpack.c.l.b16 %v4219
  %v5821 = vunpack.c.l.b16 %v4220
  %v5822 = vunpack.c.l.b16 %v4221
  %v5823 = vunpack.c.l.b16 %v4222
  %v5824 = vunpack.c.l.b16 %v4223
  %v5825 = vunpack.c.l.b16 %v4224
  %v5826 = vpack.c.b16 %v5763, %v5762
  %v5827 = vpack.c.b16 %v5765, %v5764
  %v5828 = vpack.c.b16 %v5767, %v5766
  %v5829 = vpack.c.b16 %v5769, %v5768
  %v5830 = vpack.c.b16 %v5771, %v5770
  %v5831 = vpack.c.b16 %v5773, %v5772
  %v5832 = vpack.c.b16 %v5775, %v5774
  %v5833 = vpack.c.b16 %v5777, %v5776
  %v5834 = vpack.c.b16 %v5779, %v5778
  %v5835 = vpack.c.b16 %v5781, %v5780
  %v5836 = vpack.c.b16 %v5783, %v5782
  %v5837 = vpack.c.b16 %v5785, %v5784
  %v5838 = vpack.c.b16 %v5787, %v5786
  %v5839 = vpack.c.b16 %v5789, %v5788
  %v5840 = vpack.c.b16 %v5791, %v5790
  %v5841 = vpack.c.b16 %v5793, %v5792
  %v5842 = vpack.c.b16 %v5795, %v5794
  %v5843 = vpack.c.b16 %v5797, %v5796
  %v5844 = vpack.c.b16 %v5799, %v5798
  %v5845 = vpack.c.b16 %v5801, %v5800
  %v5846 = vpack.c.b16 %v5803, %v5802
  %v5847 = vpack.c.b16 %v5805, %v5804
  %v5848 = vpack.c.b16 %v5807, %v5806
  %v5849 = vpack.c.b16 %v5809, %v5808
  %v5850 = vpack.c.b16 %v5811, %v5810
  %v5851 = vpack.c.b16 %v5813, %v5812
  %v5852 = vpack.c.b16 %v5815, %v5814
  %v5853 = vpack.c.b16 %v5817, %v5816
  %v5854 = vpack.c.b16 %v5819, %v5818
  %v5855 = vpack.c.b16 %v5821, %v5820
  %v5856 = vpack.c.b16 %v5823, %v5822
  %v5857 = vpack.c.b16 %v5825, %v5824
  %v5954 = vunpack.c.l.b16 %v4290
  %v5955 = vunpack.c.l.b16 %v4291
  %v5956 = vunpack.c.l.b16 %v4292
  %v5957 = vunpack.c.l.b16 %v4293
  %v5958 = vunpack.c.l.b16 %v4294
  %v5959 = vunpack.c.l.b16 %v4295
  %v5960 = vunpack.c.l.b16 %v4296
  %v5961 = vunpack.c.l.b16 %v4297
  %v5962 = vunpack.c.l.b16 %v4298
  %v5963 = vunpack.c.l.b16 %v4299
  %v5964 = vunpack.c.l.b16 %v4300
  %v5965 = vunpack.c.l.b16 %v4301
  %v5966 = vunpack.c.l.b16 %v4302
  %v5967 = vunpack.c.l.b16 %v4303
  %v5968 = vunpack.c.l.b16 %v4304
  %v5969 = vunpack.c.l.b16 %v4305
  %v5970 = vunpack.c.l.b16 %v4306
  %v5971 = vunpack.c.l.b16 %v4307
  %v5972 = vunpack.c.l.b16 %v4308
  %v5973 = vunpack.c.l.b16 %v4309
  %v5974 = vunpack.c.l.b16 %v4310
  %v5975 = vunpack.c.l.b16 %v4311
  %v5976 = vunpack.c.l.b16 %v4312
  %v5977 = vunpack.c.l.b16 %v4313
  %v5978 = vunpack.c.l.b16 %v4314
  %v5979 = vunpack.c.l.b16 %v4315
  %v5980 = vunpack.c.l.b16 %v4316
  %v5981 = vunpack.c.l.b16 %v4317
  %v5982 = vunpack.c.l.b16 %v4318
  %v5983 = vunpack.c.l.b16 %v4319
  %v5984 = vunpack.c.l.b16 %v4320
  %v5985 = vunpack.c.l.b16 %v4321
  %v5986 = vunpack.c.l.b16 %v4322
  %v5987 = vunpack.c.l.b16 %v4323
  %v5988 = vunpack.c.l.b16 %v4324
  %v5989 = vunpack.c.l.b16 %v4325
  %v5990 = vunpack.c.l.b16 %v4326
  %v5991 = vunpack.c.l.b16 %v4327
  %v5992 = vunpack.c.l.b16 %v4328
  %v5993 = vunpack.c.l.b16 %v4329
  %v5994 = vunpack.c.l.b16 %v4330
  %v5995 = vunpack.c.l.b16 %v4331
  %v5996 = vunpack.c.l.b16 %v4332
  %v5997 = vunpack.c.l.b16 %v4333
  %v5998 = vunpack.c.l.b16 %v4334
  %v5999 = vunpack.c.l.b16 %v4335
  %v6000 = vunpack.c.l.b16 %v4336
  %v6001 = vunpack.c.l.b16 %v4337
  %v6002 = vunpack.c.l.b16 %v4338
  %v6003 = vunpack.c.l.b16 %v4339
  %v6004 = vunpack.c.l.b16 %v4340
  %v6005 = vunpack.c.l.b16 %v4341
  %v6006 = vunpack.c.l.b16 %v4342
  %v6007 = vunpack.c.l.b16 %v4343
  %v6008 = vunpack.c.l.b16 %v4344
  %v6009 = vunpack.c.l.b16 %v4345
  %v6010 = vunpack.c.l.b16 %v4346
  %v6011 = vunpack.c.l.b16 %v4347
  %v6012 = vunpack.c.l.b16 %v4348
  %v6013 = vunpack.c.l.b16 %v4349
  %v6014 = vunpack.c.l.b16 %v4350
  %v6015 = vunpack.c.l.b16 %v4351
  %v6016 = vunpack.c.l.b16 %v4352
  %v6017 = vunpack.c.l.b16 %v4353
  %v6018 = vpack.c.b16 %v5955, %v5954
  %v6019 = vpack.c.b16 %v5957, %v5956
  %v6020 = vpack.c.b16 %v5959, %v5958
  %v6021 = vpack.c.b16 %v5961, %v5960
  %v6022 = vpack.c.b16 %v5963, %v5962
  %v6023 = vpack.c.b16 %v5965, %v5964
  %v6024 = vpack.c.b16 %v5967, %v5966
  %v6025 = vpack.c.b16 %v5969, %v5968
  %v6026 = vpack.c.b16 %v5971, %v5970
  %v6027 = vpack.c.b16 %v5973, %v5972
  %v6028 = vpack.c.b16 %v5975, %v5974
  %v6029 = vpack.c.b16 %v5977, %v5976
  %v6030 = vpack.c.b16 %v5979, %v5978
  %v6031 = vpack.c.b16 %v5981, %v5980
  %v6032 = vpack.c.b16 %v5983, %v5982
  %v6033 = vpack.c.b16 %v5985, %v5984
  %v6034 = vpack.c.b16 %v5987, %v5986
  %v6035 = vpack.c.b16 %v5989, %v5988
  %v6036 = vpack.c.b16 %v5991, %v5990
  %v6037 = vpack.c.b16 %v5993, %v5992
  %v6038 = vpack.c.b16 %v5995, %v5994
  %v6039 = vpack.c.b16 %v5997, %v5996
  %v6040 = vpack.c.b16 %v5999, %v5998
  %v6041 = vpack.c.b16 %v6001, %v6000
  %v6042 = vpack.c.b16 %v6003, %v6002
  %v6043 = vpack.c.b16 %v6005, %v6004
  %v6044 = vpack.c.b16 %v6007, %v6006
  %v6045 = vpack.c.b16 %v6009, %v6008
  %v6046 = vpack.c.b16 %v6011, %v6010
  %v6047 = vpack.c.b16 %v6013, %v6012
  %v6048 = vpack.c.b16 %v6015, %v6014
  %v6049 = vpack.c.b16 %v6017, %v6016
  %v6082 = vld [vmem:[%s3] sm:$0xf]
  %v6083 = vld [vmem:[%s3 + $0x4] sm:$0xf]
  %v6084 = vld [vmem:[%s3 + $0x8] sm:$0xf]
  %v6085 = vld [vmem:[%s3 + $0xc] sm:$0xf]
  %v6086 = vld [vmem:[%s3 + $0x10] sm:$0xf]
  %v6087 = vld [vmem:[%s3 + $0x14] sm:$0xf]
  %v6088 = vld [vmem:[%s3 + $0x18] sm:$0xf]
  %v6089 = vld [vmem:[%s3 + $0x1c] sm:$0xf]
  %v6090 = vld [vmem:[%s3 + $0x20] sm:$0xf]
  %v6091 = vld [vmem:[%s3 + $0x24] sm:$0xf]
  %v6092 = vld [vmem:[%s3 + $0x28] sm:$0xf]
  %v6093 = vld [vmem:[%s3 + $0x2c] sm:$0xf]
  %v6094 = vld [vmem:[%s3 + $0x30] sm:$0xf]
  %v6095 = vld [vmem:[%s3 + $0x34] sm:$0xf]
  %v6096 = vld [vmem:[%s3 + $0x38] sm:$0xf]
  %v6097 = vld [vmem:[%s3 + $0x3c] sm:$0xf]
  %v6098 = vld [vmem:[%s3 + $0x40] sm:$0xf]
  %v6099 = vld [vmem:[%s3 + $0x44] sm:$0xf]
  %v6100 = vld [vmem:[%s3 + $0x48] sm:$0xf]
  %v6101 = vld [vmem:[%s3 + $0x4c] sm:$0xf]
  %v6102 = vld [vmem:[%s3 + $0x50] sm:$0xf]
  %v6103 = vld [vmem:[%s3 + $0x54] sm:$0xf]
  %v6104 = vld [vmem:[%s3 + $0x58] sm:$0xf]
  %v6105 = vld [vmem:[%s3 + $0x5c] sm:$0xf]
  %v6106 = vld [vmem:[%s3 + $0x60] sm:$0xf]
  %v6107 = vld [vmem:[%s3 + $0x64] sm:$0xf]
  %v6108 = vld [vmem:[%s3 + $0x68] sm:$0xf]
  %v6109 = vld [vmem:[%s3 + $0x6c] sm:$0xf]
  %v6110 = vld [vmem:[%s3 + $0x70] sm:$0xf]
  %v6111 = vld [vmem:[%s3 + $0x74] sm:$0xf]
  %v6112 = vld [vmem:[%s3 + $0x78] sm:$0xf]
  %v6113 = vld [vmem:[%s3 + $0x7c] sm:$0xf]
  %v6114 = vld [vmem:[%s3 + $0x80] sm:$0xf]
  %v6115 = vld [vmem:[%s3 + $0x84] sm:$0xf]
  %v6116 = vld [vmem:[%s3 + $0x88] sm:$0xf]
  %v6117 = vld [vmem:[%s3 + $0x8c] sm:$0xf]
  %v6118 = vld [vmem:[%s3 + $0x90] sm:$0xf]
  %v6119 = vld [vmem:[%s3 + $0x94] sm:$0xf]
  %v6120 = vld [vmem:[%s3 + $0x98] sm:$0xf]
  %v6121 = vld [vmem:[%s3 + $0x9c] sm:$0xf]
  %v6122 = vld [vmem:[%s3 + $0xa0] sm:$0xf]
  %v6123 = vld [vmem:[%s3 + $0xa4] sm:$0xf]
  %v6124 = vld [vmem:[%s3 + $0xa8] sm:$0xf]
  %v6125 = vld [vmem:[%s3 + $0xac] sm:$0xf]
  %v6126 = vld [vmem:[%s3 + $0xb0] sm:$0xf]
  %v6127 = vld [vmem:[%s3 + $0xb4] sm:$0xf]
  %v6128 = vld [vmem:[%s3 + $0xb8] sm:$0xf]
  %v6129 = vld [vmem:[%s3 + $0xbc] sm:$0xf]
  %v6130 = vld [vmem:[%s3 + $0xc0] sm:$0xf]
  %v6131 = vld [vmem:[%s3 + $0xc4] sm:$0xf]
  %v6132 = vld [vmem:[%s3 + $0xc8] sm:$0xf]
  %v6133 = vld [vmem:[%s3 + $0xcc] sm:$0xf]
  %v6134 = vld [vmem:[%s3 + $0xd0] sm:$0xf]
  %v6135 = vld [vmem:[%s3 + $0xd4] sm:$0xf]
  %v6136 = vld [vmem:[%s3 + $0xd8] sm:$0xf]
  %v6137 = vld [vmem:[%s3 + $0xdc] sm:$0xf]
  %v6138 = vld [vmem:[%s3 + $0xe0] sm:$0xf]
  %v6139 = vld [vmem:[%s3 + $0xe4] sm:$0xf]
  %v6140 = vld [vmem:[%s3 + $0xe8] sm:$0xf]
  %v6141 = vld [vmem:[%s3 + $0xec] sm:$0xf]
  %v6142 = vld [vmem:[%s3 + $0xf0] sm:$0xf]
  %v6143 = vld [vmem:[%s3 + $0xf4] sm:$0xf]
  %v6144 = vld [vmem:[%s3 + $0xf8] sm:$0xf]
  %v6145 = vld [vmem:[%s3 + $0xfc] sm:$0xf]
  %v6146 = vld [vmem:[%s3 + $0x100] sm:$0xf]
  %v6147 = vld [vmem:[%s3 + $0x104] sm:$0xf]
  %v6148 = vld [vmem:[%s3 + $0x108] sm:$0xf]
  %v6149 = vld [vmem:[%s3 + $0x10c] sm:$0xf]
  %v6150 = vld [vmem:[%s3 + $0x110] sm:$0xf]
  %v6151 = vld [vmem:[%s3 + $0x114] sm:$0xf]
  %v6152 = vld [vmem:[%s3 + $0x118] sm:$0xf]
  %v6153 = vld [vmem:[%s3 + $0x11c] sm:$0xf]
  %v6154 = vld [vmem:[%s3 + $0x120] sm:$0xf]
  %v6155 = vld [vmem:[%s3 + $0x124] sm:$0xf]
  %v6156 = vld [vmem:[%s3 + $0x128] sm:$0xf]
  %v6157 = vld [vmem:[%s3 + $0x12c] sm:$0xf]
  %v6158 = vld [vmem:[%s3 + $0x130] sm:$0xf]
  %v6159 = vld [vmem:[%s3 + $0x134] sm:$0xf]
  %v6160 = vld [vmem:[%s3 + $0x138] sm:$0xf]
  %v6161 = vld [vmem:[%s3 + $0x13c] sm:$0xf]
  %v6162 = vld [vmem:[%s3 + $0x140] sm:$0xf]
  %v6163 = vld [vmem:[%s3 + $0x144] sm:$0xf]
  %v6164 = vld [vmem:[%s3 + $0x148] sm:$0xf]
  %v6165 = vld [vmem:[%s3 + $0x14c] sm:$0xf]
  %v6166 = vld [vmem:[%s3 + $0x150] sm:$0xf]
  %v6167 = vld [vmem:[%s3 + $0x154] sm:$0xf]
  %v6168 = vld [vmem:[%s3 + $0x158] sm:$0xf]
  %v6169 = vld [vmem:[%s3 + $0x15c] sm:$0xf]
  %v6170 = vld [vmem:[%s3 + $0x160] sm:$0xf]
  %v6171 = vld [vmem:[%s3 + $0x164] sm:$0xf]
  %v6172 = vld [vmem:[%s3 + $0x168] sm:$0xf]
  %v6173 = vld [vmem:[%s3 + $0x16c] sm:$0xf]
  %v6174 = vld [vmem:[%s3 + $0x170] sm:$0xf]
  %v6175 = vld [vmem:[%s3 + $0x174] sm:$0xf]
  %v6176 = vld [vmem:[%s3 + $0x178] sm:$0xf]
  %v6177 = vld [vmem:[%s3 + $0x17c] sm:$0xf]
  %v6178 = vld [vmem:[%s3 + $0x180] sm:$0xf]
  %v6179 = vld [vmem:[%s3 + $0x184] sm:$0xf]
  %v6180 = vld [vmem:[%s3 + $0x188] sm:$0xf]
  %v6181 = vld [vmem:[%s3 + $0x18c] sm:$0xf]
  %v6182 = vld [vmem:[%s3 + $0x190] sm:$0xf]
  %v6183 = vld [vmem:[%s3 + $0x194] sm:$0xf]
  %v6184 = vld [vmem:[%s3 + $0x198] sm:$0xf]
  %v6185 = vld [vmem:[%s3 + $0x19c] sm:$0xf]
  %v6186 = vld [vmem:[%s3 + $0x1a0] sm:$0xf]
  %v6187 = vld [vmem:[%s3 + $0x1a4] sm:$0xf]
  %v6188 = vld [vmem:[%s3 + $0x1a8] sm:$0xf]
  %v6189 = vld [vmem:[%s3 + $0x1ac] sm:$0xf]
  %v6190 = vld [vmem:[%s3 + $0x1b0] sm:$0xf]
  %v6191 = vld [vmem:[%s3 + $0x1b4] sm:$0xf]
  %v6192 = vld [vmem:[%s3 + $0x1b8] sm:$0xf]
  %v6193 = vld [vmem:[%s3 + $0x1bc] sm:$0xf]
  %v6194 = vld [vmem:[%s3 + $0x1c0] sm:$0xf]
  %v6195 = vld [vmem:[%s3 + $0x1c4] sm:$0xf]
  %v6196 = vld [vmem:[%s3 + $0x1c8] sm:$0xf]
  %v6197 = vld [vmem:[%s3 + $0x1cc] sm:$0xf]
  %v6198 = vld [vmem:[%s3 + $0x1d0] sm:$0xf]
  %v6199 = vld [vmem:[%s3 + $0x1d4] sm:$0xf]
  %v6200 = vld [vmem:[%s3 + $0x1d8] sm:$0xf]
  %v6201 = vld [vmem:[%s3 + $0x1dc] sm:$0xf]
  %v6202 = vld [vmem:[%s3 + $0x1e0] sm:$0xf]
  %v6203 = vld [vmem:[%s3 + $0x1e4] sm:$0xf]
  %v6204 = vld [vmem:[%s3 + $0x1e8] sm:$0xf]
  %v6205 = vld [vmem:[%s3 + $0x1ec] sm:$0xf]
  %v6206 = vld [vmem:[%s3 + $0x1f0] sm:$0xf]
  %v6207 = vld [vmem:[%s3 + $0x1f4] sm:$0xf]
  %v6208 = vld [vmem:[%s3 + $0x1f8] sm:$0xf]
  %v6209 = vld [vmem:[%s3 + $0x1fc] sm:$0xf]
  %v6210 = vld [vmem:[%s3 + $0x200] sm:$0xf]
  %v6211 = vld [vmem:[%s3 + $0x204] sm:$0xf]
  %v6212 = vld [vmem:[%s3 + $0x208] sm:$0xf]
  %v6213 = vld [vmem:[%s3 + $0x20c] sm:$0xf]
  %v6214 = vld [vmem:[%s3 + $0x210] sm:$0xf]
  %v6215 = vld [vmem:[%s3 + $0x214] sm:$0xf]
  %v6216 = vld [vmem:[%s3 + $0x218] sm:$0xf]
  %v6217 = vld [vmem:[%s3 + $0x21c] sm:$0xf]
  %v6218 = vld [vmem:[%s3 + $0x220] sm:$0xf]
  %v6219 = vld [vmem:[%s3 + $0x224] sm:$0xf]
  %v6220 = vld [vmem:[%s3 + $0x228] sm:$0xf]
  %v6221 = vld [vmem:[%s3 + $0x22c] sm:$0xf]
  %v6222 = vld [vmem:[%s3 + $0x230] sm:$0xf]
  %v6223 = vld [vmem:[%s3 + $0x234] sm:$0xf]
  %v6224 = vld [vmem:[%s3 + $0x238] sm:$0xf]
  %v6225 = vld [vmem:[%s3 + $0x23c] sm:$0xf]
  %v6370 = vunpack.c.l.b16 %v6082
  %v6371 = vunpack.c.l.b16 %v6083
  %v6372 = vunpack.c.l.b16 %v6084
  %v6373 = vunpack.c.l.b16 %v6085
  %v6374 = vunpack.c.l.b16 %v6086
  %v6375 = vunpack.c.l.b16 %v6087
  %v6376 = vunpack.c.l.b16 %v6088
  %v6377 = vunpack.c.l.b16 %v6089
  %v6378 = vunpack.c.l.b16 %v6090
  %v6379 = vunpack.c.l.b16 %v6091
  %v6380 = vunpack.c.l.b16 %v6092
  %v6381 = vunpack.c.l.b16 %v6093
  %v6382 = vunpack.c.l.b16 %v6094
  %v6383 = vunpack.c.l.b16 %v6095
  %v6384 = vunpack.c.l.b16 %v6096
  %v6385 = vunpack.c.l.b16 %v6097
  %v6386 = vunpack.c.l.b16 %v6098
  %v6387 = vunpack.c.l.b16 %v6099
  %v6388 = vunpack.c.l.b16 %v6100
  %v6389 = vunpack.c.l.b16 %v6101
  %v6390 = vunpack.c.l.b16 %v6102
  %v6391 = vunpack.c.l.b16 %v6103
  %v6392 = vunpack.c.l.b16 %v6104
  %v6393 = vunpack.c.l.b16 %v6105
  %v6394 = vunpack.c.l.b16 %v6106
  %v6395 = vunpack.c.l.b16 %v6107
  %v6396 = vunpack.c.l.b16 %v6108
  %v6397 = vunpack.c.l.b16 %v6109
  %v6398 = vunpack.c.l.b16 %v6110
  %v6399 = vunpack.c.l.b16 %v6111
  %v6400 = vunpack.c.l.b16 %v6112
  %v6401 = vunpack.c.l.b16 %v6113
  %v6402 = vunpack.c.l.b16 %v6114
  %v6403 = vunpack.c.l.b16 %v6115
  %v6404 = vunpack.c.l.b16 %v6116
  %v6405 = vunpack.c.l.b16 %v6117
  %v6406 = vunpack.c.l.b16 %v6118
  %v6407 = vunpack.c.l.b16 %v6119
  %v6408 = vunpack.c.l.b16 %v6120
  %v6409 = vunpack.c.l.b16 %v6121
  %v6410 = vunpack.c.l.b16 %v6122
  %v6411 = vunpack.c.l.b16 %v6123
  %v6412 = vunpack.c.l.b16 %v6124
  %v6413 = vunpack.c.l.b16 %v6125
  %v6414 = vunpack.c.l.b16 %v6126
  %v6415 = vunpack.c.l.b16 %v6127
  %v6416 = vunpack.c.l.b16 %v6128
  %v6417 = vunpack.c.l.b16 %v6129
  %v6418 = vunpack.c.l.b16 %v6130
  %v6419 = vunpack.c.l.b16 %v6131
  %v6420 = vunpack.c.l.b16 %v6132
  %v6421 = vunpack.c.l.b16 %v6133
  %v6422 = vunpack.c.l.b16 %v6134
  %v6423 = vunpack.c.l.b16 %v6135
  %v6424 = vunpack.c.l.b16 %v6136
  %v6425 = vunpack.c.l.b16 %v6137
  %v6426 = vunpack.c.l.b16 %v6138
  %v6427 = vunpack.c.l.b16 %v6139
  %v6428 = vunpack.c.l.b16 %v6140
  %v6429 = vunpack.c.l.b16 %v6141
  %v6430 = vunpack.c.l.b16 %v6142
  %v6431 = vunpack.c.l.b16 %v6143
  %v6432 = vunpack.c.l.b16 %v6144
  %v6433 = vunpack.c.l.b16 %v6145
  %v6434 = vunpack.c.l.b16 %v6146
  %v6435 = vunpack.c.l.b16 %v6147
  %v6436 = vunpack.c.l.b16 %v6148
  %v6437 = vunpack.c.l.b16 %v6149
  %v6438 = vunpack.c.l.b16 %v6150
  %v6439 = vunpack.c.l.b16 %v6151
  %v6440 = vunpack.c.l.b16 %v6152
  %v6441 = vunpack.c.l.b16 %v6153
  %v6442 = vunpack.c.l.b16 %v6154
  %v6443 = vunpack.c.l.b16 %v6155
  %v6444 = vunpack.c.l.b16 %v6156
  %v6445 = vunpack.c.l.b16 %v6157
  %v6446 = vunpack.c.l.b16 %v6158
  %v6447 = vunpack.c.l.b16 %v6159
  %v6448 = vunpack.c.l.b16 %v6160
  %v6449 = vunpack.c.l.b16 %v6161
  %v6450 = vunpack.c.l.b16 %v6162
  %v6451 = vunpack.c.l.b16 %v6163
  %v6452 = vunpack.c.l.b16 %v6164
  %v6453 = vunpack.c.l.b16 %v6165
  %v6454 = vunpack.c.l.b16 %v6166
  %v6455 = vunpack.c.l.b16 %v6167
  %v6456 = vunpack.c.l.b16 %v6168
  %v6457 = vunpack.c.l.b16 %v6169
  %v6458 = vunpack.c.l.b16 %v6170
  %v6459 = vunpack.c.l.b16 %v6171
  %v6460 = vunpack.c.l.b16 %v6172
  %v6461 = vunpack.c.l.b16 %v6173
  %v6462 = vunpack.c.l.b16 %v6174
  %v6463 = vunpack.c.l.b16 %v6175
  %v6464 = vunpack.c.l.b16 %v6176
  %v6465 = vunpack.c.l.b16 %v6177
  %v6466 = vunpack.c.l.b16 %v6178
  %v6467 = vunpack.c.l.b16 %v6179
  %v6468 = vunpack.c.l.b16 %v6180
  %v6469 = vunpack.c.l.b16 %v6181
  %v6470 = vunpack.c.l.b16 %v6182
  %v6471 = vunpack.c.l.b16 %v6183
  %v6472 = vunpack.c.l.b16 %v6184
  %v6473 = vunpack.c.l.b16 %v6185
  %v6474 = vunpack.c.l.b16 %v6186
  %v6475 = vunpack.c.l.b16 %v6187
  %v6476 = vunpack.c.l.b16 %v6188
  %v6477 = vunpack.c.l.b16 %v6189
  %v6478 = vunpack.c.l.b16 %v6190
  %v6479 = vunpack.c.l.b16 %v6191
  %v6480 = vunpack.c.l.b16 %v6192
  %v6481 = vunpack.c.l.b16 %v6193
  %v6482 = vunpack.c.l.b16 %v6194
  %v6483 = vunpack.c.l.b16 %v6195
  %v6484 = vunpack.c.l.b16 %v6196
  %v6485 = vunpack.c.l.b16 %v6197
  %v6486 = vunpack.c.l.b16 %v6198
  %v6487 = vunpack.c.l.b16 %v6199
  %v6488 = vunpack.c.l.b16 %v6200
  %v6489 = vunpack.c.l.b16 %v6201
  %v6490 = vunpack.c.l.b16 %v6202
  %v6491 = vunpack.c.l.b16 %v6203
  %v6492 = vunpack.c.l.b16 %v6204
  %v6493 = vunpack.c.l.b16 %v6205
  %v6494 = vunpack.c.l.b16 %v6206
  %v6495 = vunpack.c.l.b16 %v6207
  %v6496 = vunpack.c.l.b16 %v6208
  %v6497 = vunpack.c.l.b16 %v6209
  %v6498 = vunpack.c.l.b16 %v6210
  %v6499 = vunpack.c.l.b16 %v6211
  %v6500 = vunpack.c.l.b16 %v6212
  %v6501 = vunpack.c.l.b16 %v6213
  %v6502 = vunpack.c.l.b16 %v6214
  %v6503 = vunpack.c.l.b16 %v6215
  %v6504 = vunpack.c.l.b16 %v6216
  %v6505 = vunpack.c.l.b16 %v6217
  %v6506 = vunpack.c.l.b16 %v6218
  %v6507 = vunpack.c.l.b16 %v6219
  %v6508 = vunpack.c.l.b16 %v6220
  %v6509 = vunpack.c.l.b16 %v6221
  %v6510 = vunpack.c.l.b16 %v6222
  %v6511 = vunpack.c.l.b16 %v6223
  %v6512 = vunpack.c.l.b16 %v6224
  %v6513 = vunpack.c.l.b16 %v6225
  %v6514 = vpack.c.b16 %v6371, %v6370
  %v6515 = vpack.c.b16 %v6373, %v6372
  %v6516 = vpack.c.b16 %v6375, %v6374
  %v6517 = vpack.c.b16 %v6377, %v6376
  %v6518 = vpack.c.b16 %v6379, %v6378
  %v6519 = vpack.c.b16 %v6381, %v6380
  %v6520 = vpack.c.b16 %v6383, %v6382
  %v6521 = vpack.c.b16 %v6385, %v6384
  %v6522 = vpack.c.b16 %v6387, %v6386
  %v6523 = vpack.c.b16 %v6389, %v6388
  %v6524 = vpack.c.b16 %v6391, %v6390
  %v6525 = vpack.c.b16 %v6393, %v6392
  %v6526 = vpack.c.b16 %v6395, %v6394
  %v6527 = vpack.c.b16 %v6397, %v6396
  %v6528 = vpack.c.b16 %v6399, %v6398
  %v6529 = vpack.c.b16 %v6401, %v6400
  %v6530 = vpack.c.b16 %v6403, %v6402
  %v6531 = vpack.c.b16 %v6405, %v6404
  %v6532 = vpack.c.b16 %v6407, %v6406
  %v6533 = vpack.c.b16 %v6409, %v6408
  %v6534 = vpack.c.b16 %v6411, %v6410
  %v6535 = vpack.c.b16 %v6413, %v6412
  %v6536 = vpack.c.b16 %v6415, %v6414
  %v6537 = vpack.c.b16 %v6417, %v6416
  %v6538 = vpack.c.b16 %v6419, %v6418
  %v6539 = vpack.c.b16 %v6421, %v6420
  %v6540 = vpack.c.b16 %v6423, %v6422
  %v6541 = vpack.c.b16 %v6425, %v6424
  %v6542 = vpack.c.b16 %v6427, %v6426
  %v6543 = vpack.c.b16 %v6429, %v6428
  %v6544 = vpack.c.b16 %v6431, %v6430
  %v6545 = vpack.c.b16 %v6433, %v6432
  %v6546 = vpack.c.b16 %v6435, %v6434
  %v6547 = vpack.c.b16 %v6437, %v6436
  %v6548 = vpack.c.b16 %v6439, %v6438
  %v6549 = vpack.c.b16 %v6441, %v6440
  %v6550 = vpack.c.b16 %v6443, %v6442
  %v6551 = vpack.c.b16 %v6445, %v6444
  %v6552 = vpack.c.b16 %v6447, %v6446
  %v6553 = vpack.c.b16 %v6449, %v6448
  %v6554 = vpack.c.b16 %v6451, %v6450
  %v6555 = vpack.c.b16 %v6453, %v6452
  %v6556 = vpack.c.b16 %v6455, %v6454
  %v6557 = vpack.c.b16 %v6457, %v6456
  %v6558 = vpack.c.b16 %v6459, %v6458
  %v6559 = vpack.c.b16 %v6461, %v6460
  %v6560 = vpack.c.b16 %v6463, %v6462
  %v6561 = vpack.c.b16 %v6465, %v6464
  %v6562 = vpack.c.b16 %v6467, %v6466
  %v6563 = vpack.c.b16 %v6469, %v6468
  %v6564 = vpack.c.b16 %v6471, %v6470
  %v6565 = vpack.c.b16 %v6473, %v6472
  %v6566 = vpack.c.b16 %v6475, %v6474
  %v6567 = vpack.c.b16 %v6477, %v6476
  %v6568 = vpack.c.b16 %v6479, %v6478
  %v6569 = vpack.c.b16 %v6481, %v6480
  %v6570 = vpack.c.b16 %v6483, %v6482
  %v6571 = vpack.c.b16 %v6485, %v6484
  %v6572 = vpack.c.b16 %v6487, %v6486
  %v6573 = vpack.c.b16 %v6489, %v6488
  %v6574 = vpack.c.b16 %v6491, %v6490
  %v6575 = vpack.c.b16 %v6493, %v6492
  %v6576 = vpack.c.b16 %v6495, %v6494
  %v6577 = vpack.c.b16 %v6497, %v6496
  %v6578 = vpack.c.b16 %v6499, %v6498
  %v6579 = vpack.c.b16 %v6501, %v6500
  %v6580 = vpack.c.b16 %v6503, %v6502
  %v6581 = vpack.c.b16 %v6505, %v6504
  %v6582 = vpack.c.b16 %v6507, %v6506
  %v6583 = vpack.c.b16 %v6509, %v6508
  %v6584 = vpack.c.b16 %v6511, %v6510
  %v6585 = vpack.c.b16 %v6513, %v6512
  %6658 = vmatpush.bf16.msra.mxu0 %v6521
  %6659 = vmatpush.bf16.msra.mxu0 %v6520
  %6660 = vmatpush.bf16.msra.mxu0 %v6519
  %6661 = vmatpush.bf16.msra.mxu0 %v6518
  %6662 = vmatpush.bf16.msra.mxu0 %v6517
  %6663 = vmatpush.bf16.msra.mxu0 %v6516
  %6664 = vmatpush.bf16.msra.mxu0 %v6515
  %6665 = vmatpush.bf16.msra.mxu0 %v6514
  %6666 = vmatmul.bf16.gmra.mxu0 %v4482
  %v6667 = vpop.f32.mrf.mxu0
  %v6668 = vadd.f32 0.0, %v6667
  %v6669 = vpop.f32.mrf.mxu0
  %v6670 = vadd.f32 0.0, %v6669
  %6671 = vmatmul.bf16.gmra.mxu0 %v4483
  %v6672 = vpop.f32.mrf.mxu0
  %v6673 = vadd.f32 0.0, %v6672
  %v6674 = vpop.f32.mrf.mxu0
  %v6675 = vadd.f32 0.0, %v6674
  %6676 = vmatmul.bf16.gmra.mxu0 %v4484
  %v6677 = vpop.f32.mrf.mxu0
  %v6678 = vadd.f32 0.0, %v6677
  %v6679 = vpop.f32.mrf.mxu0
  %v6680 = vadd.f32 0.0, %v6679
  %6681 = vmatmul.bf16.gmra.mxu0 %v4485
  %v6682 = vpop.f32.mrf.mxu0
  %v6683 = vadd.f32 0.0, %v6682
  %v6684 = vpop.f32.mrf.mxu0
  %v6685 = vadd.f32 0.0, %v6684
  %6686 = vmatmul.bf16.gmra.mxu0 %v4486
  %v6687 = vpop.f32.mrf.mxu0
  %v6688 = vadd.f32 0.0, %v6687
  %v6689 = vpop.f32.mrf.mxu0
  %v6690 = vadd.f32 0.0, %v6689
  %6691 = vmatmul.bf16.gmra.mxu0 %v4487
  %v6692 = vpop.f32.mrf.mxu0
  %v6693 = vadd.f32 0.0, %v6692
  %v6694 = vpop.f32.mrf.mxu0
  %v6695 = vadd.f32 0.0, %v6694
  %6696 = vmatmul.bf16.gmra.mxu0 %v4488
  %v6697 = vpop.f32.mrf.mxu0
  %v6698 = vadd.f32 0.0, %v6697
  %v6699 = vpop.f32.mrf.mxu0
  %v6700 = vadd.f32 0.0, %v6699
  %6701 = vmatmul.bf16.gmra.mxu0 %v4489
  %v6702 = vpop.f32.mrf.mxu0
  %v6703 = vadd.f32 0.0, %v6702
  %v6704 = vpop.f32.mrf.mxu0
  %v6705 = vadd.f32 0.0, %v6704
  %6706 = vmatmul.bf16.gmra.mxu0 %v4490
  %v6707 = vpop.f32.mrf.mxu0
  %v6708 = vadd.f32 0.0, %v6707
  %v6709 = vpop.f32.mrf.mxu0
  %v6710 = vadd.f32 0.0, %v6709
  %6711 = vmatmul.bf16.gmra.mxu0 %v4491
  %v6712 = vpop.f32.mrf.mxu0
  %v6713 = vadd.f32 0.0, %v6712
  %v6714 = vpop.f32.mrf.mxu0
  %v6715 = vadd.f32 0.0, %v6714
  %6716 = vmatmul.bf16.gmra.mxu0 %v4492
  %v6717 = vpop.f32.mrf.mxu0
  %v6718 = vadd.f32 0.0, %v6717
  %v6719 = vpop.f32.mrf.mxu0
  %v6720 = vadd.f32 0.0, %v6719
  %6721 = vmatmul.bf16.gmra.mxu0 %v4493
  %v6722 = vpop.f32.mrf.mxu0
  %v6723 = vadd.f32 0.0, %v6722
  %v6724 = vpop.f32.mrf.mxu0
  %v6725 = vadd.f32 0.0, %v6724
  %6726 = vmatmul.bf16.gmra.mxu0 %v4494
  %v6727 = vpop.f32.mrf.mxu0
  %v6728 = vadd.f32 0.0, %v6727
  %v6729 = vpop.f32.mrf.mxu0
  %v6730 = vadd.f32 0.0, %v6729
  %6731 = vmatmul.bf16.gmra.mxu0 %v4495
  %v6732 = vpop.f32.mrf.mxu0
  %v6733 = vadd.f32 0.0, %v6732
  %v6734 = vpop.f32.mrf.mxu0
  %v6735 = vadd.f32 0.0, %v6734
  %6736 = vmatmul.bf16.gmra.mxu0 %v4496
  %v6737 = vpop.f32.mrf.mxu0
  %v6738 = vadd.f32 0.0, %v6737
  %v6739 = vpop.f32.mrf.mxu0
  %v6740 = vadd.f32 0.0, %v6739
  %6741 = vmatmul.bf16.gmra.mxu0 %v4497
  %v6742 = vpop.f32.mrf.mxu0
  %v6743 = vadd.f32 0.0, %v6742
  %v6744 = vpop.f32.mrf.mxu0
  %v6745 = vadd.f32 0.0, %v6744
  %6746 = vmatmul.bf16.gmra.mxu0 %v4498
  %v6747 = vpop.f32.mrf.mxu0
  %v6748 = vadd.f32 0.0, %v6747
  %v6749 = vpop.f32.mrf.mxu0
  %v6750 = vadd.f32 0.0, %v6749
  %6751 = vmatmul.bf16.gmra.mxu0 %v4499
  %v6752 = vpop.f32.mrf.mxu0
  %v6753 = vadd.f32 0.0, %v6752
  %v6754 = vpop.f32.mrf.mxu0
  %v6755 = vadd.f32 0.0, %v6754
  %6756 = vmatmul.bf16.gmra.mxu0 %v4500
  %v6757 = vpop.f32.mrf.mxu0
  %v6758 = vadd.f32 0.0, %v6757
  %v6759 = vpop.f32.mrf.mxu0
  %v6760 = vadd.f32 0.0, %v6759
  %6761 = vmatmul.bf16.gmra.mxu0 %v4501
  %v6762 = vpop.f32.mrf.mxu0
  %v6763 = vadd.f32 0.0, %v6762
  %v6764 = vpop.f32.mrf.mxu0
  %v6765 = vadd.f32 0.0, %v6764
  %6766 = vmatmul.bf16.gmra.mxu0 %v4502
  %v6767 = vpop.f32.mrf.mxu0
  %v6768 = vadd.f32 0.0, %v6767
  %v6769 = vpop.f32.mrf.mxu0
  %v6770 = vadd.f32 0.0, %v6769
  %6771 = vmatmul.bf16.gmra.mxu0 %v4503
  %v6772 = vpop.f32.mrf.mxu0
  %v6773 = vadd.f32 0.0, %v6772
  %v6774 = vpop.f32.mrf.mxu0
  %v6775 = vadd.f32 0.0, %v6774
  %6776 = vmatmul.bf16.gmra.mxu0 %v4504
  %v6777 = vpop.f32.mrf.mxu0
  %v6778 = vadd.f32 0.0, %v6777
  %v6779 = vpop.f32.mrf.mxu0
  %v6780 = vadd.f32 0.0, %v6779
  %6781 = vmatmul.bf16.gmra.mxu0 %v4505
  %v6782 = vpop.f32.mrf.mxu0
  %v6783 = vadd.f32 0.0, %v6782
  %v6784 = vpop.f32.mrf.mxu0
  %v6785 = vadd.f32 0.0, %v6784
  %6786 = vmatmul.bf16.gmra.mxu0 %v4506
  %v6787 = vpop.f32.mrf.mxu0
  %v6788 = vadd.f32 0.0, %v6787
  %v6789 = vpop.f32.mrf.mxu0
  %v6790 = vadd.f32 0.0, %v6789
  %6791 = vmatmul.bf16.gmra.mxu0 %v4507
  %v6792 = vpop.f32.mrf.mxu0
  %v6793 = vadd.f32 0.0, %v6792
  %v6794 = vpop.f32.mrf.mxu0
  %v6795 = vadd.f32 0.0, %v6794
  %6796 = vmatmul.bf16.gmra.mxu0 %v4508
  %v6797 = vpop.f32.mrf.mxu0
  %v6798 = vadd.f32 0.0, %v6797
  %v6799 = vpop.f32.mrf.mxu0
  %v6800 = vadd.f32 0.0, %v6799
  %6801 = vmatmul.bf16.gmra.mxu0 %v4509
  %v6802 = vpop.f32.mrf.mxu0
  %v6803 = vadd.f32 0.0, %v6802
  %v6804 = vpop.f32.mrf.mxu0
  %v6805 = vadd.f32 0.0, %v6804
  %6806 = vmatmul.bf16.gmra.mxu0 %v4510
  %v6807 = vpop.f32.mrf.mxu0
  %v6808 = vadd.f32 0.0, %v6807
  %v6809 = vpop.f32.mrf.mxu0
  %v6810 = vadd.f32 0.0, %v6809
  %6811 = vmatmul.bf16.gmra.mxu0 %v4511
  %v6812 = vpop.f32.mrf.mxu0
  %v6813 = vadd.f32 0.0, %v6812
  %v6814 = vpop.f32.mrf.mxu0
  %v6815 = vadd.f32 0.0, %v6814
  %6816 = vmatmul.bf16.gmra.mxu0 %v4512
  %v6817 = vpop.f32.mrf.mxu0
  %v6818 = vadd.f32 0.0, %v6817
  %v6819 = vpop.f32.mrf.mxu0
  %v6820 = vadd.f32 0.0, %v6819
  %6821 = vmatmul.bf16.gmra.mxu0 %v4513
  %v6822 = vpop.f32.mrf.mxu0
  %v6823 = vadd.f32 0.0, %v6822
  %v6824 = vpop.f32.mrf.mxu0
  %v6825 = vadd.f32 0.0, %v6824
  %6826 = vdwg.mxu0
  %6827 = vmatpush.bf16.msra.mxu0 %v6529
  %6828 = vmatpush.bf16.msra.mxu0 %v6528
  %6829 = vmatpush.bf16.msra.mxu0 %v6527
  %6830 = vmatpush.bf16.msra.mxu0 %v6526
  %6831 = vmatpush.bf16.msra.mxu0 %v6525
  %6832 = vmatpush.bf16.msra.mxu0 %v6524
  %6833 = vmatpush.bf16.msra.mxu0 %v6523
  %6834 = vmatpush.bf16.msra.mxu0 %v6522
  %6835 = vmatmul.bf16.gmra.mxu0 %v4674
  %v6836 = vpop.f32.mrf.mxu0
  %v6837 = vadd.f32 %v6668, %v6836
  %v6838 = vpop.f32.mrf.mxu0
  %v6839 = vadd.f32 %v6670, %v6838
  %6840 = vmatmul.bf16.gmra.mxu0 %v4675
  %v6841 = vpop.f32.mrf.mxu0
  %v6842 = vadd.f32 %v6673, %v6841
  %v6843 = vpop.f32.mrf.mxu0
  %v6844 = vadd.f32 %v6675, %v6843
  %6845 = vmatmul.bf16.gmra.mxu0 %v4676
  %v6846 = vpop.f32.mrf.mxu0
  %v6847 = vadd.f32 %v6678, %v6846
  %v6848 = vpop.f32.mrf.mxu0
  %v6849 = vadd.f32 %v6680, %v6848
  %6850 = vmatmul.bf16.gmra.mxu0 %v4677
  %v6851 = vpop.f32.mrf.mxu0
  %v6852 = vadd.f32 %v6683, %v6851
  %v6853 = vpop.f32.mrf.mxu0
  %v6854 = vadd.f32 %v6685, %v6853
  %6855 = vmatmul.bf16.gmra.mxu0 %v4678
  %v6856 = vpop.f32.mrf.mxu0
  %v6857 = vadd.f32 %v6688, %v6856
  %v6858 = vpop.f32.mrf.mxu0
  %v6859 = vadd.f32 %v6690, %v6858
  %6860 = vmatmul.bf16.gmra.mxu0 %v4679
  %v6861 = vpop.f32.mrf.mxu0
  %v6862 = vadd.f32 %v6693, %v6861
  %v6863 = vpop.f32.mrf.mxu0
  %v6864 = vadd.f32 %v6695, %v6863
  %6865 = vmatmul.bf16.gmra.mxu0 %v4680
  %v6866 = vpop.f32.mrf.mxu0
  %v6867 = vadd.f32 %v6698, %v6866
  %v6868 = vpop.f32.mrf.mxu0
  %v6869 = vadd.f32 %v6700, %v6868
  %6870 = vmatmul.bf16.gmra.mxu0 %v4681
  %v6871 = vpop.f32.mrf.mxu0
  %v6872 = vadd.f32 %v6703, %v6871
  %v6873 = vpop.f32.mrf.mxu0
  %v6874 = vadd.f32 %v6705, %v6873
  %6875 = vmatmul.bf16.gmra.mxu0 %v4682
  %v6876 = vpop.f32.mrf.mxu0
  %v6877 = vadd.f32 %v6708, %v6876
  %v6878 = vpop.f32.mrf.mxu0
  %v6879 = vadd.f32 %v6710, %v6878
  %6880 = vmatmul.bf16.gmra.mxu0 %v4683
  %v6881 = vpop.f32.mrf.mxu0
  %v6882 = vadd.f32 %v6713, %v6881
  %v6883 = vpop.f32.mrf.mxu0
  %v6884 = vadd.f32 %v6715, %v6883
  %6885 = vmatmul.bf16.gmra.mxu0 %v4684
  %v6886 = vpop.f32.mrf.mxu0
  %v6887 = vadd.f32 %v6718, %v6886
  %v6888 = vpop.f32.mrf.mxu0
  %v6889 = vadd.f32 %v6720, %v6888
  %6890 = vmatmul.bf16.gmra.mxu0 %v4685
  %v6891 = vpop.f32.mrf.mxu0
  %v6892 = vadd.f32 %v6723, %v6891
  %v6893 = vpop.f32.mrf.mxu0
  %v6894 = vadd.f32 %v6725, %v6893
  %6895 = vmatmul.bf16.gmra.mxu0 %v4686
  %v6896 = vpop.f32.mrf.mxu0
  %v6897 = vadd.f32 %v6728, %v6896
  %v6898 = vpop.f32.mrf.mxu0
  %v6899 = vadd.f32 %v6730, %v6898
  %6900 = vmatmul.bf16.gmra.mxu0 %v4687
  %v6901 = vpop.f32.mrf.mxu0
  %v6902 = vadd.f32 %v6733, %v6901
  %v6903 = vpop.f32.mrf.mxu0
  %v6904 = vadd.f32 %v6735, %v6903
  %6905 = vmatmul.bf16.gmra.mxu0 %v4688
  %v6906 = vpop.f32.mrf.mxu0
  %v6907 = vadd.f32 %v6738, %v6906
  %v6908 = vpop.f32.mrf.mxu0
  %v6909 = vadd.f32 %v6740, %v6908
  %6910 = vmatmul.bf16.gmra.mxu0 %v4689
  %v6911 = vpop.f32.mrf.mxu0
  %v6912 = vadd.f32 %v6743, %v6911
  %v6913 = vpop.f32.mrf.mxu0
  %v6914 = vadd.f32 %v6745, %v6913
  %6915 = vmatmul.bf16.gmra.mxu0 %v4690
  %v6916 = vpop.f32.mrf.mxu0
  %v6917 = vadd.f32 %v6748, %v6916
  %v6918 = vpop.f32.mrf.mxu0
  %v6919 = vadd.f32 %v6750, %v6918
  %6920 = vmatmul.bf16.gmra.mxu0 %v4691
  %v6921 = vpop.f32.mrf.mxu0
  %v6922 = vadd.f32 %v6753, %v6921
  %v6923 = vpop.f32.mrf.mxu0
  %v6924 = vadd.f32 %v6755, %v6923
  %6925 = vmatmul.bf16.gmra.mxu0 %v4692
  %v6926 = vpop.f32.mrf.mxu0
  %v6927 = vadd.f32 %v6758, %v6926
  %v6928 = vpop.f32.mrf.mxu0
  %v6929 = vadd.f32 %v6760, %v6928
  %6930 = vmatmul.bf16.gmra.mxu0 %v4693
  %v6931 = vpop.f32.mrf.mxu0
  %v6932 = vadd.f32 %v6763, %v6931
  %v6933 = vpop.f32.mrf.mxu0
  %v6934 = vadd.f32 %v6765, %v6933
  %6935 = vmatmul.bf16.gmra.mxu0 %v4694
  %v6936 = vpop.f32.mrf.mxu0
  %v6937 = vadd.f32 %v6768, %v6936
  %v6938 = vpop.f32.mrf.mxu0
  %v6939 = vadd.f32 %v6770, %v6938
  %6940 = vmatmul.bf16.gmra.mxu0 %v4695
  %v6941 = vpop.f32.mrf.mxu0
  %v6942 = vadd.f32 %v6773, %v6941
  %v6943 = vpop.f32.mrf.mxu0
  %v6944 = vadd.f32 %v6775, %v6943
  %6945 = vmatmul.bf16.gmra.mxu0 %v4696
  %v6946 = vpop.f32.mrf.mxu0
  %v6947 = vadd.f32 %v6778, %v6946
  %v6948 = vpop.f32.mrf.mxu0
  %v6949 = vadd.f32 %v6780, %v6948
  %6950 = vmatmul.bf16.gmra.mxu0 %v4697
  %v6951 = vpop.f32.mrf.mxu0
  %v6952 = vadd.f32 %v6783, %v6951
  %v6953 = vpop.f32.mrf.mxu0
  %v6954 = vadd.f32 %v6785, %v6953
  %6955 = vmatmul.bf16.gmra.mxu0 %v4698
  %v6956 = vpop.f32.mrf.mxu0
  %v6957 = vadd.f32 %v6788, %v6956
  %v6958 = vpop.f32.mrf.mxu0
  %v6959 = vadd.f32 %v6790, %v6958
  %6960 = vmatmul.bf16.gmra.mxu0 %v4699
  %v6961 = vpop.f32.mrf.mxu0
  %v6962 = vadd.f32 %v6793, %v6961
  %v6963 = vpop.f32.mrf.mxu0
  %v6964 = vadd.f32 %v6795, %v6963
  %6965 = vmatmul.bf16.gmra.mxu0 %v4700
  %v6966 = vpop.f32.mrf.mxu0
  %v6967 = vadd.f32 %v6798, %v6966
  %v6968 = vpop.f32.mrf.mxu0
  %v6969 = vadd.f32 %v6800, %v6968
  %6970 = vmatmul.bf16.gmra.mxu0 %v4701
  %v6971 = vpop.f32.mrf.mxu0
  %v6972 = vadd.f32 %v6803, %v6971
  %v6973 = vpop.f32.mrf.mxu0
  %v6974 = vadd.f32 %v6805, %v6973
  %6975 = vmatmul.bf16.gmra.mxu0 %v4702
  %v6976 = vpop.f32.mrf.mxu0
  %v6977 = vadd.f32 %v6808, %v6976
  %v6978 = vpop.f32.mrf.mxu0
  %v6979 = vadd.f32 %v6810, %v6978
  %6980 = vmatmul.bf16.gmra.mxu0 %v4703
  %v6981 = vpop.f32.mrf.mxu0
  %v6982 = vadd.f32 %v6813, %v6981
  %v6983 = vpop.f32.mrf.mxu0
  %v6984 = vadd.f32 %v6815, %v6983
  %6985 = vmatmul.bf16.gmra.mxu0 %v4704
  %v6986 = vpop.f32.mrf.mxu0
  %v6987 = vadd.f32 %v6818, %v6986
  %v6988 = vpop.f32.mrf.mxu0
  %v6989 = vadd.f32 %v6820, %v6988
  %6990 = vmatmul.bf16.gmra.mxu0 %v4705
  %v6991 = vpop.f32.mrf.mxu0
  %v6992 = vadd.f32 %v6823, %v6991
  %v6993 = vpop.f32.mrf.mxu0
  %v6994 = vadd.f32 %v6825, %v6993
  %6995 = vdwg.mxu0
  %6996 = vmatpush.bf16.msra.mxu0 %v6537
  %6997 = vmatpush.bf16.msra.mxu0 %v6536
  %6998 = vmatpush.bf16.msra.mxu0 %v6535
  %6999 = vmatpush.bf16.msra.mxu0 %v6534
  %7000 = vmatpush.bf16.msra.mxu0 %v6533
  %7001 = vmatpush.bf16.msra.mxu0 %v6532
  %7002 = vmatpush.bf16.msra.mxu0 %v6531
  %7003 = vmatpush.bf16.msra.mxu0 %v6530
  %7004 = vmatmul.bf16.gmra.mxu0 %v4866
  %v7005 = vpop.f32.mrf.mxu0
  %v7006 = vadd.f32 %v6837, %v7005
  %v7007 = vpop.f32.mrf.mxu0
  %v7008 = vadd.f32 %v6839, %v7007
  %7009 = vmatmul.bf16.gmra.mxu0 %v4867
  %v7010 = vpop.f32.mrf.mxu0
  %v7011 = vadd.f32 %v6842, %v7010
  %v7012 = vpop.f32.mrf.mxu0
  %v7013 = vadd.f32 %v6844, %v7012
  %7014 = vmatmul.bf16.gmra.mxu0 %v4868
  %v7015 = vpop.f32.mrf.mxu0
  %v7016 = vadd.f32 %v6847, %v7015
  %v7017 = vpop.f32.mrf.mxu0
  %v7018 = vadd.f32 %v6849, %v7017
  %7019 = vmatmul.bf16.gmra.mxu0 %v4869
  %v7020 = vpop.f32.mrf.mxu0
  %v7021 = vadd.f32 %v6852, %v7020
  %v7022 = vpop.f32.mrf.mxu0
  %v7023 = vadd.f32 %v6854, %v7022
  %7024 = vmatmul.bf16.gmra.mxu0 %v4870
  %v7025 = vpop.f32.mrf.mxu0
  %v7026 = vadd.f32 %v6857, %v7025
  %v7027 = vpop.f32.mrf.mxu0
  %v7028 = vadd.f32 %v6859, %v7027
  %7029 = vmatmul.bf16.gmra.mxu0 %v4871
  %v7030 = vpop.f32.mrf.mxu0
  %v7031 = vadd.f32 %v6862, %v7030
  %v7032 = vpop.f32.mrf.mxu0
  %v7033 = vadd.f32 %v6864, %v7032
  %7034 = vmatmul.bf16.gmra.mxu0 %v4872
  %v7035 = vpop.f32.mrf.mxu0
  %v7036 = vadd.f32 %v6867, %v7035
  %v7037 = vpop.f32.mrf.mxu0
  %v7038 = vadd.f32 %v6869, %v7037
  %7039 = vmatmul.bf16.gmra.mxu0 %v4873
  %v7040 = vpop.f32.mrf.mxu0
  %v7041 = vadd.f32 %v6872, %v7040
  %v7042 = vpop.f32.mrf.mxu0
  %v7043 = vadd.f32 %v6874, %v7042
  %7044 = vmatmul.bf16.gmra.mxu0 %v4874
  %v7045 = vpop.f32.mrf.mxu0
  %v7046 = vadd.f32 %v6877, %v7045
  %v7047 = vpop.f32.mrf.mxu0
  %v7048 = vadd.f32 %v6879, %v7047
  %7049 = vmatmul.bf16.gmra.mxu0 %v4875
  %v7050 = vpop.f32.mrf.mxu0
  %v7051 = vadd.f32 %v6882, %v7050
  %v7052 = vpop.f32.mrf.mxu0
  %v7053 = vadd.f32 %v6884, %v7052
  %7054 = vmatmul.bf16.gmra.mxu0 %v4876
  %v7055 = vpop.f32.mrf.mxu0
  %v7056 = vadd.f32 %v6887, %v7055
  %v7057 = vpop.f32.mrf.mxu0
  %v7058 = vadd.f32 %v6889, %v7057
  %7059 = vmatmul.bf16.gmra.mxu0 %v4877
  %v7060 = vpop.f32.mrf.mxu0
  %v7061 = vadd.f32 %v6892, %v7060
  %v7062 = vpop.f32.mrf.mxu0
  %v7063 = vadd.f32 %v6894, %v7062
  %7064 = vmatmul.bf16.gmra.mxu0 %v4878
  %v7065 = vpop.f32.mrf.mxu0
  %v7066 = vadd.f32 %v6897, %v7065
  %v7067 = vpop.f32.mrf.mxu0
  %v7068 = vadd.f32 %v6899, %v7067
  %7069 = vmatmul.bf16.gmra.mxu0 %v4879
  %v7070 = vpop.f32.mrf.mxu0
  %v7071 = vadd.f32 %v6902, %v7070
  %v7072 = vpop.f32.mrf.mxu0
  %v7073 = vadd.f32 %v6904, %v7072
  %7074 = vmatmul.bf16.gmra.mxu0 %v4880
  %v7075 = vpop.f32.mrf.mxu0
  %v7076 = vadd.f32 %v6907, %v7075
  %v7077 = vpop.f32.mrf.mxu0
  %v7078 = vadd.f32 %v6909, %v7077
  %7079 = vmatmul.bf16.gmra.mxu0 %v4881
  %v7080 = vpop.f32.mrf.mxu0
  %v7081 = vadd.f32 %v6912, %v7080
  %v7082 = vpop.f32.mrf.mxu0
  %v7083 = vadd.f32 %v6914, %v7082
  %7084 = vmatmul.bf16.gmra.mxu0 %v4882
  %v7085 = vpop.f32.mrf.mxu0
  %v7086 = vadd.f32 %v6917, %v7085
  %v7087 = vpop.f32.mrf.mxu0
  %v7088 = vadd.f32 %v6919, %v7087
  %7089 = vmatmul.bf16.gmra.mxu0 %v4883
  %v7090 = vpop.f32.mrf.mxu0
  %v7091 = vadd.f32 %v6922, %v7090
  %v7092 = vpop.f32.mrf.mxu0
  %v7093 = vadd.f32 %v6924, %v7092
  %7094 = vmatmul.bf16.gmra.mxu0 %v4884
  %v7095 = vpop.f32.mrf.mxu0
  %v7096 = vadd.f32 %v6927, %v7095
  %v7097 = vpop.f32.mrf.mxu0
  %v7098 = vadd.f32 %v6929, %v7097
  %7099 = vmatmul.bf16.gmra.mxu0 %v4885
  %v7100 = vpop.f32.mrf.mxu0
  %v7101 = vadd.f32 %v6932, %v7100
  %v7102 = vpop.f32.mrf.mxu0
  %v7103 = vadd.f32 %v6934, %v7102
  %7104 = vmatmul.bf16.gmra.mxu0 %v4886
  %v7105 = vpop.f32.mrf.mxu0
  %v7106 = vadd.f32 %v6937, %v7105
  %v7107 = vpop.f32.mrf.mxu0
  %v7108 = vadd.f32 %v6939, %v7107
  %7109 = vmatmul.bf16.gmra.mxu0 %v4887
  %v7110 = vpop.f32.mrf.mxu0
  %v7111 = vadd.f32 %v6942, %v7110
  %v7112 = vpop.f32.mrf.mxu0
  %v7113 = vadd.f32 %v6944, %v7112
  %7114 = vmatmul.bf16.gmra.mxu0 %v4888
  %v7115 = vpop.f32.mrf.mxu0
  %v7116 = vadd.f32 %v6947, %v7115
  %v7117 = vpop.f32.mrf.mxu0
  %v7118 = vadd.f32 %v6949, %v7117
  %7119 = vmatmul.bf16.gmra.mxu0 %v4889
  %v7120 = vpop.f32.mrf.mxu0
  %v7121 = vadd.f32 %v6952, %v7120
  %v7122 = vpop.f32.mrf.mxu0
  %v7123 = vadd.f32 %v6954, %v7122
  %7124 = vmatmul.bf16.gmra.mxu0 %v4890
  %v7125 = vpop.f32.mrf.mxu0
  %v7126 = vadd.f32 %v6957, %v7125
  %v7127 = vpop.f32.mrf.mxu0
  %v7128 = vadd.f32 %v6959, %v7127
  %7129 = vmatmul.bf16.gmra.mxu0 %v4891
  %v7130 = vpop.f32.mrf.mxu0
  %v7131 = vadd.f32 %v6962, %v7130
  %v7132 = vpop.f32.mrf.mxu0
  %v7133 = vadd.f32 %v6964, %v7132
  %7134 = vmatmul.bf16.gmra.mxu0 %v4892
  %v7135 = vpop.f32.mrf.mxu0
  %v7136 = vadd.f32 %v6967, %v7135
  %v7137 = vpop.f32.mrf.mxu0
  %v7138 = vadd.f32 %v6969, %v7137
  %7139 = vmatmul.bf16.gmra.mxu0 %v4893
  %v7140 = vpop.f32.mrf.mxu0
  %v7141 = vadd.f32 %v6972, %v7140
  %v7142 = vpop.f32.mrf.mxu0
  %v7143 = vadd.f32 %v6974, %v7142
  %7144 = vmatmul.bf16.gmra.mxu0 %v4894
  %v7145 = vpop.f32.mrf.mxu0
  %v7146 = vadd.f32 %v6977, %v7145
  %v7147 = vpop.f32.mrf.mxu0
  %v7148 = vadd.f32 %v6979, %v7147
  %7149 = vmatmul.bf16.gmra.mxu0 %v4895
  %v7150 = vpop.f32.mrf.mxu0
  %v7151 = vadd.f32 %v6982, %v7150
  %v7152 = vpop.f32.mrf.mxu0
  %v7153 = vadd.f32 %v6984, %v7152
  %7154 = vmatmul.bf16.gmra.mxu0 %v4896
  %v7155 = vpop.f32.mrf.mxu0
  %v7156 = vadd.f32 %v6987, %v7155
  %v7157 = vpop.f32.mrf.mxu0
  %v7158 = vadd.f32 %v6989, %v7157
  %7159 = vmatmul.bf16.gmra.mxu0 %v4897
  %v7160 = vpop.f32.mrf.mxu0
  %v7161 = vadd.f32 %v6992, %v7160
  %v7162 = vpop.f32.mrf.mxu0
  %v7163 = vadd.f32 %v6994, %v7162
  %7164 = vdwg.mxu0
  %7165 = vmatpush.bf16.msra.mxu0 %v6545
  %7166 = vmatpush.bf16.msra.mxu0 %v6544
  %7167 = vmatpush.bf16.msra.mxu0 %v6543
  %7168 = vmatpush.bf16.msra.mxu0 %v6542
  %7169 = vmatpush.bf16.msra.mxu0 %v6541
  %7170 = vmatpush.bf16.msra.mxu0 %v6540
  %7171 = vmatpush.bf16.msra.mxu0 %v6539
  %7172 = vmatpush.bf16.msra.mxu0 %v6538
  %7173 = vmatmul.bf16.gmra.mxu0 %v5058
  %v7174 = vpop.f32.mrf.mxu0
  %v7175 = vadd.f32 %v7006, %v7174
  %v7176 = vpop.f32.mrf.mxu0
  %v7177 = vadd.f32 %v7008, %v7176
  %7178 = vmatmul.bf16.gmra.mxu0 %v5059
  %v7179 = vpop.f32.mrf.mxu0
  %v7180 = vadd.f32 %v7011, %v7179
  %v7181 = vpop.f32.mrf.mxu0
  %v7182 = vadd.f32 %v7013, %v7181
  %7183 = vmatmul.bf16.gmra.mxu0 %v5060
  %v7184 = vpop.f32.mrf.mxu0
  %v7185 = vadd.f32 %v7016, %v7184
  %v7186 = vpop.f32.mrf.mxu0
  %v7187 = vadd.f32 %v7018, %v7186
  %7188 = vmatmul.bf16.gmra.mxu0 %v5061
  %v7189 = vpop.f32.mrf.mxu0
  %v7190 = vadd.f32 %v7021, %v7189
  %v7191 = vpop.f32.mrf.mxu0
  %v7192 = vadd.f32 %v7023, %v7191
  %7193 = vmatmul.bf16.gmra.mxu0 %v5062
  %v7194 = vpop.f32.mrf.mxu0
  %v7195 = vadd.f32 %v7026, %v7194
  %v7196 = vpop.f32.mrf.mxu0
  %v7197 = vadd.f32 %v7028, %v7196
  %7198 = vmatmul.bf16.gmra.mxu0 %v5063
  %v7199 = vpop.f32.mrf.mxu0
  %v7200 = vadd.f32 %v7031, %v7199
  %v7201 = vpop.f32.mrf.mxu0
  %v7202 = vadd.f32 %v7033, %v7201
  %7203 = vmatmul.bf16.gmra.mxu0 %v5064
  %v7204 = vpop.f32.mrf.mxu0
  %v7205 = vadd.f32 %v7036, %v7204
  %v7206 = vpop.f32.mrf.mxu0
  %v7207 = vadd.f32 %v7038, %v7206
  %7208 = vmatmul.bf16.gmra.mxu0 %v5065
  %v7209 = vpop.f32.mrf.mxu0
  %v7210 = vadd.f32 %v7041, %v7209
  %v7211 = vpop.f32.mrf.mxu0
  %v7212 = vadd.f32 %v7043, %v7211
  %7213 = vmatmul.bf16.gmra.mxu0 %v5066
  %v7214 = vpop.f32.mrf.mxu0
  %v7215 = vadd.f32 %v7046, %v7214
  %v7216 = vpop.f32.mrf.mxu0
  %v7217 = vadd.f32 %v7048, %v7216
  %7218 = vmatmul.bf16.gmra.mxu0 %v5067
  %v7219 = vpop.f32.mrf.mxu0
  %v7220 = vadd.f32 %v7051, %v7219
  %v7221 = vpop.f32.mrf.mxu0
  %v7222 = vadd.f32 %v7053, %v7221
  %7223 = vmatmul.bf16.gmra.mxu0 %v5068
  %v7224 = vpop.f32.mrf.mxu0
  %v7225 = vadd.f32 %v7056, %v7224
  %v7226 = vpop.f32.mrf.mxu0
  %v7227 = vadd.f32 %v7058, %v7226
  %7228 = vmatmul.bf16.gmra.mxu0 %v5069
  %v7229 = vpop.f32.mrf.mxu0
  %v7230 = vadd.f32 %v7061, %v7229
  %v7231 = vpop.f32.mrf.mxu0
  %v7232 = vadd.f32 %v7063, %v7231
  %7233 = vmatmul.bf16.gmra.mxu0 %v5070
  %v7234 = vpop.f32.mrf.mxu0
  %v7235 = vadd.f32 %v7066, %v7234
  %v7236 = vpop.f32.mrf.mxu0
  %v7237 = vadd.f32 %v7068, %v7236
  %7238 = vmatmul.bf16.gmra.mxu0 %v5071
  %v7239 = vpop.f32.mrf.mxu0
  %v7240 = vadd.f32 %v7071, %v7239
  %v7241 = vpop.f32.mrf.mxu0
  %v7242 = vadd.f32 %v7073, %v7241
  %7243 = vmatmul.bf16.gmra.mxu0 %v5072
  %v7244 = vpop.f32.mrf.mxu0
  %v7245 = vadd.f32 %v7076, %v7244
  %v7246 = vpop.f32.mrf.mxu0
  %v7247 = vadd.f32 %v7078, %v7246
  %7248 = vmatmul.bf16.gmra.mxu0 %v5073
  %v7249 = vpop.f32.mrf.mxu0
  %v7250 = vadd.f32 %v7081, %v7249
  %v7251 = vpop.f32.mrf.mxu0
  %v7252 = vadd.f32 %v7083, %v7251
  %7253 = vmatmul.bf16.gmra.mxu0 %v5074
  %v7254 = vpop.f32.mrf.mxu0
  %v7255 = vadd.f32 %v7086, %v7254
  %v7256 = vpop.f32.mrf.mxu0
  %v7257 = vadd.f32 %v7088, %v7256
  %7258 = vmatmul.bf16.gmra.mxu0 %v5075
  %v7259 = vpop.f32.mrf.mxu0
  %v7260 = vadd.f32 %v7091, %v7259
  %v7261 = vpop.f32.mrf.mxu0
  %v7262 = vadd.f32 %v7093, %v7261
  %7263 = vmatmul.bf16.gmra.mxu0 %v5076
  %v7264 = vpop.f32.mrf.mxu0
  %v7265 = vadd.f32 %v7096, %v7264
  %v7266 = vpop.f32.mrf.mxu0
  %v7267 = vadd.f32 %v7098, %v7266
  %7268 = vmatmul.bf16.gmra.mxu0 %v5077
  %v7269 = vpop.f32.mrf.mxu0
  %v7270 = vadd.f32 %v7101, %v7269
  %v7271 = vpop.f32.mrf.mxu0
  %v7272 = vadd.f32 %v7103, %v7271
  %7273 = vmatmul.bf16.gmra.mxu0 %v5078
  %v7274 = vpop.f32.mrf.mxu0
  %v7275 = vadd.f32 %v7106, %v7274
  %v7276 = vpop.f32.mrf.mxu0
  %v7277 = vadd.f32 %v7108, %v7276
  %7278 = vmatmul.bf16.gmra.mxu0 %v5079
  %v7279 = vpop.f32.mrf.mxu0
  %v7280 = vadd.f32 %v7111, %v7279
  %v7281 = vpop.f32.mrf.mxu0
  %v7282 = vadd.f32 %v7113, %v7281
  %7283 = vmatmul.bf16.gmra.mxu0 %v5080
  %v7284 = vpop.f32.mrf.mxu0
  %v7285 = vadd.f32 %v7116, %v7284
  %v7286 = vpop.f32.mrf.mxu0
  %v7287 = vadd.f32 %v7118, %v7286
  %7288 = vmatmul.bf16.gmra.mxu0 %v5081
  %v7289 = vpop.f32.mrf.mxu0
  %v7290 = vadd.f32 %v7121, %v7289
  %v7291 = vpop.f32.mrf.mxu0
  %v7292 = vadd.f32 %v7123, %v7291
  %7293 = vmatmul.bf16.gmra.mxu0 %v5082
  %v7294 = vpop.f32.mrf.mxu0
  %v7295 = vadd.f32 %v7126, %v7294
  %v7296 = vpop.f32.mrf.mxu0
  %v7297 = vadd.f32 %v7128, %v7296
  %7298 = vmatmul.bf16.gmra.mxu0 %v5083
  %v7299 = vpop.f32.mrf.mxu0
  %v7300 = vadd.f32 %v7131, %v7299
  %v7301 = vpop.f32.mrf.mxu0
  %v7302 = vadd.f32 %v7133, %v7301
  %7303 = vmatmul.bf16.gmra.mxu0 %v5084
  %v7304 = vpop.f32.mrf.mxu0
  %v7305 = vadd.f32 %v7136, %v7304
  %v7306 = vpop.f32.mrf.mxu0
  %v7307 = vadd.f32 %v7138, %v7306
  %7308 = vmatmul.bf16.gmra.mxu0 %v5085
  %v7309 = vpop.f32.mrf.mxu0
  %v7310 = vadd.f32 %v7141, %v7309
  %v7311 = vpop.f32.mrf.mxu0
  %v7312 = vadd.f32 %v7143, %v7311
  %7313 = vmatmul.bf16.gmra.mxu0 %v5086
  %v7314 = vpop.f32.mrf.mxu0
  %v7315 = vadd.f32 %v7146, %v7314
  %v7316 = vpop.f32.mrf.mxu0
  %v7317 = vadd.f32 %v7148, %v7316
  %7318 = vmatmul.bf16.gmra.mxu0 %v5087
  %v7319 = vpop.f32.mrf.mxu0
  %v7320 = vadd.f32 %v7151, %v7319
  %v7321 = vpop.f32.mrf.mxu0
  %v7322 = vadd.f32 %v7153, %v7321
  %7323 = vmatmul.bf16.gmra.mxu0 %v5088
  %v7324 = vpop.f32.mrf.mxu0
  %v7325 = vadd.f32 %v7156, %v7324
  %v7326 = vpop.f32.mrf.mxu0
  %v7327 = vadd.f32 %v7158, %v7326
  %7328 = vmatmul.bf16.gmra.mxu0 %v5089
  %v7329 = vpop.f32.mrf.mxu0
  %v7330 = vadd.f32 %v7161, %v7329
  %v7331 = vpop.f32.mrf.mxu0
  %v7332 = vadd.f32 %v7163, %v7331
  %7333 = vdwg.mxu0
  %7334 = vmatpush.bf16.msra.mxu0 %v6553
  %7335 = vmatpush.bf16.msra.mxu0 %v6552
  %7336 = vmatpush.bf16.msra.mxu0 %v6551
  %7337 = vmatpush.bf16.msra.mxu0 %v6550
  %7338 = vmatpush.bf16.msra.mxu0 %v6549
  %7339 = vmatpush.bf16.msra.mxu0 %v6548
  %7340 = vmatpush.bf16.msra.mxu0 %v6547
  %7341 = vmatpush.bf16.msra.mxu0 %v6546
  %7342 = vmatmul.bf16.gmra.mxu0 %v5250
  %v7343 = vpop.f32.mrf.mxu0
  %v7344 = vadd.f32 %v7175, %v7343
  %v7345 = vpop.f32.mrf.mxu0
  %v7346 = vadd.f32 %v7177, %v7345
  %7347 = vmatmul.bf16.gmra.mxu0 %v5251
  %v7348 = vpop.f32.mrf.mxu0
  %v7349 = vadd.f32 %v7180, %v7348
  %v7350 = vpop.f32.mrf.mxu0
  %v7351 = vadd.f32 %v7182, %v7350
  %7352 = vmatmul.bf16.gmra.mxu0 %v5252
  %v7353 = vpop.f32.mrf.mxu0
  %v7354 = vadd.f32 %v7185, %v7353
  %v7355 = vpop.f32.mrf.mxu0
  %v7356 = vadd.f32 %v7187, %v7355
  %7357 = vmatmul.bf16.gmra.mxu0 %v5253
  %v7358 = vpop.f32.mrf.mxu0
  %v7359 = vadd.f32 %v7190, %v7358
  %v7360 = vpop.f32.mrf.mxu0
  %v7361 = vadd.f32 %v7192, %v7360
  %7362 = vmatmul.bf16.gmra.mxu0 %v5254
  %v7363 = vpop.f32.mrf.mxu0
  %v7364 = vadd.f32 %v7195, %v7363
  %v7365 = vpop.f32.mrf.mxu0
  %v7366 = vadd.f32 %v7197, %v7365
  %7367 = vmatmul.bf16.gmra.mxu0 %v5255
  %v7368 = vpop.f32.mrf.mxu0
  %v7369 = vadd.f32 %v7200, %v7368
  %v7370 = vpop.f32.mrf.mxu0
  %v7371 = vadd.f32 %v7202, %v7370
  %7372 = vmatmul.bf16.gmra.mxu0 %v5256
  %v7373 = vpop.f32.mrf.mxu0
  %v7374 = vadd.f32 %v7205, %v7373
  %v7375 = vpop.f32.mrf.mxu0
  %v7376 = vadd.f32 %v7207, %v7375
  %7377 = vmatmul.bf16.gmra.mxu0 %v5257
  %v7378 = vpop.f32.mrf.mxu0
  %v7379 = vadd.f32 %v7210, %v7378
  %v7380 = vpop.f32.mrf.mxu0
  %v7381 = vadd.f32 %v7212, %v7380
  %7382 = vmatmul.bf16.gmra.mxu0 %v5258
  %v7383 = vpop.f32.mrf.mxu0
  %v7384 = vadd.f32 %v7215, %v7383
  %v7385 = vpop.f32.mrf.mxu0
  %v7386 = vadd.f32 %v7217, %v7385
  %7387 = vmatmul.bf16.gmra.mxu0 %v5259
  %v7388 = vpop.f32.mrf.mxu0
  %v7389 = vadd.f32 %v7220, %v7388
  %v7390 = vpop.f32.mrf.mxu0
  %v7391 = vadd.f32 %v7222, %v7390
  %7392 = vmatmul.bf16.gmra.mxu0 %v5260
  %v7393 = vpop.f32.mrf.mxu0
  %v7394 = vadd.f32 %v7225, %v7393
  %v7395 = vpop.f32.mrf.mxu0
  %v7396 = vadd.f32 %v7227, %v7395
  %7397 = vmatmul.bf16.gmra.mxu0 %v5261
  %v7398 = vpop.f32.mrf.mxu0
  %v7399 = vadd.f32 %v7230, %v7398
  %v7400 = vpop.f32.mrf.mxu0
  %v7401 = vadd.f32 %v7232, %v7400
  %7402 = vmatmul.bf16.gmra.mxu0 %v5262
  %v7403 = vpop.f32.mrf.mxu0
  %v7404 = vadd.f32 %v7235, %v7403
  %v7405 = vpop.f32.mrf.mxu0
  %v7406 = vadd.f32 %v7237, %v7405
  %7407 = vmatmul.bf16.gmra.mxu0 %v5263
  %v7408 = vpop.f32.mrf.mxu0
  %v7409 = vadd.f32 %v7240, %v7408
  %v7410 = vpop.f32.mrf.mxu0
  %v7411 = vadd.f32 %v7242, %v7410
  %7412 = vmatmul.bf16.gmra.mxu0 %v5264
  %v7413 = vpop.f32.mrf.mxu0
  %v7414 = vadd.f32 %v7245, %v7413
  %v7415 = vpop.f32.mrf.mxu0
  %v7416 = vadd.f32 %v7247, %v7415
  %7417 = vmatmul.bf16.gmra.mxu0 %v5265
  %v7418 = vpop.f32.mrf.mxu0
  %v7419 = vadd.f32 %v7250, %v7418
  %v7420 = vpop.f32.mrf.mxu0
  %v7421 = vadd.f32 %v7252, %v7420
  %7422 = vmatmul.bf16.gmra.mxu0 %v5266
  %v7423 = vpop.f32.mrf.mxu0
  %v7424 = vadd.f32 %v7255, %v7423
  %v7425 = vpop.f32.mrf.mxu0
  %v7426 = vadd.f32 %v7257, %v7425
  %7427 = vmatmul.bf16.gmra.mxu0 %v5267
  %v7428 = vpop.f32.mrf.mxu0
  %v7429 = vadd.f32 %v7260, %v7428
  %v7430 = vpop.f32.mrf.mxu0
  %v7431 = vadd.f32 %v7262, %v7430
  %7432 = vmatmul.bf16.gmra.mxu0 %v5268
  %v7433 = vpop.f32.mrf.mxu0
  %v7434 = vadd.f32 %v7265, %v7433
  %v7435 = vpop.f32.mrf.mxu0
  %v7436 = vadd.f32 %v7267, %v7435
  %7437 = vmatmul.bf16.gmra.mxu0 %v5269
  %v7438 = vpop.f32.mrf.mxu0
  %v7439 = vadd.f32 %v7270, %v7438
  %v7440 = vpop.f32.mrf.mxu0
  %v7441 = vadd.f32 %v7272, %v7440
  %7442 = vmatmul.bf16.gmra.mxu0 %v5270
  %v7443 = vpop.f32.mrf.mxu0
  %v7444 = vadd.f32 %v7275, %v7443
  %v7445 = vpop.f32.mrf.mxu0
  %v7446 = vadd.f32 %v7277, %v7445
  %7447 = vmatmul.bf16.gmra.mxu0 %v5271
  %v7448 = vpop.f32.mrf.mxu0
  %v7449 = vadd.f32 %v7280, %v7448
  %v7450 = vpop.f32.mrf.mxu0
  %v7451 = vadd.f32 %v7282, %v7450
  %7452 = vmatmul.bf16.gmra.mxu0 %v5272
  %v7453 = vpop.f32.mrf.mxu0
  %v7454 = vadd.f32 %v7285, %v7453
  %v7455 = vpop.f32.mrf.mxu0
  %v7456 = vadd.f32 %v7287, %v7455
  %7457 = vmatmul.bf16.gmra.mxu0 %v5273
  %v7458 = vpop.f32.mrf.mxu0
  %v7459 = vadd.f32 %v7290, %v7458
  %v7460 = vpop.f32.mrf.mxu0
  %v7461 = vadd.f32 %v7292, %v7460
  %7462 = vmatmul.bf16.gmra.mxu0 %v5274
  %v7463 = vpop.f32.mrf.mxu0
  %v7464 = vadd.f32 %v7295, %v7463
  %v7465 = vpop.f32.mrf.mxu0
  %v7466 = vadd.f32 %v7297, %v7465
  %7467 = vmatmul.bf16.gmra.mxu0 %v5275
  %v7468 = vpop.f32.mrf.mxu0
  %v7469 = vadd.f32 %v7300, %v7468
  %v7470 = vpop.f32.mrf.mxu0
  %v7471 = vadd.f32 %v7302, %v7470
  %7472 = vmatmul.bf16.gmra.mxu0 %v5276
  %v7473 = vpop.f32.mrf.mxu0
  %v7474 = vadd.f32 %v7305, %v7473
  %v7475 = vpop.f32.mrf.mxu0
  %v7476 = vadd.f32 %v7307, %v7475
  %7477 = vmatmul.bf16.gmra.mxu0 %v5277
  %v7478 = vpop.f32.mrf.mxu0
  %v7479 = vadd.f32 %v7310, %v7478
  %v7480 = vpop.f32.mrf.mxu0
  %v7481 = vadd.f32 %v7312, %v7480
  %7482 = vmatmul.bf16.gmra.mxu0 %v5278
  %v7483 = vpop.f32.mrf.mxu0
  %v7484 = vadd.f32 %v7315, %v7483
  %v7485 = vpop.f32.mrf.mxu0
  %v7486 = vadd.f32 %v7317, %v7485
  %7487 = vmatmul.bf16.gmra.mxu0 %v5279
  %v7488 = vpop.f32.mrf.mxu0
  %v7489 = vadd.f32 %v7320, %v7488
  %v7490 = vpop.f32.mrf.mxu0
  %v7491 = vadd.f32 %v7322, %v7490
  %7492 = vmatmul.bf16.gmra.mxu0 %v5280
  %v7493 = vpop.f32.mrf.mxu0
  %v7494 = vadd.f32 %v7325, %v7493
  %v7495 = vpop.f32.mrf.mxu0
  %v7496 = vadd.f32 %v7327, %v7495
  %7497 = vmatmul.bf16.gmra.mxu0 %v5281
  %v7498 = vpop.f32.mrf.mxu0
  %v7499 = vadd.f32 %v7330, %v7498
  %v7500 = vpop.f32.mrf.mxu0
  %v7501 = vadd.f32 %v7332, %v7500
  %7502 = vdwg.mxu0
  %7503 = vmatpush.bf16.msra.mxu0 %v6561
  %7504 = vmatpush.bf16.msra.mxu0 %v6560
  %7505 = vmatpush.bf16.msra.mxu0 %v6559
  %7506 = vmatpush.bf16.msra.mxu0 %v6558
  %7507 = vmatpush.bf16.msra.mxu0 %v6557
  %7508 = vmatpush.bf16.msra.mxu0 %v6556
  %7509 = vmatpush.bf16.msra.mxu0 %v6555
  %7510 = vmatpush.bf16.msra.mxu0 %v6554
  %7511 = vmatmul.bf16.gmra.mxu0 %v5442
  %v7512 = vpop.f32.mrf.mxu0
  %v7513 = vadd.f32 %v7344, %v7512
  %v7514 = vpop.f32.mrf.mxu0
  %v7515 = vadd.f32 %v7346, %v7514
  %7516 = vmatmul.bf16.gmra.mxu0 %v5443
  %v7517 = vpop.f32.mrf.mxu0
  %v7518 = vadd.f32 %v7349, %v7517
  %v7519 = vpop.f32.mrf.mxu0
  %v7520 = vadd.f32 %v7351, %v7519
  %7521 = vmatmul.bf16.gmra.mxu0 %v5444
  %v7522 = vpop.f32.mrf.mxu0
  %v7523 = vadd.f32 %v7354, %v7522
  %v7524 = vpop.f32.mrf.mxu0
  %v7525 = vadd.f32 %v7356, %v7524
  %7526 = vmatmul.bf16.gmra.mxu0 %v5445
  %v7527 = vpop.f32.mrf.mxu0
  %v7528 = vadd.f32 %v7359, %v7527
  %v7529 = vpop.f32.mrf.mxu0
  %v7530 = vadd.f32 %v7361, %v7529
  %7531 = vmatmul.bf16.gmra.mxu0 %v5446
  %v7532 = vpop.f32.mrf.mxu0
  %v7533 = vadd.f32 %v7364, %v7532
  %v7534 = vpop.f32.mrf.mxu0
  %v7535 = vadd.f32 %v7366, %v7534
  %7536 = vmatmul.bf16.gmra.mxu0 %v5447
  %v7537 = vpop.f32.mrf.mxu0
  %v7538 = vadd.f32 %v7369, %v7537
  %v7539 = vpop.f32.mrf.mxu0
  %v7540 = vadd.f32 %v7371, %v7539
  %7541 = vmatmul.bf16.gmra.mxu0 %v5448
  %v7542 = vpop.f32.mrf.mxu0
  %v7543 = vadd.f32 %v7374, %v7542
  %v7544 = vpop.f32.mrf.mxu0
  %v7545 = vadd.f32 %v7376, %v7544
  %7546 = vmatmul.bf16.gmra.mxu0 %v5449
  %v7547 = vpop.f32.mrf.mxu0
  %v7548 = vadd.f32 %v7379, %v7547
  %v7549 = vpop.f32.mrf.mxu0
  %v7550 = vadd.f32 %v7381, %v7549
  %7551 = vmatmul.bf16.gmra.mxu0 %v5450
  %v7552 = vpop.f32.mrf.mxu0
  %v7553 = vadd.f32 %v7384, %v7552
  %v7554 = vpop.f32.mrf.mxu0
  %v7555 = vadd.f32 %v7386, %v7554
  %7556 = vmatmul.bf16.gmra.mxu0 %v5451
  %v7557 = vpop.f32.mrf.mxu0
  %v7558 = vadd.f32 %v7389, %v7557
  %v7559 = vpop.f32.mrf.mxu0
  %v7560 = vadd.f32 %v7391, %v7559
  %7561 = vmatmul.bf16.gmra.mxu0 %v5452
  %v7562 = vpop.f32.mrf.mxu0
  %v7563 = vadd.f32 %v7394, %v7562
  %v7564 = vpop.f32.mrf.mxu0
  %v7565 = vadd.f32 %v7396, %v7564
  %7566 = vmatmul.bf16.gmra.mxu0 %v5453
  %v7567 = vpop.f32.mrf.mxu0
  %v7568 = vadd.f32 %v7399, %v7567
  %v7569 = vpop.f32.mrf.mxu0
  %v7570 = vadd.f32 %v7401, %v7569
  %7571 = vmatmul.bf16.gmra.mxu0 %v5454
  %v7572 = vpop.f32.mrf.mxu0
  %v7573 = vadd.f32 %v7404, %v7572
  %v7574 = vpop.f32.mrf.mxu0
  %v7575 = vadd.f32 %v7406, %v7574
  %7576 = vmatmul.bf16.gmra.mxu0 %v5455
  %v7577 = vpop.f32.mrf.mxu0
  %v7578 = vadd.f32 %v7409, %v7577
  %v7579 = vpop.f32.mrf.mxu0
  %v7580 = vadd.f32 %v7411, %v7579
  %7581 = vmatmul.bf16.gmra.mxu0 %v5456
  %v7582 = vpop.f32.mrf.mxu0
  %v7583 = vadd.f32 %v7414, %v7582
  %v7584 = vpop.f32.mrf.mxu0
  %v7585 = vadd.f32 %v7416, %v7584
  %7586 = vmatmul.bf16.gmra.mxu0 %v5457
  %v7587 = vpop.f32.mrf.mxu0
  %v7588 = vadd.f32 %v7419, %v7587
  %v7589 = vpop.f32.mrf.mxu0
  %v7590 = vadd.f32 %v7421, %v7589
  %7591 = vmatmul.bf16.gmra.mxu0 %v5458
  %v7592 = vpop.f32.mrf.mxu0
  %v7593 = vadd.f32 %v7424, %v7592
  %v7594 = vpop.f32.mrf.mxu0
  %v7595 = vadd.f32 %v7426, %v7594
  %7596 = vmatmul.bf16.gmra.mxu0 %v5459
  %v7597 = vpop.f32.mrf.mxu0
  %v7598 = vadd.f32 %v7429, %v7597
  %v7599 = vpop.f32.mrf.mxu0
  %v7600 = vadd.f32 %v7431, %v7599
  %7601 = vmatmul.bf16.gmra.mxu0 %v5460
  %v7602 = vpop.f32.mrf.mxu0
  %v7603 = vadd.f32 %v7434, %v7602
  %v7604 = vpop.f32.mrf.mxu0
  %v7605 = vadd.f32 %v7436, %v7604
  %7606 = vmatmul.bf16.gmra.mxu0 %v5461
  %v7607 = vpop.f32.mrf.mxu0
  %v7608 = vadd.f32 %v7439, %v7607
  %v7609 = vpop.f32.mrf.mxu0
  %v7610 = vadd.f32 %v7441, %v7609
  %7611 = vmatmul.bf16.gmra.mxu0 %v5462
  %v7612 = vpop.f32.mrf.mxu0
  %v7613 = vadd.f32 %v7444, %v7612
  %v7614 = vpop.f32.mrf.mxu0
  %v7615 = vadd.f32 %v7446, %v7614
  %7616 = vmatmul.bf16.gmra.mxu0 %v5463
  %v7617 = vpop.f32.mrf.mxu0
  %v7618 = vadd.f32 %v7449, %v7617
  %v7619 = vpop.f32.mrf.mxu0
  %v7620 = vadd.f32 %v7451, %v7619
  %7621 = vmatmul.bf16.gmra.mxu0 %v5464
  %v7622 = vpop.f32.mrf.mxu0
  %v7623 = vadd.f32 %v7454, %v7622
  %v7624 = vpop.f32.mrf.mxu0
  %v7625 = vadd.f32 %v7456, %v7624
  %7626 = vmatmul.bf16.gmra.mxu0 %v5465
  %v7627 = vpop.f32.mrf.mxu0
  %v7628 = vadd.f32 %v7459, %v7627
  %v7629 = vpop.f32.mrf.mxu0
  %v7630 = vadd.f32 %v7461, %v7629
  %7631 = vmatmul.bf16.gmra.mxu0 %v5466
  %v7632 = vpop.f32.mrf.mxu0
  %v7633 = vadd.f32 %v7464, %v7632
  %v7634 = vpop.f32.mrf.mxu0
  %v7635 = vadd.f32 %v7466, %v7634
  %7636 = vmatmul.bf16.gmra.mxu0 %v5467
  %v7637 = vpop.f32.mrf.mxu0
  %v7638 = vadd.f32 %v7469, %v7637
  %v7639 = vpop.f32.mrf.mxu0
  %v7640 = vadd.f32 %v7471, %v7639
  %7641 = vmatmul.bf16.gmra.mxu0 %v5468
  %v7642 = vpop.f32.mrf.mxu0
  %v7643 = vadd.f32 %v7474, %v7642
  %v7644 = vpop.f32.mrf.mxu0
  %v7645 = vadd.f32 %v7476, %v7644
  %7646 = vmatmul.bf16.gmra.mxu0 %v5469
  %v7647 = vpop.f32.mrf.mxu0
  %v7648 = vadd.f32 %v7479, %v7647
  %v7649 = vpop.f32.mrf.mxu0
  %v7650 = vadd.f32 %v7481, %v7649
  %7651 = vmatmul.bf16.gmra.mxu0 %v5470
  %v7652 = vpop.f32.mrf.mxu0
  %v7653 = vadd.f32 %v7484, %v7652
  %v7654 = vpop.f32.mrf.mxu0
  %v7655 = vadd.f32 %v7486, %v7654
  %7656 = vmatmul.bf16.gmra.mxu0 %v5471
  %v7657 = vpop.f32.mrf.mxu0
  %v7658 = vadd.f32 %v7489, %v7657
  %v7659 = vpop.f32.mrf.mxu0
  %v7660 = vadd.f32 %v7491, %v7659
  %7661 = vmatmul.bf16.gmra.mxu0 %v5472
  %v7662 = vpop.f32.mrf.mxu0
  %v7663 = vadd.f32 %v7494, %v7662
  %v7664 = vpop.f32.mrf.mxu0
  %v7665 = vadd.f32 %v7496, %v7664
  %7666 = vmatmul.bf16.gmra.mxu0 %v5473
  %v7667 = vpop.f32.mrf.mxu0
  %v7668 = vadd.f32 %v7499, %v7667
  %v7669 = vpop.f32.mrf.mxu0
  %v7670 = vadd.f32 %v7501, %v7669
  %7671 = vdwg.mxu0
  %7672 = vmatpush.bf16.msra.mxu0 %v6569
  %7673 = vmatpush.bf16.msra.mxu0 %v6568
  %7674 = vmatpush.bf16.msra.mxu0 %v6567
  %7675 = vmatpush.bf16.msra.mxu0 %v6566
  %7676 = vmatpush.bf16.msra.mxu0 %v6565
  %7677 = vmatpush.bf16.msra.mxu0 %v6564
  %7678 = vmatpush.bf16.msra.mxu0 %v6563
  %7679 = vmatpush.bf16.msra.mxu0 %v6562
  %7680 = vmatmul.bf16.gmra.mxu0 %v5634
  %v7681 = vpop.f32.mrf.mxu0
  %v7682 = vadd.f32 %v7513, %v7681
  %v7683 = vpop.f32.mrf.mxu0
  %v7684 = vadd.f32 %v7515, %v7683
  %7685 = vmatmul.bf16.gmra.mxu0 %v5635
  %v7686 = vpop.f32.mrf.mxu0
  %v7687 = vadd.f32 %v7518, %v7686
  %v7688 = vpop.f32.mrf.mxu0
  %v7689 = vadd.f32 %v7520, %v7688
  %7690 = vmatmul.bf16.gmra.mxu0 %v5636
  %v7691 = vpop.f32.mrf.mxu0
  %v7692 = vadd.f32 %v7523, %v7691
  %v7693 = vpop.f32.mrf.mxu0
  %v7694 = vadd.f32 %v7525, %v7693
  %7695 = vmatmul.bf16.gmra.mxu0 %v5637
  %v7696 = vpop.f32.mrf.mxu0
  %v7697 = vadd.f32 %v7528, %v7696
  %v7698 = vpop.f32.mrf.mxu0
  %v7699 = vadd.f32 %v7530, %v7698
  %7700 = vmatmul.bf16.gmra.mxu0 %v5638
  %v7701 = vpop.f32.mrf.mxu0
  %v7702 = vadd.f32 %v7533, %v7701
  %v7703 = vpop.f32.mrf.mxu0
  %v7704 = vadd.f32 %v7535, %v7703
  %7705 = vmatmul.bf16.gmra.mxu0 %v5639
  %v7706 = vpop.f32.mrf.mxu0
  %v7707 = vadd.f32 %v7538, %v7706
  %v7708 = vpop.f32.mrf.mxu0
  %v7709 = vadd.f32 %v7540, %v7708
  %7710 = vmatmul.bf16.gmra.mxu0 %v5640
  %v7711 = vpop.f32.mrf.mxu0
  %v7712 = vadd.f32 %v7543, %v7711
  %v7713 = vpop.f32.mrf.mxu0
  %v7714 = vadd.f32 %v7545, %v7713
  %7715 = vmatmul.bf16.gmra.mxu0 %v5641
  %v7716 = vpop.f32.mrf.mxu0
  %v7717 = vadd.f32 %v7548, %v7716
  %v7718 = vpop.f32.mrf.mxu0
  %v7719 = vadd.f32 %v7550, %v7718
  %7720 = vmatmul.bf16.gmra.mxu0 %v5642
  %v7721 = vpop.f32.mrf.mxu0
  %v7722 = vadd.f32 %v7553, %v7721
  %v7723 = vpop.f32.mrf.mxu0
  %v7724 = vadd.f32 %v7555, %v7723
  %7725 = vmatmul.bf16.gmra.mxu0 %v5643
  %v7726 = vpop.f32.mrf.mxu0
  %v7727 = vadd.f32 %v7558, %v7726
  %v7728 = vpop.f32.mrf.mxu0
  %v7729 = vadd.f32 %v7560, %v7728
  %7730 = vmatmul.bf16.gmra.mxu0 %v5644
  %v7731 = vpop.f32.mrf.mxu0
  %v7732 = vadd.f32 %v7563, %v7731
  %v7733 = vpop.f32.mrf.mxu0
  %v7734 = vadd.f32 %v7565, %v7733
  %7735 = vmatmul.bf16.gmra.mxu0 %v5645
  %v7736 = vpop.f32.mrf.mxu0
  %v7737 = vadd.f32 %v7568, %v7736
  %v7738 = vpop.f32.mrf.mxu0
  %v7739 = vadd.f32 %v7570, %v7738
  %7740 = vmatmul.bf16.gmra.mxu0 %v5646
  %v7741 = vpop.f32.mrf.mxu0
  %v7742 = vadd.f32 %v7573, %v7741
  %v7743 = vpop.f32.mrf.mxu0
  %v7744 = vadd.f32 %v7575, %v7743
  %7745 = vmatmul.bf16.gmra.mxu0 %v5647
  %v7746 = vpop.f32.mrf.mxu0
  %v7747 = vadd.f32 %v7578, %v7746
  %v7748 = vpop.f32.mrf.mxu0
  %v7749 = vadd.f32 %v7580, %v7748
  %7750 = vmatmul.bf16.gmra.mxu0 %v5648
  %v7751 = vpop.f32.mrf.mxu0
  %v7752 = vadd.f32 %v7583, %v7751
  %v7753 = vpop.f32.mrf.mxu0
  %v7754 = vadd.f32 %v7585, %v7753
  %7755 = vmatmul.bf16.gmra.mxu0 %v5649
  %v7756 = vpop.f32.mrf.mxu0
  %v7757 = vadd.f32 %v7588, %v7756
  %v7758 = vpop.f32.mrf.mxu0
  %v7759 = vadd.f32 %v7590, %v7758
  %7760 = vmatmul.bf16.gmra.mxu0 %v5650
  %v7761 = vpop.f32.mrf.mxu0
  %v7762 = vadd.f32 %v7593, %v7761
  %v7763 = vpop.f32.mrf.mxu0
  %v7764 = vadd.f32 %v7595, %v7763
  %7765 = vmatmul.bf16.gmra.mxu0 %v5651
  %v7766 = vpop.f32.mrf.mxu0
  %v7767 = vadd.f32 %v7598, %v7766
  %v7768 = vpop.f32.mrf.mxu0
  %v7769 = vadd.f32 %v7600, %v7768
  %7770 = vmatmul.bf16.gmra.mxu0 %v5652
  %v7771 = vpop.f32.mrf.mxu0
  %v7772 = vadd.f32 %v7603, %v7771
  %v7773 = vpop.f32.mrf.mxu0
  %v7774 = vadd.f32 %v7605, %v7773
  %7775 = vmatmul.bf16.gmra.mxu0 %v5653
  %v7776 = vpop.f32.mrf.mxu0
  %v7777 = vadd.f32 %v7608, %v7776
  %v7778 = vpop.f32.mrf.mxu0
  %v7779 = vadd.f32 %v7610, %v7778
  %7780 = vmatmul.bf16.gmra.mxu0 %v5654
  %v7781 = vpop.f32.mrf.mxu0
  %v7782 = vadd.f32 %v7613, %v7781
  %v7783 = vpop.f32.mrf.mxu0
  %v7784 = vadd.f32 %v7615, %v7783
  %7785 = vmatmul.bf16.gmra.mxu0 %v5655
  %v7786 = vpop.f32.mrf.mxu0
  %v7787 = vadd.f32 %v7618, %v7786
  %v7788 = vpop.f32.mrf.mxu0
  %v7789 = vadd.f32 %v7620, %v7788
  %7790 = vmatmul.bf16.gmra.mxu0 %v5656
  %v7791 = vpop.f32.mrf.mxu0
  %v7792 = vadd.f32 %v7623, %v7791
  %v7793 = vpop.f32.mrf.mxu0
  %v7794 = vadd.f32 %v7625, %v7793
  %7795 = vmatmul.bf16.gmra.mxu0 %v5657
  %v7796 = vpop.f32.mrf.mxu0
  %v7797 = vadd.f32 %v7628, %v7796
  %v7798 = vpop.f32.mrf.mxu0
  %v7799 = vadd.f32 %v7630, %v7798
  %7800 = vmatmul.bf16.gmra.mxu0 %v5658
  %v7801 = vpop.f32.mrf.mxu0
  %v7802 = vadd.f32 %v7633, %v7801
  %v7803 = vpop.f32.mrf.mxu0
  %v7804 = vadd.f32 %v7635, %v7803
  %7805 = vmatmul.bf16.gmra.mxu0 %v5659
  %v7806 = vpop.f32.mrf.mxu0
  %v7807 = vadd.f32 %v7638, %v7806
  %v7808 = vpop.f32.mrf.mxu0
  %v7809 = vadd.f32 %v7640, %v7808
  %7810 = vmatmul.bf16.gmra.mxu0 %v5660
  %v7811 = vpop.f32.mrf.mxu0
  %v7812 = vadd.f32 %v7643, %v7811
  %v7813 = vpop.f32.mrf.mxu0
  %v7814 = vadd.f32 %v7645, %v7813
  %7815 = vmatmul.bf16.gmra.mxu0 %v5661
  %v7816 = vpop.f32.mrf.mxu0
  %v7817 = vadd.f32 %v7648, %v7816
  %v7818 = vpop.f32.mrf.mxu0
  %v7819 = vadd.f32 %v7650, %v7818
  %7820 = vmatmul.bf16.gmra.mxu0 %v5662
  %v7821 = vpop.f32.mrf.mxu0
  %v7822 = vadd.f32 %v7653, %v7821
  %v7823 = vpop.f32.mrf.mxu0
  %v7824 = vadd.f32 %v7655, %v7823
  %7825 = vmatmul.bf16.gmra.mxu0 %v5663
  %v7826 = vpop.f32.mrf.mxu0
  %v7827 = vadd.f32 %v7658, %v7826
  %v7828 = vpop.f32.mrf.mxu0
  %v7829 = vadd.f32 %v7660, %v7828
  %7830 = vmatmul.bf16.gmra.mxu0 %v5664
  %v7831 = vpop.f32.mrf.mxu0
  %v7832 = vadd.f32 %v7663, %v7831
  %v7833 = vpop.f32.mrf.mxu0
  %v7834 = vadd.f32 %v7665, %v7833
  %7835 = vmatmul.bf16.gmra.mxu0 %v5665
  %v7836 = vpop.f32.mrf.mxu0
  %v7837 = vadd.f32 %v7668, %v7836
  %v7838 = vpop.f32.mrf.mxu0
  %v7839 = vadd.f32 %v7670, %v7838
  %7840 = vdwg.mxu0
  %7841 = vmatpush.bf16.msra.mxu0 %v6577
  %7842 = vmatpush.bf16.msra.mxu0 %v6576
  %7843 = vmatpush.bf16.msra.mxu0 %v6575
  %7844 = vmatpush.bf16.msra.mxu0 %v6574
  %7845 = vmatpush.bf16.msra.mxu0 %v6573
  %7846 = vmatpush.bf16.msra.mxu0 %v6572
  %7847 = vmatpush.bf16.msra.mxu0 %v6571
  %7848 = vmatpush.bf16.msra.mxu0 %v6570
  %7849 = vmatmul.bf16.gmra.mxu0 %v5826
  %v7850 = vpop.f32.mrf.mxu0
  %v7851 = vadd.f32 %v7682, %v7850
  %v7852 = vpop.f32.mrf.mxu0
  %v7853 = vadd.f32 %v7684, %v7852
  %7854 = vmatmul.bf16.gmra.mxu0 %v5827
  %v7855 = vpop.f32.mrf.mxu0
  %v7856 = vadd.f32 %v7687, %v7855
  %v7857 = vpop.f32.mrf.mxu0
  %v7858 = vadd.f32 %v7689, %v7857
  %7859 = vmatmul.bf16.gmra.mxu0 %v5828
  %v7860 = vpop.f32.mrf.mxu0
  %v7861 = vadd.f32 %v7692, %v7860
  %v7862 = vpop.f32.mrf.mxu0
  %v7863 = vadd.f32 %v7694, %v7862
  %7864 = vmatmul.bf16.gmra.mxu0 %v5829
  %v7865 = vpop.f32.mrf.mxu0
  %v7866 = vadd.f32 %v7697, %v7865
  %v7867 = vpop.f32.mrf.mxu0
  %v7868 = vadd.f32 %v7699, %v7867
  %7869 = vmatmul.bf16.gmra.mxu0 %v5830
  %v7870 = vpop.f32.mrf.mxu0
  %v7871 = vadd.f32 %v7702, %v7870
  %v7872 = vpop.f32.mrf.mxu0
  %v7873 = vadd.f32 %v7704, %v7872
  %7874 = vmatmul.bf16.gmra.mxu0 %v5831
  %v7875 = vpop.f32.mrf.mxu0
  %v7876 = vadd.f32 %v7707, %v7875
  %v7877 = vpop.f32.mrf.mxu0
  %v7878 = vadd.f32 %v7709, %v7877
  %7879 = vmatmul.bf16.gmra.mxu0 %v5832
  %v7880 = vpop.f32.mrf.mxu0
  %v7881 = vadd.f32 %v7712, %v7880
  %v7882 = vpop.f32.mrf.mxu0
  %v7883 = vadd.f32 %v7714, %v7882
  %7884 = vmatmul.bf16.gmra.mxu0 %v5833
  %v7885 = vpop.f32.mrf.mxu0
  %v7886 = vadd.f32 %v7717, %v7885
  %v7887 = vpop.f32.mrf.mxu0
  %v7888 = vadd.f32 %v7719, %v7887
  %7889 = vmatmul.bf16.gmra.mxu0 %v5834
  %v7890 = vpop.f32.mrf.mxu0
  %v7891 = vadd.f32 %v7722, %v7890
  %v7892 = vpop.f32.mrf.mxu0
  %v7893 = vadd.f32 %v7724, %v7892
  %7894 = vmatmul.bf16.gmra.mxu0 %v5835
  %v7895 = vpop.f32.mrf.mxu0
  %v7896 = vadd.f32 %v7727, %v7895
  %v7897 = vpop.f32.mrf.mxu0
  %v7898 = vadd.f32 %v7729, %v7897
  %7899 = vmatmul.bf16.gmra.mxu0 %v5836
  %v7900 = vpop.f32.mrf.mxu0
  %v7901 = vadd.f32 %v7732, %v7900
  %v7902 = vpop.f32.mrf.mxu0
  %v7903 = vadd.f32 %v7734, %v7902
  %7904 = vmatmul.bf16.gmra.mxu0 %v5837
  %v7905 = vpop.f32.mrf.mxu0
  %v7906 = vadd.f32 %v7737, %v7905
  %v7907 = vpop.f32.mrf.mxu0
  %v7908 = vadd.f32 %v7739, %v7907
  %7909 = vmatmul.bf16.gmra.mxu0 %v5838
  %v7910 = vpop.f32.mrf.mxu0
  %v7911 = vadd.f32 %v7742, %v7910
  %v7912 = vpop.f32.mrf.mxu0
  %v7913 = vadd.f32 %v7744, %v7912
  %7914 = vmatmul.bf16.gmra.mxu0 %v5839
  %v7915 = vpop.f32.mrf.mxu0
  %v7916 = vadd.f32 %v7747, %v7915
  %v7917 = vpop.f32.mrf.mxu0
  %v7918 = vadd.f32 %v7749, %v7917
  %7919 = vmatmul.bf16.gmra.mxu0 %v5840
  %v7920 = vpop.f32.mrf.mxu0
  %v7921 = vadd.f32 %v7752, %v7920
  %v7922 = vpop.f32.mrf.mxu0
  %v7923 = vadd.f32 %v7754, %v7922
  %7924 = vmatmul.bf16.gmra.mxu0 %v5841
  %v7925 = vpop.f32.mrf.mxu0
  %v7926 = vadd.f32 %v7757, %v7925
  %v7927 = vpop.f32.mrf.mxu0
  %v7928 = vadd.f32 %v7759, %v7927
  %7929 = vmatmul.bf16.gmra.mxu0 %v5842
  %v7930 = vpop.f32.mrf.mxu0
  %v7931 = vadd.f32 %v7762, %v7930
  %v7932 = vpop.f32.mrf.mxu0
  %v7933 = vadd.f32 %v7764, %v7932
  %7934 = vmatmul.bf16.gmra.mxu0 %v5843
  %v7935 = vpop.f32.mrf.mxu0
  %v7936 = vadd.f32 %v7767, %v7935
  %v7937 = vpop.f32.mrf.mxu0
  %v7938 = vadd.f32 %v7769, %v7937
  %7939 = vmatmul.bf16.gmra.mxu0 %v5844
  %v7940 = vpop.f32.mrf.mxu0
  %v7941 = vadd.f32 %v7772, %v7940
  %v7942 = vpop.f32.mrf.mxu0
  %v7943 = vadd.f32 %v7774, %v7942
  %7944 = vmatmul.bf16.gmra.mxu0 %v5845
  %v7945 = vpop.f32.mrf.mxu0
  %v7946 = vadd.f32 %v7777, %v7945
  %v7947 = vpop.f32.mrf.mxu0
  %v7948 = vadd.f32 %v7779, %v7947
  %7949 = vmatmul.bf16.gmra.mxu0 %v5846
  %v7950 = vpop.f32.mrf.mxu0
  %v7951 = vadd.f32 %v7782, %v7950
  %v7952 = vpop.f32.mrf.mxu0
  %v7953 = vadd.f32 %v7784, %v7952
  %7954 = vmatmul.bf16.gmra.mxu0 %v5847
  %v7955 = vpop.f32.mrf.mxu0
  %v7956 = vadd.f32 %v7787, %v7955
  %v7957 = vpop.f32.mrf.mxu0
  %v7958 = vadd.f32 %v7789, %v7957
  %7959 = vmatmul.bf16.gmra.mxu0 %v5848
  %v7960 = vpop.f32.mrf.mxu0
  %v7961 = vadd.f32 %v7792, %v7960
  %v7962 = vpop.f32.mrf.mxu0
  %v7963 = vadd.f32 %v7794, %v7962
  %7964 = vmatmul.bf16.gmra.mxu0 %v5849
  %v7965 = vpop.f32.mrf.mxu0
  %v7966 = vadd.f32 %v7797, %v7965
  %v7967 = vpop.f32.mrf.mxu0
  %v7968 = vadd.f32 %v7799, %v7967
  %7969 = vmatmul.bf16.gmra.mxu0 %v5850
  %v7970 = vpop.f32.mrf.mxu0
  %v7971 = vadd.f32 %v7802, %v7970
  %v7972 = vpop.f32.mrf.mxu0
  %v7973 = vadd.f32 %v7804, %v7972
  %7974 = vmatmul.bf16.gmra.mxu0 %v5851
  %v7975 = vpop.f32.mrf.mxu0
  %v7976 = vadd.f32 %v7807, %v7975
  %v7977 = vpop.f32.mrf.mxu0
  %v7978 = vadd.f32 %v7809, %v7977
  %7979 = vmatmul.bf16.gmra.mxu0 %v5852
  %v7980 = vpop.f32.mrf.mxu0
  %v7981 = vadd.f32 %v7812, %v7980
  %v7982 = vpop.f32.mrf.mxu0
  %v7983 = vadd.f32 %v7814, %v7982
  %7984 = vmatmul.bf16.gmra.mxu0 %v5853
  %v7985 = vpop.f32.mrf.mxu0
  %v7986 = vadd.f32 %v7817, %v7985
  %v7987 = vpop.f32.mrf.mxu0
  %v7988 = vadd.f32 %v7819, %v7987
  %7989 = vmatmul.bf16.gmra.mxu0 %v5854
  %v7990 = vpop.f32.mrf.mxu0
  %v7991 = vadd.f32 %v7822, %v7990
  %v7992 = vpop.f32.mrf.mxu0
  %v7993 = vadd.f32 %v7824, %v7992
  %7994 = vmatmul.bf16.gmra.mxu0 %v5855
  %v7995 = vpop.f32.mrf.mxu0
  %v7996 = vadd.f32 %v7827, %v7995
  %v7997 = vpop.f32.mrf.mxu0
  %v7998 = vadd.f32 %v7829, %v7997
  %7999 = vmatmul.bf16.gmra.mxu0 %v5856
  %v8000 = vpop.f32.mrf.mxu0
  %v8001 = vadd.f32 %v7832, %v8000
  %v8002 = vpop.f32.mrf.mxu0
  %v8003 = vadd.f32 %v7834, %v8002
  %8004 = vmatmul.bf16.gmra.mxu0 %v5857
  %v8005 = vpop.f32.mrf.mxu0
  %v8006 = vadd.f32 %v7837, %v8005
  %v8007 = vpop.f32.mrf.mxu0
  %v8008 = vadd.f32 %v7839, %v8007
  %8009 = vdwg.mxu0
  %8010 = vmatpush.bf16.msra.mxu0 %v6585
  %8011 = vmatpush.bf16.msra.mxu0 %v6584
  %8012 = vmatpush.bf16.msra.mxu0 %v6583
  %8013 = vmatpush.bf16.msra.mxu0 %v6582
  %8014 = vmatpush.bf16.msra.mxu0 %v6581
  %8015 = vmatpush.bf16.msra.mxu0 %v6580
  %8016 = vmatpush.bf16.msra.mxu0 %v6579
  %8017 = vmatpush.bf16.msra.mxu0 %v6578
  %8018 = vmatmul.bf16.gmra.mxu0 %v6018
  %v8019 = vpop.f32.mrf.mxu0
  %v8020 = vadd.f32 %v7851, %v8019
  %v8021 = vpop.f32.mrf.mxu0
  %v8022 = vadd.f32 %v7853, %v8021
  %8023 = vmatmul.bf16.gmra.mxu0 %v6019
  %v8024 = vpop.f32.mrf.mxu0
  %v8025 = vadd.f32 %v7856, %v8024
  %v8026 = vpop.f32.mrf.mxu0
  %v8027 = vadd.f32 %v7858, %v8026
  %8028 = vmatmul.bf16.gmra.mxu0 %v6020
  %v8029 = vpop.f32.mrf.mxu0
  %v8030 = vadd.f32 %v7861, %v8029
  %v8031 = vpop.f32.mrf.mxu0
  %v8032 = vadd.f32 %v7863, %v8031
  %8033 = vmatmul.bf16.gmra.mxu0 %v6021
  %v8034 = vpop.f32.mrf.mxu0
  %v8035 = vadd.f32 %v7866, %v8034
  %v8036 = vpop.f32.mrf.mxu0
  %v8037 = vadd.f32 %v7868, %v8036
  %8038 = vmatmul.bf16.gmra.mxu0 %v6022
  %v8039 = vpop.f32.mrf.mxu0
  %v8040 = vadd.f32 %v7871, %v8039
  %v8041 = vpop.f32.mrf.mxu0
  %v8042 = vadd.f32 %v7873, %v8041
  %8043 = vmatmul.bf16.gmra.mxu0 %v6023
  %v8044 = vpop.f32.mrf.mxu0
  %v8045 = vadd.f32 %v7876, %v8044
  %v8046 = vpop.f32.mrf.mxu0
  %v8047 = vadd.f32 %v7878, %v8046
  %8048 = vmatmul.bf16.gmra.mxu0 %v6024
  %v8049 = vpop.f32.mrf.mxu0
  %v8050 = vadd.f32 %v7881, %v8049
  %v8051 = vpop.f32.mrf.mxu0
  %v8052 = vadd.f32 %v7883, %v8051
  %8053 = vmatmul.bf16.gmra.mxu0 %v6025
  %v8054 = vpop.f32.mrf.mxu0
  %v8055 = vadd.f32 %v7886, %v8054
  %v8056 = vpop.f32.mrf.mxu0
  %v8057 = vadd.f32 %v7888, %v8056
  %8058 = vmatmul.bf16.gmra.mxu0 %v6026
  %v8059 = vpop.f32.mrf.mxu0
  %v8060 = vadd.f32 %v7891, %v8059
  %v8061 = vpop.f32.mrf.mxu0
  %v8062 = vadd.f32 %v7893, %v8061
  %8063 = vmatmul.bf16.gmra.mxu0 %v6027
  %v8064 = vpop.f32.mrf.mxu0
  %v8065 = vadd.f32 %v7896, %v8064
  %v8066 = vpop.f32.mrf.mxu0
  %v8067 = vadd.f32 %v7898, %v8066
  %8068 = vmatmul.bf16.gmra.mxu0 %v6028
  %v8069 = vpop.f32.mrf.mxu0
  %v8070 = vadd.f32 %v7901, %v8069
  %v8071 = vpop.f32.mrf.mxu0
  %v8072 = vadd.f32 %v7903, %v8071
  %8073 = vmatmul.bf16.gmra.mxu0 %v6029
  %v8074 = vpop.f32.mrf.mxu0
  %v8075 = vadd.f32 %v7906, %v8074
  %v8076 = vpop.f32.mrf.mxu0
  %v8077 = vadd.f32 %v7908, %v8076
  %8078 = vmatmul.bf16.gmra.mxu0 %v6030
  %v8079 = vpop.f32.mrf.mxu0
  %v8080 = vadd.f32 %v7911, %v8079
  %v8081 = vpop.f32.mrf.mxu0
  %v8082 = vadd.f32 %v7913, %v8081
  %8083 = vmatmul.bf16.gmra.mxu0 %v6031
  %v8084 = vpop.f32.mrf.mxu0
  %v8085 = vadd.f32 %v7916, %v8084
  %v8086 = vpop.f32.mrf.mxu0
  %v8087 = vadd.f32 %v7918, %v8086
  %8088 = vmatmul.bf16.gmra.mxu0 %v6032
  %v8089 = vpop.f32.mrf.mxu0
  %v8090 = vadd.f32 %v7921, %v8089
  %v8091 = vpop.f32.mrf.mxu0
  %v8092 = vadd.f32 %v7923, %v8091
  %8093 = vmatmul.bf16.gmra.mxu0 %v6033
  %v8094 = vpop.f32.mrf.mxu0
  %v8095 = vadd.f32 %v7926, %v8094
  %v8096 = vpop.f32.mrf.mxu0
  %v8097 = vadd.f32 %v7928, %v8096
  %8098 = vmatmul.bf16.gmra.mxu0 %v6034
  %v8099 = vpop.f32.mrf.mxu0
  %v8100 = vadd.f32 %v7931, %v8099
  %v8101 = vpop.f32.mrf.mxu0
  %v8102 = vadd.f32 %v7933, %v8101
  %8103 = vmatmul.bf16.gmra.mxu0 %v6035
  %v8104 = vpop.f32.mrf.mxu0
  %v8105 = vadd.f32 %v7936, %v8104
  %v8106 = vpop.f32.mrf.mxu0
  %v8107 = vadd.f32 %v7938, %v8106
  %8108 = vmatmul.bf16.gmra.mxu0 %v6036
  %v8109 = vpop.f32.mrf.mxu0
  %v8110 = vadd.f32 %v7941, %v8109
  %v8111 = vpop.f32.mrf.mxu0
  %v8112 = vadd.f32 %v7943, %v8111
  %8113 = vmatmul.bf16.gmra.mxu0 %v6037
  %v8114 = vpop.f32.mrf.mxu0
  %v8115 = vadd.f32 %v7946, %v8114
  %v8116 = vpop.f32.mrf.mxu0
  %v8117 = vadd.f32 %v7948, %v8116
  %8118 = vmatmul.bf16.gmra.mxu0 %v6038
  %v8119 = vpop.f32.mrf.mxu0
  %v8120 = vadd.f32 %v7951, %v8119
  %v8121 = vpop.f32.mrf.mxu0
  %v8122 = vadd.f32 %v7953, %v8121
  %8123 = vmatmul.bf16.gmra.mxu0 %v6039
  %v8124 = vpop.f32.mrf.mxu0
  %v8125 = vadd.f32 %v7956, %v8124
  %v8126 = vpop.f32.mrf.mxu0
  %v8127 = vadd.f32 %v7958, %v8126
  %8128 = vmatmul.bf16.gmra.mxu0 %v6040
  %v8129 = vpop.f32.mrf.mxu0
  %v8130 = vadd.f32 %v7961, %v8129
  %v8131 = vpop.f32.mrf.mxu0
  %v8132 = vadd.f32 %v7963, %v8131
  %8133 = vmatmul.bf16.gmra.mxu0 %v6041
  %v8134 = vpop.f32.mrf.mxu0
  %v8135 = vadd.f32 %v7966, %v8134
  %v8136 = vpop.f32.mrf.mxu0
  %v8137 = vadd.f32 %v7968, %v8136
  %8138 = vmatmul.bf16.gmra.mxu0 %v6042
  %v8139 = vpop.f32.mrf.mxu0
  %v8140 = vadd.f32 %v7971, %v8139
  %v8141 = vpop.f32.mrf.mxu0
  %v8142 = vadd.f32 %v7973, %v8141
  %8143 = vmatmul.bf16.gmra.mxu0 %v6043
  %v8144 = vpop.f32.mrf.mxu0
  %v8145 = vadd.f32 %v7976, %v8144
  %v8146 = vpop.f32.mrf.mxu0
  %v8147 = vadd.f32 %v7978, %v8146
  %8148 = vmatmul.bf16.gmra.mxu0 %v6044
  %v8149 = vpop.f32.mrf.mxu0
  %v8150 = vadd.f32 %v7981, %v8149
  %v8151 = vpop.f32.mrf.mxu0
  %v8152 = vadd.f32 %v7983, %v8151
  %8153 = vmatmul.bf16.gmra.mxu0 %v6045
  %v8154 = vpop.f32.mrf.mxu0
  %v8155 = vadd.f32 %v7986, %v8154
  %v8156 = vpop.f32.mrf.mxu0
  %v8157 = vadd.f32 %v7988, %v8156
  %8158 = vmatmul.bf16.gmra.mxu0 %v6046
  %v8159 = vpop.f32.mrf.mxu0
  %v8160 = vadd.f32 %v7991, %v8159
  %v8161 = vpop.f32.mrf.mxu0
  %v8162 = vadd.f32 %v7993, %v8161
  %8163 = vmatmul.bf16.gmra.mxu0 %v6047
  %v8164 = vpop.f32.mrf.mxu0
  %v8165 = vadd.f32 %v7996, %v8164
  %v8166 = vpop.f32.mrf.mxu0
  %v8167 = vadd.f32 %v7998, %v8166
  %8168 = vmatmul.bf16.gmra.mxu0 %v6048
  %v8169 = vpop.f32.mrf.mxu0
  %v8170 = vadd.f32 %v8001, %v8169
  %v8171 = vpop.f32.mrf.mxu0
  %v8172 = vadd.f32 %v8003, %v8171
  %8173 = vmatmul.bf16.gmra.mxu0 %v6049
  %v8174 = vpop.f32.mrf.mxu0
  %v8175 = vadd.f32 %v8006, %v8174
  %v8176 = vpop.f32.mrf.mxu0
  %v8177 = vadd.f32 %v8008, %v8176
  %8178 = vdwg.mxu0
  %8179 = vrot.lane.b32.xlu0 %v8020, 64
  %v8180 = vpop.permute.xlu0 %8179
  %8181 = vrot.lane.b32.xlu0 %v8022, 64
  %v8182 = vpop.permute.xlu0 %8181
  %8183 = vrot.lane.b32.xlu0 %v8025, 64
  %v8184 = vpop.permute.xlu0 %8183
  %8185 = vrot.lane.b32.xlu0 %v8027, 64
  %v8186 = vpop.permute.xlu0 %8185
  %8187 = vrot.lane.b32.xlu0 %v8030, 64
  %v8188 = vpop.permute.xlu0 %8187
  %8189 = vrot.lane.b32.xlu0 %v8032, 64
  %v8190 = vpop.permute.xlu0 %8189
  %8191 = vrot.lane.b32.xlu0 %v8035, 64
  %v8192 = vpop.permute.xlu0 %8191
  %8193 = vrot.lane.b32.xlu0 %v8037, 64
  %v8194 = vpop.permute.xlu0 %8193
  %8195 = vrot.lane.b32.xlu0 %v8040, 64
  %v8196 = vpop.permute.xlu0 %8195
  %8197 = vrot.lane.b32.xlu0 %v8042, 64
  %v8198 = vpop.permute.xlu0 %8197
  %8199 = vrot.lane.b32.xlu0 %v8045, 64
  %v8200 = vpop.permute.xlu0 %8199
  %8201 = vrot.lane.b32.xlu0 %v8047, 64
  %v8202 = vpop.permute.xlu0 %8201
  %8203 = vrot.lane.b32.xlu0 %v8050, 64
  %v8204 = vpop.permute.xlu0 %8203
  %8205 = vrot.lane.b32.xlu0 %v8052, 64
  %v8206 = vpop.permute.xlu0 %8205
  %8207 = vrot.lane.b32.xlu0 %v8055, 64
  %v8208 = vpop.permute.xlu0 %8207
  %8209 = vrot.lane.b32.xlu0 %v8057, 64
  %v8210 = vpop.permute.xlu0 %8209
  %8211 = vrot.lane.b32.xlu0 %v8060, 64
  %v8212 = vpop.permute.xlu0 %8211
  %8213 = vrot.lane.b32.xlu0 %v8062, 64
  %v8214 = vpop.permute.xlu0 %8213
  %8215 = vrot.lane.b32.xlu0 %v8065, 64
  %v8216 = vpop.permute.xlu0 %8215
  %8217 = vrot.lane.b32.xlu0 %v8067, 64
  %v8218 = vpop.permute.xlu0 %8217
  %8219 = vrot.lane.b32.xlu0 %v8070, 64
  %v8220 = vpop.permute.xlu0 %8219
  %8221 = vrot.lane.b32.xlu0 %v8072, 64
  %v8222 = vpop.permute.xlu0 %8221
  %8223 = vrot.lane.b32.xlu0 %v8075, 64
  %v8224 = vpop.permute.xlu0 %8223
  %8225 = vrot.lane.b32.xlu0 %v8077, 64
  %v8226 = vpop.permute.xlu0 %8225
  %8227 = vrot.lane.b32.xlu0 %v8080, 64
  %v8228 = vpop.permute.xlu0 %8227
  %8229 = vrot.lane.b32.xlu0 %v8082, 64
  %v8230 = vpop.permute.xlu0 %8229
  %8231 = vrot.lane.b32.xlu0 %v8085, 64
  %v8232 = vpop.permute.xlu0 %8231
  %8233 = vrot.lane.b32.xlu0 %v8087, 64
  %v8234 = vpop.permute.xlu0 %8233
  %8235 = vrot.lane.b32.xlu0 %v8090, 64
  %v8236 = vpop.permute.xlu0 %8235
  %8237 = vrot.lane.b32.xlu0 %v8092, 64
  %v8238 = vpop.permute.xlu0 %8237
  %8239 = vrot.lane.b32.xlu0 %v8095, 64
  %v8240 = vpop.permute.xlu0 %8239
  %8241 = vrot.lane.b32.xlu0 %v8097, 64
  %v8242 = vpop.permute.xlu0 %8241
  %8243 = vrot.lane.b32.xlu0 %v8100, 64
  %v8244 = vpop.permute.xlu0 %8243
  %8245 = vrot.lane.b32.xlu0 %v8102, 64
  %v8246 = vpop.permute.xlu0 %8245
  %8247 = vrot.lane.b32.xlu0 %v8105, 64
  %v8248 = vpop.permute.xlu0 %8247
  %8249 = vrot.lane.b32.xlu0 %v8107, 64
  %v8250 = vpop.permute.xlu0 %8249
  %8251 = vrot.lane.b32.xlu0 %v8110, 64
  %v8252 = vpop.permute.xlu0 %8251
  %8253 = vrot.lane.b32.xlu0 %v8112, 64
  %v8254 = vpop.permute.xlu0 %8253
  %8255 = vrot.lane.b32.xlu0 %v8115, 64
  %v8256 = vpop.permute.xlu0 %8255
  %8257 = vrot.lane.b32.xlu0 %v8117, 64
  %v8258 = vpop.permute.xlu0 %8257
  %8259 = vrot.lane.b32.xlu0 %v8120, 64
  %v8260 = vpop.permute.xlu0 %8259
  %8261 = vrot.lane.b32.xlu0 %v8122, 64
  %v8262 = vpop.permute.xlu0 %8261
  %8263 = vrot.lane.b32.xlu0 %v8125, 64
  %v8264 = vpop.permute.xlu0 %8263
  %8265 = vrot.lane.b32.xlu0 %v8127, 64
  %v8266 = vpop.permute.xlu0 %8265
  %8267 = vrot.lane.b32.xlu0 %v8130, 64
  %v8268 = vpop.permute.xlu0 %8267
  %8269 = vrot.lane.b32.xlu0 %v8132, 64
  %v8270 = vpop.permute.xlu0 %8269
  %8271 = vrot.lane.b32.xlu0 %v8135, 64
  %v8272 = vpop.permute.xlu0 %8271
  %8273 = vrot.lane.b32.xlu0 %v8137, 64
  %v8274 = vpop.permute.xlu0 %8273
  %8275 = vrot.lane.b32.xlu0 %v8140, 64
  %v8276 = vpop.permute.xlu0 %8275
  %8277 = vrot.lane.b32.xlu0 %v8142, 64
  %v8278 = vpop.permute.xlu0 %8277
  %8279 = vrot.lane.b32.xlu0 %v8145, 64
  %v8280 = vpop.permute.xlu0 %8279
  %8281 = vrot.lane.b32.xlu0 %v8147, 64
  %v8282 = vpop.permute.xlu0 %8281
  %8283 = vrot.lane.b32.xlu0 %v8150, 64
  %v8284 = vpop.permute.xlu0 %8283
  %8285 = vrot.lane.b32.xlu0 %v8152, 64
  %v8286 = vpop.permute.xlu0 %8285
  %8287 = vrot.lane.b32.xlu0 %v8155, 64
  %v8288 = vpop.permute.xlu0 %8287
  %8289 = vrot.lane.b32.xlu0 %v8157, 64
  %v8290 = vpop.permute.xlu0 %8289
  %8291 = vrot.lane.b32.xlu0 %v8160, 64
  %v8292 = vpop.permute.xlu0 %8291
  %8293 = vrot.lane.b32.xlu0 %v8162, 64
  %v8294 = vpop.permute.xlu0 %8293
  %8295 = vrot.lane.b32.xlu0 %v8165, 64
  %v8296 = vpop.permute.xlu0 %8295
  %8297 = vrot.lane.b32.xlu0 %v8167, 64
  %v8298 = vpop.permute.xlu0 %8297
  %8299 = vrot.lane.b32.xlu0 %v8170, 64
  %v8300 = vpop.permute.xlu0 %8299
  %8301 = vrot.lane.b32.xlu0 %v8172, 64
  %v8302 = vpop.permute.xlu0 %8301
  %8303 = vrot.lane.b32.xlu0 %v8175, 64
  %v8304 = vpop.permute.xlu0 %8303
  %8305 = vrot.lane.b32.xlu0 %v8177, 64
  %v8306 = vpop.permute.xlu0 %8305
  %v8307 = vmax.f32 %v8020, %v8180
  %v8308 = vmax.f32 %v8022, %v8182
  %v8309 = vmax.f32 %v8025, %v8184
  %v8310 = vmax.f32 %v8027, %v8186
  %v8311 = vmax.f32 %v8030, %v8188
  %v8312 = vmax.f32 %v8032, %v8190
  %v8313 = vmax.f32 %v8035, %v8192
  %v8314 = vmax.f32 %v8037, %v8194
  %v8315 = vmax.f32 %v8040, %v8196
  %v8316 = vmax.f32 %v8042, %v8198
  %v8317 = vmax.f32 %v8045, %v8200
  %v8318 = vmax.f32 %v8047, %v8202
  %v8319 = vmax.f32 %v8050, %v8204
  %v8320 = vmax.f32 %v8052, %v8206
  %v8321 = vmax.f32 %v8055, %v8208
  %v8322 = vmax.f32 %v8057, %v8210
  %v8323 = vmax.f32 %v8060, %v8212
  %v8324 = vmax.f32 %v8062, %v8214
  %v8325 = vmax.f32 %v8065, %v8216
  %v8326 = vmax.f32 %v8067, %v8218
  %v8327 = vmax.f32 %v8070, %v8220
  %v8328 = vmax.f32 %v8072, %v8222
  %v8329 = vmax.f32 %v8075, %v8224
  %v8330 = vmax.f32 %v8077, %v8226
  %v8331 = vmax.f32 %v8080, %v8228
  %v8332 = vmax.f32 %v8082, %v8230
  %v8333 = vmax.f32 %v8085, %v8232
  %v8334 = vmax.f32 %v8087, %v8234
  %v8335 = vmax.f32 %v8090, %v8236
  %v8336 = vmax.f32 %v8092, %v8238
  %v8337 = vmax.f32 %v8095, %v8240
  %v8338 = vmax.f32 %v8097, %v8242
  %v8339 = vmax.f32 %v8100, %v8244
  %v8340 = vmax.f32 %v8102, %v8246
  %v8341 = vmax.f32 %v8105, %v8248
  %v8342 = vmax.f32 %v8107, %v8250
  %v8343 = vmax.f32 %v8110, %v8252
  %v8344 = vmax.f32 %v8112, %v8254
  %v8345 = vmax.f32 %v8115, %v8256
  %v8346 = vmax.f32 %v8117, %v8258
  %v8347 = vmax.f32 %v8120, %v8260
  %v8348 = vmax.f32 %v8122, %v8262
  %v8349 = vmax.f32 %v8125, %v8264
  %v8350 = vmax.f32 %v8127, %v8266
  %v8351 = vmax.f32 %v8130, %v8268
  %v8352 = vmax.f32 %v8132, %v8270
  %v8353 = vmax.f32 %v8135, %v8272
  %v8354 = vmax.f32 %v8137, %v8274
  %v8355 = vmax.f32 %v8140, %v8276
  %v8356 = vmax.f32 %v8142, %v8278
  %v8357 = vmax.f32 %v8145, %v8280
  %v8358 = vmax.f32 %v8147, %v8282
  %v8359 = vmax.f32 %v8150, %v8284
  %v8360 = vmax.f32 %v8152, %v8286
  %v8361 = vmax.f32 %v8155, %v8288
  %v8362 = vmax.f32 %v8157, %v8290
  %v8363 = vmax.f32 %v8160, %v8292
  %v8364 = vmax.f32 %v8162, %v8294
  %v8365 = vmax.f32 %v8165, %v8296
  %v8366 = vmax.f32 %v8167, %v8298
  %v8367 = vmax.f32 %v8170, %v8300
  %v8368 = vmax.f32 %v8172, %v8302
  %v8369 = vmax.f32 %v8175, %v8304
  %v8370 = vmax.f32 %v8177, %v8306
  %8371 = vrot.lane.b32.xlu0 %v8307, 32
  %v8372 = vpop.permute.xlu0 %8371
  %8373 = vrot.lane.b32.xlu0 %v8308, 32
  %v8374 = vpop.permute.xlu0 %8373
  %8375 = vrot.lane.b32.xlu0 %v8309, 32
  %v8376 = vpop.permute.xlu0 %8375
  %8377 = vrot.lane.b32.xlu0 %v8310, 32
  %v8378 = vpop.permute.xlu0 %8377
  %8379 = vrot.lane.b32.xlu0 %v8311, 32
  %v8380 = vpop.permute.xlu0 %8379
  %8381 = vrot.lane.b32.xlu0 %v8312, 32
  %v8382 = vpop.permute.xlu0 %8381
  %8383 = vrot.lane.b32.xlu0 %v8313, 32
  %v8384 = vpop.permute.xlu0 %8383
  %8385 = vrot.lane.b32.xlu0 %v8314, 32
  %v8386 = vpop.permute.xlu0 %8385
  %8387 = vrot.lane.b32.xlu0 %v8315, 32
  %v8388 = vpop.permute.xlu0 %8387
  %8389 = vrot.lane.b32.xlu0 %v8316, 32
  %v8390 = vpop.permute.xlu0 %8389
  %8391 = vrot.lane.b32.xlu0 %v8317, 32
  %v8392 = vpop.permute.xlu0 %8391
  %8393 = vrot.lane.b32.xlu0 %v8318, 32
  %v8394 = vpop.permute.xlu0 %8393
  %8395 = vrot.lane.b32.xlu0 %v8319, 32
  %v8396 = vpop.permute.xlu0 %8395
  %8397 = vrot.lane.b32.xlu0 %v8320, 32
  %v8398 = vpop.permute.xlu0 %8397
  %8399 = vrot.lane.b32.xlu0 %v8321, 32
  %v8400 = vpop.permute.xlu0 %8399
  %8401 = vrot.lane.b32.xlu0 %v8322, 32
  %v8402 = vpop.permute.xlu0 %8401
  %8403 = vrot.lane.b32.xlu0 %v8323, 32
  %v8404 = vpop.permute.xlu0 %8403
  %8405 = vrot.lane.b32.xlu0 %v8324, 32
  %v8406 = vpop.permute.xlu0 %8405
  %8407 = vrot.lane.b32.xlu0 %v8325, 32
  %v8408 = vpop.permute.xlu0 %8407
  %8409 = vrot.lane.b32.xlu0 %v8326, 32
  %v8410 = vpop.permute.xlu0 %8409
  %8411 = vrot.lane.b32.xlu0 %v8327, 32
  %v8412 = vpop.permute.xlu0 %8411
  %8413 = vrot.lane.b32.xlu0 %v8328, 32
  %v8414 = vpop.permute.xlu0 %8413
  %8415 = vrot.lane.b32.xlu0 %v8329, 32
  %v8416 = vpop.permute.xlu0 %8415
  %8417 = vrot.lane.b32.xlu0 %v8330, 32
  %v8418 = vpop.permute.xlu0 %8417
  %8419 = vrot.lane.b32.xlu0 %v8331, 32
  %v8420 = vpop.permute.xlu0 %8419
  %8421 = vrot.lane.b32.xlu0 %v8332, 32
  %v8422 = vpop.permute.xlu0 %8421
  %8423 = vrot.lane.b32.xlu0 %v8333, 32
  %v8424 = vpop.permute.xlu0 %8423
  %8425 = vrot.lane.b32.xlu0 %v8334, 32
  %v8426 = vpop.permute.xlu0 %8425
  %8427 = vrot.lane.b32.xlu0 %v8335, 32
  %v8428 = vpop.permute.xlu0 %8427
  %8429 = vrot.lane.b32.xlu0 %v8336, 32
  %v8430 = vpop.permute.xlu0 %8429
  %8431 = vrot.lane.b32.xlu0 %v8337, 32
  %v8432 = vpop.permute.xlu0 %8431
  %8433 = vrot.lane.b32.xlu0 %v8338, 32
  %v8434 = vpop.permute.xlu0 %8433
  %8435 = vrot.lane.b32.xlu0 %v8339, 32
  %v8436 = vpop.permute.xlu0 %8435
  %8437 = vrot.lane.b32.xlu0 %v8340, 32
  %v8438 = vpop.permute.xlu0 %8437
  %8439 = vrot.lane.b32.xlu0 %v8341, 32
  %v8440 = vpop.permute.xlu0 %8439
  %8441 = vrot.lane.b32.xlu0 %v8342, 32
  %v8442 = vpop.permute.xlu0 %8441
  %8443 = vrot.lane.b32.xlu0 %v8343, 32
  %v8444 = vpop.permute.xlu0 %8443
  %8445 = vrot.lane.b32.xlu0 %v8344, 32
  %v8446 = vpop.permute.xlu0 %8445
  %8447 = vrot.lane.b32.xlu0 %v8345, 32
  %v8448 = vpop.permute.xlu0 %8447
  %8449 = vrot.lane.b32.xlu0 %v8346, 32
  %v8450 = vpop.permute.xlu0 %8449
  %8451 = vrot.lane.b32.xlu0 %v8347, 32
  %v8452 = vpop.permute.xlu0 %8451
  %8453 = vrot.lane.b32.xlu0 %v8348, 32
  %v8454 = vpop.permute.xlu0 %8453
  %8455 = vrot.lane.b32.xlu0 %v8349, 32
  %v8456 = vpop.permute.xlu0 %8455
  %8457 = vrot.lane.b32.xlu0 %v8350, 32
  %v8458 = vpop.permute.xlu0 %8457
  %8459 = vrot.lane.b32.xlu0 %v8351, 32
  %v8460 = vpop.permute.xlu0 %8459
  %8461 = vrot.lane.b32.xlu0 %v8352, 32
  %v8462 = vpop.permute.xlu0 %8461
  %8463 = vrot.lane.b32.xlu0 %v8353, 32
  %v8464 = vpop.permute.xlu0 %8463
  %8465 = vrot.lane.b32.xlu0 %v8354, 32
  %v8466 = vpop.permute.xlu0 %8465
  %8467 = vrot.lane.b32.xlu0 %v8355, 32
  %v8468 = vpop.permute.xlu0 %8467
  %8469 = vrot.lane.b32.xlu0 %v8356, 32
  %v8470 = vpop.permute.xlu0 %8469
  %8471 = vrot.lane.b32.xlu0 %v8357, 32
  %v8472 = vpop.permute.xlu0 %8471
  %8473 = vrot.lane.b32.xlu0 %v8358, 32
  %v8474 = vpop.permute.xlu0 %8473
  %8475 = vrot.lane.b32.xlu0 %v8359, 32
  %v8476 = vpop.permute.xlu0 %8475
  %8477 = vrot.lane.b32.xlu0 %v8360, 32
  %v8478 = vpop.permute.xlu0 %8477
  %8479 = vrot.lane.b32.xlu0 %v8361, 32
  %v8480 = vpop.permute.xlu0 %8479
  %8481 = vrot.lane.b32.xlu0 %v8362, 32
  %v8482 = vpop.permute.xlu0 %8481
  %8483 = vrot.lane.b32.xlu0 %v8363, 32
  %v8484 = vpop.permute.xlu0 %8483
  %8485 = vrot.lane.b32.xlu0 %v8364, 32
  %v8486 = vpop.permute.xlu0 %8485
  %8487 = vrot.lane.b32.xlu0 %v8365, 32
  %v8488 = vpop.permute.xlu0 %8487
  %8489 = vrot.lane.b32.xlu0 %v8366, 32
  %v8490 = vpop.permute.xlu0 %8489
  %8491 = vrot.lane.b32.xlu0 %v8367, 32
  %v8492 = vpop.permute.xlu0 %8491
  %8493 = vrot.lane.b32.xlu0 %v8368, 32
  %v8494 = vpop.permute.xlu0 %8493
  %8495 = vrot.lane.b32.xlu0 %v8369, 32
  %v8496 = vpop.permute.xlu0 %8495
  %8497 = vrot.lane.b32.xlu0 %v8370, 32
  %v8498 = vpop.permute.xlu0 %8497
  %v8499 = vmax.f32 %v8307, %v8372
  %v8500 = vmax.f32 %v8308, %v8374
  %v8501 = vmax.f32 %v8309, %v8376
  %v8502 = vmax.f32 %v8310, %v8378
  %v8503 = vmax.f32 %v8311, %v8380
  %v8504 = vmax.f32 %v8312, %v8382
  %v8505 = vmax.f32 %v8313, %v8384
  %v8506 = vmax.f32 %v8314, %v8386
  %v8507 = vmax.f32 %v8315, %v8388
  %v8508 = vmax.f32 %v8316, %v8390
  %v8509 = vmax.f32 %v8317, %v8392
  %v8510 = vmax.f32 %v8318, %v8394
  %v8511 = vmax.f32 %v8319, %v8396
  %v8512 = vmax.f32 %v8320, %v8398
  %v8513 = vmax.f32 %v8321, %v8400
  %v8514 = vmax.f32 %v8322, %v8402
  %v8515 = vmax.f32 %v8323, %v8404
  %v8516 = vmax.f32 %v8324, %v8406
  %v8517 = vmax.f32 %v8325, %v8408
  %v8518 = vmax.f32 %v8326, %v8410
  %v8519 = vmax.f32 %v8327, %v8412
  %v8520 = vmax.f32 %v8328, %v8414
  %v8521 = vmax.f32 %v8329, %v8416
  %v8522 = vmax.f32 %v8330, %v8418
  %v8523 = vmax.f32 %v8331, %v8420
  %v8524 = vmax.f32 %v8332, %v8422
  %v8525 = vmax.f32 %v8333, %v8424
  %v8526 = vmax.f32 %v8334, %v8426
  %v8527 = vmax.f32 %v8335, %v8428
  %v8528 = vmax.f32 %v8336, %v8430
  %v8529 = vmax.f32 %v8337, %v8432
  %v8530 = vmax.f32 %v8338, %v8434
  %v8531 = vmax.f32 %v8339, %v8436
  %v8532 = vmax.f32 %v8340, %v8438
  %v8533 = vmax.f32 %v8341, %v8440
  %v8534 = vmax.f32 %v8342, %v8442
  %v8535 = vmax.f32 %v8343, %v8444
  %v8536 = vmax.f32 %v8344, %v8446
  %v8537 = vmax.f32 %v8345, %v8448
  %v8538 = vmax.f32 %v8346, %v8450
  %v8539 = vmax.f32 %v8347, %v8452
  %v8540 = vmax.f32 %v8348, %v8454
  %v8541 = vmax.f32 %v8349, %v8456
  %v8542 = vmax.f32 %v8350, %v8458
  %v8543 = vmax.f32 %v8351, %v8460
  %v8544 = vmax.f32 %v8352, %v8462
  %v8545 = vmax.f32 %v8353, %v8464
  %v8546 = vmax.f32 %v8354, %v8466
  %v8547 = vmax.f32 %v8355, %v8468
  %v8548 = vmax.f32 %v8356, %v8470
  %v8549 = vmax.f32 %v8357, %v8472
  %v8550 = vmax.f32 %v8358, %v8474
  %v8551 = vmax.f32 %v8359, %v8476
  %v8552 = vmax.f32 %v8360, %v8478
  %v8553 = vmax.f32 %v8361, %v8480
  %v8554 = vmax.f32 %v8362, %v8482
  %v8555 = vmax.f32 %v8363, %v8484
  %v8556 = vmax.f32 %v8364, %v8486
  %v8557 = vmax.f32 %v8365, %v8488
  %v8558 = vmax.f32 %v8366, %v8490
  %v8559 = vmax.f32 %v8367, %v8492
  %v8560 = vmax.f32 %v8368, %v8494
  %v8561 = vmax.f32 %v8369, %v8496
  %v8562 = vmax.f32 %v8370, %v8498
  %v8563 = vld [vmem:[%s4] sm:$0x1]
  %v8565 = vperm.slane %v8563, 0
  %v8567 = vadd.f32 %v8499, %v8565
  %v8568 = vadd.f32 %v8500, %v8565
  %v8569 = vadd.f32 %v8501, %v8565
  %v8570 = vadd.f32 %v8502, %v8565
  %v8571 = vadd.f32 %v8503, %v8565
  %v8572 = vadd.f32 %v8504, %v8565
  %v8573 = vadd.f32 %v8505, %v8565
  %v8574 = vadd.f32 %v8506, %v8565
  %v8575 = vadd.f32 %v8507, %v8565
  %v8576 = vadd.f32 %v8508, %v8565
  %v8577 = vadd.f32 %v8509, %v8565
  %v8578 = vadd.f32 %v8510, %v8565
  %v8579 = vadd.f32 %v8511, %v8565
  %v8580 = vadd.f32 %v8512, %v8565
  %v8581 = vadd.f32 %v8513, %v8565
  %v8582 = vadd.f32 %v8514, %v8565
  %v8583 = vadd.f32 %v8515, %v8565
  %v8584 = vadd.f32 %v8516, %v8565
  %v8585 = vadd.f32 %v8517, %v8565
  %v8586 = vadd.f32 %v8518, %v8565
  %v8587 = vadd.f32 %v8519, %v8565
  %v8588 = vadd.f32 %v8520, %v8565
  %v8589 = vadd.f32 %v8521, %v8565
  %v8590 = vadd.f32 %v8522, %v8565
  %v8591 = vadd.f32 %v8523, %v8565
  %v8592 = vadd.f32 %v8524, %v8565
  %v8593 = vadd.f32 %v8525, %v8565
  %v8594 = vadd.f32 %v8526, %v8565
  %v8595 = vadd.f32 %v8527, %v8565
  %v8596 = vadd.f32 %v8528, %v8565
  %v8597 = vadd.f32 %v8529, %v8565
  %v8598 = vadd.f32 %v8530, %v8565
  %v8599 = vadd.f32 %v8531, %v8565
  %v8600 = vadd.f32 %v8532, %v8565
  %v8601 = vadd.f32 %v8533, %v8565
  %v8602 = vadd.f32 %v8534, %v8565
  %v8603 = vadd.f32 %v8535, %v8565
  %v8604 = vadd.f32 %v8536, %v8565
  %v8605 = vadd.f32 %v8537, %v8565
  %v8606 = vadd.f32 %v8538, %v8565
  %v8607 = vadd.f32 %v8539, %v8565
  %v8608 = vadd.f32 %v8540, %v8565
  %v8609 = vadd.f32 %v8541, %v8565
  %v8610 = vadd.f32 %v8542, %v8565
  %v8611 = vadd.f32 %v8543, %v8565
  %v8612 = vadd.f32 %v8544, %v8565
  %v8613 = vadd.f32 %v8545, %v8565
  %v8614 = vadd.f32 %v8546, %v8565
  %v8615 = vadd.f32 %v8547, %v8565
  %v8616 = vadd.f32 %v8548, %v8565
  %v8617 = vadd.f32 %v8549, %v8565
  %v8618 = vadd.f32 %v8550, %v8565
  %v8619 = vadd.f32 %v8551, %v8565
  %v8620 = vadd.f32 %v8552, %v8565
  %v8621 = vadd.f32 %v8553, %v8565
  %v8622 = vadd.f32 %v8554, %v8565
  %v8623 = vadd.f32 %v8555, %v8565
  %v8624 = vadd.f32 %v8556, %v8565
  %v8625 = vadd.f32 %v8557, %v8565
  %v8626 = vadd.f32 %v8558, %v8565
  %v8627 = vadd.f32 %v8559, %v8565
  %v8628 = vadd.f32 %v8560, %v8565
  %v8629 = vadd.f32 %v8561, %v8565
  %v8630 = vadd.f32 %v8562, %v8565
  %v8631 = vmax.f32 %v8567, 0.0
  %v8632 = vmax.f32 %v8568, 0.0
  %v8633 = vmax.f32 %v8569, 0.0
  %v8634 = vmax.f32 %v8570, 0.0
  %v8635 = vmax.f32 %v8571, 0.0
  %v8636 = vmax.f32 %v8572, 0.0
  %v8637 = vmax.f32 %v8573, 0.0
  %v8638 = vmax.f32 %v8574, 0.0
  %v8639 = vmax.f32 %v8575, 0.0
  %v8640 = vmax.f32 %v8576, 0.0
  %v8641 = vmax.f32 %v8577, 0.0
  %v8642 = vmax.f32 %v8578, 0.0
  %v8643 = vmax.f32 %v8579, 0.0
  %v8644 = vmax.f32 %v8580, 0.0
  %v8645 = vmax.f32 %v8581, 0.0
  %v8646 = vmax.f32 %v8582, 0.0
  %v8647 = vmax.f32 %v8583, 0.0
  %v8648 = vmax.f32 %v8584, 0.0
  %v8649 = vmax.f32 %v8585, 0.0
  %v8650 = vmax.f32 %v8586, 0.0
  %v8651 = vmax.f32 %v8587, 0.0
  %v8652 = vmax.f32 %v8588, 0.0
  %v8653 = vmax.f32 %v8589, 0.0
  %v8654 = vmax.f32 %v8590, 0.0
  %v8655 = vmax.f32 %v8591, 0.0
  %v8656 = vmax.f32 %v8592, 0.0
  %v8657 = vmax.f32 %v8593, 0.0
  %v8658 = vmax.f32 %v8594, 0.0
  %v8659 = vmax.f32 %v8595, 0.0
  %v8660 = vmax.f32 %v8596, 0.0
  %v8661 = vmax.f32 %v8597, 0.0
  %v8662 = vmax.f32 %v8598, 0.0
  %v8663 = vmax.f32 %v8599, 0.0
  %v8664 = vmax.f32 %v8600, 0.0
  %v8665 = vmax.f32 %v8601, 0.0
  %v8666 = vmax.f32 %v8602, 0.0
  %v8667 = vmax.f32 %v8603, 0.0
  %v8668 = vmax.f32 %v8604, 0.0
  %v8669 = vmax.f32 %v8605, 0.0
  %v8670 = vmax.f32 %v8606, 0.0
  %v8671 = vmax.f32 %v8607, 0.0
  %v8672 = vmax.f32 %v8608, 0.0
  %v8673 = vmax.f32 %v8609, 0.0
  %v8674 = vmax.f32 %v8610, 0.0
  %v8675 = vmax.f32 %v8611, 0.0
  %v8676 = vmax.f32 %v8612, 0.0
  %v8677 = vmax.f32 %v8613, 0.0
  %v8678 = vmax.f32 %v8614, 0.0
  %v8679 = vmax.f32 %v8615, 0.0
  %v8680 = vmax.f32 %v8616, 0.0
  %v8681 = vmax.f32 %v8617, 0.0
  %v8682 = vmax.f32 %v8618, 0.0
  %v8683 = vmax.f32 %v8619, 0.0
  %v8684 = vmax.f32 %v8620, 0.0
  %v8685 = vmax.f32 %v8621, 0.0
  %v8686 = vmax.f32 %v8622, 0.0
  %v8687 = vmax.f32 %v8623, 0.0
  %v8688 = vmax.f32 %v8624, 0.0
  %v8689 = vmax.f32 %v8625, 0.0
  %v8690 = vmax.f32 %v8626, 0.0
  %v8691 = vmax.f32 %v8627, 0.0
  %v8692 = vmax.f32 %v8628, 0.0
  %v8693 = vmax.f32 %v8629, 0.0
  %v8694 = vmax.f32 %v8630, 0.0
  %8699 = vrot.lane.b32.xlu0 %v8635, 32
  %v8700 = vpop.permute.xlu0 %8699
  %8701 = vrot.lane.b32.xlu0 %v8636, 32
  %v8702 = vpop.permute.xlu0 %8701
  %8703 = vrot.lane.b32.xlu0 %v8637, 32
  %v8704 = vpop.permute.xlu0 %8703
  %8705 = vrot.lane.b32.xlu0 %v8638, 32
  %v8706 = vpop.permute.xlu0 %8705
  %8715 = vrot.lane.b32.xlu0 %v8639, 64
  %v8716 = vpop.permute.xlu0 %8715
  %8717 = vrot.lane.b32.xlu0 %v8640, 64
  %v8718 = vpop.permute.xlu0 %8717
  %8719 = vrot.lane.b32.xlu0 %v8641, 64
  %v8720 = vpop.permute.xlu0 %8719
  %8721 = vrot.lane.b32.xlu0 %v8642, 64
  %v8722 = vpop.permute.xlu0 %8721
  %8731 = vrot.lane.b32.xlu0 %v8643, 96
  %v8732 = vpop.permute.xlu0 %8731
  %8733 = vrot.lane.b32.xlu0 %v8644, 96
  %v8734 = vpop.permute.xlu0 %8733
  %8735 = vrot.lane.b32.xlu0 %v8645, 96
  %v8736 = vpop.permute.xlu0 %8735
  %8737 = vrot.lane.b32.xlu0 %v8646, 96
  %v8738 = vpop.permute.xlu0 %8737
  %8747 = vrot.lane.b32.xlu0 %v8651, 32
  %v8748 = vpop.permute.xlu0 %8747
  %8749 = vrot.lane.b32.xlu0 %v8652, 32
  %v8750 = vpop.permute.xlu0 %8749
  %8751 = vrot.lane.b32.xlu0 %v8653, 32
  %v8752 = vpop.permute.xlu0 %8751
  %8753 = vrot.lane.b32.xlu0 %v8654, 32
  %v8754 = vpop.permute.xlu0 %8753
  %8763 = vrot.lane.b32.xlu0 %v8655, 64
  %v8764 = vpop.permute.xlu0 %8763
  %8765 = vrot.lane.b32.xlu0 %v8656, 64
  %v8766 = vpop.permute.xlu0 %8765
  %8767 = vrot.lane.b32.xlu0 %v8657, 64
  %v8768 = vpop.permute.xlu0 %8767
  %8769 = vrot.lane.b32.xlu0 %v8658, 64
  %v8770 = vpop.permute.xlu0 %8769
  %8779 = vrot.lane.b32.xlu0 %v8659, 96
  %v8780 = vpop.permute.xlu0 %8779
  %8781 = vrot.lane.b32.xlu0 %v8660, 96
  %v8782 = vpop.permute.xlu0 %8781
  %8783 = vrot.lane.b32.xlu0 %v8661, 96
  %v8784 = vpop.permute.xlu0 %8783
  %8785 = vrot.lane.b32.xlu0 %v8662, 96
  %v8786 = vpop.permute.xlu0 %8785
  %8795 = vrot.lane.b32.xlu0 %v8667, 32
  %v8796 = vpop.permute.xlu0 %8795
  %8797 = vrot.lane.b32.xlu0 %v8668, 32
  %v8798 = vpop.permute.xlu0 %8797
  %8799 = vrot.lane.b32.xlu0 %v8669, 32
  %v8800 = vpop.permute.xlu0 %8799
  %8801 = vrot.lane.b32.xlu0 %v8670, 32
  %v8802 = vpop.permute.xlu0 %8801
  %8811 = vrot.lane.b32.xlu0 %v8671, 64
  %v8812 = vpop.permute.xlu0 %8811
  %8813 = vrot.lane.b32.xlu0 %v8672, 64
  %v8814 = vpop.permute.xlu0 %8813
  %8815 = vrot.lane.b32.xlu0 %v8673, 64
  %v8816 = vpop.permute.xlu0 %8815
  %8817 = vrot.lane.b32.xlu0 %v8674, 64
  %v8818 = vpop.permute.xlu0 %8817
  %8827 = vrot.lane.b32.xlu0 %v8675, 96
  %v8828 = vpop.permute.xlu0 %8827
  %8829 = vrot.lane.b32.xlu0 %v8676, 96
  %v8830 = vpop.permute.xlu0 %8829
  %8831 = vrot.lane.b32.xlu0 %v8677, 96
  %v8832 = vpop.permute.xlu0 %8831
  %8833 = vrot.lane.b32.xlu0 %v8678, 96
  %v8834 = vpop.permute.xlu0 %8833
  %8843 = vrot.lane.b32.xlu0 %v8683, 32
  %v8844 = vpop.permute.xlu0 %8843
  %8845 = vrot.lane.b32.xlu0 %v8684, 32
  %v8846 = vpop.permute.xlu0 %8845
  %8847 = vrot.lane.b32.xlu0 %v8685, 32
  %v8848 = vpop.permute.xlu0 %8847
  %8849 = vrot.lane.b32.xlu0 %v8686, 32
  %v8850 = vpop.permute.xlu0 %8849
  %8859 = vrot.lane.b32.xlu0 %v8687, 64
  %v8860 = vpop.permute.xlu0 %8859
  %8861 = vrot.lane.b32.xlu0 %v8688, 64
  %v8862 = vpop.permute.xlu0 %8861
  %8863 = vrot.lane.b32.xlu0 %v8689, 64
  %v8864 = vpop.permute.xlu0 %8863
  %8865 = vrot.lane.b32.xlu0 %v8690, 64
  %v8866 = vpop.permute.xlu0 %8865
  %8875 = vrot.lane.b32.xlu0 %v8691, 96
  %v8876 = vpop.permute.xlu0 %8875
  %8877 = vrot.lane.b32.xlu0 %v8692, 96
  %v8878 = vpop.permute.xlu0 %8877
  %8879 = vrot.lane.b32.xlu0 %v8693, 96
  %v8880 = vpop.permute.xlu0 %8879
  %8881 = vrot.lane.b32.xlu0 %v8694, 96
  %v8882 = vpop.permute.xlu0 %8881
  %vm8887 = vcmask 261120
  %v8888 = vsel %vm8887, %v8631, %v8700
  %v8889 = vsel %vm8887, %v8632, %v8702
  %v8890 = vsel %vm8887, %v8633, %v8704
  %v8891 = vsel %vm8887, %v8634, %v8706
  %v8892 = vsel %vm633, %v8888, %v8716
  %v8893 = vsel %vm633, %v8889, %v8718
  %v8894 = vsel %vm633, %v8890, %v8720
  %v8895 = vsel %vm633, %v8891, %v8722
  %vm8896 = vcmask 785408
  %v8897 = vsel %vm8896, %v8892, %v8732
  %v8898 = vsel %vm8896, %v8893, %v8734
  %v8899 = vsel %vm8896, %v8894, %v8736
  %v8900 = vsel %vm8896, %v8895, %v8738
  %v8901 = vsel %vm8887, %v8647, %v8748
  %v8902 = vsel %vm8887, %v8648, %v8750
  %v8903 = vsel %vm8887, %v8649, %v8752
  %v8904 = vsel %vm8887, %v8650, %v8754
  %v8905 = vsel %vm633, %v8901, %v8764
  %v8906 = vsel %vm633, %v8902, %v8766
  %v8907 = vsel %vm633, %v8903, %v8768
  %v8908 = vsel %vm633, %v8904, %v8770
  %v8909 = vsel %vm8896, %v8905, %v8780
  %v8910 = vsel %vm8896, %v8906, %v8782
  %v8911 = vsel %vm8896, %v8907, %v8784
  %v8912 = vsel %vm8896, %v8908, %v8786
  %v8913 = vsel %vm8887, %v8663, %v8796
  %v8914 = vsel %vm8887, %v8664, %v8798
  %v8915 = vsel %vm8887, %v8665, %v8800
  %v8916 = vsel %vm8887, %v8666, %v8802
  %v8917 = vsel %vm633, %v8913, %v8812
  %v8918 = vsel %vm633, %v8914, %v8814
  %v8919 = vsel %vm633, %v8915, %v8816
  %v8920 = vsel %vm633, %v8916, %v8818
  %v8921 = vsel %vm8896, %v8917, %v8828
  %v8922 = vsel %vm8896, %v8918, %v8830
  %v8923 = vsel %vm8896, %v8919, %v8832
  %v8924 = vsel %vm8896, %v8920, %v8834
  %v8925 = vsel %vm8887, %v8679, %v8844
  %v8926 = vsel %vm8887, %v8680, %v8846
  %v8927 = vsel %vm8887, %v8681, %v8848
  %v8928 = vsel %vm8887, %v8682, %v8850
  %v8929 = vsel %vm633, %v8925, %v8860
  %v8930 = vsel %vm633, %v8926, %v8862
  %v8931 = vsel %vm633, %v8927, %v8864
  %v8932 = vsel %vm633, %v8928, %v8866
  %v8933 = vsel %vm8896, %v8929, %v8876
  %v8934 = vsel %vm8896, %v8930, %v8878
  %v8935 = vsel %vm8896, %v8931, %v8880
  %v8936 = vsel %vm8896, %v8932, %v8882
  %v8937 = vpack.c.bf16 %v8898, %v8897
  %v8938 = vpack.c.bf16 %v8910, %v8909
  %v8939 = vpack.c.bf16 %v8922, %v8921
  %v8940 = vpack.c.bf16 %v8934, %v8933
  %v8941 = vpack.c.bf16 %v8900, %v8899
  %v8942 = vpack.c.bf16 %v8912, %v8911
  %v8943 = vpack.c.bf16 %v8924, %v8923
  %v8944 = vpack.c.bf16 %v8936, %v8935
  %v8945 = vld [vmem:[%s5] sm:$0xf]
  %v8946 = vld [vmem:[%s5 + $0x4] sm:$0xf]
  %v8947 = vld [vmem:[%s5 + $0x8] sm:$0xf]
  %v8948 = vld [vmem:[%s5 + $0xc] sm:$0xf]
  %v8949 = vld [vmem:[%s5 + $0x10] sm:$0xf]
  %v8950 = vld [vmem:[%s5 + $0x14] sm:$0xf]
  %v8951 = vld [vmem:[%s5 + $0x18] sm:$0xf]
  %v8952 = vld [vmem:[%s5 + $0x1c] sm:$0xf]
  %v8953 = vld [vmem:[%s5 + $0x20] sm:$0xf]
  %v8954 = vld [vmem:[%s5 + $0x24] sm:$0xf]
  %v8955 = vld [vmem:[%s5 + $0x28] sm:$0xf]
  %v8956 = vld [vmem:[%s5 + $0x2c] sm:$0xf]
  %v8957 = vld [vmem:[%s5 + $0x30] sm:$0xf]
  %v8958 = vld [vmem:[%s5 + $0x34] sm:$0xf]
  %v8959 = vld [vmem:[%s5 + $0x38] sm:$0xf]
  %v8960 = vld [vmem:[%s5 + $0x3c] sm:$0xf]
  %v8961 = vld [vmem:[%s5 + $0x40] sm:$0xf]
  %v8962 = vld [vmem:[%s5 + $0x44] sm:$0xf]
  %v8963 = vld [vmem:[%s5 + $0x48] sm:$0xf]
  %v8964 = vld [vmem:[%s5 + $0x4c] sm:$0xf]
  %v8965 = vld [vmem:[%s5 + $0x50] sm:$0xf]
  %v8966 = vld [vmem:[%s5 + $0x54] sm:$0xf]
  %v8967 = vld [vmem:[%s5 + $0x58] sm:$0xf]
  %v8968 = vld [vmem:[%s5 + $0x5c] sm:$0xf]
  %v8969 = vld [vmem:[%s5 + $0x60] sm:$0xf]
  %v8970 = vld [vmem:[%s5 + $0x64] sm:$0xf]
  %v8971 = vld [vmem:[%s5 + $0x68] sm:$0xf]
  %v8972 = vld [vmem:[%s5 + $0x6c] sm:$0xf]
  %v8973 = vld [vmem:[%s5 + $0x70] sm:$0xf]
  %v8974 = vld [vmem:[%s5 + $0x74] sm:$0xf]
  %v8975 = vld [vmem:[%s5 + $0x78] sm:$0xf]
  %v8976 = vld [vmem:[%s5 + $0x7c] sm:$0xf]
  %v8977 = vld [vmem:[%s5 + $0x80] sm:$0xf]
  %v8978 = vld [vmem:[%s5 + $0x84] sm:$0xf]
  %v8979 = vld [vmem:[%s5 + $0x88] sm:$0xf]
  %v8980 = vld [vmem:[%s5 + $0x8c] sm:$0xf]
  %v8981 = vld [vmem:[%s5 + $0x90] sm:$0xf]
  %v8982 = vld [vmem:[%s5 + $0x94] sm:$0xf]
  %v8983 = vld [vmem:[%s5 + $0x98] sm:$0xf]
  %v8984 = vld [vmem:[%s5 + $0x9c] sm:$0xf]
  %v8985 = vld [vmem:[%s5 + $0xa0] sm:$0xf]
  %v8986 = vld [vmem:[%s5 + $0xa4] sm:$0xf]
  %v8987 = vld [vmem:[%s5 + $0xa8] sm:$0xf]
  %v8988 = vld [vmem:[%s5 + $0xac] sm:$0xf]
  %v8989 = vld [vmem:[%s5 + $0xb0] sm:$0xf]
  %v8990 = vld [vmem:[%s5 + $0xb4] sm:$0xf]
  %v8991 = vld [vmem:[%s5 + $0xb8] sm:$0xf]
  %v8992 = vld [vmem:[%s5 + $0xbc] sm:$0xf]
  %v8993 = vld [vmem:[%s5 + $0xc0] sm:$0xf]
  %v8994 = vld [vmem:[%s5 + $0xc4] sm:$0xf]
  %v8995 = vld [vmem:[%s5 + $0xc8] sm:$0xf]
  %v8996 = vld [vmem:[%s5 + $0xcc] sm:$0xf]
  %v8997 = vld [vmem:[%s5 + $0xd0] sm:$0xf]
  %v8998 = vld [vmem:[%s5 + $0xd4] sm:$0xf]
  %v8999 = vld [vmem:[%s5 + $0xd8] sm:$0xf]
  %v9000 = vld [vmem:[%s5 + $0xdc] sm:$0xf]
  %v9001 = vld [vmem:[%s5 + $0xe0] sm:$0xf]
  %v9002 = vld [vmem:[%s5 + $0xe4] sm:$0xf]
  %v9003 = vld [vmem:[%s5 + $0xe8] sm:$0xf]
  %v9004 = vld [vmem:[%s5 + $0xec] sm:$0xf]
  %v9005 = vld [vmem:[%s5 + $0xf0] sm:$0xf]
  %v9006 = vld [vmem:[%s5 + $0xf4] sm:$0xf]
  %v9007 = vld [vmem:[%s5 + $0xf8] sm:$0xf]
  %v9008 = vld [vmem:[%s5 + $0xfc] sm:$0xf]
  %v9009 = vld [vmem:[%s6] sm:$0x1]
  %v9011 = vperm.slane %v9009, 0
  %v9077 = vunpack.c.l.b16 %v8945
  %v9078 = vunpack.c.l.b16 %v8946
  %v9079 = vunpack.c.l.b16 %v8947
  %v9080 = vunpack.c.l.b16 %v8948
  %v9081 = vunpack.c.l.b16 %v8949
  %v9082 = vunpack.c.l.b16 %v8950
  %v9083 = vunpack.c.l.b16 %v8951
  %v9084 = vunpack.c.l.b16 %v8952
  %v9085 = vunpack.c.l.b16 %v8953
  %v9086 = vunpack.c.l.b16 %v8954
  %v9087 = vunpack.c.l.b16 %v8955
  %v9088 = vunpack.c.l.b16 %v8956
  %v9089 = vunpack.c.l.b16 %v8957
  %v9090 = vunpack.c.l.b16 %v8958
  %v9091 = vunpack.c.l.b16 %v8959
  %v9092 = vunpack.c.l.b16 %v8960
  %v9093 = vunpack.c.l.b16 %v8961
  %v9094 = vunpack.c.l.b16 %v8962
  %v9095 = vunpack.c.l.b16 %v8963
  %v9096 = vunpack.c.l.b16 %v8964
  %v9097 = vunpack.c.l.b16 %v8965
  %v9098 = vunpack.c.l.b16 %v8966
  %v9099 = vunpack.c.l.b16 %v8967
  %v9100 = vunpack.c.l.b16 %v8968
  %v9101 = vunpack.c.l.b16 %v8969
  %v9102 = vunpack.c.l.b16 %v8970
  %v9103 = vunpack.c.l.b16 %v8971
  %v9104 = vunpack.c.l.b16 %v8972
  %v9105 = vunpack.c.l.b16 %v8973
  %v9106 = vunpack.c.l.b16 %v8974
  %v9107 = vunpack.c.l.b16 %v8975
  %v9108 = vunpack.c.l.b16 %v8976
  %v9109 = vunpack.c.l.b16 %v8977
  %v9110 = vunpack.c.l.b16 %v8978
  %v9111 = vunpack.c.l.b16 %v8979
  %v9112 = vunpack.c.l.b16 %v8980
  %v9113 = vunpack.c.l.b16 %v8981
  %v9114 = vunpack.c.l.b16 %v8982
  %v9115 = vunpack.c.l.b16 %v8983
  %v9116 = vunpack.c.l.b16 %v8984
  %v9117 = vunpack.c.l.b16 %v8985
  %v9118 = vunpack.c.l.b16 %v8986
  %v9119 = vunpack.c.l.b16 %v8987
  %v9120 = vunpack.c.l.b16 %v8988
  %v9121 = vunpack.c.l.b16 %v8989
  %v9122 = vunpack.c.l.b16 %v8990
  %v9123 = vunpack.c.l.b16 %v8991
  %v9124 = vunpack.c.l.b16 %v8992
  %v9125 = vunpack.c.l.b16 %v8993
  %v9126 = vunpack.c.l.b16 %v8994
  %v9127 = vunpack.c.l.b16 %v8995
  %v9128 = vunpack.c.l.b16 %v8996
  %v9129 = vunpack.c.l.b16 %v8997
  %v9130 = vunpack.c.l.b16 %v8998
  %v9131 = vunpack.c.l.b16 %v8999
  %v9132 = vunpack.c.l.b16 %v9000
  %v9133 = vunpack.c.l.b16 %v9001
  %v9134 = vunpack.c.l.b16 %v9002
  %v9135 = vunpack.c.l.b16 %v9003
  %v9136 = vunpack.c.l.b16 %v9004
  %v9137 = vunpack.c.l.b16 %v9005
  %v9138 = vunpack.c.l.b16 %v9006
  %v9139 = vunpack.c.l.b16 %v9007
  %v9140 = vunpack.c.l.b16 %v9008
  %v9141 = vpack.c.b16 %v9078, %v9077
  %v9142 = vpack.c.b16 %v9080, %v9079
  %v9143 = vpack.c.b16 %v9082, %v9081
  %v9144 = vpack.c.b16 %v9084, %v9083
  %v9145 = vpack.c.b16 %v9086, %v9085
  %v9146 = vpack.c.b16 %v9088, %v9087
  %v9147 = vpack.c.b16 %v9090, %v9089
  %v9148 = vpack.c.b16 %v9092, %v9091
  %v9149 = vpack.c.b16 %v9094, %v9093
  %v9150 = vpack.c.b16 %v9096, %v9095
  %v9151 = vpack.c.b16 %v9098, %v9097
  %v9152 = vpack.c.b16 %v9100, %v9099
  %v9153 = vpack.c.b16 %v9102, %v9101
  %v9154 = vpack.c.b16 %v9104, %v9103
  %v9155 = vpack.c.b16 %v9106, %v9105
  %v9156 = vpack.c.b16 %v9108, %v9107
  %v9157 = vpack.c.b16 %v9110, %v9109
  %v9158 = vpack.c.b16 %v9112, %v9111
  %v9159 = vpack.c.b16 %v9114, %v9113
  %v9160 = vpack.c.b16 %v9116, %v9115
  %v9161 = vpack.c.b16 %v9118, %v9117
  %v9162 = vpack.c.b16 %v9120, %v9119
  %v9163 = vpack.c.b16 %v9122, %v9121
  %v9164 = vpack.c.b16 %v9124, %v9123
  %v9165 = vpack.c.b16 %v9126, %v9125
  %v9166 = vpack.c.b16 %v9128, %v9127
  %v9167 = vpack.c.b16 %v9130, %v9129
  %v9168 = vpack.c.b16 %v9132, %v9131
  %v9169 = vpack.c.b16 %v9134, %v9133
  %v9170 = vpack.c.b16 %v9136, %v9135
  %v9171 = vpack.c.b16 %v9138, %v9137
  %v9172 = vpack.c.b16 %v9140, %v9139
  %9205 = vmatpush.bf16.msra.mxu0 %v9148
  %9206 = vmatpush.bf16.msra.mxu0 %v9147
  %9207 = vmatpush.bf16.msra.mxu0 %v9146
  %9208 = vmatpush.bf16.msra.mxu0 %v9145
  %9209 = vmatpush.bf16.msra.mxu0 %v9144
  %9210 = vmatpush.bf16.msra.mxu0 %v9143
  %9211 = vmatpush.bf16.msra.mxu0 %v9142
  %9212 = vmatpush.bf16.msra.mxu0 %v9141
  %9213 = vmatmul.bf16.gmra.mxu0 %v8937
  %v9214 = vpop.f32.mrf.mxu0
  %v9215 = vadd.f32 %v9011, %v9214
  %v9216 = vpop.f32.mrf.mxu0
  %v9217 = vadd.f32 %v9011, %v9216
  %9218 = vmatmul.bf16.gmra.mxu0 %v8941
  %v9219 = vpop.f32.mrf.mxu0
  %v9220 = vadd.f32 %v9011, %v9219
  %v9221 = vpop.f32.mrf.mxu0
  %v9222 = vadd.f32 %v9011, %v9221
  %9223 = vdwg.mxu0
  %9224 = vmatpush.bf16.msra.mxu0 %v9156
  %9225 = vmatpush.bf16.msra.mxu0 %v9155
  %9226 = vmatpush.bf16.msra.mxu0 %v9154
  %9227 = vmatpush.bf16.msra.mxu0 %v9153
  %9228 = vmatpush.bf16.msra.mxu0 %v9152
  %9229 = vmatpush.bf16.msra.mxu0 %v9151
  %9230 = vmatpush.bf16.msra.mxu0 %v9150
  %9231 = vmatpush.bf16.msra.mxu0 %v9149
  %9232 = vmatmul.bf16.gmra.mxu0 %v8938
  %v9233 = vpop.f32.mrf.mxu0
  %v9234 = vadd.f32 %v9215, %v9233
  %v9235 = vpop.f32.mrf.mxu0
  %v9236 = vadd.f32 %v9217, %v9235
  %9237 = vmatmul.bf16.gmra.mxu0 %v8942
  %v9238 = vpop.f32.mrf.mxu0
  %v9239 = vadd.f32 %v9220, %v9238
  %v9240 = vpop.f32.mrf.mxu0
  %v9241 = vadd.f32 %v9222, %v9240
  %9242 = vdwg.mxu0
  %9243 = vmatpush.bf16.msra.mxu0 %v9164
  %9244 = vmatpush.bf16.msra.mxu0 %v9163
  %9245 = vmatpush.bf16.msra.mxu0 %v9162
  %9246 = vmatpush.bf16.msra.mxu0 %v9161
  %9247 = vmatpush.bf16.msra.mxu0 %v9160
  %9248 = vmatpush.bf16.msra.mxu0 %v9159
  %9249 = vmatpush.bf16.msra.mxu0 %v9158
  %9250 = vmatpush.bf16.msra.mxu0 %v9157
  %9251 = vmatmul.bf16.gmra.mxu0 %v8939
  %v9252 = vpop.f32.mrf.mxu0
  %v9253 = vadd.f32 %v9234, %v9252
  %v9254 = vpop.f32.mrf.mxu0
  %v9255 = vadd.f32 %v9236, %v9254
  %9256 = vmatmul.bf16.gmra.mxu0 %v8943
  %v9257 = vpop.f32.mrf.mxu0
  %v9258 = vadd.f32 %v9239, %v9257
  %v9259 = vpop.f32.mrf.mxu0
  %v9260 = vadd.f32 %v9241, %v9259
  %9261 = vdwg.mxu0
  %9262 = vmatpush.bf16.msra.mxu0 %v9172
  %9263 = vmatpush.bf16.msra.mxu0 %v9171
  %9264 = vmatpush.bf16.msra.mxu0 %v9170
  %9265 = vmatpush.bf16.msra.mxu0 %v9169
  %9266 = vmatpush.bf16.msra.mxu0 %v9168
  %9267 = vmatpush.bf16.msra.mxu0 %v9167
  %9268 = vmatpush.bf16.msra.mxu0 %v9166
  %9269 = vmatpush.bf16.msra.mxu0 %v9165
  %9270 = vmatmul.bf16.gmra.mxu0 %v8940
  %v9271 = vpop.f32.mrf.mxu0
  %v9272 = vadd.f32 %v9253, %v9271
  %v9273 = vpop.f32.mrf.mxu0
  %v9274 = vadd.f32 %v9255, %v9273
  %9275 = vmatmul.bf16.gmra.mxu0 %v8944
  %v9276 = vpop.f32.mrf.mxu0
  %v9277 = vadd.f32 %v9258, %v9276
  %v9278 = vpop.f32.mrf.mxu0
  %v9279 = vadd.f32 %v9260, %v9278
  %9280 = vdwg.mxu0
  %v9281 = vmax.f32 %v9272, 0.0
  %v9282 = vmax.f32 %v9274, 0.0
  %v9283 = vmax.f32 %v9277, 0.0
  %v9284 = vmax.f32 %v9279, 0.0
  %v9285 = vpack.c.bf16 %v9282, %v9281
  %v9286 = vpack.c.bf16 %v9284, %v9283
  %v9287 = vld [vmem:[%s7] sm:$0xf]
  %v9288 = vld [vmem:[%s7 + $0x4] sm:$0xf]
  %v9289 = vld [vmem:[%s7 + $0x8] sm:$0xf]
  %v9290 = vld [vmem:[%s7 + $0xc] sm:$0xf]
  %v9291 = vld [vmem:[%s7 + $0x10] sm:$0xf]
  %v9292 = vld [vmem:[%s7 + $0x14] sm:$0xf]
  %v9293 = vld [vmem:[%s7 + $0x18] sm:$0xf]
  %v9294 = vld [vmem:[%s7 + $0x1c] sm:$0xf]
  %v9295 = vld [vmem:[%s8] sm:$0x1]
  %v9297 = vperm.slane %v9295, 0
  %v9307 = vunpack.c.l.b16 %v9287
  %v9308 = vunpack.c.l.b16 %v9288
  %v9309 = vunpack.c.l.b16 %v9289
  %v9310 = vunpack.c.l.b16 %v9290
  %v9311 = vunpack.c.l.b16 %v9291
  %v9312 = vunpack.c.l.b16 %v9292
  %v9313 = vunpack.c.l.b16 %v9293
  %v9314 = vunpack.c.l.b16 %v9294
  %v9315 = vpack.c.b16 %v9308, %v9307
  %v9316 = vpack.c.b16 %v9310, %v9309
  %v9317 = vpack.c.b16 %v9312, %v9311
  %v9318 = vpack.c.b16 %v9314, %v9313
  %v9324 = vsel %vm633, %v9285, 0
  %v9327 = vsel %vm633, %v9286, 0
  %9329 = vmatpush.bf16.msra.mxu0 0
  %9330 = vmatpush.bf16.msra.mxu0 0
  %9331 = vmatpush.bf16.msra.mxu0 0
  %9332 = vmatpush.bf16.msra.mxu0 0
  %9333 = vmatpush.bf16.msra.mxu0 %v9318
  %9334 = vmatpush.bf16.msra.mxu0 %v9317
  %9335 = vmatpush.bf16.msra.mxu0 %v9316
  %9336 = vmatpush.bf16.msra.mxu0 %v9315
  %9337 = vmatmul.bf16.gmra.mxu0 %v9324
  %v9338 = vpop.f32.mrf.mxu0
  %v9339 = vadd.f32 %v9297, %v9338
  %v9340 = vpop.f32.mrf.mxu0
  %v9341 = vadd.f32 %v9297, %v9340
  %9342 = vmatmul.bf16.gmra.mxu0 %v9327
  %v9343 = vpop.f32.mrf.mxu0
  %v9344 = vadd.f32 %v9297, %v9343
  %v9345 = vpop.f32.mrf.mxu0
  %v9346 = vadd.f32 %v9297, %v9345
  %9347 = vdwg.mxu0
  %9348 = vmax.xlane.f32.xlu0 %v9339
  %v9349 = vpop.xlane.xlu0 %9348
  %9350 = vmax.xlane.f32.xlu0 %v9341
  %v9351 = vpop.xlane.xlu0 %9350
  %9352 = vmax.xlane.f32.xlu0 %v9344
  %v9353 = vpop.xlane.xlu0 %9352
  %9354 = vmax.xlane.f32.xlu0 %v9346
  %v9355 = vpop.xlane.xlu0 %9354
  %v9356 = vsub.f32 %v9339, %v9349
  %v9357 = vsub.f32 %v9341, %v9351
  %v9358 = vsub.f32 %v9344, %v9353
  %v9359 = vsub.f32 %v9346, %v9355
  %v9360 = vmul.f32 %v9356, 1.442695
  %v9361 = vpow.pop %v9360
  %v9362 = vmul.f32 %v9357, 1.442695
  %v9363 = vpow.pop %v9362
  %v9364 = vmul.f32 %v9358, 1.442695
  %v9365 = vpow.pop %v9364
  %v9366 = vmul.f32 %v9359, 1.442695
  %v9367 = vpow.pop %v9366
  %9368 = vadd.xlane.f32.xlu0 %v9361
  %v9369 = vpop.xlane.xlu0 %9368
  %9370 = vadd.xlane.f32.xlu0 %v9363
  %v9371 = vpop.xlane.xlu0 %9370
  %9372 = vadd.xlane.f32.xlu0 %v9365
  %v9373 = vpop.xlane.xlu0 %9372
  %9374 = vadd.xlane.f32.xlu0 %v9367
  %v9375 = vpop.xlane.xlu0 %9374
  %v9376 = vlog2.pop %v9369
  %v9377 = vmul.f32 %v9376, 0.6931472
  %v9378 = vlog2.pop %v9371
  %v9379 = vmul.f32 %v9378, 0.6931472
  %v9380 = vlog2.pop %v9373
  %v9381 = vmul.f32 %v9380, 0.6931472
  %v9382 = vlog2.pop %v9375
  %v9383 = vmul.f32 %v9382, 0.6931472
  %v9384 = vsub.f32 %v9356, %v9377
  %v9385 = vsub.f32 %v9357, %v9379
  %v9386 = vsub.f32 %v9358, %v9381
  %v9387 = vsub.f32 %v9359, %v9383
  %9388 = vst [vmem:[%s9] sm:$0xff] %v9384
  %9389 = vst [vmem:[%s9 + $0x8] sm:$0xff] %v9385
  %9390 = vst [vmem:[%s9 + $0x10] sm:$0xff] %v9386
  %9391 = vst [vmem:[%s9 + $0x18] sm:$0xff] %v9387
  // Predicated region
  $region38: #{smallnet_forward.1} parent=0 // pred_check
    _
  $region39: #{smallnet_forward.1} parent=0 // pred_check_branch
    %9393 = sbr.rel (0) target = $region41
  $region40: #{smallnet_forward.1} parent=0 // pred_region
    _
  $region41: #{smallnet_forward.1} parent=0 // pred_fallthru
    _
  // Predicated region
  $region42: #{smallnet_forward.1} parent=0 // pred_check
    _
  $region43: #{smallnet_forward.1} parent=0 // pred_check_branch
    %9395 = sbr.rel (0) target = $region45
  $region44: #{smallnet_forward.1} parent=0 // pred_region
    _
  $region45: #{smallnet_forward.1} parent=0 // pred_fallthru
    _

</llo_original>
